<compile_context>
chip_gen: v7x
topology: tpu7x:2x2x1
jax: 0.10.0
libtpu: 0.0.40
codegen_flags: <defaults>
</compile_context>

<pallas_src>
import jax
import jax.numpy as jnp
from jax.experimental import pallas as pl
from jax.experimental.pallas import tpu as pltpu

COMPUTE_DTYPE = jnp.bfloat16   # MXU operand dtype; all accumulation/state is f32.


# --------------------------------------------------------------------------
# Fused bidirectional LSTM layer kernel (one time block per grid step)
# --------------------------------------------------------------------------
def bilstm_block_kernel(gxf_ref, gxb_ref, whf_ref, whb_ref,
                        outf_ref, outb_ref, maxf_ref, maxb_ref,
                        hf, cf, hb, cb):
    """Grid axis 0 = time blocks (sequential). At grid step tb the forward
    direction consumes time block tb (left->right) and the backward direction
    consumes time block (nt-1-tb) (right->left).

      gxf_ref/gxb_ref : (B, T_BLK, 4H) f32   precomputed x@W_ih + b per direction
      whf_ref/whb_ref : (H, 4H)        bf16  recurrent weights
      outf_ref/outb_ref : (B, T_BLK, H) f32  hidden outputs (batch-first)
      maxf_ref/maxb_ref : (B, H) f32         running max over sequence (accumulator)
      hf, cf, hb, cb    : (B, H) f32         recurrent state scratch
    """
    tb = pl.program_id(0)
    t_blk = gxf_ref.shape[1]
    H = hf.shape[1]

    @pl.when(tb == 0)
    def _init():
        zeros = jnp.zeros(hf.shape, hf.dtype)
        hf[...] = zeros
        cf[...] = zeros
        hb[...] = zeros
        cb[...] = zeros
        neg_inf = jnp.full(maxf_ref.shape, -jnp.inf, maxf_ref.dtype)
        maxf_ref[...] = neg_inf
        maxb_ref[...] = neg_inf

    w_f = whf_ref[...]          # (H, 4H) bf16, loaded once per grid step
    w_b = whb_ref[...]

    def cell(gates_x, h, c, w_hh):
        # Recurrent matmul on the MXU (bf16 operands, f32 accumulate).
        gates = jnp.dot(h.astype(w_hh.dtype), w_hh,
                        preferred_element_type=jnp.float32) + gates_x
        # Gate math in f32 (gate slices are static lane slices; the rotates ride
        # the XLU slot and are not the binding unit here).
        i = jax.nn.sigmoid(gates[:, 0 * H:1 * H])
        f = jax.nn.sigmoid(gates[:, 1 * H:2 * H])
        g = jnp.tanh(gates[:, 2 * H:3 * H])
        o = jax.nn.sigmoid(gates[:, 3 * H:4 * H])
        c_new = f * c + i * g
        h_new = o * jnp.tanh(c_new)
        return h_new, c_new

    # Statically unrolled time-block loop (small fixed trip count).
    for i in range(t_blk):
        # forward: step i of this block
        hf_new, cf_new = cell(gxf_ref[:, i, :], hf[...], cf[...], w_f)
        hf[...] = hf_new
        cf[...] = cf_new
        outf_ref[:, i, :] = hf_new
        # backward: step (t_blk-1-i) of its (time-reversed) block
        rb = t_blk - 1 - i
        hb_new, cb_new = cell(gxb_ref[:, rb, :], hb[...], cb[...], w_b)
        hb[...] = hb_new
        cb[...] = cb_new
        outb_ref[:, rb, :] = hb_new
        # fused running max over the sequence (cheap VPU filler)
        maxf_ref[...] = jnp.maximum(maxf_ref[...], hf_new)
        maxb_ref[...] = jnp.maximum(maxb_ref[...], hb_new)


# --------------------------------------------------------------------------
# Wrappers
# --------------------------------------------------------------------------
def _pick_t_blk(S, target=8):
    """Largest time block <= target that tiles S with 8-aligned blocks."""
    if S % 8 != 0:
        return S                      # single block covering the whole sequence
    t = max(8, min(target, S) - (min(target, S) % 8))
    while S % t != 0:
        t -= 8
    return t


def input_gates(x_parts, w_ih, b):
    """Hoisted input projection: (sum_p x_p @ W_ih[rows_p]) + b -> (B, S, 4H) f32.

    x_parts is a tuple of (B, S, d_p) arrays whose feature-concat is the layer
    input; splitting W_ih by rows avoids materializing the concatenated
    activations in HBM for inner layers."""
    off = 0
    acc = None
    for xp in x_parts:
        d = xp.shape[-1]
        w = w_ih[off:off + d]
        part = jnp.einsum('bsd,dg->bsg',
                          xp.astype(COMPUTE_DTYPE), w.astype(COMPUTE_DTYPE),
                          preferred_element_type=jnp.float32)
        acc = part if acc is None else acc + part
        off += d
    return acc + b[None, None, :]


def bilstm_layer(gx_f, gx_b, w_hh_f, w_hh_b):
    """One fused bidirectional LSTM layer over precomputed input gates.

    Returns out_f, out_b : (B, S, H) and max_f, max_b : (B, H)."""
    B, S, G = gx_f.shape
    H = G // 4
    t_blk = _pick_t_blk(S)
    nt = S // t_blk

    grid_spec = pltpu.PrefetchScalarGridSpec(
        num_scalar_prefetch=0,
        grid=(nt,),
        in_specs=[
            pl.BlockSpec((B, t_blk, G), lambda tb: (0, tb, 0)),
            pl.BlockSpec((B, t_blk, G), lambda tb: (0, nt - 1 - tb, 0)),   # reversed
            pl.BlockSpec((H, G), lambda tb: (0, 0)),
            pl.BlockSpec((H, G), lambda tb: (0, 0)),
        ],
        out_specs=[
            pl.BlockSpec((B, t_blk, H), lambda tb: (0, tb, 0)),
            pl.BlockSpec((B, t_blk, H), lambda tb: (0, nt - 1 - tb, 0)),   # reversed
            pl.BlockSpec((B, H), lambda tb: (0, 0)),    # running-max accumulators
            pl.BlockSpec((B, H), lambda tb: (0, 0)),
        ],
        scratch_shapes=[pltpu.VMEM((B, H), jnp.float32) for _ in range(4)],
    )

    return pl.pallas_call(
        bilstm_block_kernel,
        out_shape=(
            jax.ShapeDtypeStruct((B, S, H), jnp.float32),
            jax.ShapeDtypeStruct((B, S, H), jnp.float32),
            jax.ShapeDtypeStruct((B, H), jnp.float32),
            jax.ShapeDtypeStruct((B, H), jnp.float32),
        ),
        grid_spec=grid_spec,
        compiler_params=pltpu.CompilerParams(
            dimension_semantics=("arbitrary",),        # recurrence is sequential
            vmem_limit_bytes=32 * 1024 * 1024,         # explicit budget (v7x-safe)
        ),
    )(gx_f, gx_b,
      w_hh_f.astype(COMPUTE_DTYPE), w_hh_b.astype(COMPUTE_DTYPE))


@jax.jit
def base_lstm_encoder_forward(x, params):
    """x: (B, S, d_hidden) batch_first. Returns (max_hidden_output (B, d_hidden),
    hidden_output (B, S, d_hidden)) like BaseLSTMEncoder.forward."""
    x_parts = (x,)
    out_f = out_b = max_f = max_b = None
    for p in params:                                   # 2 layers
        gx_f = input_gates(x_parts, p['w_ih_f'], p['b_f'])
        gx_b = input_gates(x_parts, p['w_ih_b'], p['b_b'])
        out_f, out_b, max_f, max_b = bilstm_layer(gx_f, gx_b,
                                                  p['w_hh_f'], p['w_hh_b'])
        x_parts = (out_f, out_b)       # next layer consumes [fwd | bwd] halves
    hidden_output = jnp.concatenate([out_f, out_b], axis=-1)     # (B, S, d_hidden)
    max_hidden = jnp.concatenate([max_f, max_b], axis=-1)        # (B, d_hidden)
    return max_hidden, hidden_output


# --------------------------------------------------------------------------
# Parameter init (PyTorch-style uniform(-1/sqrt(H), 1/sqrt(H)))
# Weights stored transposed vs PyTorch: (in_features, 4H) / (H, 4H).
# Gate order matches PyTorch: i, f, g, o. bias_ih + bias_hh folded.
# --------------------------------------------------------------------------
def init_params(key, d_hidden, n_layers):
    H = d_hidden // 2
    bound = 1.0 / (H ** 0.5)
    params = []
    for _ in range(n_layers):
        d_in = d_hidden          # 2H == d_hidden for every layer (bidirectional)
        layer = {}
        for tag in ('f', 'b'):
            key, k1, k2, k3, k4 = jax.random.split(key, 5)
            layer['w_ih_' + tag] = jax.random.uniform(
                k1, (d_in, 4 * H), jnp.float32, -bound, bound)
            layer['w_hh_' + tag] = jax.random.uniform(
                k2, (H, 4 * H), jnp.float32, -bound, bound)
            b_ih = jax.random.uniform(k3, (4 * H,), jnp.float32, -bound, bound)
            b_hh = jax.random.uniform(k4, (4 * H,), jnp.float32, -bound, bound)
            layer['b_' + tag] = b_ih + b_hh
        params.append(layer)
    return params


# --------------------------------------------------------------------------
# Pure-JAX reference (lax.scan, same precision policy) for correctness check
# --------------------------------------------------------------------------
def _ref_dir(gx, w_hh, reverse):
    B, S, G = gx.shape
    H = G // 4
    w = w_hh.astype(COMPUTE_DTYPE)

    def step(carry, g_x):
        h, c = carry
        gates = jnp.dot(h.astype(w.dtype), w,
                        preferred_element_type=jnp.float32) + g_x
        i = jax.nn.sigmoid(gates[:, 0 * H:1 * H])
        f = jax.nn.sigmoid(gates[:, 1 * H:2 * H])
        g = jnp.tanh(gates[:, 2 * H:3 * H])
        o = jax.nn.sigmoid(gates[:, 3 * H:4 * H])
        c = f * c + i * g
        h = o * jnp.tanh(c)
        return (h, c), h

    init = (jnp.zeros((B, H), jnp.float32), jnp.zeros((B, H), jnp.float32))
    _, hs = jax.lax.scan(step, init, jnp.swapaxes(gx, 0, 1), reverse=reverse)
    return jnp.swapaxes(hs, 0, 1)     # (B, S, H)


def ref_forward(x, params):
    x_parts = (x,)
    out_f = out_b = None
    for p in params:
        gx_f = input_gates(x_parts, p['w_ih_f'], p['b_f'])
        gx_b = input_gates(x_parts, p['w_ih_b'], p['b_b'])
        out_f = _ref_dir(gx_f, p['w_hh_f'], reverse=False)
        out_b = _ref_dir(gx_b, p['w_hh_b'], reverse=True)
        x_parts = (out_f, out_b)
    hidden = jnp.concatenate([out_f, out_b], axis=-1)
    return jnp.max(hidden, axis=1), hidden


# --------------------------------------------------------------------------
if __name__ == "__main__":
    B, S, D_HIDDEN, N_LAYERS = 2, 16, 32, 2   # small shapes; d_hidden=32 -> H=16/dir

    key = jax.random.PRNGKey(0)
    kx, kp = jax.random.split(key)
    x = jax.random.normal(kx, (B, S, D_HIDDEN), jnp.float32)
    params = init_params(kp, D_HIDDEN, N_LAYERS)

    max_h, hidden = base_lstm_encoder_forward(x, params)
    jax.block_until_ready((max_h, hidden))

    assert max_h.shape == (B, D_HIDDEN)
    assert hidden.shape == (B, S, D_HIDDEN)

    # sanity check against pure-JAX lax.scan reference (same precision policy)
    ref_max, ref_hidden = ref_forward(x, params)
    assert jnp.allclose(hidden, ref_hidden, atol=5e-3, rtol=5e-3), \
        float(jnp.max(jnp.abs(hidden - ref_hidden)))
    assert jnp.allclose(max_h, ref_max, atol=5e-3, rtol=5e-3)

    print("KERNEL_OK")
</pallas_src>

<mosaic_0001>
module attributes {stable_mosaic.version = 11 : i64} {
  func.func @bilstm_block_kernel(%arg0: i32, %arg1: memref<2x8x64xf32, #tpu.memory_space<vmem>>, %arg2: memref<2x8x64xf32, #tpu.memory_space<vmem>>, %arg3: memref<16x64xbf16, #tpu.memory_space<vmem>>, %arg4: memref<16x64xbf16, #tpu.memory_space<vmem>>, %arg5: memref<2x8x16xf32, #tpu.memory_space<vmem>>, %arg6: memref<2x8x16xf32, #tpu.memory_space<vmem>>, %arg7: memref<2x16xf32, #tpu.memory_space<vmem>>, %arg8: memref<2x16xf32, #tpu.memory_space<vmem>>, %arg9: memref<2x16xf32, #tpu.memory_space<vmem>>, %arg10: memref<2x16xf32, #tpu.memory_space<vmem>>, %arg11: memref<2x16xf32, #tpu.memory_space<vmem>>, %arg12: memref<2x16xf32, #tpu.memory_space<vmem>>) attributes {dimension_semantics = [#tpu.dimension_semantics<arbitrary>], iteration_bounds = array<i64: 2>, scalar_prefetch = 0 : i64, scratch_operands = 4 : i64, tpu.core_type = #tpu.core_type<tc>, window_params = [{transform_indices = @transform_0, window_bounds = array<i64: 2, 8, 64>}, {transform_indices = @transform_1, window_bounds = array<i64: 2, 8, 64>}, {pipeline_mode = #tpu.pipeline_mode<synchronous>, transform_indices = @transform_2, window_bounds = array<i64: 16, 64>}, {pipeline_mode = #tpu.pipeline_mode<synchronous>, transform_indices = @transform_3, window_bounds = array<i64: 16, 64>}, {transform_indices = @transform_4, window_bounds = array<i64: 2, 8, 16>}, {transform_indices = @transform_5, window_bounds = array<i64: 2, 8, 16>}, {pipeline_mode = #tpu.pipeline_mode<synchronous>, transform_indices = @transform_6, window_bounds = array<i64: 2, 16>}, {pipeline_mode = #tpu.pipeline_mode<synchronous>, transform_indices = @transform_7, window_bounds = array<i64: 2, 16>}]} {
    %c0_i32 = arith.constant 0 : i32
    %0 = arith.cmpi eq, %arg0, %c0_i32 : i32
    %1 = arith.extui %0 : i1 to i32
    %c0_i32_0 = arith.constant 0 : i32
    %2 = arith.cmpi ne, %1, %c0_i32_0 : i32
    scf.if %2 {
      %cst_348 = arith.constant 0.000000e+00 : f32
      %645 = vector.broadcast %cst_348 : f32 to vector<2x16xf32>
      %c0_349 = arith.constant 0 : index
      %c0_350 = arith.constant 0 : index
      %646 = vector.load %arg9[%c0_349, %c0_350] : memref<2x16xf32, #tpu.memory_space<vmem>>, vector<2x16xf32>
      tpu.vector_store %arg9[%c0_349, %c0_350], %645 {strides = array<i32>} : memref<2x16xf32, #tpu.memory_space<vmem>>, vector<2x16xf32>,
      %c0_351 = arith.constant 0 : index
      %c0_352 = arith.constant 0 : index
      %647 = vector.load %arg10[%c0_351, %c0_352] : memref<2x16xf32, #tpu.memory_space<vmem>>, vector<2x16xf32>
      tpu.vector_store %arg10[%c0_351, %c0_352], %645 {strides = array<i32>} : memref<2x16xf32, #tpu.memory_space<vmem>>, vector<2x16xf32>,
      %c0_353 = arith.constant 0 : index
      %c0_354 = arith.constant 0 : index
      %648 = vector.load %arg11[%c0_353, %c0_354] : memref<2x16xf32, #tpu.memory_space<vmem>>, vector<2x16xf32>
      tpu.vector_store %arg11[%c0_353, %c0_354], %645 {strides = array<i32>} : memref<2x16xf32, #tpu.memory_space<vmem>>, vector<2x16xf32>,
      %c0_355 = arith.constant 0 : index
      %c0_356 = arith.constant 0 : index
      %649 = vector.load %arg12[%c0_355, %c0_356] : memref<2x16xf32, #tpu.memory_space<vmem>>, vector<2x16xf32>
      tpu.vector_store %arg12[%c0_355, %c0_356], %645 {strides = array<i32>} : memref<2x16xf32, #tpu.memory_space<vmem>>, vector<2x16xf32>,
      %cst_357 = arith.constant 0xFF800000 : f32
      %650 = vector.broadcast %cst_357 : f32 to vector<2x16xf32>
      %c0_358 = arith.constant 0 : index
      %c0_359 = arith.constant 0 : index
      %651 = vector.load %arg7[%c0_358, %c0_359] : memref<2x16xf32, #tpu.memory_space<vmem>>, vector<2x16xf32>
      tpu.vector_store %arg7[%c0_358, %c0_359], %650 {strides = array<i32>} : memref<2x16xf32, #tpu.memory_space<vmem>>, vector<2x16xf32>,
      %c0_360 = arith.constant 0 : index
      %c0_361 = arith.constant 0 : index
      %652 = vector.load %arg8[%c0_360, %c0_361] : memref<2x16xf32, #tpu.memory_space<vmem>>, vector<2x16xf32>
      tpu.vector_store %arg8[%c0_360, %c0_361], %650 {strides = array<i32>} : memref<2x16xf32, #tpu.memory_space<vmem>>, vector<2x16xf32>,
    } else {
    }
    %c0 = arith.constant 0 : index
    %c0_1 = arith.constant 0 : index
    %3 = vector.load %arg3[%c0, %c0_1] : memref<16x64xbf16, #tpu.memory_space<vmem>>, vector<16x64xbf16>
    %c0_2 = arith.constant 0 : index
    %c0_3 = arith.constant 0 : index
    %4 = vector.load %arg4[%c0_2, %c0_3] : memref<16x64xbf16, #tpu.memory_space<vmem>>, vector<16x64xbf16>
    %c0_4 = arith.constant 0 : index
    %c0_5 = arith.constant 0 : index
    %c0_6 = arith.constant 0 : index
    %5 = vector.load %arg1[%c0_4, %c0_5, %c0_6] : memref<2x8x64xf32, #tpu.memory_space<vmem>>, vector<2x1x64xf32>
    %6 = vector.shape_cast %5 : vector<2x1x64xf32> to vector<2x64xf32>
    %c0_7 = arith.constant 0 : index
    %c0_8 = arith.constant 0 : index
    %7 = vector.load %arg9[%c0_7, %c0_8] : memref<2x16xf32, #tpu.memory_space<vmem>>, vector<2x16xf32>
    %c0_9 = arith.constant 0 : index
    %c0_10 = arith.constant 0 : index
    %8 = vector.load %arg10[%c0_9, %c0_10] : memref<2x16xf32, #tpu.memory_space<vmem>>, vector<2x16xf32>
    %9 = arith.truncf %7 : vector<2x16xf32> to vector<2x16xbf16>
    %cst = arith.constant dense<0.000000e+00> : vector<2x64xf32>
    %10 = tpu.matmul %9, %3, %cst {dimension_numbers = #tpu.dot_dimension_numbers<[1], [0], [0], [1], [0, 0, 1, 1], [], []>} : vector<2x16xbf16>, vector<16x64xbf16>, vector<2x64xf32> -> vector<2x64xf32>
    %11 = arith.addf %10, %6 : vector<2x64xf32>
    %12 = vector.extract_strided_slice %11 {offsets = [0, 0], sizes = [2, 16], strides = [1, 1]} : vector<2x64xf32> to vector<2x16xf32>
    %13 = arith.negf %12 : vector<2x16xf32>
    %14 = math.exp %13 : vector<2x16xf32>
    %cst_11 = arith.constant 1.000000e+00 : f32
    %15 = vector.broadcast %cst_11 : f32 to vector<2x16xf32>
    %16 = arith.addf %15, %14 : vector<2x16xf32>
    %17 = arith.divf %15, %16 : vector<2x16xf32>
    %18 = vector.extract_strided_slice %11 {offsets = [0, 16], sizes = [2, 16], strides = [1, 1]} : vector<2x64xf32> to vector<2x16xf32>
    %19 = arith.negf %18 : vector<2x16xf32>
    %20 = math.exp %19 : vector<2x16xf32>
    %cst_12 = arith.constant 1.000000e+00 : f32
    %21 = vector.broadcast %cst_12 : f32 to vector<2x16xf32>
    %22 = arith.addf %21, %20 : vector<2x16xf32>
    %23 = arith.divf %21, %22 : vector<2x16xf32>
    %24 = vector.extract_strided_slice %11 {offsets = [0, 32], sizes = [2, 16], strides = [1, 1]} : vector<2x64xf32> to vector<2x16xf32>
    %25 = math.tanh %24 : vector<2x16xf32>
    %26 = vector.extract_strided_slice %11 {offsets = [0, 48], sizes = [2, 16], strides = [1, 1]} : vector<2x64xf32> to vector<2x16xf32>
    %27 = arith.negf %26 : vector<2x16xf32>
    %28 = math.exp %27 : vector<2x16xf32>
    %cst_13 = arith.constant 1.000000e+00 : f32
    %29 = vector.broadcast %cst_13 : f32 to vector<2x16xf32>
    %30 = arith.addf %29, %28 : vector<2x16xf32>
    %31 = arith.divf %29, %30 : vector<2x16xf32>
    %32 = arith.mulf %23, %8 : vector<2x16xf32>
    %33 = arith.mulf %17, %25 : vector<2x16xf32>
    %34 = arith.addf %32, %33 : vector<2x16xf32>
    %35 = math.tanh %34 : vector<2x16xf32>
    %36 = arith.mulf %31, %35 : vector<2x16xf32>
    %c0_14 = arith.constant 0 : index
    %c0_15 = arith.constant 0 : index
    %37 = vector.load %arg9[%c0_14, %c0_15] : memref<2x16xf32, #tpu.memory_space<vmem>>, vector<2x16xf32>
    tpu.vector_store %arg9[%c0_14, %c0_15], %36 {strides = array<i32>} : memref<2x16xf32, #tpu.memory_space<vmem>>, vector<2x16xf32>,
    %c0_16 = arith.constant 0 : index
    %c0_17 = arith.constant 0 : index
    %38 = vector.load %arg10[%c0_16, %c0_17] : memref<2x16xf32, #tpu.memory_space<vmem>>, vector<2x16xf32>
    tpu.vector_store %arg10[%c0_16, %c0_17], %34 {strides = array<i32>} : memref<2x16xf32, #tpu.memory_space<vmem>>, vector<2x16xf32>,
    %c0_18 = arith.constant 0 : index
    %c0_19 = arith.constant 0 : index
    %c0_20 = arith.constant 0 : index
    %39 = vector.load %arg5[%c0_18, %c0_19, %c0_20] : memref<2x8x16xf32, #tpu.memory_space<vmem>>, vector<2x1x16xf32>
    %40 = vector.shape_cast %39 : vector<2x1x16xf32> to vector<2x16xf32>
    %41 = vector.shape_cast %36 : vector<2x16xf32> to vector<2x1x16xf32>
    tpu.vector_store %arg5[%c0_18, %c0_19, %c0_20], %41 {strides = array<i32>} : memref<2x8x16xf32, #tpu.memory_space<vmem>>, vector<2x1x16xf32>,
    %c0_21 = arith.constant 0 : index
    %c7 = arith.constant 7 : index
    %c0_22 = arith.constant 0 : index
    %42 = vector.load %arg2[%c0_21, %c7, %c0_22] : memref<2x8x64xf32, #tpu.memory_space<vmem>>, vector<2x1x64xf32>
    %43 = vector.shape_cast %42 : vector<2x1x64xf32> to vector<2x64xf32>
    %c0_23 = arith.constant 0 : index
    %c0_24 = arith.constant 0 : index
    %44 = vector.load %arg11[%c0_23, %c0_24] : memref<2x16xf32, #tpu.memory_space<vmem>>, vector<2x16xf32>
    %c0_25 = arith.constant 0 : index
    %c0_26 = arith.constant 0 : index
    %45 = vector.load %arg12[%c0_25, %c0_26] : memref<2x16xf32, #tpu.memory_space<vmem>>, vector<2x16xf32>
    %46 = arith.truncf %44 : vector<2x16xf32> to vector<2x16xbf16>
    %cst_27 = arith.constant dense<0.000000e+00> : vector<2x64xf32>
    %47 = tpu.matmul %46, %4, %cst_27 {dimension_numbers = #tpu.dot_dimension_numbers<[1], [0], [0], [1], [0, 0, 1, 1], [], []>} : vector<2x16xbf16>, vector<16x64xbf16>, vector<2x64xf32> -> vector<2x64xf32>
    %48 = arith.addf %47, %43 : vector<2x64xf32>
    %49 = vector.extract_strided_slice %48 {offsets = [0, 0], sizes = [2, 16], strides = [1, 1]} : vector<2x64xf32> to vector<2x16xf32>
    %50 = arith.negf %49 : vector<2x16xf32>
    %51 = math.exp %50 : vector<2x16xf32>
    %cst_28 = arith.constant 1.000000e+00 : f32
    %52 = vector.broadcast %cst_28 : f32 to vector<2x16xf32>
    %53 = arith.addf %52, %51 : vector<2x16xf32>
    %54 = arith.divf %52, %53 : vector<2x16xf32>
    %55 = vector.extract_strided_slice %48 {offsets = [0, 16], sizes = [2, 16], strides = [1, 1]} : vector<2x64xf32> to vector<2x16xf32>
    %56 = arith.negf %55 : vector<2x16xf32>
    %57 = math.exp %56 : vector<2x16xf32>
    %cst_29 = arith.constant 1.000000e+00 : f32
    %58 = vector.broadcast %cst_29 : f32 to vector<2x16xf32>
    %59 = arith.addf %58, %57 : vector<2x16xf32>
    %60 = arith.divf %58, %59 : vector<2x16xf32>
    %61 = vector.extract_strided_slice %48 {offsets = [0, 32], sizes = [2, 16], strides = [1, 1]} : vector<2x64xf32> to vector<2x16xf32>
    %62 = math.tanh %61 : vector<2x16xf32>
    %63 = vector.extract_strided_slice %48 {offsets = [0, 48], sizes = [2, 16], strides = [1, 1]} : vector<2x64xf32> to vector<2x16xf32>
    %64 = arith.negf %63 : vector<2x16xf32>
    %65 = math.exp %64 : vector<2x16xf32>
    %cst_30 = arith.constant 1.000000e+00 : f32
    %66 = vector.broadcast %cst_30 : f32 to vector<2x16xf32>
    %67 = arith.addf %66, %65 : vector<2x16xf32>
    %68 = arith.divf %66, %67 : vector<2x16xf32>
    %69 = arith.mulf %60, %45 : vector<2x16xf32>
    %70 = arith.mulf %54, %62 : vector<2x16xf32>
    %71 = arith.addf %69, %70 : vector<2x16xf32>
    %72 = math.tanh %71 : vector<2x16xf32>
    %73 = arith.mulf %68, %72 : vector<2x16xf32>
    %c0_31 = arith.constant 0 : index
    %c0_32 = arith.constant 0 : index
    %74 = vector.load %arg11[%c0_31, %c0_32] : memref<2x16xf32, #tpu.memory_space<vmem>>, vector<2x16xf32>
    tpu.vector_store %arg11[%c0_31, %c0_32], %73 {strides = array<i32>} : memref<2x16xf32, #tpu.memory_space<vmem>>, vector<2x16xf32>,
    %c0_33 = arith.constant 0 : index
    %c0_34 = arith.constant 0 : index
    %75 = vector.load %arg12[%c0_33, %c0_34] : memref<2x16xf32, #tpu.memory_space<vmem>>, vector<2x16xf32>
    tpu.vector_store %arg12[%c0_33, %c0_34], %71 {strides = array<i32>} : memref<2x16xf32, #tpu.memory_space<vmem>>, vector<2x16xf32>,
    %c0_35 = arith.constant 0 : index
    %c7_36 = arith.constant 7 : index
    %c0_37 = arith.constant 0 : index
    %76 = vector.load %arg6[%c0_35, %c7_36, %c0_37] : memref<2x8x16xf32, #tpu.memory_space<vmem>>, vector<2x1x16xf32>
    %77 = vector.shape_cast %76 : vector<2x1x16xf32> to vector<2x16xf32>
    %78 = vector.shape_cast %73 : vector<2x16xf32> to vector<2x1x16xf32>
    tpu.vector_store %arg6[%c0_35, %c7_36, %c0_37], %78 {strides = array<i32>} : memref<2x8x16xf32, #tpu.memory_space<vmem>>, vector<2x1x16xf32>,
    %c0_38 = arith.constant 0 : index
    %c0_39 = arith.constant 0 : index
    %79 = vector.load %arg7[%c0_38, %c0_39] : memref<2x16xf32, #tpu.memory_space<vmem>>, vector<2x16xf32>
    %80 = arith.maximumf %79, %36 : vector<2x16xf32>
    %c0_40 = arith.constant 0 : index
    %c0_41 = arith.constant 0 : index
    %81 = vector.load %arg7[%c0_40, %c0_41] : memref<2x16xf32, #tpu.memory_space<vmem>>, vector<2x16xf32>
    tpu.vector_store %arg7[%c0_40, %c0_41], %80 {strides = array<i32>} : memref<2x16xf32, #tpu.memory_space<vmem>>, vector<2x16xf32>,
    %c0_42 = arith.constant 0 : index
    %c0_43 = arith.constant 0 : index
    %82 = vector.load %arg8[%c0_42, %c0_43] : memref<2x16xf32, #tpu.memory_space<vmem>>, vector<2x16xf32>
    %83 = arith.maximumf %82, %73 : vector<2x16xf32>
    %c0_44 = arith.constant 0 : index
    %c0_45 = arith.constant 0 : index
    %84 = vector.load %arg8[%c0_44, %c0_45] : memref<2x16xf32, #tpu.memory_space<vmem>>, vector<2x16xf32>
    tpu.vector_store %arg8[%c0_44, %c0_45], %83 {strides = array<i32>} : memref<2x16xf32, #tpu.memory_space<vmem>>, vector<2x16xf32>,
    %c0_46 = arith.constant 0 : index
    %c1 = arith.constant 1 : index
    %c0_47 = arith.constant 0 : index
    %85 = vector.load %arg1[%c0_46, %c1, %c0_47] : memref<2x8x64xf32, #tpu.memory_space<vmem>>, vector<2x1x64xf32>
    %86 = vector.shape_cast %85 : vector<2x1x64xf32> to vector<2x64xf32>
    %c0_48 = arith.constant 0 : index
    %c0_49 = arith.constant 0 : index
    %87 = vector.load %arg9[%c0_48, %c0_49] : memref<2x16xf32, #tpu.memory_space<vmem>>, vector<2x16xf32>
    %c0_50 = arith.constant 0 : index
    %c0_51 = arith.constant 0 : index
    %88 = vector.load %arg10[%c0_50, %c0_51] : memref<2x16xf32, #tpu.memory_space<vmem>>, vector<2x16xf32>
    %89 = arith.truncf %87 : vector<2x16xf32> to vector<2x16xbf16>
    %cst_52 = arith.constant dense<0.000000e+00> : vector<2x64xf32>
    %90 = tpu.matmul %89, %3, %cst_52 {dimension_numbers = #tpu.dot_dimension_numbers<[1], [0], [0], [1], [0, 0, 1, 1], [], []>} : vector<2x16xbf16>, vector<16x64xbf16>, vector<2x64xf32> -> vector<2x64xf32>
    %91 = arith.addf %90, %86 : vector<2x64xf32>
    %92 = vector.extract_strided_slice %91 {offsets = [0, 0], sizes = [2, 16], strides = [1, 1]} : vector<2x64xf32> to vector<2x16xf32>
    %93 = arith.negf %92 : vector<2x16xf32>
    %94 = math.exp %93 : vector<2x16xf32>
    %cst_53 = arith.constant 1.000000e+00 : f32
    %95 = vector.broadcast %cst_53 : f32 to vector<2x16xf32>
    %96 = arith.addf %95, %94 : vector<2x16xf32>
    %97 = arith.divf %95, %96 : vector<2x16xf32>
    %98 = vector.extract_strided_slice %91 {offsets = [0, 16], sizes = [2, 16], strides = [1, 1]} : vector<2x64xf32> to vector<2x16xf32>
    %99 = arith.negf %98 : vector<2x16xf32>
    %100 = math.exp %99 : vector<2x16xf32>
    %cst_54 = arith.constant 1.000000e+00 : f32
    %101 = vector.broadcast %cst_54 : f32 to vector<2x16xf32>
    %102 = arith.addf %101, %100 : vector<2x16xf32>
    %103 = arith.divf %101, %102 : vector<2x16xf32>
    %104 = vector.extract_strided_slice %91 {offsets = [0, 32], sizes = [2, 16], strides = [1, 1]} : vector<2x64xf32> to vector<2x16xf32>
    %105 = math.tanh %104 : vector<2x16xf32>
    %106 = vector.extract_strided_slice %91 {offsets = [0, 48], sizes = [2, 16], strides = [1, 1]} : vector<2x64xf32> to vector<2x16xf32>
    %107 = arith.negf %106 : vector<2x16xf32>
    %108 = math.exp %107 : vector<2x16xf32>
    %cst_55 = arith.constant 1.000000e+00 : f32
    %109 = vector.broadcast %cst_55 : f32 to vector<2x16xf32>
    %110 = arith.addf %109, %108 : vector<2x16xf32>
    %111 = arith.divf %109, %110 : vector<2x16xf32>
    %112 = arith.mulf %103, %88 : vector<2x16xf32>
    %113 = arith.mulf %97, %105 : vector<2x16xf32>
    %114 = arith.addf %112, %113 : vector<2x16xf32>
    %115 = math.tanh %114 : vector<2x16xf32>
    %116 = arith.mulf %111, %115 : vector<2x16xf32>
    %c0_56 = arith.constant 0 : index
    %c0_57 = arith.constant 0 : index
    %117 = vector.load %arg9[%c0_56, %c0_57] : memref<2x16xf32, #tpu.memory_space<vmem>>, vector<2x16xf32>
    tpu.vector_store %arg9[%c0_56, %c0_57], %116 {strides = array<i32>} : memref<2x16xf32, #tpu.memory_space<vmem>>, vector<2x16xf32>,
    %c0_58 = arith.constant 0 : index
    %c0_59 = arith.constant 0 : index
    %118 = vector.load %arg10[%c0_58, %c0_59] : memref<2x16xf32, #tpu.memory_space<vmem>>, vector<2x16xf32>
    tpu.vector_store %arg10[%c0_58, %c0_59], %114 {strides = array<i32>} : memref<2x16xf32, #tpu.memory_space<vmem>>, vector<2x16xf32>,
    %c0_60 = arith.constant 0 : index
    %c1_61 = arith.constant 1 : index
    %c0_62 = arith.constant 0 : index
    %119 = vector.load %arg5[%c0_60, %c1_61, %c0_62] : memref<2x8x16xf32, #tpu.memory_space<vmem>>, vector<2x1x16xf32>
    %120 = vector.shape_cast %119 : vector<2x1x16xf32> to vector<2x16xf32>
    %121 = vector.shape_cast %116 : vector<2x16xf32> to vector<2x1x16xf32>
    tpu.vector_store %arg5[%c0_60, %c1_61, %c0_62], %121 {strides = array<i32>} : memref<2x8x16xf32, #tpu.memory_space<vmem>>, vector<2x1x16xf32>,
    %c0_63 = arith.constant 0 : index
    %c6 = arith.constant 6 : index
    %c0_64 = arith.constant 0 : index
    %122 = vector.load %arg2[%c0_63, %c6, %c0_64] : memref<2x8x64xf32, #tpu.memory_space<vmem>>, vector<2x1x64xf32>
    %123 = vector.shape_cast %122 : vector<2x1x64xf32> to vector<2x64xf32>
    %c0_65 = arith.constant 0 : index
    %c0_66 = arith.constant 0 : index
    %124 = vector.load %arg11[%c0_65, %c0_66] : memref<2x16xf32, #tpu.memory_space<vmem>>, vector<2x16xf32>
    %c0_67 = arith.constant 0 : index
    %c0_68 = arith.constant 0 : index
    %125 = vector.load %arg12[%c0_67, %c0_68] : memref<2x16xf32, #tpu.memory_space<vmem>>, vector<2x16xf32>
    %126 = arith.truncf %124 : vector<2x16xf32> to vector<2x16xbf16>
    %cst_69 = arith.constant dense<0.000000e+00> : vector<2x64xf32>
    %127 = tpu.matmul %126, %4, %cst_69 {dimension_numbers = #tpu.dot_dimension_numbers<[1], [0], [0], [1], [0, 0, 1, 1], [], []>} : vector<2x16xbf16>, vector<16x64xbf16>, vector<2x64xf32> -> vector<2x64xf32>
    %128 = arith.addf %127, %123 : vector<2x64xf32>
    %129 = vector.extract_strided_slice %128 {offsets = [0, 0], sizes = [2, 16], strides = [1, 1]} : vector<2x64xf32> to vector<2x16xf32>
    %130 = arith.negf %129 : vector<2x16xf32>
    %131 = math.exp %130 : vector<2x16xf32>
    %cst_70 = arith.constant 1.000000e+00 : f32
    %132 = vector.broadcast %cst_70 : f32 to vector<2x16xf32>
    %133 = arith.addf %132, %131 : vector<2x16xf32>
    %134 = arith.divf %132, %133 : vector<2x16xf32>
    %135 = vector.extract_strided_slice %128 {offsets = [0, 16], sizes = [2, 16], strides = [1, 1]} : vector<2x64xf32> to vector<2x16xf32>
    %136 = arith.negf %135 : vector<2x16xf32>
    %137 = math.exp %136 : vector<2x16xf32>
    %cst_71 = arith.constant 1.000000e+00 : f32
    %138 = vector.broadcast %cst_71 : f32 to vector<2x16xf32>
    %139 = arith.addf %138, %137 : vector<2x16xf32>
    %140 = arith.divf %138, %139 : vector<2x16xf32>
    %141 = vector.extract_strided_slice %128 {offsets = [0, 32], sizes = [2, 16], strides = [1, 1]} : vector<2x64xf32> to vector<2x16xf32>
    %142 = math.tanh %141 : vector<2x16xf32>
    %143 = vector.extract_strided_slice %128 {offsets = [0, 48], sizes = [2, 16], strides = [1, 1]} : vector<2x64xf32> to vector<2x16xf32>
    %144 = arith.negf %143 : vector<2x16xf32>
    %145 = math.exp %144 : vector<2x16xf32>
    %cst_72 = arith.constant 1.000000e+00 : f32
    %146 = vector.broadcast %cst_72 : f32 to vector<2x16xf32>
    %147 = arith.addf %146, %145 : vector<2x16xf32>
    %148 = arith.divf %146, %147 : vector<2x16xf32>
    %149 = arith.mulf %140, %125 : vector<2x16xf32>
    %150 = arith.mulf %134, %142 : vector<2x16xf32>
    %151 = arith.addf %149, %150 : vector<2x16xf32>
    %152 = math.tanh %151 : vector<2x16xf32>
    %153 = arith.mulf %148, %152 : vector<2x16xf32>
    %c0_73 = arith.constant 0 : index
    %c0_74 = arith.constant 0 : index
    %154 = vector.load %arg11[%c0_73, %c0_74] : memref<2x16xf32, #tpu.memory_space<vmem>>, vector<2x16xf32>
    tpu.vector_store %arg11[%c0_73, %c0_74], %153 {strides = array<i32>} : memref<2x16xf32, #tpu.memory_space<vmem>>, vector<2x16xf32>,
    %c0_75 = arith.constant 0 : index
    %c0_76 = arith.constant 0 : index
    %155 = vector.load %arg12[%c0_75, %c0_76] : memref<2x16xf32, #tpu.memory_space<vmem>>, vector<2x16xf32>
    tpu.vector_store %arg12[%c0_75, %c0_76], %151 {strides = array<i32>} : memref<2x16xf32, #tpu.memory_space<vmem>>, vector<2x16xf32>,
    %c0_77 = arith.constant 0 : index
    %c6_78 = arith.constant 6 : index
    %c0_79 = arith.constant 0 : index
    %156 = vector.load %arg6[%c0_77, %c6_78, %c0_79] : memref<2x8x16xf32, #tpu.memory_space<vmem>>, vector<2x1x16xf32>
    %157 = vector.shape_cast %156 : vector<2x1x16xf32> to vector<2x16xf32>
    %158 = vector.shape_cast %153 : vector<2x16xf32> to vector<2x1x16xf32>
    tpu.vector_store %arg6[%c0_77, %c6_78, %c0_79], %158 {strides = array<i32>} : memref<2x8x16xf32, #tpu.memory_space<vmem>>, vector<2x1x16xf32>,
    %c0_80 = arith.constant 0 : index
    %c0_81 = arith.constant 0 : index
    %159 = vector.load %arg7[%c0_80, %c0_81] : memref<2x16xf32, #tpu.memory_space<vmem>>, vector<2x16xf32>
    %160 = arith.maximumf %159, %116 : vector<2x16xf32>
    %c0_82 = arith.constant 0 : index
    %c0_83 = arith.constant 0 : index
    %161 = vector.load %arg7[%c0_82, %c0_83] : memref<2x16xf32, #tpu.memory_space<vmem>>, vector<2x16xf32>
    tpu.vector_store %arg7[%c0_82, %c0_83], %160 {strides = array<i32>} : memref<2x16xf32, #tpu.memory_space<vmem>>, vector<2x16xf32>,
    %c0_84 = arith.constant 0 : index
    %c0_85 = arith.constant 0 : index
    %162 = vector.load %arg8[%c0_84, %c0_85] : memref<2x16xf32, #tpu.memory_space<vmem>>, vector<2x16xf32>
    %163 = arith.maximumf %162, %153 : vector<2x16xf32>
    %c0_86 = arith.constant 0 : index
    %c0_87 = arith.constant 0 : index
    %164 = vector.load %arg8[%c0_86, %c0_87] : memref<2x16xf32, #tpu.memory_space<vmem>>, vector<2x16xf32>
    tpu.vector_store %arg8[%c0_86, %c0_87], %163 {strides = array<i32>} : memref<2x16xf32, #tpu.memory_space<vmem>>, vector<2x16xf32>,
    %c0_88 = arith.constant 0 : index
    %c2 = arith.constant 2 : index
    %c0_89 = arith.constant 0 : index
    %165 = vector.load %arg1[%c0_88, %c2, %c0_89] : memref<2x8x64xf32, #tpu.memory_space<vmem>>, vector<2x1x64xf32>
    %166 = vector.shape_cast %165 : vector<2x1x64xf32> to vector<2x64xf32>
    %c0_90 = arith.constant 0 : index
    %c0_91 = arith.constant 0 : index
    %167 = vector.load %arg9[%c0_90, %c0_91] : memref<2x16xf32, #tpu.memory_space<vmem>>, vector<2x16xf32>
    %c0_92 = arith.constant 0 : index
    %c0_93 = arith.constant 0 : index
    %168 = vector.load %arg10[%c0_92, %c0_93] : memref<2x16xf32, #tpu.memory_space<vmem>>, vector<2x16xf32>
    %169 = arith.truncf %167 : vector<2x16xf32> to vector<2x16xbf16>
    %cst_94 = arith.constant dense<0.000000e+00> : vector<2x64xf32>
    %170 = tpu.matmul %169, %3, %cst_94 {dimension_numbers = #tpu.dot_dimension_numbers<[1], [0], [0], [1], [0, 0, 1, 1], [], []>} : vector<2x16xbf16>, vector<16x64xbf16>, vector<2x64xf32> -> vector<2x64xf32>
    %171 = arith.addf %170, %166 : vector<2x64xf32>
    %172 = vector.extract_strided_slice %171 {offsets = [0, 0], sizes = [2, 16], strides = [1, 1]} : vector<2x64xf32> to vector<2x16xf32>
    %173 = arith.negf %172 : vector<2x16xf32>
    %174 = math.exp %173 : vector<2x16xf32>
    %cst_95 = arith.constant 1.000000e+00 : f32
    %175 = vector.broadcast %cst_95 : f32 to vector<2x16xf32>
    %176 = arith.addf %175, %174 : vector<2x16xf32>
    %177 = arith.divf %175, %176 : vector<2x16xf32>
    %178 = vector.extract_strided_slice %171 {offsets = [0, 16], sizes = [2, 16], strides = [1, 1]} : vector<2x64xf32> to vector<2x16xf32>
    %179 = arith.negf %178 : vector<2x16xf32>
    %180 = math.exp %179 : vector<2x16xf32>
    %cst_96 = arith.constant 1.000000e+00 : f32
    %181 = vector.broadcast %cst_96 : f32 to vector<2x16xf32>
    %182 = arith.addf %181, %180 : vector<2x16xf32>
    %183 = arith.divf %181, %182 : vector<2x16xf32>
    %184 = vector.extract_strided_slice %171 {offsets = [0, 32], sizes = [2, 16], strides = [1, 1]} : vector<2x64xf32> to vector<2x16xf32>
    %185 = math.tanh %184 : vector<2x16xf32>
    %186 = vector.extract_strided_slice %171 {offsets = [0, 48], sizes = [2, 16], strides = [1, 1]} : vector<2x64xf32> to vector<2x16xf32>
    %187 = arith.negf %186 : vector<2x16xf32>
    %188 = math.exp %187 : vector<2x16xf32>
    %cst_97 = arith.constant 1.000000e+00 : f32
    %189 = vector.broadcast %cst_97 : f32 to vector<2x16xf32>
    %190 = arith.addf %189, %188 : vector<2x16xf32>
    %191 = arith.divf %189, %190 : vector<2x16xf32>
    %192 = arith.mulf %183, %168 : vector<2x16xf32>
    %193 = arith.mulf %177, %185 : vector<2x16xf32>
    %194 = arith.addf %192, %193 : vector<2x16xf32>
    %195 = math.tanh %194 : vector<2x16xf32>
    %196 = arith.mulf %191, %195 : vector<2x16xf32>
    %c0_98 = arith.constant 0 : index
    %c0_99 = arith.constant 0 : index
    %197 = vector.load %arg9[%c0_98, %c0_99] : memref<2x16xf32, #tpu.memory_space<vmem>>, vector<2x16xf32>
    tpu.vector_store %arg9[%c0_98, %c0_99], %196 {strides = array<i32>} : memref<2x16xf32, #tpu.memory_space<vmem>>, vector<2x16xf32>,
    %c0_100 = arith.constant 0 : index
    %c0_101 = arith.constant 0 : index
    %198 = vector.load %arg10[%c0_100, %c0_101] : memref<2x16xf32, #tpu.memory_space<vmem>>, vector<2x16xf32>
    tpu.vector_store %arg10[%c0_100, %c0_101], %194 {strides = array<i32>} : memref<2x16xf32, #tpu.memory_space<vmem>>, vector<2x16xf32>,
    %c0_102 = arith.constant 0 : index
    %c2_103 = arith.constant 2 : index
    %c0_104 = arith.constant 0 : index
    %199 = vector.load %arg5[%c0_102, %c2_103, %c0_104] : memref<2x8x16xf32, #tpu.memory_space<vmem>>, vector<2x1x16xf32>
    %200 = vector.shape_cast %199 : vector<2x1x16xf32> to vector<2x16xf32>
    %201 = vector.shape_cast %196 : vector<2x16xf32> to vector<2x1x16xf32>
    tpu.vector_store %arg5[%c0_102, %c2_103, %c0_104], %201 {strides = array<i32>} : memref<2x8x16xf32, #tpu.memory_space<vmem>>, vector<2x1x16xf32>,
    %c0_105 = arith.constant 0 : index
    %c5 = arith.constant 5 : index
    %c0_106 = arith.constant 0 : index
    %202 = vector.load %arg2[%c0_105, %c5, %c0_106] : memref<2x8x64xf32, #tpu.memory_space<vmem>>, vector<2x1x64xf32>
    %203 = vector.shape_cast %202 : vector<2x1x64xf32> to vector<2x64xf32>
    %c0_107 = arith.constant 0 : index
    %c0_108 = arith.constant 0 : index
    %204 = vector.load %arg11[%c0_107, %c0_108] : memref<2x16xf32, #tpu.memory_space<vmem>>, vector<2x16xf32>
    %c0_109 = arith.constant 0 : index
    %c0_110 = arith.constant 0 : index
    %205 = vector.load %arg12[%c0_109, %c0_110] : memref<2x16xf32, #tpu.memory_space<vmem>>, vector<2x16xf32>
    %206 = arith.truncf %204 : vector<2x16xf32> to vector<2x16xbf16>
    %cst_111 = arith.constant dense<0.000000e+00> : vector<2x64xf32>
    %207 = tpu.matmul %206, %4, %cst_111 {dimension_numbers = #tpu.dot_dimension_numbers<[1], [0], [0], [1], [0, 0, 1, 1], [], []>} : vector<2x16xbf16>, vector<16x64xbf16>, vector<2x64xf32> -> vector<2x64xf32>
    %208 = arith.addf %207, %203 : vector<2x64xf32>
    %209 = vector.extract_strided_slice %208 {offsets = [0, 0], sizes = [2, 16], strides = [1, 1]} : vector<2x64xf32> to vector<2x16xf32>
    %210 = arith.negf %209 : vector<2x16xf32>
    %211 = math.exp %210 : vector<2x16xf32>
    %cst_112 = arith.constant 1.000000e+00 : f32
    %212 = vector.broadcast %cst_112 : f32 to vector<2x16xf32>
    %213 = arith.addf %212, %211 : vector<2x16xf32>
    %214 = arith.divf %212, %213 : vector<2x16xf32>
    %215 = vector.extract_strided_slice %208 {offsets = [0, 16], sizes = [2, 16], strides = [1, 1]} : vector<2x64xf32> to vector<2x16xf32>
    %216 = arith.negf %215 : vector<2x16xf32>
    %217 = math.exp %216 : vector<2x16xf32>
    %cst_113 = arith.constant 1.000000e+00 : f32
    %218 = vector.broadcast %cst_113 : f32 to vector<2x16xf32>
    %219 = arith.addf %218, %217 : vector<2x16xf32>
    %220 = arith.divf %218, %219 : vector<2x16xf32>
    %221 = vector.extract_strided_slice %208 {offsets = [0, 32], sizes = [2, 16], strides = [1, 1]} : vector<2x64xf32> to vector<2x16xf32>
    %222 = math.tanh %221 : vector<2x16xf32>
    %223 = vector.extract_strided_slice %208 {offsets = [0, 48], sizes = [2, 16], strides = [1, 1]} : vector<2x64xf32> to vector<2x16xf32>
    %224 = arith.negf %223 : vector<2x16xf32>
    %225 = math.exp %224 : vector<2x16xf32>
    %cst_114 = arith.constant 1.000000e+00 : f32
    %226 = vector.broadcast %cst_114 : f32 to vector<2x16xf32>
    %227 = arith.addf %226, %225 : vector<2x16xf32>
    %228 = arith.divf %226, %227 : vector<2x16xf32>
    %229 = arith.mulf %220, %205 : vector<2x16xf32>
    %230 = arith.mulf %214, %222 : vector<2x16xf32>
    %231 = arith.addf %229, %230 : vector<2x16xf32>
    %232 = math.tanh %231 : vector<2x16xf32>
    %233 = arith.mulf %228, %232 : vector<2x16xf32>
    %c0_115 = arith.constant 0 : index
    %c0_116 = arith.constant 0 : index
    %234 = vector.load %arg11[%c0_115, %c0_116] : memref<2x16xf32, #tpu.memory_space<vmem>>, vector<2x16xf32>
    tpu.vector_store %arg11[%c0_115, %c0_116], %233 {strides = array<i32>} : memref<2x16xf32, #tpu.memory_space<vmem>>, vector<2x16xf32>,
    %c0_117 = arith.constant 0 : index
    %c0_118 = arith.constant 0 : index
    %235 = vector.load %arg12[%c0_117, %c0_118] : memref<2x16xf32, #tpu.memory_space<vmem>>, vector<2x16xf32>
    tpu.vector_store %arg12[%c0_117, %c0_118], %231 {strides = array<i32>} : memref<2x16xf32, #tpu.memory_space<vmem>>, vector<2x16xf32>,
    %c0_119 = arith.constant 0 : index
    %c5_120 = arith.constant 5 : index
    %c0_121 = arith.constant 0 : index
    %236 = vector.load %arg6[%c0_119, %c5_120, %c0_121] : memref<2x8x16xf32, #tpu.memory_space<vmem>>, vector<2x1x16xf32>
    %237 = vector.shape_cast %236 : vector<2x1x16xf32> to vector<2x16xf32>
    %238 = vector.shape_cast %233 : vector<2x16xf32> to vector<2x1x16xf32>
    tpu.vector_store %arg6[%c0_119, %c5_120, %c0_121], %238 {strides = array<i32>} : memref<2x8x16xf32, #tpu.memory_space<vmem>>, vector<2x1x16xf32>,
    %c0_122 = arith.constant 0 : index
    %c0_123 = arith.constant 0 : index
    %239 = vector.load %arg7[%c0_122, %c0_123] : memref<2x16xf32, #tpu.memory_space<vmem>>, vector<2x16xf32>
    %240 = arith.maximumf %239, %196 : vector<2x16xf32>
    %c0_124 = arith.constant 0 : index
    %c0_125 = arith.constant 0 : index
    %241 = vector.load %arg7[%c0_124, %c0_125] : memref<2x16xf32, #tpu.memory_space<vmem>>, vector<2x16xf32>
    tpu.vector_store %arg7[%c0_124, %c0_125], %240 {strides = array<i32>} : memref<2x16xf32, #tpu.memory_space<vmem>>, vector<2x16xf32>,
    %c0_126 = arith.constant 0 : index
    %c0_127 = arith.constant 0 : index
    %242 = vector.load %arg8[%c0_126, %c0_127] : memref<2x16xf32, #tpu.memory_space<vmem>>, vector<2x16xf32>
    %243 = arith.maximumf %242, %233 : vector<2x16xf32>
    %c0_128 = arith.constant 0 : index
    %c0_129 = arith.constant 0 : index
    %244 = vector.load %arg8[%c0_128, %c0_129] : memref<2x16xf32, #tpu.memory_space<vmem>>, vector<2x16xf32>
    tpu.vector_store %arg8[%c0_128, %c0_129], %243 {strides = array<i32>} : memref<2x16xf32, #tpu.memory_space<vmem>>, vector<2x16xf32>,
    %c0_130 = arith.constant 0 : index
    %c3 = arith.constant 3 : index
    %c0_131 = arith.constant 0 : index
    %245 = vector.load %arg1[%c0_130, %c3, %c0_131] : memref<2x8x64xf32, #tpu.memory_space<vmem>>, vector<2x1x64xf32>
    %246 = vector.shape_cast %245 : vector<2x1x64xf32> to vector<2x64xf32>
    %c0_132 = arith.constant 0 : index
    %c0_133 = arith.constant 0 : index
    %247 = vector.load %arg9[%c0_132, %c0_133] : memref<2x16xf32, #tpu.memory_space<vmem>>, vector<2x16xf32>
    %c0_134 = arith.constant 0 : index
    %c0_135 = arith.constant 0 : index
    %248 = vector.load %arg10[%c0_134, %c0_135] : memref<2x16xf32, #tpu.memory_space<vmem>>, vector<2x16xf32>
    %249 = arith.truncf %247 : vector<2x16xf32> to vector<2x16xbf16>
    %cst_136 = arith.constant dense<0.000000e+00> : vector<2x64xf32>
    %250 = tpu.matmul %249, %3, %cst_136 {dimension_numbers = #tpu.dot_dimension_numbers<[1], [0], [0], [1], [0, 0, 1, 1], [], []>} : vector<2x16xbf16>, vector<16x64xbf16>, vector<2x64xf32> -> vector<2x64xf32>
    %251 = arith.addf %250, %246 : vector<2x64xf32>
    %252 = vector.extract_strided_slice %251 {offsets = [0, 0], sizes = [2, 16], strides = [1, 1]} : vector<2x64xf32> to vector<2x16xf32>
    %253 = arith.negf %252 : vector<2x16xf32>
    %254 = math.exp %253 : vector<2x16xf32>
    %cst_137 = arith.constant 1.000000e+00 : f32
    %255 = vector.broadcast %cst_137 : f32 to vector<2x16xf32>
    %256 = arith.addf %255, %254 : vector<2x16xf32>
    %257 = arith.divf %255, %256 : vector<2x16xf32>
    %258 = vector.extract_strided_slice %251 {offsets = [0, 16], sizes = [2, 16], strides = [1, 1]} : vector<2x64xf32> to vector<2x16xf32>
    %259 = arith.negf %258 : vector<2x16xf32>
    %260 = math.exp %259 : vector<2x16xf32>
    %cst_138 = arith.constant 1.000000e+00 : f32
    %261 = vector.broadcast %cst_138 : f32 to vector<2x16xf32>
    %262 = arith.addf %261, %260 : vector<2x16xf32>
    %263 = arith.divf %261, %262 : vector<2x16xf32>
    %264 = vector.extract_strided_slice %251 {offsets = [0, 32], sizes = [2, 16], strides = [1, 1]} : vector<2x64xf32> to vector<2x16xf32>
    %265 = math.tanh %264 : vector<2x16xf32>
    %266 = vector.extract_strided_slice %251 {offsets = [0, 48], sizes = [2, 16], strides = [1, 1]} : vector<2x64xf32> to vector<2x16xf32>
    %267 = arith.negf %266 : vector<2x16xf32>
    %268 = math.exp %267 : vector<2x16xf32>
    %cst_139 = arith.constant 1.000000e+00 : f32
    %269 = vector.broadcast %cst_139 : f32 to vector<2x16xf32>
    %270 = arith.addf %269, %268 : vector<2x16xf32>
    %271 = arith.divf %269, %270 : vector<2x16xf32>
    %272 = arith.mulf %263, %248 : vector<2x16xf32>
    %273 = arith.mulf %257, %265 : vector<2x16xf32>
    %274 = arith.addf %272, %273 : vector<2x16xf32>
    %275 = math.tanh %274 : vector<2x16xf32>
    %276 = arith.mulf %271, %275 : vector<2x16xf32>
    %c0_140 = arith.constant 0 : index
    %c0_141 = arith.constant 0 : index
    %277 = vector.load %arg9[%c0_140, %c0_141] : memref<2x16xf32, #tpu.memory_space<vmem>>, vector<2x16xf32>
    tpu.vector_store %arg9[%c0_140, %c0_141], %276 {strides = array<i32>} : memref<2x16xf32, #tpu.memory_space<vmem>>, vector<2x16xf32>,
    %c0_142 = arith.constant 0 : index
    %c0_143 = arith.constant 0 : index
    %278 = vector.load %arg10[%c0_142, %c0_143] : memref<2x16xf32, #tpu.memory_space<vmem>>, vector<2x16xf32>
    tpu.vector_store %arg10[%c0_142, %c0_143], %274 {strides = array<i32>} : memref<2x16xf32, #tpu.memory_space<vmem>>, vector<2x16xf32>,
    %c0_144 = arith.constant 0 : index
    %c3_145 = arith.constant 3 : index
    %c0_146 = arith.constant 0 : index
    %279 = vector.load %arg5[%c0_144, %c3_145, %c0_146] : memref<2x8x16xf32, #tpu.memory_space<vmem>>, vector<2x1x16xf32>
    %280 = vector.shape_cast %279 : vector<2x1x16xf32> to vector<2x16xf32>
    %281 = vector.shape_cast %276 : vector<2x16xf32> to vector<2x1x16xf32>
    tpu.vector_store %arg5[%c0_144, %c3_145, %c0_146], %281 {strides = array<i32>} : memref<2x8x16xf32, #tpu.memory_space<vmem>>, vector<2x1x16xf32>,
    %c0_147 = arith.constant 0 : index
    %c4 = arith.constant 4 : index
    %c0_148 = arith.constant 0 : index
    %282 = vector.load %arg2[%c0_147, %c4, %c0_148] : memref<2x8x64xf32, #tpu.memory_space<vmem>>, vector<2x1x64xf32>
    %283 = vector.shape_cast %282 : vector<2x1x64xf32> to vector<2x64xf32>
    %c0_149 = arith.constant 0 : index
    %c0_150 = arith.constant 0 : index
    %284 = vector.load %arg11[%c0_149, %c0_150] : memref<2x16xf32, #tpu.memory_space<vmem>>, vector<2x16xf32>
    %c0_151 = arith.constant 0 : index
    %c0_152 = arith.constant 0 : index
    %285 = vector.load %arg12[%c0_151, %c0_152] : memref<2x16xf32, #tpu.memory_space<vmem>>, vector<2x16xf32>
    %286 = arith.truncf %284 : vector<2x16xf32> to vector<2x16xbf16>
    %cst_153 = arith.constant dense<0.000000e+00> : vector<2x64xf32>
    %287 = tpu.matmul %286, %4, %cst_153 {dimension_numbers = #tpu.dot_dimension_numbers<[1], [0], [0], [1], [0, 0, 1, 1], [], []>} : vector<2x16xbf16>, vector<16x64xbf16>, vector<2x64xf32> -> vector<2x64xf32>
    %288 = arith.addf %287, %283 : vector<2x64xf32>
    %289 = vector.extract_strided_slice %288 {offsets = [0, 0], sizes = [2, 16], strides = [1, 1]} : vector<2x64xf32> to vector<2x16xf32>
    %290 = arith.negf %289 : vector<2x16xf32>
    %291 = math.exp %290 : vector<2x16xf32>
    %cst_154 = arith.constant 1.000000e+00 : f32
    %292 = vector.broadcast %cst_154 : f32 to vector<2x16xf32>
    %293 = arith.addf %292, %291 : vector<2x16xf32>
    %294 = arith.divf %292, %293 : vector<2x16xf32>
    %295 = vector.extract_strided_slice %288 {offsets = [0, 16], sizes = [2, 16], strides = [1, 1]} : vector<2x64xf32> to vector<2x16xf32>
    %296 = arith.negf %295 : vector<2x16xf32>
    %297 = math.exp %296 : vector<2x16xf32>
    %cst_155 = arith.constant 1.000000e+00 : f32
    %298 = vector.broadcast %cst_155 : f32 to vector<2x16xf32>
    %299 = arith.addf %298, %297 : vector<2x16xf32>
    %300 = arith.divf %298, %299 : vector<2x16xf32>
    %301 = vector.extract_strided_slice %288 {offsets = [0, 32], sizes = [2, 16], strides = [1, 1]} : vector<2x64xf32> to vector<2x16xf32>
    %302 = math.tanh %301 : vector<2x16xf32>
    %303 = vector.extract_strided_slice %288 {offsets = [0, 48], sizes = [2, 16], strides = [1, 1]} : vector<2x64xf32> to vector<2x16xf32>
    %304 = arith.negf %303 : vector<2x16xf32>
    %305 = math.exp %304 : vector<2x16xf32>
    %cst_156 = arith.constant 1.000000e+00 : f32
    %306 = vector.broadcast %cst_156 : f32 to vector<2x16xf32>
    %307 = arith.addf %306, %305 : vector<2x16xf32>
    %308 = arith.divf %306, %307 : vector<2x16xf32>
    %309 = arith.mulf %300, %285 : vector<2x16xf32>
    %310 = arith.mulf %294, %302 : vector<2x16xf32>
    %311 = arith.addf %309, %310 : vector<2x16xf32>
    %312 = math.tanh %311 : vector<2x16xf32>
    %313 = arith.mulf %308, %312 : vector<2x16xf32>
    %c0_157 = arith.constant 0 : index
    %c0_158 = arith.constant 0 : index
    %314 = vector.load %arg11[%c0_157, %c0_158] : memref<2x16xf32, #tpu.memory_space<vmem>>, vector<2x16xf32>
    tpu.vector_store %arg11[%c0_157, %c0_158], %313 {strides = array<i32>} : memref<2x16xf32, #tpu.memory_space<vmem>>, vector<2x16xf32>,
    %c0_159 = arith.constant 0 : index
    %c0_160 = arith.constant 0 : index
    %315 = vector.load %arg12[%c0_159, %c0_160] : memref<2x16xf32, #tpu.memory_space<vmem>>, vector<2x16xf32>
    tpu.vector_store %arg12[%c0_159, %c0_160], %311 {strides = array<i32>} : memref<2x16xf32, #tpu.memory_space<vmem>>, vector<2x16xf32>,
    %c0_161 = arith.constant 0 : index
    %c4_162 = arith.constant 4 : index
    %c0_163 = arith.constant 0 : index
    %316 = vector.load %arg6[%c0_161, %c4_162, %c0_163] : memref<2x8x16xf32, #tpu.memory_space<vmem>>, vector<2x1x16xf32>
    %317 = vector.shape_cast %316 : vector<2x1x16xf32> to vector<2x16xf32>
    %318 = vector.shape_cast %313 : vector<2x16xf32> to vector<2x1x16xf32>
    tpu.vector_store %arg6[%c0_161, %c4_162, %c0_163], %318 {strides = array<i32>} : memref<2x8x16xf32, #tpu.memory_space<vmem>>, vector<2x1x16xf32>,
    %c0_164 = arith.constant 0 : index
    %c0_165 = arith.constant 0 : index
    %319 = vector.load %arg7[%c0_164, %c0_165] : memref<2x16xf32, #tpu.memory_space<vmem>>, vector<2x16xf32>
    %320 = arith.maximumf %319, %276 : vector<2x16xf32>
    %c0_166 = arith.constant 0 : index
    %c0_167 = arith.constant 0 : index
    %321 = vector.load %arg7[%c0_166, %c0_167] : memref<2x16xf32, #tpu.memory_space<vmem>>, vector<2x16xf32>
    tpu.vector_store %arg7[%c0_166, %c0_167], %320 {strides = array<i32>} : memref<2x16xf32, #tpu.memory_space<vmem>>, vector<2x16xf32>,
    %c0_168 = arith.constant 0 : index
    %c0_169 = arith.constant 0 : index
    %322 = vector.load %arg8[%c0_168, %c0_169] : memref<2x16xf32, #tpu.memory_space<vmem>>, vector<2x16xf32>
    %323 = arith.maximumf %322, %313 : vector<2x16xf32>
    %c0_170 = arith.constant 0 : index
    %c0_171 = arith.constant 0 : index
    %324 = vector.load %arg8[%c0_170, %c0_171] : memref<2x16xf32, #tpu.memory_space<vmem>>, vector<2x16xf32>
    tpu.vector_store %arg8[%c0_170, %c0_171], %323 {strides = array<i32>} : memref<2x16xf32, #tpu.memory_space<vmem>>, vector<2x16xf32>,
    %c0_172 = arith.constant 0 : index
    %c4_173 = arith.constant 4 : index
    %c0_174 = arith.constant 0 : index
    %325 = vector.load %arg1[%c0_172, %c4_173, %c0_174] : memref<2x8x64xf32, #tpu.memory_space<vmem>>, vector<2x1x64xf32>
    %326 = vector.shape_cast %325 : vector<2x1x64xf32> to vector<2x64xf32>
    %c0_175 = arith.constant 0 : index
    %c0_176 = arith.constant 0 : index
    %327 = vector.load %arg9[%c0_175, %c0_176] : memref<2x16xf32, #tpu.memory_space<vmem>>, vector<2x16xf32>
    %c0_177 = arith.constant 0 : index
    %c0_178 = arith.constant 0 : index
    %328 = vector.load %arg10[%c0_177, %c0_178] : memref<2x16xf32, #tpu.memory_space<vmem>>, vector<2x16xf32>
    %329 = arith.truncf %327 : vector<2x16xf32> to vector<2x16xbf16>
    %cst_179 = arith.constant dense<0.000000e+00> : vector<2x64xf32>
    %330 = tpu.matmul %329, %3, %cst_179 {dimension_numbers = #tpu.dot_dimension_numbers<[1], [0], [0], [1], [0, 0, 1, 1], [], []>} : vector<2x16xbf16>, vector<16x64xbf16>, vector<2x64xf32> -> vector<2x64xf32>
    %331 = arith.addf %330, %326 : vector<2x64xf32>
    %332 = vector.extract_strided_slice %331 {offsets = [0, 0], sizes = [2, 16], strides = [1, 1]} : vector<2x64xf32> to vector<2x16xf32>
    %333 = arith.negf %332 : vector<2x16xf32>
    %334 = math.exp %333 : vector<2x16xf32>
    %cst_180 = arith.constant 1.000000e+00 : f32
    %335 = vector.broadcast %cst_180 : f32 to vector<2x16xf32>
    %336 = arith.addf %335, %334 : vector<2x16xf32>
    %337 = arith.divf %335, %336 : vector<2x16xf32>
    %338 = vector.extract_strided_slice %331 {offsets = [0, 16], sizes = [2, 16], strides = [1, 1]} : vector<2x64xf32> to vector<2x16xf32>
    %339 = arith.negf %338 : vector<2x16xf32>
    %340 = math.exp %339 : vector<2x16xf32>
    %cst_181 = arith.constant 1.000000e+00 : f32
    %341 = vector.broadcast %cst_181 : f32 to vector<2x16xf32>
    %342 = arith.addf %341, %340 : vector<2x16xf32>
    %343 = arith.divf %341, %342 : vector<2x16xf32>
    %344 = vector.extract_strided_slice %331 {offsets = [0, 32], sizes = [2, 16], strides = [1, 1]} : vector<2x64xf32> to vector<2x16xf32>
    %345 = math.tanh %344 : vector<2x16xf32>
    %346 = vector.extract_strided_slice %331 {offsets = [0, 48], sizes = [2, 16], strides = [1, 1]} : vector<2x64xf32> to vector<2x16xf32>
    %347 = arith.negf %346 : vector<2x16xf32>
    %348 = math.exp %347 : vector<2x16xf32>
    %cst_182 = arith.constant 1.000000e+00 : f32
    %349 = vector.broadcast %cst_182 : f32 to vector<2x16xf32>
    %350 = arith.addf %349, %348 : vector<2x16xf32>
    %351 = arith.divf %349, %350 : vector<2x16xf32>
    %352 = arith.mulf %343, %328 : vector<2x16xf32>
    %353 = arith.mulf %337, %345 : vector<2x16xf32>
    %354 = arith.addf %352, %353 : vector<2x16xf32>
    %355 = math.tanh %354 : vector<2x16xf32>
    %356 = arith.mulf %351, %355 : vector<2x16xf32>
    %c0_183 = arith.constant 0 : index
    %c0_184 = arith.constant 0 : index
    %357 = vector.load %arg9[%c0_183, %c0_184] : memref<2x16xf32, #tpu.memory_space<vmem>>, vector<2x16xf32>
    tpu.vector_store %arg9[%c0_183, %c0_184], %356 {strides = array<i32>} : memref<2x16xf32, #tpu.memory_space<vmem>>, vector<2x16xf32>,
    %c0_185 = arith.constant 0 : index
    %c0_186 = arith.constant 0 : index
    %358 = vector.load %arg10[%c0_185, %c0_186] : memref<2x16xf32, #tpu.memory_space<vmem>>, vector<2x16xf32>
    tpu.vector_store %arg10[%c0_185, %c0_186], %354 {strides = array<i32>} : memref<2x16xf32, #tpu.memory_space<vmem>>, vector<2x16xf32>,
    %c0_187 = arith.constant 0 : index
    %c4_188 = arith.constant 4 : index
    %c0_189 = arith.constant 0 : index
    %359 = vector.load %arg5[%c0_187, %c4_188, %c0_189] : memref<2x8x16xf32, #tpu.memory_space<vmem>>, vector<2x1x16xf32>
    %360 = vector.shape_cast %359 : vector<2x1x16xf32> to vector<2x16xf32>
    %361 = vector.shape_cast %356 : vector<2x16xf32> to vector<2x1x16xf32>
    tpu.vector_store %arg5[%c0_187, %c4_188, %c0_189], %361 {strides = array<i32>} : memref<2x8x16xf32, #tpu.memory_space<vmem>>, vector<2x1x16xf32>,
    %c0_190 = arith.constant 0 : index
    %c3_191 = arith.constant 3 : index
    %c0_192 = arith.constant 0 : index
    %362 = vector.load %arg2[%c0_190, %c3_191, %c0_192] : memref<2x8x64xf32, #tpu.memory_space<vmem>>, vector<2x1x64xf32>
    %363 = vector.shape_cast %362 : vector<2x1x64xf32> to vector<2x64xf32>
    %c0_193 = arith.constant 0 : index
    %c0_194 = arith.constant 0 : index
    %364 = vector.load %arg11[%c0_193, %c0_194] : memref<2x16xf32, #tpu.memory_space<vmem>>, vector<2x16xf32>
    %c0_195 = arith.constant 0 : index
    %c0_196 = arith.constant 0 : index
    %365 = vector.load %arg12[%c0_195, %c0_196] : memref<2x16xf32, #tpu.memory_space<vmem>>, vector<2x16xf32>
    %366 = arith.truncf %364 : vector<2x16xf32> to vector<2x16xbf16>
    %cst_197 = arith.constant dense<0.000000e+00> : vector<2x64xf32>
    %367 = tpu.matmul %366, %4, %cst_197 {dimension_numbers = #tpu.dot_dimension_numbers<[1], [0], [0], [1], [0, 0, 1, 1], [], []>} : vector<2x16xbf16>, vector<16x64xbf16>, vector<2x64xf32> -> vector<2x64xf32>
    %368 = arith.addf %367, %363 : vector<2x64xf32>
    %369 = vector.extract_strided_slice %368 {offsets = [0, 0], sizes = [2, 16], strides = [1, 1]} : vector<2x64xf32> to vector<2x16xf32>
    %370 = arith.negf %369 : vector<2x16xf32>
    %371 = math.exp %370 : vector<2x16xf32>
    %cst_198 = arith.constant 1.000000e+00 : f32
    %372 = vector.broadcast %cst_198 : f32 to vector<2x16xf32>
    %373 = arith.addf %372, %371 : vector<2x16xf32>
    %374 = arith.divf %372, %373 : vector<2x16xf32>
    %375 = vector.extract_strided_slice %368 {offsets = [0, 16], sizes = [2, 16], strides = [1, 1]} : vector<2x64xf32> to vector<2x16xf32>
    %376 = arith.negf %375 : vector<2x16xf32>
    %377 = math.exp %376 : vector<2x16xf32>
    %cst_199 = arith.constant 1.000000e+00 : f32
    %378 = vector.broadcast %cst_199 : f32 to vector<2x16xf32>
    %379 = arith.addf %378, %377 : vector<2x16xf32>
    %380 = arith.divf %378, %379 : vector<2x16xf32>
    %381 = vector.extract_strided_slice %368 {offsets = [0, 32], sizes = [2, 16], strides = [1, 1]} : vector<2x64xf32> to vector<2x16xf32>
    %382 = math.tanh %381 : vector<2x16xf32>
    %383 = vector.extract_strided_slice %368 {offsets = [0, 48], sizes = [2, 16], strides = [1, 1]} : vector<2x64xf32> to vector<2x16xf32>
    %384 = arith.negf %383 : vector<2x16xf32>
    %385 = math.exp %384 : vector<2x16xf32>
    %cst_200 = arith.constant 1.000000e+00 : f32
    %386 = vector.broadcast %cst_200 : f32 to vector<2x16xf32>
    %387 = arith.addf %386, %385 : vector<2x16xf32>
    %388 = arith.divf %386, %387 : vector<2x16xf32>
    %389 = arith.mulf %380, %365 : vector<2x16xf32>
    %390 = arith.mulf %374, %382 : vector<2x16xf32>
    %391 = arith.addf %389, %390 : vector<2x16xf32>
    %392 = math.tanh %391 : vector<2x16xf32>
    %393 = arith.mulf %388, %392 : vector<2x16xf32>
    %c0_201 = arith.constant 0 : index
    %c0_202 = arith.constant 0 : index
    %394 = vector.load %arg11[%c0_201, %c0_202] : memref<2x16xf32, #tpu.memory_space<vmem>>, vector<2x16xf32>
    tpu.vector_store %arg11[%c0_201, %c0_202], %393 {strides = array<i32>} : memref<2x16xf32, #tpu.memory_space<vmem>>, vector<2x16xf32>,
    %c0_203 = arith.constant 0 : index
    %c0_204 = arith.constant 0 : index
    %395 = vector.load %arg12[%c0_203, %c0_204] : memref<2x16xf32, #tpu.memory_space<vmem>>, vector<2x16xf32>
    tpu.vector_store %arg12[%c0_203, %c0_204], %391 {strides = array<i32>} : memref<2x16xf32, #tpu.memory_space<vmem>>, vector<2x16xf32>,
    %c0_205 = arith.constant 0 : index
    %c3_206 = arith.constant 3 : index
    %c0_207 = arith.constant 0 : index
    %396 = vector.load %arg6[%c0_205, %c3_206, %c0_207] : memref<2x8x16xf32, #tpu.memory_space<vmem>>, vector<2x1x16xf32>
    %397 = vector.shape_cast %396 : vector<2x1x16xf32> to vector<2x16xf32>
    %398 = vector.shape_cast %393 : vector<2x16xf32> to vector<2x1x16xf32>
    tpu.vector_store %arg6[%c0_205, %c3_206, %c0_207], %398 {strides = array<i32>} : memref<2x8x16xf32, #tpu.memory_space<vmem>>, vector<2x1x16xf32>,
    %c0_208 = arith.constant 0 : index
    %c0_209 = arith.constant 0 : index
    %399 = vector.load %arg7[%c0_208, %c0_209] : memref<2x16xf32, #tpu.memory_space<vmem>>, vector<2x16xf32>
    %400 = arith.maximumf %399, %356 : vector<2x16xf32>
    %c0_210 = arith.constant 0 : index
    %c0_211 = arith.constant 0 : index
    %401 = vector.load %arg7[%c0_210, %c0_211] : memref<2x16xf32, #tpu.memory_space<vmem>>, vector<2x16xf32>
    tpu.vector_store %arg7[%c0_210, %c0_211], %400 {strides = array<i32>} : memref<2x16xf32, #tpu.memory_space<vmem>>, vector<2x16xf32>,
    %c0_212 = arith.constant 0 : index
    %c0_213 = arith.constant 0 : index
    %402 = vector.load %arg8[%c0_212, %c0_213] : memref<2x16xf32, #tpu.memory_space<vmem>>, vector<2x16xf32>
    %403 = arith.maximumf %402, %393 : vector<2x16xf32>
    %c0_214 = arith.constant 0 : index
    %c0_215 = arith.constant 0 : index
    %404 = vector.load %arg8[%c0_214, %c0_215] : memref<2x16xf32, #tpu.memory_space<vmem>>, vector<2x16xf32>
    tpu.vector_store %arg8[%c0_214, %c0_215], %403 {strides = array<i32>} : memref<2x16xf32, #tpu.memory_space<vmem>>, vector<2x16xf32>,
    %c0_216 = arith.constant 0 : index
    %c5_217 = arith.constant 5 : index
    %c0_218 = arith.constant 0 : index
    %405 = vector.load %arg1[%c0_216, %c5_217, %c0_218] : memref<2x8x64xf32, #tpu.memory_space<vmem>>, vector<2x1x64xf32>
    %406 = vector.shape_cast %405 : vector<2x1x64xf32> to vector<2x64xf32>
    %c0_219 = arith.constant 0 : index
    %c0_220 = arith.constant 0 : index
    %407 = vector.load %arg9[%c0_219, %c0_220] : memref<2x16xf32, #tpu.memory_space<vmem>>, vector<2x16xf32>
    %c0_221 = arith.constant 0 : index
    %c0_222 = arith.constant 0 : index
    %408 = vector.load %arg10[%c0_221, %c0_222] : memref<2x16xf32, #tpu.memory_space<vmem>>, vector<2x16xf32>
    %409 = arith.truncf %407 : vector<2x16xf32> to vector<2x16xbf16>
    %cst_223 = arith.constant dense<0.000000e+00> : vector<2x64xf32>
    %410 = tpu.matmul %409, %3, %cst_223 {dimension_numbers = #tpu.dot_dimension_numbers<[1], [0], [0], [1], [0, 0, 1, 1], [], []>} : vector<2x16xbf16>, vector<16x64xbf16>, vector<2x64xf32> -> vector<2x64xf32>
    %411 = arith.addf %410, %406 : vector<2x64xf32>
    %412 = vector.extract_strided_slice %411 {offsets = [0, 0], sizes = [2, 16], strides = [1, 1]} : vector<2x64xf32> to vector<2x16xf32>
    %413 = arith.negf %412 : vector<2x16xf32>
    %414 = math.exp %413 : vector<2x16xf32>
    %cst_224 = arith.constant 1.000000e+00 : f32
    %415 = vector.broadcast %cst_224 : f32 to vector<2x16xf32>
    %416 = arith.addf %415, %414 : vector<2x16xf32>
    %417 = arith.divf %415, %416 : vector<2x16xf32>
    %418 = vector.extract_strided_slice %411 {offsets = [0, 16], sizes = [2, 16], strides = [1, 1]} : vector<2x64xf32> to vector<2x16xf32>
    %419 = arith.negf %418 : vector<2x16xf32>
    %420 = math.exp %419 : vector<2x16xf32>
    %cst_225 = arith.constant 1.000000e+00 : f32
    %421 = vector.broadcast %cst_225 : f32 to vector<2x16xf32>
    %422 = arith.addf %421, %420 : vector<2x16xf32>
    %423 = arith.divf %421, %422 : vector<2x16xf32>
    %424 = vector.extract_strided_slice %411 {offsets = [0, 32], sizes = [2, 16], strides = [1, 1]} : vector<2x64xf32> to vector<2x16xf32>
    %425 = math.tanh %424 : vector<2x16xf32>
    %426 = vector.extract_strided_slice %411 {offsets = [0, 48], sizes = [2, 16], strides = [1, 1]} : vector<2x64xf32> to vector<2x16xf32>
    %427 = arith.negf %426 : vector<2x16xf32>
    %428 = math.exp %427 : vector<2x16xf32>
    %cst_226 = arith.constant 1.000000e+00 : f32
    %429 = vector.broadcast %cst_226 : f32 to vector<2x16xf32>
    %430 = arith.addf %429, %428 : vector<2x16xf32>
    %431 = arith.divf %429, %430 : vector<2x16xf32>
    %432 = arith.mulf %423, %408 : vector<2x16xf32>
    %433 = arith.mulf %417, %425 : vector<2x16xf32>
    %434 = arith.addf %432, %433 : vector<2x16xf32>
    %435 = math.tanh %434 : vector<2x16xf32>
    %436 = arith.mulf %431, %435 : vector<2x16xf32>
    %c0_227 = arith.constant 0 : index
    %c0_228 = arith.constant 0 : index
    %437 = vector.load %arg9[%c0_227, %c0_228] : memref<2x16xf32, #tpu.memory_space<vmem>>, vector<2x16xf32>
    tpu.vector_store %arg9[%c0_227, %c0_228], %436 {strides = array<i32>} : memref<2x16xf32, #tpu.memory_space<vmem>>, vector<2x16xf32>,
    %c0_229 = arith.constant 0 : index
    %c0_230 = arith.constant 0 : index
    %438 = vector.load %arg10[%c0_229, %c0_230] : memref<2x16xf32, #tpu.memory_space<vmem>>, vector<2x16xf32>
    tpu.vector_store %arg10[%c0_229, %c0_230], %434 {strides = array<i32>} : memref<2x16xf32, #tpu.memory_space<vmem>>, vector<2x16xf32>,
    %c0_231 = arith.constant 0 : index
    %c5_232 = arith.constant 5 : index
    %c0_233 = arith.constant 0 : index
    %439 = vector.load %arg5[%c0_231, %c5_232, %c0_233] : memref<2x8x16xf32, #tpu.memory_space<vmem>>, vector<2x1x16xf32>
    %440 = vector.shape_cast %439 : vector<2x1x16xf32> to vector<2x16xf32>
    %441 = vector.shape_cast %436 : vector<2x16xf32> to vector<2x1x16xf32>
    tpu.vector_store %arg5[%c0_231, %c5_232, %c0_233], %441 {strides = array<i32>} : memref<2x8x16xf32, #tpu.memory_space<vmem>>, vector<2x1x16xf32>,
    %c0_234 = arith.constant 0 : index
    %c2_235 = arith.constant 2 : index
    %c0_236 = arith.constant 0 : index
    %442 = vector.load %arg2[%c0_234, %c2_235, %c0_236] : memref<2x8x64xf32, #tpu.memory_space<vmem>>, vector<2x1x64xf32>
    %443 = vector.shape_cast %442 : vector<2x1x64xf32> to vector<2x64xf32>
    %c0_237 = arith.constant 0 : index
    %c0_238 = arith.constant 0 : index
    %444 = vector.load %arg11[%c0_237, %c0_238] : memref<2x16xf32, #tpu.memory_space<vmem>>, vector<2x16xf32>
    %c0_239 = arith.constant 0 : index
    %c0_240 = arith.constant 0 : index
    %445 = vector.load %arg12[%c0_239, %c0_240] : memref<2x16xf32, #tpu.memory_space<vmem>>, vector<2x16xf32>
    %446 = arith.truncf %444 : vector<2x16xf32> to vector<2x16xbf16>
    %cst_241 = arith.constant dense<0.000000e+00> : vector<2x64xf32>
    %447 = tpu.matmul %446, %4, %cst_241 {dimension_numbers = #tpu.dot_dimension_numbers<[1], [0], [0], [1], [0, 0, 1, 1], [], []>} : vector<2x16xbf16>, vector<16x64xbf16>, vector<2x64xf32> -> vector<2x64xf32>
    %448 = arith.addf %447, %443 : vector<2x64xf32>
    %449 = vector.extract_strided_slice %448 {offsets = [0, 0], sizes = [2, 16], strides = [1, 1]} : vector<2x64xf32> to vector<2x16xf32>
    %450 = arith.negf %449 : vector<2x16xf32>
    %451 = math.exp %450 : vector<2x16xf32>
    %cst_242 = arith.constant 1.000000e+00 : f32
    %452 = vector.broadcast %cst_242 : f32 to vector<2x16xf32>
    %453 = arith.addf %452, %451 : vector<2x16xf32>
    %454 = arith.divf %452, %453 : vector<2x16xf32>
    %455 = vector.extract_strided_slice %448 {offsets = [0, 16], sizes = [2, 16], strides = [1, 1]} : vector<2x64xf32> to vector<2x16xf32>
    %456 = arith.negf %455 : vector<2x16xf32>
    %457 = math.exp %456 : vector<2x16xf32>
    %cst_243 = arith.constant 1.000000e+00 : f32
    %458 = vector.broadcast %cst_243 : f32 to vector<2x16xf32>
    %459 = arith.addf %458, %457 : vector<2x16xf32>
    %460 = arith.divf %458, %459 : vector<2x16xf32>
    %461 = vector.extract_strided_slice %448 {offsets = [0, 32], sizes = [2, 16], strides = [1, 1]} : vector<2x64xf32> to vector<2x16xf32>
    %462 = math.tanh %461 : vector<2x16xf32>
    %463 = vector.extract_strided_slice %448 {offsets = [0, 48], sizes = [2, 16], strides = [1, 1]} : vector<2x64xf32> to vector<2x16xf32>
    %464 = arith.negf %463 : vector<2x16xf32>
    %465 = math.exp %464 : vector<2x16xf32>
    %cst_244 = arith.constant 1.000000e+00 : f32
    %466 = vector.broadcast %cst_244 : f32 to vector<2x16xf32>
    %467 = arith.addf %466, %465 : vector<2x16xf32>
    %468 = arith.divf %466, %467 : vector<2x16xf32>
    %469 = arith.mulf %460, %445 : vector<2x16xf32>
    %470 = arith.mulf %454, %462 : vector<2x16xf32>
    %471 = arith.addf %469, %470 : vector<2x16xf32>
    %472 = math.tanh %471 : vector<2x16xf32>
    %473 = arith.mulf %468, %472 : vector<2x16xf32>
    %c0_245 = arith.constant 0 : index
    %c0_246 = arith.constant 0 : index
    %474 = vector.load %arg11[%c0_245, %c0_246] : memref<2x16xf32, #tpu.memory_space<vmem>>, vector<2x16xf32>
    tpu.vector_store %arg11[%c0_245, %c0_246], %473 {strides = array<i32>} : memref<2x16xf32, #tpu.memory_space<vmem>>, vector<2x16xf32>,
    %c0_247 = arith.constant 0 : index
    %c0_248 = arith.constant 0 : index
    %475 = vector.load %arg12[%c0_247, %c0_248] : memref<2x16xf32, #tpu.memory_space<vmem>>, vector<2x16xf32>
    tpu.vector_store %arg12[%c0_247, %c0_248], %471 {strides = array<i32>} : memref<2x16xf32, #tpu.memory_space<vmem>>, vector<2x16xf32>,
    %c0_249 = arith.constant 0 : index
    %c2_250 = arith.constant 2 : index
    %c0_251 = arith.constant 0 : index
    %476 = vector.load %arg6[%c0_249, %c2_250, %c0_251] : memref<2x8x16xf32, #tpu.memory_space<vmem>>, vector<2x1x16xf32>
    %477 = vector.shape_cast %476 : vector<2x1x16xf32> to vector<2x16xf32>
    %478 = vector.shape_cast %473 : vector<2x16xf32> to vector<2x1x16xf32>
    tpu.vector_store %arg6[%c0_249, %c2_250, %c0_251], %478 {strides = array<i32>} : memref<2x8x16xf32, #tpu.memory_space<vmem>>, vector<2x1x16xf32>,
    %c0_252 = arith.constant 0 : index
    %c0_253 = arith.constant 0 : index
    %479 = vector.load %arg7[%c0_252, %c0_253] : memref<2x16xf32, #tpu.memory_space<vmem>>, vector<2x16xf32>
    %480 = arith.maximumf %479, %436 : vector<2x16xf32>
    %c0_254 = arith.constant 0 : index
    %c0_255 = arith.constant 0 : index
    %481 = vector.load %arg7[%c0_254, %c0_255] : memref<2x16xf32, #tpu.memory_space<vmem>>, vector<2x16xf32>
    tpu.vector_store %arg7[%c0_254, %c0_255], %480 {strides = array<i32>} : memref<2x16xf32, #tpu.memory_space<vmem>>, vector<2x16xf32>,
    %c0_256 = arith.constant 0 : index
    %c0_257 = arith.constant 0 : index
    %482 = vector.load %arg8[%c0_256, %c0_257] : memref<2x16xf32, #tpu.memory_space<vmem>>, vector<2x16xf32>
    %483 = arith.maximumf %482, %473 : vector<2x16xf32>
    %c0_258 = arith.constant 0 : index
    %c0_259 = arith.constant 0 : index
    %484 = vector.load %arg8[%c0_258, %c0_259] : memref<2x16xf32, #tpu.memory_space<vmem>>, vector<2x16xf32>
    tpu.vector_store %arg8[%c0_258, %c0_259], %483 {strides = array<i32>} : memref<2x16xf32, #tpu.memory_space<vmem>>, vector<2x16xf32>,
    %c0_260 = arith.constant 0 : index
    %c6_261 = arith.constant 6 : index
    %c0_262 = arith.constant 0 : index
    %485 = vector.load %arg1[%c0_260, %c6_261, %c0_262] : memref<2x8x64xf32, #tpu.memory_space<vmem>>, vector<2x1x64xf32>
    %486 = vector.shape_cast %485 : vector<2x1x64xf32> to vector<2x64xf32>
    %c0_263 = arith.constant 0 : index
    %c0_264 = arith.constant 0 : index
    %487 = vector.load %arg9[%c0_263, %c0_264] : memref<2x16xf32, #tpu.memory_space<vmem>>, vector<2x16xf32>
    %c0_265 = arith.constant 0 : index
    %c0_266 = arith.constant 0 : index
    %488 = vector.load %arg10[%c0_265, %c0_266] : memref<2x16xf32, #tpu.memory_space<vmem>>, vector<2x16xf32>
    %489 = arith.truncf %487 : vector<2x16xf32> to vector<2x16xbf16>
    %cst_267 = arith.constant dense<0.000000e+00> : vector<2x64xf32>
    %490 = tpu.matmul %489, %3, %cst_267 {dimension_numbers = #tpu.dot_dimension_numbers<[1], [0], [0], [1], [0, 0, 1, 1], [], []>} : vector<2x16xbf16>, vector<16x64xbf16>, vector<2x64xf32> -> vector<2x64xf32>
    %491 = arith.addf %490, %486 : vector<2x64xf32>
    %492 = vector.extract_strided_slice %491 {offsets = [0, 0], sizes = [2, 16], strides = [1, 1]} : vector<2x64xf32> to vector<2x16xf32>
    %493 = arith.negf %492 : vector<2x16xf32>
    %494 = math.exp %493 : vector<2x16xf32>
    %cst_268 = arith.constant 1.000000e+00 : f32
    %495 = vector.broadcast %cst_268 : f32 to vector<2x16xf32>
    %496 = arith.addf %495, %494 : vector<2x16xf32>
    %497 = arith.divf %495, %496 : vector<2x16xf32>
    %498 = vector.extract_strided_slice %491 {offsets = [0, 16], sizes = [2, 16], strides = [1, 1]} : vector<2x64xf32> to vector<2x16xf32>
    %499 = arith.negf %498 : vector<2x16xf32>
    %500 = math.exp %499 : vector<2x16xf32>
    %cst_269 = arith.constant 1.000000e+00 : f32
    %501 = vector.broadcast %cst_269 : f32 to vector<2x16xf32>
    %502 = arith.addf %501, %500 : vector<2x16xf32>
    %503 = arith.divf %501, %502 : vector<2x16xf32>
    %504 = vector.extract_strided_slice %491 {offsets = [0, 32], sizes = [2, 16], strides = [1, 1]} : vector<2x64xf32> to vector<2x16xf32>
    %505 = math.tanh %504 : vector<2x16xf32>
    %506 = vector.extract_strided_slice %491 {offsets = [0, 48], sizes = [2, 16], strides = [1, 1]} : vector<2x64xf32> to vector<2x16xf32>
    %507 = arith.negf %506 : vector<2x16xf32>
    %508 = math.exp %507 : vector<2x16xf32>
    %cst_270 = arith.constant 1.000000e+00 : f32
    %509 = vector.broadcast %cst_270 : f32 to vector<2x16xf32>
    %510 = arith.addf %509, %508 : vector<2x16xf32>
    %511 = arith.divf %509, %510 : vector<2x16xf32>
    %512 = arith.mulf %503, %488 : vector<2x16xf32>
    %513 = arith.mulf %497, %505 : vector<2x16xf32>
    %514 = arith.addf %512, %513 : vector<2x16xf32>
    %515 = math.tanh %514 : vector<2x16xf32>
    %516 = arith.mulf %511, %515 : vector<2x16xf32>
    %c0_271 = arith.constant 0 : index
    %c0_272 = arith.constant 0 : index
    %517 = vector.load %arg9[%c0_271, %c0_272] : memref<2x16xf32, #tpu.memory_space<vmem>>, vector<2x16xf32>
    tpu.vector_store %arg9[%c0_271, %c0_272], %516 {strides = array<i32>} : memref<2x16xf32, #tpu.memory_space<vmem>>, vector<2x16xf32>,
    %c0_273 = arith.constant 0 : index
    %c0_274 = arith.constant 0 : index
    %518 = vector.load %arg10[%c0_273, %c0_274] : memref<2x16xf32, #tpu.memory_space<vmem>>, vector<2x16xf32>
    tpu.vector_store %arg10[%c0_273, %c0_274], %514 {strides = array<i32>} : memref<2x16xf32, #tpu.memory_space<vmem>>, vector<2x16xf32>,
    %c0_275 = arith.constant 0 : index
    %c6_276 = arith.constant 6 : index
    %c0_277 = arith.constant 0 : index
    %519 = vector.load %arg5[%c0_275, %c6_276, %c0_277] : memref<2x8x16xf32, #tpu.memory_space<vmem>>, vector<2x1x16xf32>
    %520 = vector.shape_cast %519 : vector<2x1x16xf32> to vector<2x16xf32>
    %521 = vector.shape_cast %516 : vector<2x16xf32> to vector<2x1x16xf32>
    tpu.vector_store %arg5[%c0_275, %c6_276, %c0_277], %521 {strides = array<i32>} : memref<2x8x16xf32, #tpu.memory_space<vmem>>, vector<2x1x16xf32>,
    %c0_278 = arith.constant 0 : index
    %c1_279 = arith.constant 1 : index
    %c0_280 = arith.constant 0 : index
    %522 = vector.load %arg2[%c0_278, %c1_279, %c0_280] : memref<2x8x64xf32, #tpu.memory_space<vmem>>, vector<2x1x64xf32>
    %523 = vector.shape_cast %522 : vector<2x1x64xf32> to vector<2x64xf32>
    %c0_281 = arith.constant 0 : index
    %c0_282 = arith.constant 0 : index
    %524 = vector.load %arg11[%c0_281, %c0_282] : memref<2x16xf32, #tpu.memory_space<vmem>>, vector<2x16xf32>
    %c0_283 = arith.constant 0 : index
    %c0_284 = arith.constant 0 : index
    %525 = vector.load %arg12[%c0_283, %c0_284] : memref<2x16xf32, #tpu.memory_space<vmem>>, vector<2x16xf32>
    %526 = arith.truncf %524 : vector<2x16xf32> to vector<2x16xbf16>
    %cst_285 = arith.constant dense<0.000000e+00> : vector<2x64xf32>
    %527 = tpu.matmul %526, %4, %cst_285 {dimension_numbers = #tpu.dot_dimension_numbers<[1], [0], [0], [1], [0, 0, 1, 1], [], []>} : vector<2x16xbf16>, vector<16x64xbf16>, vector<2x64xf32> -> vector<2x64xf32>
    %528 = arith.addf %527, %523 : vector<2x64xf32>
    %529 = vector.extract_strided_slice %528 {offsets = [0, 0], sizes = [2, 16], strides = [1, 1]} : vector<2x64xf32> to vector<2x16xf32>
    %530 = arith.negf %529 : vector<2x16xf32>
    %531 = math.exp %530 : vector<2x16xf32>
    %cst_286 = arith.constant 1.000000e+00 : f32
    %532 = vector.broadcast %cst_286 : f32 to vector<2x16xf32>
    %533 = arith.addf %532, %531 : vector<2x16xf32>
    %534 = arith.divf %532, %533 : vector<2x16xf32>
    %535 = vector.extract_strided_slice %528 {offsets = [0, 16], sizes = [2, 16], strides = [1, 1]} : vector<2x64xf32> to vector<2x16xf32>
    %536 = arith.negf %535 : vector<2x16xf32>
    %537 = math.exp %536 : vector<2x16xf32>
    %cst_287 = arith.constant 1.000000e+00 : f32
    %538 = vector.broadcast %cst_287 : f32 to vector<2x16xf32>
    %539 = arith.addf %538, %537 : vector<2x16xf32>
    %540 = arith.divf %538, %539 : vector<2x16xf32>
    %541 = vector.extract_strided_slice %528 {offsets = [0, 32], sizes = [2, 16], strides = [1, 1]} : vector<2x64xf32> to vector<2x16xf32>
    %542 = math.tanh %541 : vector<2x16xf32>
    %543 = vector.extract_strided_slice %528 {offsets = [0, 48], sizes = [2, 16], strides = [1, 1]} : vector<2x64xf32> to vector<2x16xf32>
    %544 = arith.negf %543 : vector<2x16xf32>
    %545 = math.exp %544 : vector<2x16xf32>
    %cst_288 = arith.constant 1.000000e+00 : f32
    %546 = vector.broadcast %cst_288 : f32 to vector<2x16xf32>
    %547 = arith.addf %546, %545 : vector<2x16xf32>
    %548 = arith.divf %546, %547 : vector<2x16xf32>
    %549 = arith.mulf %540, %525 : vector<2x16xf32>
    %550 = arith.mulf %534, %542 : vector<2x16xf32>
    %551 = arith.addf %549, %550 : vector<2x16xf32>
    %552 = math.tanh %551 : vector<2x16xf32>
    %553 = arith.mulf %548, %552 : vector<2x16xf32>
    %c0_289 = arith.constant 0 : index
    %c0_290 = arith.constant 0 : index
    %554 = vector.load %arg11[%c0_289, %c0_290] : memref<2x16xf32, #tpu.memory_space<vmem>>, vector<2x16xf32>
    tpu.vector_store %arg11[%c0_289, %c0_290], %553 {strides = array<i32>} : memref<2x16xf32, #tpu.memory_space<vmem>>, vector<2x16xf32>,
    %c0_291 = arith.constant 0 : index
    %c0_292 = arith.constant 0 : index
    %555 = vector.load %arg12[%c0_291, %c0_292] : memref<2x16xf32, #tpu.memory_space<vmem>>, vector<2x16xf32>
    tpu.vector_store %arg12[%c0_291, %c0_292], %551 {strides = array<i32>} : memref<2x16xf32, #tpu.memory_space<vmem>>, vector<2x16xf32>,
    %c0_293 = arith.constant 0 : index
    %c1_294 = arith.constant 1 : index
    %c0_295 = arith.constant 0 : index
    %556 = vector.load %arg6[%c0_293, %c1_294, %c0_295] : memref<2x8x16xf32, #tpu.memory_space<vmem>>, vector<2x1x16xf32>
    %557 = vector.shape_cast %556 : vector<2x1x16xf32> to vector<2x16xf32>
    %558 = vector.shape_cast %553 : vector<2x16xf32> to vector<2x1x16xf32>
    tpu.vector_store %arg6[%c0_293, %c1_294, %c0_295], %558 {strides = array<i32>} : memref<2x8x16xf32, #tpu.memory_space<vmem>>, vector<2x1x16xf32>,
    %c0_296 = arith.constant 0 : index
    %c0_297 = arith.constant 0 : index
    %559 = vector.load %arg7[%c0_296, %c0_297] : memref<2x16xf32, #tpu.memory_space<vmem>>, vector<2x16xf32>
    %560 = arith.maximumf %559, %516 : vector<2x16xf32>
    %c0_298 = arith.constant 0 : index
    %c0_299 = arith.constant 0 : index
    %561 = vector.load %arg7[%c0_298, %c0_299] : memref<2x16xf32, #tpu.memory_space<vmem>>, vector<2x16xf32>
    tpu.vector_store %arg7[%c0_298, %c0_299], %560 {strides = array<i32>} : memref<2x16xf32, #tpu.memory_space<vmem>>, vector<2x16xf32>,
    %c0_300 = arith.constant 0 : index
    %c0_301 = arith.constant 0 : index
    %562 = vector.load %arg8[%c0_300, %c0_301] : memref<2x16xf32, #tpu.memory_space<vmem>>, vector<2x16xf32>
    %563 = arith.maximumf %562, %553 : vector<2x16xf32>
    %c0_302 = arith.constant 0 : index
    %c0_303 = arith.constant 0 : index
    %564 = vector.load %arg8[%c0_302, %c0_303] : memref<2x16xf32, #tpu.memory_space<vmem>>, vector<2x16xf32>
    tpu.vector_store %arg8[%c0_302, %c0_303], %563 {strides = array<i32>} : memref<2x16xf32, #tpu.memory_space<vmem>>, vector<2x16xf32>,
    %c0_304 = arith.constant 0 : index
    %c7_305 = arith.constant 7 : index
    %c0_306 = arith.constant 0 : index
    %565 = vector.load %arg1[%c0_304, %c7_305, %c0_306] : memref<2x8x64xf32, #tpu.memory_space<vmem>>, vector<2x1x64xf32>
    %566 = vector.shape_cast %565 : vector<2x1x64xf32> to vector<2x64xf32>
    %c0_307 = arith.constant 0 : index
    %c0_308 = arith.constant 0 : index
    %567 = vector.load %arg9[%c0_307, %c0_308] : memref<2x16xf32, #tpu.memory_space<vmem>>, vector<2x16xf32>
    %c0_309 = arith.constant 0 : index
    %c0_310 = arith.constant 0 : index
    %568 = vector.load %arg10[%c0_309, %c0_310] : memref<2x16xf32, #tpu.memory_space<vmem>>, vector<2x16xf32>
    %569 = arith.truncf %567 : vector<2x16xf32> to vector<2x16xbf16>
    %cst_311 = arith.constant dense<0.000000e+00> : vector<2x64xf32>
    %570 = tpu.matmul %569, %3, %cst_311 {dimension_numbers = #tpu.dot_dimension_numbers<[1], [0], [0], [1], [0, 0, 1, 1], [], []>} : vector<2x16xbf16>, vector<16x64xbf16>, vector<2x64xf32> -> vector<2x64xf32>
    %571 = arith.addf %570, %566 : vector<2x64xf32>
    %572 = vector.extract_strided_slice %571 {offsets = [0, 0], sizes = [2, 16], strides = [1, 1]} : vector<2x64xf32> to vector<2x16xf32>
    %573 = arith.negf %572 : vector<2x16xf32>
    %574 = math.exp %573 : vector<2x16xf32>
    %cst_312 = arith.constant 1.000000e+00 : f32
    %575 = vector.broadcast %cst_312 : f32 to vector<2x16xf32>
    %576 = arith.addf %575, %574 : vector<2x16xf32>
    %577 = arith.divf %575, %576 : vector<2x16xf32>
    %578 = vector.extract_strided_slice %571 {offsets = [0, 16], sizes = [2, 16], strides = [1, 1]} : vector<2x64xf32> to vector<2x16xf32>
    %579 = arith.negf %578 : vector<2x16xf32>
    %580 = math.exp %579 : vector<2x16xf32>
    %cst_313 = arith.constant 1.000000e+00 : f32
    %581 = vector.broadcast %cst_313 : f32 to vector<2x16xf32>
    %582 = arith.addf %581, %580 : vector<2x16xf32>
    %583 = arith.divf %581, %582 : vector<2x16xf32>
    %584 = vector.extract_strided_slice %571 {offsets = [0, 32], sizes = [2, 16], strides = [1, 1]} : vector<2x64xf32> to vector<2x16xf32>
    %585 = math.tanh %584 : vector<2x16xf32>
    %586 = vector.extract_strided_slice %571 {offsets = [0, 48], sizes = [2, 16], strides = [1, 1]} : vector<2x64xf32> to vector<2x16xf32>
    %587 = arith.negf %586 : vector<2x16xf32>
    %588 = math.exp %587 : vector<2x16xf32>
    %cst_314 = arith.constant 1.000000e+00 : f32
    %589 = vector.broadcast %cst_314 : f32 to vector<2x16xf32>
    %590 = arith.addf %589, %588 : vector<2x16xf32>
    %591 = arith.divf %589, %590 : vector<2x16xf32>
    %592 = arith.mulf %583, %568 : vector<2x16xf32>
    %593 = arith.mulf %577, %585 : vector<2x16xf32>
    %594 = arith.addf %592, %593 : vector<2x16xf32>
    %595 = math.tanh %594 : vector<2x16xf32>
    %596 = arith.mulf %591, %595 : vector<2x16xf32>
    %c0_315 = arith.constant 0 : index
    %c0_316 = arith.constant 0 : index
    %597 = vector.load %arg9[%c0_315, %c0_316] : memref<2x16xf32, #tpu.memory_space<vmem>>, vector<2x16xf32>
    tpu.vector_store %arg9[%c0_315, %c0_316], %596 {strides = array<i32>} : memref<2x16xf32, #tpu.memory_space<vmem>>, vector<2x16xf32>,
    %c0_317 = arith.constant 0 : index
    %c0_318 = arith.constant 0 : index
    %598 = vector.load %arg10[%c0_317, %c0_318] : memref<2x16xf32, #tpu.memory_space<vmem>>, vector<2x16xf32>
    tpu.vector_store %arg10[%c0_317, %c0_318], %594 {strides = array<i32>} : memref<2x16xf32, #tpu.memory_space<vmem>>, vector<2x16xf32>,
    %c0_319 = arith.constant 0 : index
    %c7_320 = arith.constant 7 : index
    %c0_321 = arith.constant 0 : index
    %599 = vector.load %arg5[%c0_319, %c7_320, %c0_321] : memref<2x8x16xf32, #tpu.memory_space<vmem>>, vector<2x1x16xf32>
    %600 = vector.shape_cast %599 : vector<2x1x16xf32> to vector<2x16xf32>
    %601 = vector.shape_cast %596 : vector<2x16xf32> to vector<2x1x16xf32>
    tpu.vector_store %arg5[%c0_319, %c7_320, %c0_321], %601 {strides = array<i32>} : memref<2x8x16xf32, #tpu.memory_space<vmem>>, vector<2x1x16xf32>,
    %c0_322 = arith.constant 0 : index
    %c0_323 = arith.constant 0 : index
    %c0_324 = arith.constant 0 : index
    %602 = vector.load %arg2[%c0_322, %c0_323, %c0_324] : memref<2x8x64xf32, #tpu.memory_space<vmem>>, vector<2x1x64xf32>
    %603 = vector.shape_cast %602 : vector<2x1x64xf32> to vector<2x64xf32>
    %c0_325 = arith.constant 0 : index
    %c0_326 = arith.constant 0 : index
    %604 = vector.load %arg11[%c0_325, %c0_326] : memref<2x16xf32, #tpu.memory_space<vmem>>, vector<2x16xf32>
    %c0_327 = arith.constant 0 : index
    %c0_328 = arith.constant 0 : index
    %605 = vector.load %arg12[%c0_327, %c0_328] : memref<2x16xf32, #tpu.memory_space<vmem>>, vector<2x16xf32>
    %606 = arith.truncf %604 : vector<2x16xf32> to vector<2x16xbf16>
    %cst_329 = arith.constant dense<0.000000e+00> : vector<2x64xf32>
    %607 = tpu.matmul %606, %4, %cst_329 {dimension_numbers = #tpu.dot_dimension_numbers<[1], [0], [0], [1], [0, 0, 1, 1], [], []>} : vector<2x16xbf16>, vector<16x64xbf16>, vector<2x64xf32> -> vector<2x64xf32>
    %608 = arith.addf %607, %603 : vector<2x64xf32>
    %609 = vector.extract_strided_slice %608 {offsets = [0, 0], sizes = [2, 16], strides = [1, 1]} : vector<2x64xf32> to vector<2x16xf32>
    %610 = arith.negf %609 : vector<2x16xf32>
    %611 = math.exp %610 : vector<2x16xf32>
    %cst_330 = arith.constant 1.000000e+00 : f32
    %612 = vector.broadcast %cst_330 : f32 to vector<2x16xf32>
    %613 = arith.addf %612, %611 : vector<2x16xf32>
    %614 = arith.divf %612, %613 : vector<2x16xf32>
    %615 = vector.extract_strided_slice %608 {offsets = [0, 16], sizes = [2, 16], strides = [1, 1]} : vector<2x64xf32> to vector<2x16xf32>
    %616 = arith.negf %615 : vector<2x16xf32>
    %617 = math.exp %616 : vector<2x16xf32>
    %cst_331 = arith.constant 1.000000e+00 : f32
    %618 = vector.broadcast %cst_331 : f32 to vector<2x16xf32>
    %619 = arith.addf %618, %617 : vector<2x16xf32>
    %620 = arith.divf %618, %619 : vector<2x16xf32>
    %621 = vector.extract_strided_slice %608 {offsets = [0, 32], sizes = [2, 16], strides = [1, 1]} : vector<2x64xf32> to vector<2x16xf32>
    %622 = math.tanh %621 : vector<2x16xf32>
    %623 = vector.extract_strided_slice %608 {offsets = [0, 48], sizes = [2, 16], strides = [1, 1]} : vector<2x64xf32> to vector<2x16xf32>
    %624 = arith.negf %623 : vector<2x16xf32>
    %625 = math.exp %624 : vector<2x16xf32>
    %cst_332 = arith.constant 1.000000e+00 : f32
    %626 = vector.broadcast %cst_332 : f32 to vector<2x16xf32>
    %627 = arith.addf %626, %625 : vector<2x16xf32>
    %628 = arith.divf %626, %627 : vector<2x16xf32>
    %629 = arith.mulf %620, %605 : vector<2x16xf32>
    %630 = arith.mulf %614, %622 : vector<2x16xf32>
    %631 = arith.addf %629, %630 : vector<2x16xf32>
    %632 = math.tanh %631 : vector<2x16xf32>
    %633 = arith.mulf %628, %632 : vector<2x16xf32>
    %c0_333 = arith.constant 0 : index
    %c0_334 = arith.constant 0 : index
    %634 = vector.load %arg11[%c0_333, %c0_334] : memref<2x16xf32, #tpu.memory_space<vmem>>, vector<2x16xf32>
    tpu.vector_store %arg11[%c0_333, %c0_334], %633 {strides = array<i32>} : memref<2x16xf32, #tpu.memory_space<vmem>>, vector<2x16xf32>,
    %c0_335 = arith.constant 0 : index
    %c0_336 = arith.constant 0 : index
    %635 = vector.load %arg12[%c0_335, %c0_336] : memref<2x16xf32, #tpu.memory_space<vmem>>, vector<2x16xf32>
    tpu.vector_store %arg12[%c0_335, %c0_336], %631 {strides = array<i32>} : memref<2x16xf32, #tpu.memory_space<vmem>>, vector<2x16xf32>,
    %c0_337 = arith.constant 0 : index
    %c0_338 = arith.constant 0 : index
    %c0_339 = arith.constant 0 : index
    %636 = vector.load %arg6[%c0_337, %c0_338, %c0_339] : memref<2x8x16xf32, #tpu.memory_space<vmem>>, vector<2x1x16xf32>
    %637 = vector.shape_cast %636 : vector<2x1x16xf32> to vector<2x16xf32>
    %638 = vector.shape_cast %633 : vector<2x16xf32> to vector<2x1x16xf32>
    tpu.vector_store %arg6[%c0_337, %c0_338, %c0_339], %638 {strides = array<i32>} : memref<2x8x16xf32, #tpu.memory_space<vmem>>, vector<2x1x16xf32>,
    %c0_340 = arith.constant 0 : index
    %c0_341 = arith.constant 0 : index
    %639 = vector.load %arg7[%c0_340, %c0_341] : memref<2x16xf32, #tpu.memory_space<vmem>>, vector<2x16xf32>
    %640 = arith.maximumf %639, %596 : vector<2x16xf32>
    %c0_342 = arith.constant 0 : index
    %c0_343 = arith.constant 0 : index
    %641 = vector.load %arg7[%c0_342, %c0_343] : memref<2x16xf32, #tpu.memory_space<vmem>>, vector<2x16xf32>
    tpu.vector_store %arg7[%c0_342, %c0_343], %640 {strides = array<i32>} : memref<2x16xf32, #tpu.memory_space<vmem>>, vector<2x16xf32>,
    %c0_344 = arith.constant 0 : index
    %c0_345 = arith.constant 0 : index
    %642 = vector.load %arg8[%c0_344, %c0_345] : memref<2x16xf32, #tpu.memory_space<vmem>>, vector<2x16xf32>
    %643 = arith.maximumf %642, %633 : vector<2x16xf32>
    %c0_346 = arith.constant 0 : index
    %c0_347 = arith.constant 0 : index
    %644 = vector.load %arg8[%c0_346, %c0_347] : memref<2x16xf32, #tpu.memory_space<vmem>>, vector<2x16xf32>
    tpu.vector_store %arg8[%c0_346, %c0_347], %643 {strides = array<i32>} : memref<2x16xf32, #tpu.memory_space<vmem>>, vector<2x16xf32>,
    return
  }
  func.func @transform_0(%arg0: i32) -> (i32, i32, i32) {
    %c0_i32 = arith.constant 0 : i32
    %c0_i32_0 = arith.constant 0 : i32
    %c0_i32_1 = arith.constant 0 : i32
    return %c0_i32, %arg0, %c0_i32_0 : i32, i32, i32
  }
  func.func @transform_1(%arg0: i32) -> (i32, i32, i32) {
    %c1_i32 = arith.constant 1 : i32
    %0 = arith.subi %c1_i32, %arg0 : i32
    %c0_i32 = arith.constant 0 : i32
    %c0_i32_0 = arith.constant 0 : i32
    %c0_i32_1 = arith.constant 0 : i32
    return %c0_i32, %0, %c0_i32_0 : i32, i32, i32
  }
  func.func @transform_2(%arg0: i32) -> (i32, i32) {
    %c0_i32 = arith.constant 0 : i32
    %c0_i32_0 = arith.constant 0 : i32
    %c0_i32_1 = arith.constant 0 : i32
    return %c0_i32, %c0_i32_0 : i32, i32
  }
  func.func @transform_3(%arg0: i32) -> (i32, i32) {
    %c0_i32 = arith.constant 0 : i32
    %c0_i32_0 = arith.constant 0 : i32
    %c0_i32_1 = arith.constant 0 : i32
    return %c0_i32, %c0_i32_0 : i32, i32
  }
  func.func @transform_4(%arg0: i32) -> (i32, i32, i32) {
    %c0_i32 = arith.constant 0 : i32
    %c0_i32_0 = arith.constant 0 : i32
    %c0_i32_1 = arith.constant 0 : i32
    return %c0_i32, %arg0, %c0_i32_0 : i32, i32, i32
  }
  func.func @transform_5(%arg0: i32) -> (i32, i32, i32) {
    %c1_i32 = arith.constant 1 : i32
    %0 = arith.subi %c1_i32, %arg0 : i32
    %c0_i32 = arith.constant 0 : i32
    %c0_i32_0 = arith.constant 0 : i32
    %c0_i32_1 = arith.constant 0 : i32
    return %c0_i32, %0, %c0_i32_0 : i32, i32, i32
  }
  func.func @transform_6(%arg0: i32) -> (i32, i32) {
    %c0_i32 = arith.constant 0 : i32
    %c0_i32_0 = arith.constant 0 : i32
    %c0_i32_1 = arith.constant 0 : i32
    return %c0_i32, %c0_i32_0 : i32, i32
  }
  func.func @transform_7(%arg0: i32) -> (i32, i32) {
    %c0_i32 = arith.constant 0 : i32
    %c0_i32_0 = arith.constant 0 : i32
    %c0_i32_1 = arith.constant 0 : i32
    return %c0_i32, %c0_i32_0 : i32, i32
  }
}

module attributes {stable_mosaic.version = 11 : i64} {
  func.func @bilstm_block_kernel(%arg0: i32, %arg1: memref<2x8x64xf32, #tpu.memory_space<vmem>>, %arg2: memref<2x8x64xf32, #tpu.memory_space<vmem>>, %arg3: memref<16x64xbf16, #tpu.memory_space<vmem>>, %arg4: memref<16x64xbf16, #tpu.memory_space<vmem>>, %arg5: memref<2x8x16xf32, #tpu.memory_space<vmem>>, %arg6: memref<2x8x16xf32, #tpu.memory_space<vmem>>, %arg7: memref<2x16xf32, #tpu.memory_space<vmem>>, %arg8: memref<2x16xf32, #tpu.memory_space<vmem>>, %arg9: memref<2x16xf32, #tpu.memory_space<vmem>>, %arg10: memref<2x16xf32, #tpu.memory_space<vmem>>, %arg11: memref<2x16xf32, #tpu.memory_space<vmem>>, %arg12: memref<2x16xf32, #tpu.memory_space<vmem>>) attributes {dimension_semantics = [#tpu.dimension_semantics<arbitrary>], iteration_bounds = array<i64: 2>, scalar_prefetch = 0 : i64, scratch_operands = 4 : i64, tpu.core_type = #tpu.core_type<tc>, window_params = [{transform_indices = @transform_0, window_bounds = array<i64: 2, 8, 64>}, {transform_indices = @transform_1, window_bounds = array<i64: 2, 8, 64>}, {pipeline_mode = #tpu.pipeline_mode<synchronous>, transform_indices = @transform_2, window_bounds = array<i64: 16, 64>}, {pipeline_mode = #tpu.pipeline_mode<synchronous>, transform_indices = @transform_3, window_bounds = array<i64: 16, 64>}, {transform_indices = @transform_4, window_bounds = array<i64: 2, 8, 16>}, {transform_indices = @transform_5, window_bounds = array<i64: 2, 8, 16>}, {pipeline_mode = #tpu.pipeline_mode<synchronous>, transform_indices = @transform_6, window_bounds = array<i64: 2, 16>}, {pipeline_mode = #tpu.pipeline_mode<synchronous>, transform_indices = @transform_7, window_bounds = array<i64: 2, 16>}]} {
    %c0_i32 = arith.constant 0 : i32
    %0 = arith.cmpi eq, %arg0, %c0_i32 : i32
    %1 = arith.extui %0 : i1 to i32
    %c0_i32_0 = arith.constant 0 : i32
    %2 = arith.cmpi ne, %1, %c0_i32_0 : i32
    scf.if %2 {
      %cst_348 = arith.constant 0.000000e+00 : f32
      %645 = vector.broadcast %cst_348 : f32 to vector<2x16xf32>
      %c0_349 = arith.constant 0 : index
      %c0_350 = arith.constant 0 : index
      %646 = vector.load %arg9[%c0_349, %c0_350] : memref<2x16xf32, #tpu.memory_space<vmem>>, vector<2x16xf32>
      tpu.vector_store %arg9[%c0_349, %c0_350], %645 {strides = array<i32>} : memref<2x16xf32, #tpu.memory_space<vmem>>, vector<2x16xf32>,
      %c0_351 = arith.constant 0 : index
      %c0_352 = arith.constant 0 : index
      %647 = vector.load %arg10[%c0_351, %c0_352] : memref<2x16xf32, #tpu.memory_space<vmem>>, vector<2x16xf32>
      tpu.vector_store %arg10[%c0_351, %c0_352], %645 {strides = array<i32>} : memref<2x16xf32, #tpu.memory_space<vmem>>, vector<2x16xf32>,
      %c0_353 = arith.constant 0 : index
      %c0_354 = arith.constant 0 : index
      %648 = vector.load %arg11[%c0_353, %c0_354] : memref<2x16xf32, #tpu.memory_space<vmem>>, vector<2x16xf32>
      tpu.vector_store %arg11[%c0_353, %c0_354], %645 {strides = array<i32>} : memref<2x16xf32, #tpu.memory_space<vmem>>, vector<2x16xf32>,
      %c0_355 = arith.constant 0 : index
      %c0_356 = arith.constant 0 : index
      %649 = vector.load %arg12[%c0_355, %c0_356] : memref<2x16xf32, #tpu.memory_space<vmem>>, vector<2x16xf32>
      tpu.vector_store %arg12[%c0_355, %c0_356], %645 {strides = array<i32>} : memref<2x16xf32, #tpu.memory_space<vmem>>, vector<2x16xf32>,
      %cst_357 = arith.constant 0xFF800000 : f32
      %650 = vector.broadcast %cst_357 : f32 to vector<2x16xf32>
      %c0_358 = arith.constant 0 : index
      %c0_359 = arith.constant 0 : index
      %651 = vector.load %arg7[%c0_358, %c0_359] : memref<2x16xf32, #tpu.memory_space<vmem>>, vector<2x16xf32>
      tpu.vector_store %arg7[%c0_358, %c0_359], %650 {strides = array<i32>} : memref<2x16xf32, #tpu.memory_space<vmem>>, vector<2x16xf32>,
      %c0_360 = arith.constant 0 : index
      %c0_361 = arith.constant 0 : index
      %652 = vector.load %arg8[%c0_360, %c0_361] : memref<2x16xf32, #tpu.memory_space<vmem>>, vector<2x16xf32>
      tpu.vector_store %arg8[%c0_360, %c0_361], %650 {strides = array<i32>} : memref<2x16xf32, #tpu.memory_space<vmem>>, vector<2x16xf32>,
    } else {
    }
    %c0 = arith.constant 0 : index
    %c0_1 = arith.constant 0 : index
    %3 = vector.load %arg3[%c0, %c0_1] : memref<16x64xbf16, #tpu.memory_space<vmem>>, vector<16x64xbf16>
    %c0_2 = arith.constant 0 : index
    %c0_3 = arith.constant 0 : index
    %4 = vector.load %arg4[%c0_2, %c0_3] : memref<16x64xbf16, #tpu.memory_space<vmem>>, vector<16x64xbf16>
    %c0_4 = arith.constant 0 : index
    %c0_5 = arith.constant 0 : index
    %c0_6 = arith.constant 0 : index
    %5 = vector.load %arg1[%c0_4, %c0_5, %c0_6] : memref<2x8x64xf32, #tpu.memory_space<vmem>>, vector<2x1x64xf32>
    %6 = vector.shape_cast %5 : vector<2x1x64xf32> to vector<2x64xf32>
    %c0_7 = arith.constant 0 : index
    %c0_8 = arith.constant 0 : index
    %7 = vector.load %arg9[%c0_7, %c0_8] : memref<2x16xf32, #tpu.memory_space<vmem>>, vector<2x16xf32>
    %c0_9 = arith.constant 0 : index
    %c0_10 = arith.constant 0 : index
    %8 = vector.load %arg10[%c0_9, %c0_10] : memref<2x16xf32, #tpu.memory_space<vmem>>, vector<2x16xf32>
    %9 = arith.truncf %7 : vector<2x16xf32> to vector<2x16xbf16>
    %cst = arith.constant dense<0.000000e+00> : vector<2x64xf32>
    %10 = tpu.matmul %9, %3, %cst {dimension_numbers = #tpu.dot_dimension_numbers<[1], [0], [0], [1], [0, 0, 1, 1], [], []>} : vector<2x16xbf16>, vector<16x64xbf16>, vector<2x64xf32> -> vector<2x64xf32>
    %11 = arith.addf %10, %6 : vector<2x64xf32>
    %12 = vector.extract_strided_slice %11 {offsets = [0, 0], sizes = [2, 16], strides = [1, 1]} : vector<2x64xf32> to vector<2x16xf32>
    %13 = arith.negf %12 : vector<2x16xf32>
    %14 = math.exp %13 : vector<2x16xf32>
    %cst_11 = arith.constant 1.000000e+00 : f32
    %15 = vector.broadcast %cst_11 : f32 to vector<2x16xf32>
    %16 = arith.addf %15, %14 : vector<2x16xf32>
    %17 = arith.divf %15, %16 : vector<2x16xf32>
    %18 = vector.extract_strided_slice %11 {offsets = [0, 16], sizes = [2, 16], strides = [1, 1]} : vector<2x64xf32> to vector<2x16xf32>
    %19 = arith.negf %18 : vector<2x16xf32>
    %20 = math.exp %19 : vector<2x16xf32>
    %cst_12 = arith.constant 1.000000e+00 : f32
    %21 = vector.broadcast %cst_12 : f32 to vector<2x16xf32>
    %22 = arith.addf %21, %20 : vector<2x16xf32>
    %23 = arith.divf %21, %22 : vector<2x16xf32>
    %24 = vector.extract_strided_slice %11 {offsets = [0, 32], sizes = [2, 16], strides = [1, 1]} : vector<2x64xf32> to vector<2x16xf32>
    %25 = math.tanh %24 : vector<2x16xf32>
    %26 = vector.extract_strided_slice %11 {offsets = [0, 48], sizes = [2, 16], strides = [1, 1]} : vector<2x64xf32> to vector<2x16xf32>
    %27 = arith.negf %26 : vector<2x16xf32>
    %28 = math.exp %27 : vector<2x16xf32>
    %cst_13 = arith.constant 1.000000e+00 : f32
    %29 = vector.broadcast %cst_13 : f32 to vector<2x16xf32>
    %30 = arith.addf %29, %28 : vector<2x16xf32>
    %31 = arith.divf %29, %30 : vector<2x16xf32>
    %32 = arith.mulf %23, %8 : vector<2x16xf32>
    %33 = arith.mulf %17, %25 : vector<2x16xf32>
    %34 = arith.addf %32, %33 : vector<2x16xf32>
    %35 = math.tanh %34 : vector<2x16xf32>
    %36 = arith.mulf %31, %35 : vector<2x16xf32>
    %c0_14 = arith.constant 0 : index
    %c0_15 = arith.constant 0 : index
    %37 = vector.load %arg9[%c0_14, %c0_15] : memref<2x16xf32, #tpu.memory_space<vmem>>, vector<2x16xf32>
    tpu.vector_store %arg9[%c0_14, %c0_15], %36 {strides = array<i32>} : memref<2x16xf32, #tpu.memory_space<vmem>>, vector<2x16xf32>,
    %c0_16 = arith.constant 0 : index
    %c0_17 = arith.constant 0 : index
    %38 = vector.load %arg10[%c0_16, %c0_17] : memref<2x16xf32, #tpu.memory_space<vmem>>, vector<2x16xf32>
    tpu.vector_store %arg10[%c0_16, %c0_17], %34 {strides = array<i32>} : memref<2x16xf32, #tpu.memory_space<vmem>>, vector<2x16xf32>,
    %c0_18 = arith.constant 0 : index
    %c0_19 = arith.constant 0 : index
    %c0_20 = arith.constant 0 : index
    %39 = vector.load %arg5[%c0_18, %c0_19, %c0_20] : memref<2x8x16xf32, #tpu.memory_space<vmem>>, vector<2x1x16xf32>
    %40 = vector.shape_cast %39 : vector<2x1x16xf32> to vector<2x16xf32>
    %41 = vector.shape_cast %36 : vector<2x16xf32> to vector<2x1x16xf32>
    tpu.vector_store %arg5[%c0_18, %c0_19, %c0_20], %41 {strides = array<i32>} : memref<2x8x16xf32, #tpu.memory_space<vmem>>, vector<2x1x16xf32>,
    %c0_21 = arith.constant 0 : index
    %c7 = arith.constant 7 : index
    %c0_22 = arith.constant 0 : index
    %42 = vector.load %arg2[%c0_21, %c7, %c0_22] : memref<2x8x64xf32, #tpu.memory_space<vmem>>, vector<2x1x64xf32>
    %43 = vector.shape_cast %42 : vector<2x1x64xf32> to vector<2x64xf32>
    %c0_23 = arith.constant 0 : index
    %c0_24 = arith.constant 0 : index
    %44 = vector.load %arg11[%c0_23, %c0_24] : memref<2x16xf32, #tpu.memory_space<vmem>>, vector<2x16xf32>
    %c0_25 = arith.constant 0 : index
    %c0_26 = arith.constant 0 : index
    %45 = vector.load %arg12[%c0_25, %c0_26] : memref<2x16xf32, #tpu.memory_space<vmem>>, vector<2x16xf32>
    %46 = arith.truncf %44 : vector<2x16xf32> to vector<2x16xbf16>
    %cst_27 = arith.constant dense<0.000000e+00> : vector<2x64xf32>
    %47 = tpu.matmul %46, %4, %cst_27 {dimension_numbers = #tpu.dot_dimension_numbers<[1], [0], [0], [1], [0, 0, 1, 1], [], []>} : vector<2x16xbf16>, vector<16x64xbf16>, vector<2x64xf32> -> vector<2x64xf32>
    %48 = arith.addf %47, %43 : vector<2x64xf32>
    %49 = vector.extract_strided_slice %48 {offsets = [0, 0], sizes = [2, 16], strides = [1, 1]} : vector<2x64xf32> to vector<2x16xf32>
    %50 = arith.negf %49 : vector<2x16xf32>
    %51 = math.exp %50 : vector<2x16xf32>
    %cst_28 = arith.constant 1.000000e+00 : f32
    %52 = vector.broadcast %cst_28 : f32 to vector<2x16xf32>
    %53 = arith.addf %52, %51 : vector<2x16xf32>
    %54 = arith.divf %52, %53 : vector<2x16xf32>
    %55 = vector.extract_strided_slice %48 {offsets = [0, 16], sizes = [2, 16], strides = [1, 1]} : vector<2x64xf32> to vector<2x16xf32>
    %56 = arith.negf %55 : vector<2x16xf32>
    %57 = math.exp %56 : vector<2x16xf32>
    %cst_29 = arith.constant 1.000000e+00 : f32
    %58 = vector.broadcast %cst_29 : f32 to vector<2x16xf32>
    %59 = arith.addf %58, %57 : vector<2x16xf32>
    %60 = arith.divf %58, %59 : vector<2x16xf32>
    %61 = vector.extract_strided_slice %48 {offsets = [0, 32], sizes = [2, 16], strides = [1, 1]} : vector<2x64xf32> to vector<2x16xf32>
    %62 = math.tanh %61 : vector<2x16xf32>
    %63 = vector.extract_strided_slice %48 {offsets = [0, 48], sizes = [2, 16], strides = [1, 1]} : vector<2x64xf32> to vector<2x16xf32>
    %64 = arith.negf %63 : vector<2x16xf32>
    %65 = math.exp %64 : vector<2x16xf32>
    %cst_30 = arith.constant 1.000000e+00 : f32
    %66 = vector.broadcast %cst_30 : f32 to vector<2x16xf32>
    %67 = arith.addf %66, %65 : vector<2x16xf32>
    %68 = arith.divf %66, %67 : vector<2x16xf32>
    %69 = arith.mulf %60, %45 : vector<2x16xf32>
    %70 = arith.mulf %54, %62 : vector<2x16xf32>
    %71 = arith.addf %69, %70 : vector<2x16xf32>
    %72 = math.tanh %71 : vector<2x16xf32>
    %73 = arith.mulf %68, %72 : vector<2x16xf32>
    %c0_31 = arith.constant 0 : index
    %c0_32 = arith.constant 0 : index
    %74 = vector.load %arg11[%c0_31, %c0_32] : memref<2x16xf32, #tpu.memory_space<vmem>>, vector<2x16xf32>
    tpu.vector_store %arg11[%c0_31, %c0_32], %73 {strides = array<i32>} : memref<2x16xf32, #tpu.memory_space<vmem>>, vector<2x16xf32>,
    %c0_33 = arith.constant 0 : index
    %c0_34 = arith.constant 0 : index
    %75 = vector.load %arg12[%c0_33, %c0_34] : memref<2x16xf32, #tpu.memory_space<vmem>>, vector<2x16xf32>
    tpu.vector_store %arg12[%c0_33, %c0_34], %71 {strides = array<i32>} : memref<2x16xf32, #tpu.memory_space<vmem>>, vector<2x16xf32>,
    %c0_35 = arith.constant 0 : index
    %c7_36 = arith.constant 7 : index
    %c0_37 = arith.constant 0 : index
    %76 = vector.load %arg6[%c0_35, %c7_36, %c0_37] : memref<2x8x16xf32, #tpu.memory_space<vmem>>, vector<2x1x16xf32>
    %77 = vector.shape_cast %76 : vector<2x1x16xf32> to vector<2x16xf32>
    %78 = vector.shape_cast %73 : vector<2x16xf32> to vector<2x1x16xf32>
    tpu.vector_store %arg6[%c0_35, %c7_36, %c0_37], %78 {strides = array<i32>} : memref<2x8x16xf32, #tpu.memory_space<vmem>>, vector<2x1x16xf32>,
    %c0_38 = arith.constant 0 : index
    %c0_39 = arith.constant 0 : index
    %79 = vector.load %arg7[%c0_38, %c0_39] : memref<2x16xf32, #tpu.memory_space<vmem>>, vector<2x16xf32>
    %80 = arith.maximumf %79, %36 : vector<2x16xf32>
    %c0_40 = arith.constant 0 : index
    %c0_41 = arith.constant 0 : index
    %81 = vector.load %arg7[%c0_40, %c0_41] : memref<2x16xf32, #tpu.memory_space<vmem>>, vector<2x16xf32>
    tpu.vector_store %arg7[%c0_40, %c0_41], %80 {strides = array<i32>} : memref<2x16xf32, #tpu.memory_space<vmem>>, vector<2x16xf32>,
    %c0_42 = arith.constant 0 : index
    %c0_43 = arith.constant 0 : index
    %82 = vector.load %arg8[%c0_42, %c0_43] : memref<2x16xf32, #tpu.memory_space<vmem>>, vector<2x16xf32>
    %83 = arith.maximumf %82, %73 : vector<2x16xf32>
    %c0_44 = arith.constant 0 : index
    %c0_45 = arith.constant 0 : index
    %84 = vector.load %arg8[%c0_44, %c0_45] : memref<2x16xf32, #tpu.memory_space<vmem>>, vector<2x16xf32>
    tpu.vector_store %arg8[%c0_44, %c0_45], %83 {strides = array<i32>} : memref<2x16xf32, #tpu.memory_space<vmem>>, vector<2x16xf32>,
    %c0_46 = arith.constant 0 : index
    %c1 = arith.constant 1 : index
    %c0_47 = arith.constant 0 : index
    %85 = vector.load %arg1[%c0_46, %c1, %c0_47] : memref<2x8x64xf32, #tpu.memory_space<vmem>>, vector<2x1x64xf32>
    %86 = vector.shape_cast %85 : vector<2x1x64xf32> to vector<2x64xf32>
    %c0_48 = arith.constant 0 : index
    %c0_49 = arith.constant 0 : index
    %87 = vector.load %arg9[%c0_48, %c0_49] : memref<2x16xf32, #tpu.memory_space<vmem>>, vector<2x16xf32>
    %c0_50 = arith.constant 0 : index
    %c0_51 = arith.constant 0 : index
    %88 = vector.load %arg10[%c0_50, %c0_51] : memref<2x16xf32, #tpu.memory_space<vmem>>, vector<2x16xf32>
    %89 = arith.truncf %87 : vector<2x16xf32> to vector<2x16xbf16>
    %cst_52 = arith.constant dense<0.000000e+00> : vector<2x64xf32>
    %90 = tpu.matmul %89, %3, %cst_52 {dimension_numbers = #tpu.dot_dimension_numbers<[1], [0], [0], [1], [0, 0, 1, 1], [], []>} : vector<2x16xbf16>, vector<16x64xbf16>, vector<2x64xf32> -> vector<2x64xf32>
    %91 = arith.addf %90, %86 : vector<2x64xf32>
    %92 = vector.extract_strided_slice %91 {offsets = [0, 0], sizes = [2, 16], strides = [1, 1]} : vector<2x64xf32> to vector<2x16xf32>
    %93 = arith.negf %92 : vector<2x16xf32>
    %94 = math.exp %93 : vector<2x16xf32>
    %cst_53 = arith.constant 1.000000e+00 : f32
    %95 = vector.broadcast %cst_53 : f32 to vector<2x16xf32>
    %96 = arith.addf %95, %94 : vector<2x16xf32>
    %97 = arith.divf %95, %96 : vector<2x16xf32>
    %98 = vector.extract_strided_slice %91 {offsets = [0, 16], sizes = [2, 16], strides = [1, 1]} : vector<2x64xf32> to vector<2x16xf32>
    %99 = arith.negf %98 : vector<2x16xf32>
    %100 = math.exp %99 : vector<2x16xf32>
    %cst_54 = arith.constant 1.000000e+00 : f32
    %101 = vector.broadcast %cst_54 : f32 to vector<2x16xf32>
    %102 = arith.addf %101, %100 : vector<2x16xf32>
    %103 = arith.divf %101, %102 : vector<2x16xf32>
    %104 = vector.extract_strided_slice %91 {offsets = [0, 32], sizes = [2, 16], strides = [1, 1]} : vector<2x64xf32> to vector<2x16xf32>
    %105 = math.tanh %104 : vector<2x16xf32>
    %106 = vector.extract_strided_slice %91 {offsets = [0, 48], sizes = [2, 16], strides = [1, 1]} : vector<2x64xf32> to vector<2x16xf32>
    %107 = arith.negf %106 : vector<2x16xf32>
    %108 = math.exp %107 : vector<2x16xf32>
    %cst_55 = arith.constant 1.000000e+00 : f32
    %109 = vector.broadcast %cst_55 : f32 to vector<2x16xf32>
    %110 = arith.addf %109, %108 : vector<2x16xf32>
    %111 = arith.divf %109, %110 : vector<2x16xf32>
    %112 = arith.mulf %103, %88 : vector<2x16xf32>
    %113 = arith.mulf %97, %105 : vector<2x16xf32>
    %114 = arith.addf %112, %113 : vector<2x16xf32>
    %115 = math.tanh %114 : vector<2x16xf32>
    %116 = arith.mulf %111, %115 : vector<2x16xf32>
    %c0_56 = arith.constant 0 : index
    %c0_57 = arith.constant 0 : index
    %117 = vector.load %arg9[%c0_56, %c0_57] : memref<2x16xf32, #tpu.memory_space<vmem>>, vector<2x16xf32>
    tpu.vector_store %arg9[%c0_56, %c0_57], %116 {strides = array<i32>} : memref<2x16xf32, #tpu.memory_space<vmem>>, vector<2x16xf32>,
    %c0_58 = arith.constant 0 : index
    %c0_59 = arith.constant 0 : index
    %118 = vector.load %arg10[%c0_58, %c0_59] : memref<2x16xf32, #tpu.memory_space<vmem>>, vector<2x16xf32>
    tpu.vector_store %arg10[%c0_58, %c0_59], %114 {strides = array<i32>} : memref<2x16xf32, #tpu.memory_space<vmem>>, vector<2x16xf32>,
    %c0_60 = arith.constant 0 : index
    %c1_61 = arith.constant 1 : index
    %c0_62 = arith.constant 0 : index
    %119 = vector.load %arg5[%c0_60, %c1_61, %c0_62] : memref<2x8x16xf32, #tpu.memory_space<vmem>>, vector<2x1x16xf32>
    %120 = vector.shape_cast %119 : vector<2x1x16xf32> to vector<2x16xf32>
    %121 = vector.shape_cast %116 : vector<2x16xf32> to vector<2x1x16xf32>
    tpu.vector_store %arg5[%c0_60, %c1_61, %c0_62], %121 {strides = array<i32>} : memref<2x8x16xf32, #tpu.memory_space<vmem>>, vector<2x1x16xf32>,
    %c0_63 = arith.constant 0 : index
    %c6 = arith.constant 6 : index
    %c0_64 = arith.constant 0 : index
    %122 = vector.load %arg2[%c0_63, %c6, %c0_64] : memref<2x8x64xf32, #tpu.memory_space<vmem>>, vector<2x1x64xf32>
    %123 = vector.shape_cast %122 : vector<2x1x64xf32> to vector<2x64xf32>
    %c0_65 = arith.constant 0 : index
    %c0_66 = arith.constant 0 : index
    %124 = vector.load %arg11[%c0_65, %c0_66] : memref<2x16xf32, #tpu.memory_space<vmem>>, vector<2x16xf32>
    %c0_67 = arith.constant 0 : index
    %c0_68 = arith.constant 0 : index
    %125 = vector.load %arg12[%c0_67, %c0_68] : memref<2x16xf32, #tpu.memory_space<vmem>>, vector<2x16xf32>
    %126 = arith.truncf %124 : vector<2x16xf32> to vector<2x16xbf16>
    %cst_69 = arith.constant dense<0.000000e+00> : vector<2x64xf32>
    %127 = tpu.matmul %126, %4, %cst_69 {dimension_numbers = #tpu.dot_dimension_numbers<[1], [0], [0], [1], [0, 0, 1, 1], [], []>} : vector<2x16xbf16>, vector<16x64xbf16>, vector<2x64xf32> -> vector<2x64xf32>
    %128 = arith.addf %127, %123 : vector<2x64xf32>
    %129 = vector.extract_strided_slice %128 {offsets = [0, 0], sizes = [2, 16], strides = [1, 1]} : vector<2x64xf32> to vector<2x16xf32>
    %130 = arith.negf %129 : vector<2x16xf32>
    %131 = math.exp %130 : vector<2x16xf32>
    %cst_70 = arith.constant 1.000000e+00 : f32
    %132 = vector.broadcast %cst_70 : f32 to vector<2x16xf32>
    %133 = arith.addf %132, %131 : vector<2x16xf32>
    %134 = arith.divf %132, %133 : vector<2x16xf32>
    %135 = vector.extract_strided_slice %128 {offsets = [0, 16], sizes = [2, 16], strides = [1, 1]} : vector<2x64xf32> to vector<2x16xf32>
    %136 = arith.negf %135 : vector<2x16xf32>
    %137 = math.exp %136 : vector<2x16xf32>
    %cst_71 = arith.constant 1.000000e+00 : f32
    %138 = vector.broadcast %cst_71 : f32 to vector<2x16xf32>
    %139 = arith.addf %138, %137 : vector<2x16xf32>
    %140 = arith.divf %138, %139 : vector<2x16xf32>
    %141 = vector.extract_strided_slice %128 {offsets = [0, 32], sizes = [2, 16], strides = [1, 1]} : vector<2x64xf32> to vector<2x16xf32>
    %142 = math.tanh %141 : vector<2x16xf32>
    %143 = vector.extract_strided_slice %128 {offsets = [0, 48], sizes = [2, 16], strides = [1, 1]} : vector<2x64xf32> to vector<2x16xf32>
    %144 = arith.negf %143 : vector<2x16xf32>
    %145 = math.exp %144 : vector<2x16xf32>
    %cst_72 = arith.constant 1.000000e+00 : f32
    %146 = vector.broadcast %cst_72 : f32 to vector<2x16xf32>
    %147 = arith.addf %146, %145 : vector<2x16xf32>
    %148 = arith.divf %146, %147 : vector<2x16xf32>
    %149 = arith.mulf %140, %125 : vector<2x16xf32>
    %150 = arith.mulf %134, %142 : vector<2x16xf32>
    %151 = arith.addf %149, %150 : vector<2x16xf32>
    %152 = math.tanh %151 : vector<2x16xf32>
    %153 = arith.mulf %148, %152 : vector<2x16xf32>
    %c0_73 = arith.constant 0 : index
    %c0_74 = arith.constant 0 : index
    %154 = vector.load %arg11[%c0_73, %c0_74] : memref<2x16xf32, #tpu.memory_space<vmem>>, vector<2x16xf32>
    tpu.vector_store %arg11[%c0_73, %c0_74], %153 {strides = array<i32>} : memref<2x16xf32, #tpu.memory_space<vmem>>, vector<2x16xf32>,
    %c0_75 = arith.constant 0 : index
    %c0_76 = arith.constant 0 : index
    %155 = vector.load %arg12[%c0_75, %c0_76] : memref<2x16xf32, #tpu.memory_space<vmem>>, vector<2x16xf32>
    tpu.vector_store %arg12[%c0_75, %c0_76], %151 {strides = array<i32>} : memref<2x16xf32, #tpu.memory_space<vmem>>, vector<2x16xf32>,
    %c0_77 = arith.constant 0 : index
    %c6_78 = arith.constant 6 : index
    %c0_79 = arith.constant 0 : index
    %156 = vector.load %arg6[%c0_77, %c6_78, %c0_79] : memref<2x8x16xf32, #tpu.memory_space<vmem>>, vector<2x1x16xf32>
    %157 = vector.shape_cast %156 : vector<2x1x16xf32> to vector<2x16xf32>
    %158 = vector.shape_cast %153 : vector<2x16xf32> to vector<2x1x16xf32>
    tpu.vector_store %arg6[%c0_77, %c6_78, %c0_79], %158 {strides = array<i32>} : memref<2x8x16xf32, #tpu.memory_space<vmem>>, vector<2x1x16xf32>,
    %c0_80 = arith.constant 0 : index
    %c0_81 = arith.constant 0 : index
    %159 = vector.load %arg7[%c0_80, %c0_81] : memref<2x16xf32, #tpu.memory_space<vmem>>, vector<2x16xf32>
    %160 = arith.maximumf %159, %116 : vector<2x16xf32>
    %c0_82 = arith.constant 0 : index
    %c0_83 = arith.constant 0 : index
    %161 = vector.load %arg7[%c0_82, %c0_83] : memref<2x16xf32, #tpu.memory_space<vmem>>, vector<2x16xf32>
    tpu.vector_store %arg7[%c0_82, %c0_83], %160 {strides = array<i32>} : memref<2x16xf32, #tpu.memory_space<vmem>>, vector<2x16xf32>,
    %c0_84 = arith.constant 0 : index
    %c0_85 = arith.constant 0 : index
    %162 = vector.load %arg8[%c0_84, %c0_85] : memref<2x16xf32, #tpu.memory_space<vmem>>, vector<2x16xf32>
    %163 = arith.maximumf %162, %153 : vector<2x16xf32>
    %c0_86 = arith.constant 0 : index
    %c0_87 = arith.constant 0 : index
    %164 = vector.load %arg8[%c0_86, %c0_87] : memref<2x16xf32, #tpu.memory_space<vmem>>, vector<2x16xf32>
    tpu.vector_store %arg8[%c0_86, %c0_87], %163 {strides = array<i32>} : memref<2x16xf32, #tpu.memory_space<vmem>>, vector<2x16xf32>,
    %c0_88 = arith.constant 0 : index
    %c2 = arith.constant 2 : index
    %c0_89 = arith.constant 0 : index
    %165 = vector.load %arg1[%c0_88, %c2, %c0_89] : memref<2x8x64xf32, #tpu.memory_space<vmem>>, vector<2x1x64xf32>
    %166 = vector.shape_cast %165 : vector<2x1x64xf32> to vector<2x64xf32>
    %c0_90 = arith.constant 0 : index
    %c0_91 = arith.constant 0 : index
    %167 = vector.load %arg9[%c0_90, %c0_91] : memref<2x16xf32, #tpu.memory_space<vmem>>, vector<2x16xf32>
    %c0_92 = arith.constant 0 : index
    %c0_93 = arith.constant 0 : index
    %168 = vector.load %arg10[%c0_92, %c0_93] : memref<2x16xf32, #tpu.memory_space<vmem>>, vector<2x16xf32>
    %169 = arith.truncf %167 : vector<2x16xf32> to vector<2x16xbf16>
    %cst_94 = arith.constant dense<0.000000e+00> : vector<2x64xf32>
    %170 = tpu.matmul %169, %3, %cst_94 {dimension_numbers = #tpu.dot_dimension_numbers<[1], [0], [0], [1], [0, 0, 1, 1], [], []>} : vector<2x16xbf16>, vector<16x64xbf16>, vector<2x64xf32> -> vector<2x64xf32>
    %171 = arith.addf %170, %166 : vector<2x64xf32>
    %172 = vector.extract_strided_slice %171 {offsets = [0, 0], sizes = [2, 16], strides = [1, 1]} : vector<2x64xf32> to vector<2x16xf32>
    %173 = arith.negf %172 : vector<2x16xf32>
    %174 = math.exp %173 : vector<2x16xf32>
    %cst_95 = arith.constant 1.000000e+00 : f32
    %175 = vector.broadcast %cst_95 : f32 to vector<2x16xf32>
    %176 = arith.addf %175, %174 : vector<2x16xf32>
    %177 = arith.divf %175, %176 : vector<2x16xf32>
    %178 = vector.extract_strided_slice %171 {offsets = [0, 16], sizes = [2, 16], strides = [1, 1]} : vector<2x64xf32> to vector<2x16xf32>
    %179 = arith.negf %178 : vector<2x16xf32>
    %180 = math.exp %179 : vector<2x16xf32>
    %cst_96 = arith.constant 1.000000e+00 : f32
    %181 = vector.broadcast %cst_96 : f32 to vector<2x16xf32>
    %182 = arith.addf %181, %180 : vector<2x16xf32>
    %183 = arith.divf %181, %182 : vector<2x16xf32>
    %184 = vector.extract_strided_slice %171 {offsets = [0, 32], sizes = [2, 16], strides = [1, 1]} : vector<2x64xf32> to vector<2x16xf32>
    %185 = math.tanh %184 : vector<2x16xf32>
    %186 = vector.extract_strided_slice %171 {offsets = [0, 48], sizes = [2, 16], strides = [1, 1]} : vector<2x64xf32> to vector<2x16xf32>
    %187 = arith.negf %186 : vector<2x16xf32>
    %188 = math.exp %187 : vector<2x16xf32>
    %cst_97 = arith.constant 1.000000e+00 : f32
    %189 = vector.broadcast %cst_97 : f32 to vector<2x16xf32>
    %190 = arith.addf %189, %188 : vector<2x16xf32>
    %191 = arith.divf %189, %190 : vector<2x16xf32>
    %192 = arith.mulf %183, %168 : vector<2x16xf32>
    %193 = arith.mulf %177, %185 : vector<2x16xf32>
    %194 = arith.addf %192, %193 : vector<2x16xf32>
    %195 = math.tanh %194 : vector<2x16xf32>
    %196 = arith.mulf %191, %195 : vector<2x16xf32>
    %c0_98 = arith.constant 0 : index
    %c0_99 = arith.constant 0 : index
    %197 = vector.load %arg9[%c0_98, %c0_99] : memref<2x16xf32, #tpu.memory_space<vmem>>, vector<2x16xf32>
    tpu.vector_store %arg9[%c0_98, %c0_99], %196 {strides = array<i32>} : memref<2x16xf32, #tpu.memory_space<vmem>>, vector<2x16xf32>,
    %c0_100 = arith.constant 0 : index
    %c0_101 = arith.constant 0 : index
    %198 = vector.load %arg10[%c0_100, %c0_101] : memref<2x16xf32, #tpu.memory_space<vmem>>, vector<2x16xf32>
    tpu.vector_store %arg10[%c0_100, %c0_101], %194 {strides = array<i32>} : memref<2x16xf32, #tpu.memory_space<vmem>>, vector<2x16xf32>,
    %c0_102 = arith.constant 0 : index
    %c2_103 = arith.constant 2 : index
    %c0_104 = arith.constant 0 : index
    %199 = vector.load %arg5[%c0_102, %c2_103, %c0_104] : memref<2x8x16xf32, #tpu.memory_space<vmem>>, vector<2x1x16xf32>
    %200 = vector.shape_cast %199 : vector<2x1x16xf32> to vector<2x16xf32>
    %201 = vector.shape_cast %196 : vector<2x16xf32> to vector<2x1x16xf32>
    tpu.vector_store %arg5[%c0_102, %c2_103, %c0_104], %201 {strides = array<i32>} : memref<2x8x16xf32, #tpu.memory_space<vmem>>, vector<2x1x16xf32>,
    %c0_105 = arith.constant 0 : index
    %c5 = arith.constant 5 : index
    %c0_106 = arith.constant 0 : index
    %202 = vector.load %arg2[%c0_105, %c5, %c0_106] : memref<2x8x64xf32, #tpu.memory_space<vmem>>, vector<2x1x64xf32>
    %203 = vector.shape_cast %202 : vector<2x1x64xf32> to vector<2x64xf32>
    %c0_107 = arith.constant 0 : index
    %c0_108 = arith.constant 0 : index
    %204 = vector.load %arg11[%c0_107, %c0_108] : memref<2x16xf32, #tpu.memory_space<vmem>>, vector<2x16xf32>
    %c0_109 = arith.constant 0 : index
    %c0_110 = arith.constant 0 : index
    %205 = vector.load %arg12[%c0_109, %c0_110] : memref<2x16xf32, #tpu.memory_space<vmem>>, vector<2x16xf32>
    %206 = arith.truncf %204 : vector<2x16xf32> to vector<2x16xbf16>
    %cst_111 = arith.constant dense<0.000000e+00> : vector<2x64xf32>
    %207 = tpu.matmul %206, %4, %cst_111 {dimension_numbers = #tpu.dot_dimension_numbers<[1], [0], [0], [1], [0, 0, 1, 1], [], []>} : vector<2x16xbf16>, vector<16x64xbf16>, vector<2x64xf32> -> vector<2x64xf32>
    %208 = arith.addf %207, %203 : vector<2x64xf32>
    %209 = vector.extract_strided_slice %208 {offsets = [0, 0], sizes = [2, 16], strides = [1, 1]} : vector<2x64xf32> to vector<2x16xf32>
    %210 = arith.negf %209 : vector<2x16xf32>
    %211 = math.exp %210 : vector<2x16xf32>
    %cst_112 = arith.constant 1.000000e+00 : f32
    %212 = vector.broadcast %cst_112 : f32 to vector<2x16xf32>
    %213 = arith.addf %212, %211 : vector<2x16xf32>
    %214 = arith.divf %212, %213 : vector<2x16xf32>
    %215 = vector.extract_strided_slice %208 {offsets = [0, 16], sizes = [2, 16], strides = [1, 1]} : vector<2x64xf32> to vector<2x16xf32>
    %216 = arith.negf %215 : vector<2x16xf32>
    %217 = math.exp %216 : vector<2x16xf32>
    %cst_113 = arith.constant 1.000000e+00 : f32
    %218 = vector.broadcast %cst_113 : f32 to vector<2x16xf32>
    %219 = arith.addf %218, %217 : vector<2x16xf32>
    %220 = arith.divf %218, %219 : vector<2x16xf32>
    %221 = vector.extract_strided_slice %208 {offsets = [0, 32], sizes = [2, 16], strides = [1, 1]} : vector<2x64xf32> to vector<2x16xf32>
    %222 = math.tanh %221 : vector<2x16xf32>
    %223 = vector.extract_strided_slice %208 {offsets = [0, 48], sizes = [2, 16], strides = [1, 1]} : vector<2x64xf32> to vector<2x16xf32>
    %224 = arith.negf %223 : vector<2x16xf32>
    %225 = math.exp %224 : vector<2x16xf32>
    %cst_114 = arith.constant 1.000000e+00 : f32
    %226 = vector.broadcast %cst_114 : f32 to vector<2x16xf32>
    %227 = arith.addf %226, %225 : vector<2x16xf32>
    %228 = arith.divf %226, %227 : vector<2x16xf32>
    %229 = arith.mulf %220, %205 : vector<2x16xf32>
    %230 = arith.mulf %214, %222 : vector<2x16xf32>
    %231 = arith.addf %229, %230 : vector<2x16xf32>
    %232 = math.tanh %231 : vector<2x16xf32>
    %233 = arith.mulf %228, %232 : vector<2x16xf32>
    %c0_115 = arith.constant 0 : index
    %c0_116 = arith.constant 0 : index
    %234 = vector.load %arg11[%c0_115, %c0_116] : memref<2x16xf32, #tpu.memory_space<vmem>>, vector<2x16xf32>
    tpu.vector_store %arg11[%c0_115, %c0_116], %233 {strides = array<i32>} : memref<2x16xf32, #tpu.memory_space<vmem>>, vector<2x16xf32>,
    %c0_117 = arith.constant 0 : index
    %c0_118 = arith.constant 0 : index
    %235 = vector.load %arg12[%c0_117, %c0_118] : memref<2x16xf32, #tpu.memory_space<vmem>>, vector<2x16xf32>
    tpu.vector_store %arg12[%c0_117, %c0_118], %231 {strides = array<i32>} : memref<2x16xf32, #tpu.memory_space<vmem>>, vector<2x16xf32>,
    %c0_119 = arith.constant 0 : index
    %c5_120 = arith.constant 5 : index
    %c0_121 = arith.constant 0 : index
    %236 = vector.load %arg6[%c0_119, %c5_120, %c0_121] : memref<2x8x16xf32, #tpu.memory_space<vmem>>, vector<2x1x16xf32>
    %237 = vector.shape_cast %236 : vector<2x1x16xf32> to vector<2x16xf32>
    %238 = vector.shape_cast %233 : vector<2x16xf32> to vector<2x1x16xf32>
    tpu.vector_store %arg6[%c0_119, %c5_120, %c0_121], %238 {strides = array<i32>} : memref<2x8x16xf32, #tpu.memory_space<vmem>>, vector<2x1x16xf32>,
    %c0_122 = arith.constant 0 : index
    %c0_123 = arith.constant 0 : index
    %239 = vector.load %arg7[%c0_122, %c0_123] : memref<2x16xf32, #tpu.memory_space<vmem>>, vector<2x16xf32>
    %240 = arith.maximumf %239, %196 : vector<2x16xf32>
    %c0_124 = arith.constant 0 : index
    %c0_125 = arith.constant 0 : index
    %241 = vector.load %arg7[%c0_124, %c0_125] : memref<2x16xf32, #tpu.memory_space<vmem>>, vector<2x16xf32>
    tpu.vector_store %arg7[%c0_124, %c0_125], %240 {strides = array<i32>} : memref<2x16xf32, #tpu.memory_space<vmem>>, vector<2x16xf32>,
    %c0_126 = arith.constant 0 : index
    %c0_127 = arith.constant 0 : index
    %242 = vector.load %arg8[%c0_126, %c0_127] : memref<2x16xf32, #tpu.memory_space<vmem>>, vector<2x16xf32>
    %243 = arith.maximumf %242, %233 : vector<2x16xf32>
    %c0_128 = arith.constant 0 : index
    %c0_129 = arith.constant 0 : index
    %244 = vector.load %arg8[%c0_128, %c0_129] : memref<2x16xf32, #tpu.memory_space<vmem>>, vector<2x16xf32>
    tpu.vector_store %arg8[%c0_128, %c0_129], %243 {strides = array<i32>} : memref<2x16xf32, #tpu.memory_space<vmem>>, vector<2x16xf32>,
    %c0_130 = arith.constant 0 : index
    %c3 = arith.constant 3 : index
    %c0_131 = arith.constant 0 : index
    %245 = vector.load %arg1[%c0_130, %c3, %c0_131] : memref<2x8x64xf32, #tpu.memory_space<vmem>>, vector<2x1x64xf32>
    %246 = vector.shape_cast %245 : vector<2x1x64xf32> to vector<2x64xf32>
    %c0_132 = arith.constant 0 : index
    %c0_133 = arith.constant 0 : index
    %247 = vector.load %arg9[%c0_132, %c0_133] : memref<2x16xf32, #tpu.memory_space<vmem>>, vector<2x16xf32>
    %c0_134 = arith.constant 0 : index
    %c0_135 = arith.constant 0 : index
    %248 = vector.load %arg10[%c0_134, %c0_135] : memref<2x16xf32, #tpu.memory_space<vmem>>, vector<2x16xf32>
    %249 = arith.truncf %247 : vector<2x16xf32> to vector<2x16xbf16>
    %cst_136 = arith.constant dense<0.000000e+00> : vector<2x64xf32>
    %250 = tpu.matmul %249, %3, %cst_136 {dimension_numbers = #tpu.dot_dimension_numbers<[1], [0], [0], [1], [0, 0, 1, 1], [], []>} : vector<2x16xbf16>, vector<16x64xbf16>, vector<2x64xf32> -> vector<2x64xf32>
    %251 = arith.addf %250, %246 : vector<2x64xf32>
    %252 = vector.extract_strided_slice %251 {offsets = [0, 0], sizes = [2, 16], strides = [1, 1]} : vector<2x64xf32> to vector<2x16xf32>
    %253 = arith.negf %252 : vector<2x16xf32>
    %254 = math.exp %253 : vector<2x16xf32>
    %cst_137 = arith.constant 1.000000e+00 : f32
    %255 = vector.broadcast %cst_137 : f32 to vector<2x16xf32>
    %256 = arith.addf %255, %254 : vector<2x16xf32>
    %257 = arith.divf %255, %256 : vector<2x16xf32>
    %258 = vector.extract_strided_slice %251 {offsets = [0, 16], sizes = [2, 16], strides = [1, 1]} : vector<2x64xf32> to vector<2x16xf32>
    %259 = arith.negf %258 : vector<2x16xf32>
    %260 = math.exp %259 : vector<2x16xf32>
    %cst_138 = arith.constant 1.000000e+00 : f32
    %261 = vector.broadcast %cst_138 : f32 to vector<2x16xf32>
    %262 = arith.addf %261, %260 : vector<2x16xf32>
    %263 = arith.divf %261, %262 : vector<2x16xf32>
    %264 = vector.extract_strided_slice %251 {offsets = [0, 32], sizes = [2, 16], strides = [1, 1]} : vector<2x64xf32> to vector<2x16xf32>
    %265 = math.tanh %264 : vector<2x16xf32>
    %266 = vector.extract_strided_slice %251 {offsets = [0, 48], sizes = [2, 16], strides = [1, 1]} : vector<2x64xf32> to vector<2x16xf32>
    %267 = arith.negf %266 : vector<2x16xf32>
    %268 = math.exp %267 : vector<2x16xf32>
    %cst_139 = arith.constant 1.000000e+00 : f32
    %269 = vector.broadcast %cst_139 : f32 to vector<2x16xf32>
    %270 = arith.addf %269, %268 : vector<2x16xf32>
    %271 = arith.divf %269, %270 : vector<2x16xf32>
    %272 = arith.mulf %263, %248 : vector<2x16xf32>
    %273 = arith.mulf %257, %265 : vector<2x16xf32>
    %274 = arith.addf %272, %273 : vector<2x16xf32>
    %275 = math.tanh %274 : vector<2x16xf32>
    %276 = arith.mulf %271, %275 : vector<2x16xf32>
    %c0_140 = arith.constant 0 : index
    %c0_141 = arith.constant 0 : index
    %277 = vector.load %arg9[%c0_140, %c0_141] : memref<2x16xf32, #tpu.memory_space<vmem>>, vector<2x16xf32>
    tpu.vector_store %arg9[%c0_140, %c0_141], %276 {strides = array<i32>} : memref<2x16xf32, #tpu.memory_space<vmem>>, vector<2x16xf32>,
    %c0_142 = arith.constant 0 : index
    %c0_143 = arith.constant 0 : index
    %278 = vector.load %arg10[%c0_142, %c0_143] : memref<2x16xf32, #tpu.memory_space<vmem>>, vector<2x16xf32>
    tpu.vector_store %arg10[%c0_142, %c0_143], %274 {strides = array<i32>} : memref<2x16xf32, #tpu.memory_space<vmem>>, vector<2x16xf32>,
    %c0_144 = arith.constant 0 : index
    %c3_145 = arith.constant 3 : index
    %c0_146 = arith.constant 0 : index
    %279 = vector.load %arg5[%c0_144, %c3_145, %c0_146] : memref<2x8x16xf32, #tpu.memory_space<vmem>>, vector<2x1x16xf32>
    %280 = vector.shape_cast %279 : vector<2x1x16xf32> to vector<2x16xf32>
    %281 = vector.shape_cast %276 : vector<2x16xf32> to vector<2x1x16xf32>
    tpu.vector_store %arg5[%c0_144, %c3_145, %c0_146], %281 {strides = array<i32>} : memref<2x8x16xf32, #tpu.memory_space<vmem>>, vector<2x1x16xf32>,
    %c0_147 = arith.constant 0 : index
    %c4 = arith.constant 4 : index
    %c0_148 = arith.constant 0 : index
    %282 = vector.load %arg2[%c0_147, %c4, %c0_148] : memref<2x8x64xf32, #tpu.memory_space<vmem>>, vector<2x1x64xf32>
    %283 = vector.shape_cast %282 : vector<2x1x64xf32> to vector<2x64xf32>
    %c0_149 = arith.constant 0 : index
    %c0_150 = arith.constant 0 : index
    %284 = vector.load %arg11[%c0_149, %c0_150] : memref<2x16xf32, #tpu.memory_space<vmem>>, vector<2x16xf32>
    %c0_151 = arith.constant 0 : index
    %c0_152 = arith.constant 0 : index
    %285 = vector.load %arg12[%c0_151, %c0_152] : memref<2x16xf32, #tpu.memory_space<vmem>>, vector<2x16xf32>
    %286 = arith.truncf %284 : vector<2x16xf32> to vector<2x16xbf16>
    %cst_153 = arith.constant dense<0.000000e+00> : vector<2x64xf32>
    %287 = tpu.matmul %286, %4, %cst_153 {dimension_numbers = #tpu.dot_dimension_numbers<[1], [0], [0], [1], [0, 0, 1, 1], [], []>} : vector<2x16xbf16>, vector<16x64xbf16>, vector<2x64xf32> -> vector<2x64xf32>
    %288 = arith.addf %287, %283 : vector<2x64xf32>
    %289 = vector.extract_strided_slice %288 {offsets = [0, 0], sizes = [2, 16], strides = [1, 1]} : vector<2x64xf32> to vector<2x16xf32>
    %290 = arith.negf %289 : vector<2x16xf32>
    %291 = math.exp %290 : vector<2x16xf32>
    %cst_154 = arith.constant 1.000000e+00 : f32
    %292 = vector.broadcast %cst_154 : f32 to vector<2x16xf32>
    %293 = arith.addf %292, %291 : vector<2x16xf32>
    %294 = arith.divf %292, %293 : vector<2x16xf32>
    %295 = vector.extract_strided_slice %288 {offsets = [0, 16], sizes = [2, 16], strides = [1, 1]} : vector<2x64xf32> to vector<2x16xf32>
    %296 = arith.negf %295 : vector<2x16xf32>
    %297 = math.exp %296 : vector<2x16xf32>
    %cst_155 = arith.constant 1.000000e+00 : f32
    %298 = vector.broadcast %cst_155 : f32 to vector<2x16xf32>
    %299 = arith.addf %298, %297 : vector<2x16xf32>
    %300 = arith.divf %298, %299 : vector<2x16xf32>
    %301 = vector.extract_strided_slice %288 {offsets = [0, 32], sizes = [2, 16], strides = [1, 1]} : vector<2x64xf32> to vector<2x16xf32>
    %302 = math.tanh %301 : vector<2x16xf32>
    %303 = vector.extract_strided_slice %288 {offsets = [0, 48], sizes = [2, 16], strides = [1, 1]} : vector<2x64xf32> to vector<2x16xf32>
    %304 = arith.negf %303 : vector<2x16xf32>
    %305 = math.exp %304 : vector<2x16xf32>
    %cst_156 = arith.constant 1.000000e+00 : f32
    %306 = vector.broadcast %cst_156 : f32 to vector<2x16xf32>
    %307 = arith.addf %306, %305 : vector<2x16xf32>
    %308 = arith.divf %306, %307 : vector<2x16xf32>
    %309 = arith.mulf %300, %285 : vector<2x16xf32>
    %310 = arith.mulf %294, %302 : vector<2x16xf32>
    %311 = arith.addf %309, %310 : vector<2x16xf32>
    %312 = math.tanh %311 : vector<2x16xf32>
    %313 = arith.mulf %308, %312 : vector<2x16xf32>
    %c0_157 = arith.constant 0 : index
    %c0_158 = arith.constant 0 : index
    %314 = vector.load %arg11[%c0_157, %c0_158] : memref<2x16xf32, #tpu.memory_space<vmem>>, vector<2x16xf32>
    tpu.vector_store %arg11[%c0_157, %c0_158], %313 {strides = array<i32>} : memref<2x16xf32, #tpu.memory_space<vmem>>, vector<2x16xf32>,
    %c0_159 = arith.constant 0 : index
    %c0_160 = arith.constant 0 : index
    %315 = vector.load %arg12[%c0_159, %c0_160] : memref<2x16xf32, #tpu.memory_space<vmem>>, vector<2x16xf32>
    tpu.vector_store %arg12[%c0_159, %c0_160], %311 {strides = array<i32>} : memref<2x16xf32, #tpu.memory_space<vmem>>, vector<2x16xf32>,
    %c0_161 = arith.constant 0 : index
    %c4_162 = arith.constant 4 : index
    %c0_163 = arith.constant 0 : index
    %316 = vector.load %arg6[%c0_161, %c4_162, %c0_163] : memref<2x8x16xf32, #tpu.memory_space<vmem>>, vector<2x1x16xf32>
    %317 = vector.shape_cast %316 : vector<2x1x16xf32> to vector<2x16xf32>
    %318 = vector.shape_cast %313 : vector<2x16xf32> to vector<2x1x16xf32>
    tpu.vector_store %arg6[%c0_161, %c4_162, %c0_163], %318 {strides = array<i32>} : memref<2x8x16xf32, #tpu.memory_space<vmem>>, vector<2x1x16xf32>,
    %c0_164 = arith.constant 0 : index
    %c0_165 = arith.constant 0 : index
    %319 = vector.load %arg7[%c0_164, %c0_165] : memref<2x16xf32, #tpu.memory_space<vmem>>, vector<2x16xf32>
    %320 = arith.maximumf %319, %276 : vector<2x16xf32>
    %c0_166 = arith.constant 0 : index
    %c0_167 = arith.constant 0 : index
    %321 = vector.load %arg7[%c0_166, %c0_167] : memref<2x16xf32, #tpu.memory_space<vmem>>, vector<2x16xf32>
    tpu.vector_store %arg7[%c0_166, %c0_167], %320 {strides = array<i32>} : memref<2x16xf32, #tpu.memory_space<vmem>>, vector<2x16xf32>,
    %c0_168 = arith.constant 0 : index
    %c0_169 = arith.constant 0 : index
    %322 = vector.load %arg8[%c0_168, %c0_169] : memref<2x16xf32, #tpu.memory_space<vmem>>, vector<2x16xf32>
    %323 = arith.maximumf %322, %313 : vector<2x16xf32>
    %c0_170 = arith.constant 0 : index
    %c0_171 = arith.constant 0 : index
    %324 = vector.load %arg8[%c0_170, %c0_171] : memref<2x16xf32, #tpu.memory_space<vmem>>, vector<2x16xf32>
    tpu.vector_store %arg8[%c0_170, %c0_171], %323 {strides = array<i32>} : memref<2x16xf32, #tpu.memory_space<vmem>>, vector<2x16xf32>,
    %c0_172 = arith.constant 0 : index
    %c4_173 = arith.constant 4 : index
    %c0_174 = arith.constant 0 : index
    %325 = vector.load %arg1[%c0_172, %c4_173, %c0_174] : memref<2x8x64xf32, #tpu.memory_space<vmem>>, vector<2x1x64xf32>
    %326 = vector.shape_cast %325 : vector<2x1x64xf32> to vector<2x64xf32>
    %c0_175 = arith.constant 0 : index
    %c0_176 = arith.constant 0 : index
    %327 = vector.load %arg9[%c0_175, %c0_176] : memref<2x16xf32, #tpu.memory_space<vmem>>, vector<2x16xf32>
    %c0_177 = arith.constant 0 : index
    %c0_178 = arith.constant 0 : index
    %328 = vector.load %arg10[%c0_177, %c0_178] : memref<2x16xf32, #tpu.memory_space<vmem>>, vector<2x16xf32>
    %329 = arith.truncf %327 : vector<2x16xf32> to vector<2x16xbf16>
    %cst_179 = arith.constant dense<0.000000e+00> : vector<2x64xf32>
    %330 = tpu.matmul %329, %3, %cst_179 {dimension_numbers = #tpu.dot_dimension_numbers<[1], [0], [0], [1], [0, 0, 1, 1], [], []>} : vector<2x16xbf16>, vector<16x64xbf16>, vector<2x64xf32> -> vector<2x64xf32>
    %331 = arith.addf %330, %326 : vector<2x64xf32>
    %332 = vector.extract_strided_slice %331 {offsets = [0, 0], sizes = [2, 16], strides = [1, 1]} : vector<2x64xf32> to vector<2x16xf32>
    %333 = arith.negf %332 : vector<2x16xf32>
    %334 = math.exp %333 : vector<2x16xf32>
    %cst_180 = arith.constant 1.000000e+00 : f32
    %335 = vector.broadcast %cst_180 : f32 to vector<2x16xf32>
    %336 = arith.addf %335, %334 : vector<2x16xf32>
    %337 = arith.divf %335, %336 : vector<2x16xf32>
    %338 = vector.extract_strided_slice %331 {offsets = [0, 16], sizes = [2, 16], strides = [1, 1]} : vector<2x64xf32> to vector<2x16xf32>
    %339 = arith.negf %338 : vector<2x16xf32>
    %340 = math.exp %339 : vector<2x16xf32>
    %cst_181 = arith.constant 1.000000e+00 : f32
    %341 = vector.broadcast %cst_181 : f32 to vector<2x16xf32>
    %342 = arith.addf %341, %340 : vector<2x16xf32>
    %343 = arith.divf %341, %342 : vector<2x16xf32>
    %344 = vector.extract_strided_slice %331 {offsets = [0, 32], sizes = [2, 16], strides = [1, 1]} : vector<2x64xf32> to vector<2x16xf32>
    %345 = math.tanh %344 : vector<2x16xf32>
    %346 = vector.extract_strided_slice %331 {offsets = [0, 48], sizes = [2, 16], strides = [1, 1]} : vector<2x64xf32> to vector<2x16xf32>
    %347 = arith.negf %346 : vector<2x16xf32>
    %348 = math.exp %347 : vector<2x16xf32>
    %cst_182 = arith.constant 1.000000e+00 : f32
    %349 = vector.broadcast %cst_182 : f32 to vector<2x16xf32>
    %350 = arith.addf %349, %348 : vector<2x16xf32>
    %351 = arith.divf %349, %350 : vector<2x16xf32>
    %352 = arith.mulf %343, %328 : vector<2x16xf32>
    %353 = arith.mulf %337, %345 : vector<2x16xf32>
    %354 = arith.addf %352, %353 : vector<2x16xf32>
    %355 = math.tanh %354 : vector<2x16xf32>
    %356 = arith.mulf %351, %355 : vector<2x16xf32>
    %c0_183 = arith.constant 0 : index
    %c0_184 = arith.constant 0 : index
    %357 = vector.load %arg9[%c0_183, %c0_184] : memref<2x16xf32, #tpu.memory_space<vmem>>, vector<2x16xf32>
    tpu.vector_store %arg9[%c0_183, %c0_184], %356 {strides = array<i32>} : memref<2x16xf32, #tpu.memory_space<vmem>>, vector<2x16xf32>,
    %c0_185 = arith.constant 0 : index
    %c0_186 = arith.constant 0 : index
    %358 = vector.load %arg10[%c0_185, %c0_186] : memref<2x16xf32, #tpu.memory_space<vmem>>, vector<2x16xf32>
    tpu.vector_store %arg10[%c0_185, %c0_186], %354 {strides = array<i32>} : memref<2x16xf32, #tpu.memory_space<vmem>>, vector<2x16xf32>,
    %c0_187 = arith.constant 0 : index
    %c4_188 = arith.constant 4 : index
    %c0_189 = arith.constant 0 : index
    %359 = vector.load %arg5[%c0_187, %c4_188, %c0_189] : memref<2x8x16xf32, #tpu.memory_space<vmem>>, vector<2x1x16xf32>
    %360 = vector.shape_cast %359 : vector<2x1x16xf32> to vector<2x16xf32>
    %361 = vector.shape_cast %356 : vector<2x16xf32> to vector<2x1x16xf32>
    tpu.vector_store %arg5[%c0_187, %c4_188, %c0_189], %361 {strides = array<i32>} : memref<2x8x16xf32, #tpu.memory_space<vmem>>, vector<2x1x16xf32>,
    %c0_190 = arith.constant 0 : index
    %c3_191 = arith.constant 3 : index
    %c0_192 = arith.constant 0 : index
    %362 = vector.load %arg2[%c0_190, %c3_191, %c0_192] : memref<2x8x64xf32, #tpu.memory_space<vmem>>, vector<2x1x64xf32>
    %363 = vector.shape_cast %362 : vector<2x1x64xf32> to vector<2x64xf32>
    %c0_193 = arith.constant 0 : index
    %c0_194 = arith.constant 0 : index
    %364 = vector.load %arg11[%c0_193, %c0_194] : memref<2x16xf32, #tpu.memory_space<vmem>>, vector<2x16xf32>
    %c0_195 = arith.constant 0 : index
    %c0_196 = arith.constant 0 : index
    %365 = vector.load %arg12[%c0_195, %c0_196] : memref<2x16xf32, #tpu.memory_space<vmem>>, vector<2x16xf32>
    %366 = arith.truncf %364 : vector<2x16xf32> to vector<2x16xbf16>
    %cst_197 = arith.constant dense<0.000000e+00> : vector<2x64xf32>
    %367 = tpu.matmul %366, %4, %cst_197 {dimension_numbers = #tpu.dot_dimension_numbers<[1], [0], [0], [1], [0, 0, 1, 1], [], []>} : vector<2x16xbf16>, vector<16x64xbf16>, vector<2x64xf32> -> vector<2x64xf32>
    %368 = arith.addf %367, %363 : vector<2x64xf32>
    %369 = vector.extract_strided_slice %368 {offsets = [0, 0], sizes = [2, 16], strides = [1, 1]} : vector<2x64xf32> to vector<2x16xf32>
    %370 = arith.negf %369 : vector<2x16xf32>
    %371 = math.exp %370 : vector<2x16xf32>
    %cst_198 = arith.constant 1.000000e+00 : f32
    %372 = vector.broadcast %cst_198 : f32 to vector<2x16xf32>
    %373 = arith.addf %372, %371 : vector<2x16xf32>
    %374 = arith.divf %372, %373 : vector<2x16xf32>
    %375 = vector.extract_strided_slice %368 {offsets = [0, 16], sizes = [2, 16], strides = [1, 1]} : vector<2x64xf32> to vector<2x16xf32>
    %376 = arith.negf %375 : vector<2x16xf32>
    %377 = math.exp %376 : vector<2x16xf32>
    %cst_199 = arith.constant 1.000000e+00 : f32
    %378 = vector.broadcast %cst_199 : f32 to vector<2x16xf32>
    %379 = arith.addf %378, %377 : vector<2x16xf32>
    %380 = arith.divf %378, %379 : vector<2x16xf32>
    %381 = vector.extract_strided_slice %368 {offsets = [0, 32], sizes = [2, 16], strides = [1, 1]} : vector<2x64xf32> to vector<2x16xf32>
    %382 = math.tanh %381 : vector<2x16xf32>
    %383 = vector.extract_strided_slice %368 {offsets = [0, 48], sizes = [2, 16], strides = [1, 1]} : vector<2x64xf32> to vector<2x16xf32>
    %384 = arith.negf %383 : vector<2x16xf32>
    %385 = math.exp %384 : vector<2x16xf32>
    %cst_200 = arith.constant 1.000000e+00 : f32
    %386 = vector.broadcast %cst_200 : f32 to vector<2x16xf32>
    %387 = arith.addf %386, %385 : vector<2x16xf32>
    %388 = arith.divf %386, %387 : vector<2x16xf32>
    %389 = arith.mulf %380, %365 : vector<2x16xf32>
    %390 = arith.mulf %374, %382 : vector<2x16xf32>
    %391 = arith.addf %389, %390 : vector<2x16xf32>
    %392 = math.tanh %391 : vector<2x16xf32>
    %393 = arith.mulf %388, %392 : vector<2x16xf32>
    %c0_201 = arith.constant 0 : index
    %c0_202 = arith.constant 0 : index
    %394 = vector.load %arg11[%c0_201, %c0_202] : memref<2x16xf32, #tpu.memory_space<vmem>>, vector<2x16xf32>
    tpu.vector_store %arg11[%c0_201, %c0_202], %393 {strides = array<i32>} : memref<2x16xf32, #tpu.memory_space<vmem>>, vector<2x16xf32>,
    %c0_203 = arith.constant 0 : index
    %c0_204 = arith.constant 0 : index
    %395 = vector.load %arg12[%c0_203, %c0_204] : memref<2x16xf32, #tpu.memory_space<vmem>>, vector<2x16xf32>
    tpu.vector_store %arg12[%c0_203, %c0_204], %391 {strides = array<i32>} : memref<2x16xf32, #tpu.memory_space<vmem>>, vector<2x16xf32>,
    %c0_205 = arith.constant 0 : index
    %c3_206 = arith.constant 3 : index
    %c0_207 = arith.constant 0 : index
    %396 = vector.load %arg6[%c0_205, %c3_206, %c0_207] : memref<2x8x16xf32, #tpu.memory_space<vmem>>, vector<2x1x16xf32>
    %397 = vector.shape_cast %396 : vector<2x1x16xf32> to vector<2x16xf32>
    %398 = vector.shape_cast %393 : vector<2x16xf32> to vector<2x1x16xf32>
    tpu.vector_store %arg6[%c0_205, %c3_206, %c0_207], %398 {strides = array<i32>} : memref<2x8x16xf32, #tpu.memory_space<vmem>>, vector<2x1x16xf32>,
    %c0_208 = arith.constant 0 : index
    %c0_209 = arith.constant 0 : index
    %399 = vector.load %arg7[%c0_208, %c0_209] : memref<2x16xf32, #tpu.memory_space<vmem>>, vector<2x16xf32>
    %400 = arith.maximumf %399, %356 : vector<2x16xf32>
    %c0_210 = arith.constant 0 : index
    %c0_211 = arith.constant 0 : index
    %401 = vector.load %arg7[%c0_210, %c0_211] : memref<2x16xf32, #tpu.memory_space<vmem>>, vector<2x16xf32>
    tpu.vector_store %arg7[%c0_210, %c0_211], %400 {strides = array<i32>} : memref<2x16xf32, #tpu.memory_space<vmem>>, vector<2x16xf32>,
    %c0_212 = arith.constant 0 : index
    %c0_213 = arith.constant 0 : index
    %402 = vector.load %arg8[%c0_212, %c0_213] : memref<2x16xf32, #tpu.memory_space<vmem>>, vector<2x16xf32>
    %403 = arith.maximumf %402, %393 : vector<2x16xf32>
    %c0_214 = arith.constant 0 : index
    %c0_215 = arith.constant 0 : index
    %404 = vector.load %arg8[%c0_214, %c0_215] : memref<2x16xf32, #tpu.memory_space<vmem>>, vector<2x16xf32>
    tpu.vector_store %arg8[%c0_214, %c0_215], %403 {strides = array<i32>} : memref<2x16xf32, #tpu.memory_space<vmem>>, vector<2x16xf32>,
    %c0_216 = arith.constant 0 : index
    %c5_217 = arith.constant 5 : index
    %c0_218 = arith.constant 0 : index
    %405 = vector.load %arg1[%c0_216, %c5_217, %c0_218] : memref<2x8x64xf32, #tpu.memory_space<vmem>>, vector<2x1x64xf32>
    %406 = vector.shape_cast %405 : vector<2x1x64xf32> to vector<2x64xf32>
    %c0_219 = arith.constant 0 : index
    %c0_220 = arith.constant 0 : index
    %407 = vector.load %arg9[%c0_219, %c0_220] : memref<2x16xf32, #tpu.memory_space<vmem>>, vector<2x16xf32>
    %c0_221 = arith.constant 0 : index
    %c0_222 = arith.constant 0 : index
    %408 = vector.load %arg10[%c0_221, %c0_222] : memref<2x16xf32, #tpu.memory_space<vmem>>, vector<2x16xf32>
    %409 = arith.truncf %407 : vector<2x16xf32> to vector<2x16xbf16>
    %cst_223 = arith.constant dense<0.000000e+00> : vector<2x64xf32>
    %410 = tpu.matmul %409, %3, %cst_223 {dimension_numbers = #tpu.dot_dimension_numbers<[1], [0], [0], [1], [0, 0, 1, 1], [], []>} : vector<2x16xbf16>, vector<16x64xbf16>, vector<2x64xf32> -> vector<2x64xf32>
    %411 = arith.addf %410, %406 : vector<2x64xf32>
    %412 = vector.extract_strided_slice %411 {offsets = [0, 0], sizes = [2, 16], strides = [1, 1]} : vector<2x64xf32> to vector<2x16xf32>
    %413 = arith.negf %412 : vector<2x16xf32>
    %414 = math.exp %413 : vector<2x16xf32>
    %cst_224 = arith.constant 1.000000e+00 : f32
    %415 = vector.broadcast %cst_224 : f32 to vector<2x16xf32>
    %416 = arith.addf %415, %414 : vector<2x16xf32>
    %417 = arith.divf %415, %416 : vector<2x16xf32>
    %418 = vector.extract_strided_slice %411 {offsets = [0, 16], sizes = [2, 16], strides = [1, 1]} : vector<2x64xf32> to vector<2x16xf32>
    %419 = arith.negf %418 : vector<2x16xf32>
    %420 = math.exp %419 : vector<2x16xf32>
    %cst_225 = arith.constant 1.000000e+00 : f32
    %421 = vector.broadcast %cst_225 : f32 to vector<2x16xf32>
    %422 = arith.addf %421, %420 : vector<2x16xf32>
    %423 = arith.divf %421, %422 : vector<2x16xf32>
    %424 = vector.extract_strided_slice %411 {offsets = [0, 32], sizes = [2, 16], strides = [1, 1]} : vector<2x64xf32> to vector<2x16xf32>
    %425 = math.tanh %424 : vector<2x16xf32>
    %426 = vector.extract_strided_slice %411 {offsets = [0, 48], sizes = [2, 16], strides = [1, 1]} : vector<2x64xf32> to vector<2x16xf32>
    %427 = arith.negf %426 : vector<2x16xf32>
    %428 = math.exp %427 : vector<2x16xf32>
    %cst_226 = arith.constant 1.000000e+00 : f32
    %429 = vector.broadcast %cst_226 : f32 to vector<2x16xf32>
    %430 = arith.addf %429, %428 : vector<2x16xf32>
    %431 = arith.divf %429, %430 : vector<2x16xf32>
    %432 = arith.mulf %423, %408 : vector<2x16xf32>
    %433 = arith.mulf %417, %425 : vector<2x16xf32>
    %434 = arith.addf %432, %433 : vector<2x16xf32>
    %435 = math.tanh %434 : vector<2x16xf32>
    %436 = arith.mulf %431, %435 : vector<2x16xf32>
    %c0_227 = arith.constant 0 : index
    %c0_228 = arith.constant 0 : index
    %437 = vector.load %arg9[%c0_227, %c0_228] : memref<2x16xf32, #tpu.memory_space<vmem>>, vector<2x16xf32>
    tpu.vector_store %arg9[%c0_227, %c0_228], %436 {strides = array<i32>} : memref<2x16xf32, #tpu.memory_space<vmem>>, vector<2x16xf32>,
    %c0_229 = arith.constant 0 : index
    %c0_230 = arith.constant 0 : index
    %438 = vector.load %arg10[%c0_229, %c0_230] : memref<2x16xf32, #tpu.memory_space<vmem>>, vector<2x16xf32>
    tpu.vector_store %arg10[%c0_229, %c0_230], %434 {strides = array<i32>} : memref<2x16xf32, #tpu.memory_space<vmem>>, vector<2x16xf32>,
    %c0_231 = arith.constant 0 : index
    %c5_232 = arith.constant 5 : index
    %c0_233 = arith.constant 0 : index
    %439 = vector.load %arg5[%c0_231, %c5_232, %c0_233] : memref<2x8x16xf32, #tpu.memory_space<vmem>>, vector<2x1x16xf32>
    %440 = vector.shape_cast %439 : vector<2x1x16xf32> to vector<2x16xf32>
    %441 = vector.shape_cast %436 : vector<2x16xf32> to vector<2x1x16xf32>
    tpu.vector_store %arg5[%c0_231, %c5_232, %c0_233], %441 {strides = array<i32>} : memref<2x8x16xf32, #tpu.memory_space<vmem>>, vector<2x1x16xf32>,
    %c0_234 = arith.constant 0 : index
    %c2_235 = arith.constant 2 : index
    %c0_236 = arith.constant 0 : index
    %442 = vector.load %arg2[%c0_234, %c2_235, %c0_236] : memref<2x8x64xf32, #tpu.memory_space<vmem>>, vector<2x1x64xf32>
    %443 = vector.shape_cast %442 : vector<2x1x64xf32> to vector<2x64xf32>
    %c0_237 = arith.constant 0 : index
    %c0_238 = arith.constant 0 : index
    %444 = vector.load %arg11[%c0_237, %c0_238] : memref<2x16xf32, #tpu.memory_space<vmem>>, vector<2x16xf32>
    %c0_239 = arith.constant 0 : index
    %c0_240 = arith.constant 0 : index
    %445 = vector.load %arg12[%c0_239, %c0_240] : memref<2x16xf32, #tpu.memory_space<vmem>>, vector<2x16xf32>
    %446 = arith.truncf %444 : vector<2x16xf32> to vector<2x16xbf16>
    %cst_241 = arith.constant dense<0.000000e+00> : vector<2x64xf32>
    %447 = tpu.matmul %446, %4, %cst_241 {dimension_numbers = #tpu.dot_dimension_numbers<[1], [0], [0], [1], [0, 0, 1, 1], [], []>} : vector<2x16xbf16>, vector<16x64xbf16>, vector<2x64xf32> -> vector<2x64xf32>
    %448 = arith.addf %447, %443 : vector<2x64xf32>
    %449 = vector.extract_strided_slice %448 {offsets = [0, 0], sizes = [2, 16], strides = [1, 1]} : vector<2x64xf32> to vector<2x16xf32>
    %450 = arith.negf %449 : vector<2x16xf32>
    %451 = math.exp %450 : vector<2x16xf32>
    %cst_242 = arith.constant 1.000000e+00 : f32
    %452 = vector.broadcast %cst_242 : f32 to vector<2x16xf32>
    %453 = arith.addf %452, %451 : vector<2x16xf32>
    %454 = arith.divf %452, %453 : vector<2x16xf32>
    %455 = vector.extract_strided_slice %448 {offsets = [0, 16], sizes = [2, 16], strides = [1, 1]} : vector<2x64xf32> to vector<2x16xf32>
    %456 = arith.negf %455 : vector<2x16xf32>
    %457 = math.exp %456 : vector<2x16xf32>
    %cst_243 = arith.constant 1.000000e+00 : f32
    %458 = vector.broadcast %cst_243 : f32 to vector<2x16xf32>
    %459 = arith.addf %458, %457 : vector<2x16xf32>
    %460 = arith.divf %458, %459 : vector<2x16xf32>
    %461 = vector.extract_strided_slice %448 {offsets = [0, 32], sizes = [2, 16], strides = [1, 1]} : vector<2x64xf32> to vector<2x16xf32>
    %462 = math.tanh %461 : vector<2x16xf32>
    %463 = vector.extract_strided_slice %448 {offsets = [0, 48], sizes = [2, 16], strides = [1, 1]} : vector<2x64xf32> to vector<2x16xf32>
    %464 = arith.negf %463 : vector<2x16xf32>
    %465 = math.exp %464 : vector<2x16xf32>
    %cst_244 = arith.constant 1.000000e+00 : f32
    %466 = vector.broadcast %cst_244 : f32 to vector<2x16xf32>
    %467 = arith.addf %466, %465 : vector<2x16xf32>
    %468 = arith.divf %466, %467 : vector<2x16xf32>
    %469 = arith.mulf %460, %445 : vector<2x16xf32>
    %470 = arith.mulf %454, %462 : vector<2x16xf32>
    %471 = arith.addf %469, %470 : vector<2x16xf32>
    %472 = math.tanh %471 : vector<2x16xf32>
    %473 = arith.mulf %468, %472 : vector<2x16xf32>
    %c0_245 = arith.constant 0 : index
    %c0_246 = arith.constant 0 : index
    %474 = vector.load %arg11[%c0_245, %c0_246] : memref<2x16xf32, #tpu.memory_space<vmem>>, vector<2x16xf32>
    tpu.vector_store %arg11[%c0_245, %c0_246], %473 {strides = array<i32>} : memref<2x16xf32, #tpu.memory_space<vmem>>, vector<2x16xf32>,
    %c0_247 = arith.constant 0 : index
    %c0_248 = arith.constant 0 : index
    %475 = vector.load %arg12[%c0_247, %c0_248] : memref<2x16xf32, #tpu.memory_space<vmem>>, vector<2x16xf32>
    tpu.vector_store %arg12[%c0_247, %c0_248], %471 {strides = array<i32>} : memref<2x16xf32, #tpu.memory_space<vmem>>, vector<2x16xf32>,
    %c0_249 = arith.constant 0 : index
    %c2_250 = arith.constant 2 : index
    %c0_251 = arith.constant 0 : index
    %476 = vector.load %arg6[%c0_249, %c2_250, %c0_251] : memref<2x8x16xf32, #tpu.memory_space<vmem>>, vector<2x1x16xf32>
    %477 = vector.shape_cast %476 : vector<2x1x16xf32> to vector<2x16xf32>
    %478 = vector.shape_cast %473 : vector<2x16xf32> to vector<2x1x16xf32>
    tpu.vector_store %arg6[%c0_249, %c2_250, %c0_251], %478 {strides = array<i32>} : memref<2x8x16xf32, #tpu.memory_space<vmem>>, vector<2x1x16xf32>,
    %c0_252 = arith.constant 0 : index
    %c0_253 = arith.constant 0 : index
    %479 = vector.load %arg7[%c0_252, %c0_253] : memref<2x16xf32, #tpu.memory_space<vmem>>, vector<2x16xf32>
    %480 = arith.maximumf %479, %436 : vector<2x16xf32>
    %c0_254 = arith.constant 0 : index
    %c0_255 = arith.constant 0 : index
    %481 = vector.load %arg7[%c0_254, %c0_255] : memref<2x16xf32, #tpu.memory_space<vmem>>, vector<2x16xf32>
    tpu.vector_store %arg7[%c0_254, %c0_255], %480 {strides = array<i32>} : memref<2x16xf32, #tpu.memory_space<vmem>>, vector<2x16xf32>,
    %c0_256 = arith.constant 0 : index
    %c0_257 = arith.constant 0 : index
    %482 = vector.load %arg8[%c0_256, %c0_257] : memref<2x16xf32, #tpu.memory_space<vmem>>, vector<2x16xf32>
    %483 = arith.maximumf %482, %473 : vector<2x16xf32>
    %c0_258 = arith.constant 0 : index
    %c0_259 = arith.constant 0 : index
    %484 = vector.load %arg8[%c0_258, %c0_259] : memref<2x16xf32, #tpu.memory_space<vmem>>, vector<2x16xf32>
    tpu.vector_store %arg8[%c0_258, %c0_259], %483 {strides = array<i32>} : memref<2x16xf32, #tpu.memory_space<vmem>>, vector<2x16xf32>,
    %c0_260 = arith.constant 0 : index
    %c6_261 = arith.constant 6 : index
    %c0_262 = arith.constant 0 : index
    %485 = vector.load %arg1[%c0_260, %c6_261, %c0_262] : memref<2x8x64xf32, #tpu.memory_space<vmem>>, vector<2x1x64xf32>
    %486 = vector.shape_cast %485 : vector<2x1x64xf32> to vector<2x64xf32>
    %c0_263 = arith.constant 0 : index
    %c0_264 = arith.constant 0 : index
    %487 = vector.load %arg9[%c0_263, %c0_264] : memref<2x16xf32, #tpu.memory_space<vmem>>, vector<2x16xf32>
    %c0_265 = arith.constant 0 : index
    %c0_266 = arith.constant 0 : index
    %488 = vector.load %arg10[%c0_265, %c0_266] : memref<2x16xf32, #tpu.memory_space<vmem>>, vector<2x16xf32>
    %489 = arith.truncf %487 : vector<2x16xf32> to vector<2x16xbf16>
    %cst_267 = arith.constant dense<0.000000e+00> : vector<2x64xf32>
    %490 = tpu.matmul %489, %3, %cst_267 {dimension_numbers = #tpu.dot_dimension_numbers<[1], [0], [0], [1], [0, 0, 1, 1], [], []>} : vector<2x16xbf16>, vector<16x64xbf16>, vector<2x64xf32> -> vector<2x64xf32>
    %491 = arith.addf %490, %486 : vector<2x64xf32>
    %492 = vector.extract_strided_slice %491 {offsets = [0, 0], sizes = [2, 16], strides = [1, 1]} : vector<2x64xf32> to vector<2x16xf32>
    %493 = arith.negf %492 : vector<2x16xf32>
    %494 = math.exp %493 : vector<2x16xf32>
    %cst_268 = arith.constant 1.000000e+00 : f32
    %495 = vector.broadcast %cst_268 : f32 to vector<2x16xf32>
    %496 = arith.addf %495, %494 : vector<2x16xf32>
    %497 = arith.divf %495, %496 : vector<2x16xf32>
    %498 = vector.extract_strided_slice %491 {offsets = [0, 16], sizes = [2, 16], strides = [1, 1]} : vector<2x64xf32> to vector<2x16xf32>
    %499 = arith.negf %498 : vector<2x16xf32>
    %500 = math.exp %499 : vector<2x16xf32>
    %cst_269 = arith.constant 1.000000e+00 : f32
    %501 = vector.broadcast %cst_269 : f32 to vector<2x16xf32>
    %502 = arith.addf %501, %500 : vector<2x16xf32>
    %503 = arith.divf %501, %502 : vector<2x16xf32>
    %504 = vector.extract_strided_slice %491 {offsets = [0, 32], sizes = [2, 16], strides = [1, 1]} : vector<2x64xf32> to vector<2x16xf32>
    %505 = math.tanh %504 : vector<2x16xf32>
    %506 = vector.extract_strided_slice %491 {offsets = [0, 48], sizes = [2, 16], strides = [1, 1]} : vector<2x64xf32> to vector<2x16xf32>
    %507 = arith.negf %506 : vector<2x16xf32>
    %508 = math.exp %507 : vector<2x16xf32>
    %cst_270 = arith.constant 1.000000e+00 : f32
    %509 = vector.broadcast %cst_270 : f32 to vector<2x16xf32>
    %510 = arith.addf %509, %508 : vector<2x16xf32>
    %511 = arith.divf %509, %510 : vector<2x16xf32>
    %512 = arith.mulf %503, %488 : vector<2x16xf32>
    %513 = arith.mulf %497, %505 : vector<2x16xf32>
    %514 = arith.addf %512, %513 : vector<2x16xf32>
    %515 = math.tanh %514 : vector<2x16xf32>
    %516 = arith.mulf %511, %515 : vector<2x16xf32>
    %c0_271 = arith.constant 0 : index
    %c0_272 = arith.constant 0 : index
    %517 = vector.load %arg9[%c0_271, %c0_272] : memref<2x16xf32, #tpu.memory_space<vmem>>, vector<2x16xf32>
    tpu.vector_store %arg9[%c0_271, %c0_272], %516 {strides = array<i32>} : memref<2x16xf32, #tpu.memory_space<vmem>>, vector<2x16xf32>,
    %c0_273 = arith.constant 0 : index
    %c0_274 = arith.constant 0 : index
    %518 = vector.load %arg10[%c0_273, %c0_274] : memref<2x16xf32, #tpu.memory_space<vmem>>, vector<2x16xf32>
    tpu.vector_store %arg10[%c0_273, %c0_274], %514 {strides = array<i32>} : memref<2x16xf32, #tpu.memory_space<vmem>>, vector<2x16xf32>,
    %c0_275 = arith.constant 0 : index
    %c6_276 = arith.constant 6 : index
    %c0_277 = arith.constant 0 : index
    %519 = vector.load %arg5[%c0_275, %c6_276, %c0_277] : memref<2x8x16xf32, #tpu.memory_space<vmem>>, vector<2x1x16xf32>
    %520 = vector.shape_cast %519 : vector<2x1x16xf32> to vector<2x16xf32>
    %521 = vector.shape_cast %516 : vector<2x16xf32> to vector<2x1x16xf32>
    tpu.vector_store %arg5[%c0_275, %c6_276, %c0_277], %521 {strides = array<i32>} : memref<2x8x16xf32, #tpu.memory_space<vmem>>, vector<2x1x16xf32>,
    %c0_278 = arith.constant 0 : index
    %c1_279 = arith.constant 1 : index
    %c0_280 = arith.constant 0 : index
    %522 = vector.load %arg2[%c0_278, %c1_279, %c0_280] : memref<2x8x64xf32, #tpu.memory_space<vmem>>, vector<2x1x64xf32>
    %523 = vector.shape_cast %522 : vector<2x1x64xf32> to vector<2x64xf32>
    %c0_281 = arith.constant 0 : index
    %c0_282 = arith.constant 0 : index
    %524 = vector.load %arg11[%c0_281, %c0_282] : memref<2x16xf32, #tpu.memory_space<vmem>>, vector<2x16xf32>
    %c0_283 = arith.constant 0 : index
    %c0_284 = arith.constant 0 : index
    %525 = vector.load %arg12[%c0_283, %c0_284] : memref<2x16xf32, #tpu.memory_space<vmem>>, vector<2x16xf32>
    %526 = arith.truncf %524 : vector<2x16xf32> to vector<2x16xbf16>
    %cst_285 = arith.constant dense<0.000000e+00> : vector<2x64xf32>
    %527 = tpu.matmul %526, %4, %cst_285 {dimension_numbers = #tpu.dot_dimension_numbers<[1], [0], [0], [1], [0, 0, 1, 1], [], []>} : vector<2x16xbf16>, vector<16x64xbf16>, vector<2x64xf32> -> vector<2x64xf32>
    %528 = arith.addf %527, %523 : vector<2x64xf32>
    %529 = vector.extract_strided_slice %528 {offsets = [0, 0], sizes = [2, 16], strides = [1, 1]} : vector<2x64xf32> to vector<2x16xf32>
    %530 = arith.negf %529 : vector<2x16xf32>
    %531 = math.exp %530 : vector<2x16xf32>
    %cst_286 = arith.constant 1.000000e+00 : f32
    %532 = vector.broadcast %cst_286 : f32 to vector<2x16xf32>
    %533 = arith.addf %532, %531 : vector<2x16xf32>
    %534 = arith.divf %532, %533 : vector<2x16xf32>
    %535 = vector.extract_strided_slice %528 {offsets = [0, 16], sizes = [2, 16], strides = [1, 1]} : vector<2x64xf32> to vector<2x16xf32>
    %536 = arith.negf %535 : vector<2x16xf32>
    %537 = math.exp %536 : vector<2x16xf32>
    %cst_287 = arith.constant 1.000000e+00 : f32
    %538 = vector.broadcast %cst_287 : f32 to vector<2x16xf32>
    %539 = arith.addf %538, %537 : vector<2x16xf32>
    %540 = arith.divf %538, %539 : vector<2x16xf32>
    %541 = vector.extract_strided_slice %528 {offsets = [0, 32], sizes = [2, 16], strides = [1, 1]} : vector<2x64xf32> to vector<2x16xf32>
    %542 = math.tanh %541 : vector<2x16xf32>
    %543 = vector.extract_strided_slice %528 {offsets = [0, 48], sizes = [2, 16], strides = [1, 1]} : vector<2x64xf32> to vector<2x16xf32>
    %544 = arith.negf %543 : vector<2x16xf32>
    %545 = math.exp %544 : vector<2x16xf32>
    %cst_288 = arith.constant 1.000000e+00 : f32
    %546 = vector.broadcast %cst_288 : f32 to vector<2x16xf32>
    %547 = arith.addf %546, %545 : vector<2x16xf32>
    %548 = arith.divf %546, %547 : vector<2x16xf32>
    %549 = arith.mulf %540, %525 : vector<2x16xf32>
    %550 = arith.mulf %534, %542 : vector<2x16xf32>
    %551 = arith.addf %549, %550 : vector<2x16xf32>
    %552 = math.tanh %551 : vector<2x16xf32>
    %553 = arith.mulf %548, %552 : vector<2x16xf32>
    %c0_289 = arith.constant 0 : index
    %c0_290 = arith.constant 0 : index
    %554 = vector.load %arg11[%c0_289, %c0_290] : memref<2x16xf32, #tpu.memory_space<vmem>>, vector<2x16xf32>
    tpu.vector_store %arg11[%c0_289, %c0_290], %553 {strides = array<i32>} : memref<2x16xf32, #tpu.memory_space<vmem>>, vector<2x16xf32>,
    %c0_291 = arith.constant 0 : index
    %c0_292 = arith.constant 0 : index
    %555 = vector.load %arg12[%c0_291, %c0_292] : memref<2x16xf32, #tpu.memory_space<vmem>>, vector<2x16xf32>
    tpu.vector_store %arg12[%c0_291, %c0_292], %551 {strides = array<i32>} : memref<2x16xf32, #tpu.memory_space<vmem>>, vector<2x16xf32>,
    %c0_293 = arith.constant 0 : index
    %c1_294 = arith.constant 1 : index
    %c0_295 = arith.constant 0 : index
    %556 = vector.load %arg6[%c0_293, %c1_294, %c0_295] : memref<2x8x16xf32, #tpu.memory_space<vmem>>, vector<2x1x16xf32>
    %557 = vector.shape_cast %556 : vector<2x1x16xf32> to vector<2x16xf32>
    %558 = vector.shape_cast %553 : vector<2x16xf32> to vector<2x1x16xf32>
    tpu.vector_store %arg6[%c0_293, %c1_294, %c0_295], %558 {strides = array<i32>} : memref<2x8x16xf32, #tpu.memory_space<vmem>>, vector<2x1x16xf32>,
    %c0_296 = arith.constant 0 : index
    %c0_297 = arith.constant 0 : index
    %559 = vector.load %arg7[%c0_296, %c0_297] : memref<2x16xf32, #tpu.memory_space<vmem>>, vector<2x16xf32>
    %560 = arith.maximumf %559, %516 : vector<2x16xf32>
    %c0_298 = arith.constant 0 : index
    %c0_299 = arith.constant 0 : index
    %561 = vector.load %arg7[%c0_298, %c0_299] : memref<2x16xf32, #tpu.memory_space<vmem>>, vector<2x16xf32>
    tpu.vector_store %arg7[%c0_298, %c0_299], %560 {strides = array<i32>} : memref<2x16xf32, #tpu.memory_space<vmem>>, vector<2x16xf32>,
    %c0_300 = arith.constant 0 : index
    %c0_301 = arith.constant 0 : index
    %562 = vector.load %arg8[%c0_300, %c0_301] : memref<2x16xf32, #tpu.memory_space<vmem>>, vector<2x16xf32>
    %563 = arith.maximumf %562, %553 : vector<2x16xf32>
    %c0_302 = arith.constant 0 : index
    %c0_303 = arith.constant 0 : index
    %564 = vector.load %arg8[%c0_302, %c0_303] : memref<2x16xf32, #tpu.memory_space<vmem>>, vector<2x16xf32>
    tpu.vector_store %arg8[%c0_302, %c0_303], %563 {strides = array<i32>} : memref<2x16xf32, #tpu.memory_space<vmem>>, vector<2x16xf32>,
    %c0_304 = arith.constant 0 : index
    %c7_305 = arith.constant 7 : index
    %c0_306 = arith.constant 0 : index
    %565 = vector.load %arg1[%c0_304, %c7_305, %c0_306] : memref<2x8x64xf32, #tpu.memory_space<vmem>>, vector<2x1x64xf32>
    %566 = vector.shape_cast %565 : vector<2x1x64xf32> to vector<2x64xf32>
    %c0_307 = arith.constant 0 : index
    %c0_308 = arith.constant 0 : index
    %567 = vector.load %arg9[%c0_307, %c0_308] : memref<2x16xf32, #tpu.memory_space<vmem>>, vector<2x16xf32>
    %c0_309 = arith.constant 0 : index
    %c0_310 = arith.constant 0 : index
    %568 = vector.load %arg10[%c0_309, %c0_310] : memref<2x16xf32, #tpu.memory_space<vmem>>, vector<2x16xf32>
    %569 = arith.truncf %567 : vector<2x16xf32> to vector<2x16xbf16>
    %cst_311 = arith.constant dense<0.000000e+00> : vector<2x64xf32>
    %570 = tpu.matmul %569, %3, %cst_311 {dimension_numbers = #tpu.dot_dimension_numbers<[1], [0], [0], [1], [0, 0, 1, 1], [], []>} : vector<2x16xbf16>, vector<16x64xbf16>, vector<2x64xf32> -> vector<2x64xf32>
    %571 = arith.addf %570, %566 : vector<2x64xf32>
    %572 = vector.extract_strided_slice %571 {offsets = [0, 0], sizes = [2, 16], strides = [1, 1]} : vector<2x64xf32> to vector<2x16xf32>
    %573 = arith.negf %572 : vector<2x16xf32>
    %574 = math.exp %573 : vector<2x16xf32>
    %cst_312 = arith.constant 1.000000e+00 : f32
    %575 = vector.broadcast %cst_312 : f32 to vector<2x16xf32>
    %576 = arith.addf %575, %574 : vector<2x16xf32>
    %577 = arith.divf %575, %576 : vector<2x16xf32>
    %578 = vector.extract_strided_slice %571 {offsets = [0, 16], sizes = [2, 16], strides = [1, 1]} : vector<2x64xf32> to vector<2x16xf32>
    %579 = arith.negf %578 : vector<2x16xf32>
    %580 = math.exp %579 : vector<2x16xf32>
    %cst_313 = arith.constant 1.000000e+00 : f32
    %581 = vector.broadcast %cst_313 : f32 to vector<2x16xf32>
    %582 = arith.addf %581, %580 : vector<2x16xf32>
    %583 = arith.divf %581, %582 : vector<2x16xf32>
    %584 = vector.extract_strided_slice %571 {offsets = [0, 32], sizes = [2, 16], strides = [1, 1]} : vector<2x64xf32> to vector<2x16xf32>
    %585 = math.tanh %584 : vector<2x16xf32>
    %586 = vector.extract_strided_slice %571 {offsets = [0, 48], sizes = [2, 16], strides = [1, 1]} : vector<2x64xf32> to vector<2x16xf32>
    %587 = arith.negf %586 : vector<2x16xf32>
    %588 = math.exp %587 : vector<2x16xf32>
    %cst_314 = arith.constant 1.000000e+00 : f32
    %589 = vector.broadcast %cst_314 : f32 to vector<2x16xf32>
    %590 = arith.addf %589, %588 : vector<2x16xf32>
    %591 = arith.divf %589, %590 : vector<2x16xf32>
    %592 = arith.mulf %583, %568 : vector<2x16xf32>
    %593 = arith.mulf %577, %585 : vector<2x16xf32>
    %594 = arith.addf %592, %593 : vector<2x16xf32>
    %595 = math.tanh %594 : vector<2x16xf32>
    %596 = arith.mulf %591, %595 : vector<2x16xf32>
    %c0_315 = arith.constant 0 : index
    %c0_316 = arith.constant 0 : index
    %597 = vector.load %arg9[%c0_315, %c0_316] : memref<2x16xf32, #tpu.memory_space<vmem>>, vector<2x16xf32>
    tpu.vector_store %arg9[%c0_315, %c0_316], %596 {strides = array<i32>} : memref<2x16xf32, #tpu.memory_space<vmem>>, vector<2x16xf32>,
    %c0_317 = arith.constant 0 : index
    %c0_318 = arith.constant 0 : index
    %598 = vector.load %arg10[%c0_317, %c0_318] : memref<2x16xf32, #tpu.memory_space<vmem>>, vector<2x16xf32>
    tpu.vector_store %arg10[%c0_317, %c0_318], %594 {strides = array<i32>} : memref<2x16xf32, #tpu.memory_space<vmem>>, vector<2x16xf32>,
    %c0_319 = arith.constant 0 : index
    %c7_320 = arith.constant 7 : index
    %c0_321 = arith.constant 0 : index
    %599 = vector.load %arg5[%c0_319, %c7_320, %c0_321] : memref<2x8x16xf32, #tpu.memory_space<vmem>>, vector<2x1x16xf32>
    %600 = vector.shape_cast %599 : vector<2x1x16xf32> to vector<2x16xf32>
    %601 = vector.shape_cast %596 : vector<2x16xf32> to vector<2x1x16xf32>
    tpu.vector_store %arg5[%c0_319, %c7_320, %c0_321], %601 {strides = array<i32>} : memref<2x8x16xf32, #tpu.memory_space<vmem>>, vector<2x1x16xf32>,
    %c0_322 = arith.constant 0 : index
    %c0_323 = arith.constant 0 : index
    %c0_324 = arith.constant 0 : index
    %602 = vector.load %arg2[%c0_322, %c0_323, %c0_324] : memref<2x8x64xf32, #tpu.memory_space<vmem>>, vector<2x1x64xf32>
    %603 = vector.shape_cast %602 : vector<2x1x64xf32> to vector<2x64xf32>
    %c0_325 = arith.constant 0 : index
    %c0_326 = arith.constant 0 : index
    %604 = vector.load %arg11[%c0_325, %c0_326] : memref<2x16xf32, #tpu.memory_space<vmem>>, vector<2x16xf32>
    %c0_327 = arith.constant 0 : index
    %c0_328 = arith.constant 0 : index
    %605 = vector.load %arg12[%c0_327, %c0_328] : memref<2x16xf32, #tpu.memory_space<vmem>>, vector<2x16xf32>
    %606 = arith.truncf %604 : vector<2x16xf32> to vector<2x16xbf16>
    %cst_329 = arith.constant dense<0.000000e+00> : vector<2x64xf32>
    %607 = tpu.matmul %606, %4, %cst_329 {dimension_numbers = #tpu.dot_dimension_numbers<[1], [0], [0], [1], [0, 0, 1, 1], [], []>} : vector<2x16xbf16>, vector<16x64xbf16>, vector<2x64xf32> -> vector<2x64xf32>
    %608 = arith.addf %607, %603 : vector<2x64xf32>
    %609 = vector.extract_strided_slice %608 {offsets = [0, 0], sizes = [2, 16], strides = [1, 1]} : vector<2x64xf32> to vector<2x16xf32>
    %610 = arith.negf %609 : vector<2x16xf32>
    %611 = math.exp %610 : vector<2x16xf32>
    %cst_330 = arith.constant 1.000000e+00 : f32
    %612 = vector.broadcast %cst_330 : f32 to vector<2x16xf32>
    %613 = arith.addf %612, %611 : vector<2x16xf32>
    %614 = arith.divf %612, %613 : vector<2x16xf32>
    %615 = vector.extract_strided_slice %608 {offsets = [0, 16], sizes = [2, 16], strides = [1, 1]} : vector<2x64xf32> to vector<2x16xf32>
    %616 = arith.negf %615 : vector<2x16xf32>
    %617 = math.exp %616 : vector<2x16xf32>
    %cst_331 = arith.constant 1.000000e+00 : f32
    %618 = vector.broadcast %cst_331 : f32 to vector<2x16xf32>
    %619 = arith.addf %618, %617 : vector<2x16xf32>
    %620 = arith.divf %618, %619 : vector<2x16xf32>
    %621 = vector.extract_strided_slice %608 {offsets = [0, 32], sizes = [2, 16], strides = [1, 1]} : vector<2x64xf32> to vector<2x16xf32>
    %622 = math.tanh %621 : vector<2x16xf32>
    %623 = vector.extract_strided_slice %608 {offsets = [0, 48], sizes = [2, 16], strides = [1, 1]} : vector<2x64xf32> to vector<2x16xf32>
    %624 = arith.negf %623 : vector<2x16xf32>
    %625 = math.exp %624 : vector<2x16xf32>
    %cst_332 = arith.constant 1.000000e+00 : f32
    %626 = vector.broadcast %cst_332 : f32 to vector<2x16xf32>
    %627 = arith.addf %626, %625 : vector<2x16xf32>
    %628 = arith.divf %626, %627 : vector<2x16xf32>
    %629 = arith.mulf %620, %605 : vector<2x16xf32>
    %630 = arith.mulf %614, %622 : vector<2x16xf32>
    %631 = arith.addf %629, %630 : vector<2x16xf32>
    %632 = math.tanh %631 : vector<2x16xf32>
    %633 = arith.mulf %628, %632 : vector<2x16xf32>
    %c0_333 = arith.constant 0 : index
    %c0_334 = arith.constant 0 : index
    %634 = vector.load %arg11[%c0_333, %c0_334] : memref<2x16xf32, #tpu.memory_space<vmem>>, vector<2x16xf32>
    tpu.vector_store %arg11[%c0_333, %c0_334], %633 {strides = array<i32>} : memref<2x16xf32, #tpu.memory_space<vmem>>, vector<2x16xf32>,
    %c0_335 = arith.constant 0 : index
    %c0_336 = arith.constant 0 : index
    %635 = vector.load %arg12[%c0_335, %c0_336] : memref<2x16xf32, #tpu.memory_space<vmem>>, vector<2x16xf32>
    tpu.vector_store %arg12[%c0_335, %c0_336], %631 {strides = array<i32>} : memref<2x16xf32, #tpu.memory_space<vmem>>, vector<2x16xf32>,
    %c0_337 = arith.constant 0 : index
    %c0_338 = arith.constant 0 : index
    %c0_339 = arith.constant 0 : index
    %636 = vector.load %arg6[%c0_337, %c0_338, %c0_339] : memref<2x8x16xf32, #tpu.memory_space<vmem>>, vector<2x1x16xf32>
    %637 = vector.shape_cast %636 : vector<2x1x16xf32> to vector<2x16xf32>
    %638 = vector.shape_cast %633 : vector<2x16xf32> to vector<2x1x16xf32>
    tpu.vector_store %arg6[%c0_337, %c0_338, %c0_339], %638 {strides = array<i32>} : memref<2x8x16xf32, #tpu.memory_space<vmem>>, vector<2x1x16xf32>,
    %c0_340 = arith.constant 0 : index
    %c0_341 = arith.constant 0 : index
    %639 = vector.load %arg7[%c0_340, %c0_341] : memref<2x16xf32, #tpu.memory_space<vmem>>, vector<2x16xf32>
    %640 = arith.maximumf %639, %596 : vector<2x16xf32>
    %c0_342 = arith.constant 0 : index
    %c0_343 = arith.constant 0 : index
    %641 = vector.load %arg7[%c0_342, %c0_343] : memref<2x16xf32, #tpu.memory_space<vmem>>, vector<2x16xf32>
    tpu.vector_store %arg7[%c0_342, %c0_343], %640 {strides = array<i32>} : memref<2x16xf32, #tpu.memory_space<vmem>>, vector<2x16xf32>,
    %c0_344 = arith.constant 0 : index
    %c0_345 = arith.constant 0 : index
    %642 = vector.load %arg8[%c0_344, %c0_345] : memref<2x16xf32, #tpu.memory_space<vmem>>, vector<2x16xf32>
    %643 = arith.maximumf %642, %633 : vector<2x16xf32>
    %c0_346 = arith.constant 0 : index
    %c0_347 = arith.constant 0 : index
    %644 = vector.load %arg8[%c0_346, %c0_347] : memref<2x16xf32, #tpu.memory_space<vmem>>, vector<2x16xf32>
    tpu.vector_store %arg8[%c0_346, %c0_347], %643 {strides = array<i32>} : memref<2x16xf32, #tpu.memory_space<vmem>>, vector<2x16xf32>,
    return
  }
  func.func @transform_0(%arg0: i32) -> (i32, i32, i32) {
    %c0_i32 = arith.constant 0 : i32
    %c0_i32_0 = arith.constant 0 : i32
    %c0_i32_1 = arith.constant 0 : i32
    return %c0_i32, %arg0, %c0_i32_0 : i32, i32, i32
  }
  func.func @transform_1(%arg0: i32) -> (i32, i32, i32) {
    %c1_i32 = arith.constant 1 : i32
    %0 = arith.subi %c1_i32, %arg0 : i32
    %c0_i32 = arith.constant 0 : i32
    %c0_i32_0 = arith.constant 0 : i32
    %c0_i32_1 = arith.constant 0 : i32
    return %c0_i32, %0, %c0_i32_0 : i32, i32, i32
  }
  func.func @transform_2(%arg0: i32) -> (i32, i32) {
    %c0_i32 = arith.constant 0 : i32
    %c0_i32_0 = arith.constant 0 : i32
    %c0_i32_1 = arith.constant 0 : i32
    return %c0_i32, %c0_i32_0 : i32, i32
  }
  func.func @transform_3(%arg0: i32) -> (i32, i32) {
    %c0_i32 = arith.constant 0 : i32
    %c0_i32_0 = arith.constant 0 : i32
    %c0_i32_1 = arith.constant 0 : i32
    return %c0_i32, %c0_i32_0 : i32, i32
  }
  func.func @transform_4(%arg0: i32) -> (i32, i32, i32) {
    %c0_i32 = arith.constant 0 : i32
    %c0_i32_0 = arith.constant 0 : i32
    %c0_i32_1 = arith.constant 0 : i32
    return %c0_i32, %arg0, %c0_i32_0 : i32, i32, i32
  }
  func.func @transform_5(%arg0: i32) -> (i32, i32, i32) {
    %c1_i32 = arith.constant 1 : i32
    %0 = arith.subi %c1_i32, %arg0 : i32
    %c0_i32 = arith.constant 0 : i32
    %c0_i32_0 = arith.constant 0 : i32
    %c0_i32_1 = arith.constant 0 : i32
    return %c0_i32, %0, %c0_i32_0 : i32, i32, i32
  }
  func.func @transform_6(%arg0: i32) -> (i32, i32) {
    %c0_i32 = arith.constant 0 : i32
    %c0_i32_0 = arith.constant 0 : i32
    %c0_i32_1 = arith.constant 0 : i32
    return %c0_i32, %c0_i32_0 : i32, i32
  }
  func.func @transform_7(%arg0: i32) -> (i32, i32) {
    %c0_i32 = arith.constant 0 : i32
    %c0_i32_0 = arith.constant 0 : i32
    %c0_i32_1 = arith.constant 0 : i32
    return %c0_i32, %c0_i32_0 : i32, i32
  }
}

</mosaic_0001>

<llo_original>
// kernel: base_lstm_encoder_forward.2
$region0: #{base_lstm_encoder_forward.2}
  #allocation0 [shape = 'u32[]', space=smem, size = 0x4, offset = 0x4, fixed_abs, tag = 'smem constant byte address 0x4 - core index']
  #allocation1 [shape = 'u32[144,128]{1,0:T(1,128)}', space=vmem, size = 0x12000, scoped, tag = 'internal scratch']
  #allocation2 [shape = 'f32[2,16]{1,0:T(2,128)}', space=vmem, size = 0x400, scoped, tag = 'scratch operand']
  #allocation3 [shape = 'f32[2,16]{1,0:T(2,128)}', space=vmem, size = 0x400, scoped, tag = 'scratch operand']
  #allocation4 [shape = 'f32[2,16]{1,0:T(2,128)}', space=vmem, size = 0x400, scoped, tag = 'scratch operand']
  #allocation5 [shape = 'f32[2,16]{1,0:T(2,128)}', space=vmem, size = 0x400, scoped, tag = 'scratch operand']
  %s0 = inlined_call_operand.vmem [shape: f32[2,16,64], index: 0, kind: input, shape index: {}]
  %s1 = inlined_call_operand.vmem [shape: f32[2,16,64], index: 1, kind: input, shape index: {}]
  %s2 = inlined_call_operand.vmem [shape: bf16[16,64], index: 2, kind: input, shape index: {}]
  %s3 = inlined_call_operand.vmem [shape: bf16[16,64], index: 3, kind: input, shape index: {}]
  %s4 = inlined_call_operand.vmem [shape: f32[2,16,16], index: 4, kind: output, shape index: {0}]
  %s5 = inlined_call_operand.vmem [shape: f32[2,16,16], index: 5, kind: output, shape index: {1}]
  %s6 = inlined_call_operand.hbm [shape: f32[2,16], index: 6, kind: output, shape index: {2}]
  %s7 = inlined_call_operand.hbm [shape: f32[2,16], index: 7, kind: output, shape index: {3}]
  %8 = xla_tuple %s4, %s5, %s6, %s7
  %s9 = sld [smem:[#allocation0]]
  $region221: #{base_lstm_encoder_forward.2} parent=0
    _
  %s11 = ssub.s32 1, %s9
  %s12 = scalar_select 0, %s11, %s9
  $region1: #{base_lstm_encoder_forward.2} parent=0
    #allocation6 [shape = 'u8[16384]{0}', space=vmem, size = 0x4000, scoped, tag = 'input window, operand 0']
    #allocation7 [shape = 'u8[16384]{0}', space=vmem, size = 0x4000, scoped, tag = 'input window, operand 1']
    #allocation8 [shape = 'u8[16384]{0}', space=vmem, size = 0x4000, scoped, tag = 'output window, operand 0']
    #allocation9 [shape = 'u8[16384]{0}', space=vmem, size = 0x4000, scoped, tag = 'output window, operand 1']
    #allocation10 [shape = 'u8[1024]{0}', space=vmem, size = 0x400, scoped, tag = 'output window, operand 2, single buffered']
    #allocation11 [shape = 's32[2]{0}', space=sflag, size = 0x8, scoped, tag = 'scoped memory for base_lstm_encoder_forward.2']
    #allocation12 [shape = 'u8[1024]{0}', space=vmem, size = 0x400, scoped, tag = 'output window, operand 3, single buffered']
    #allocation13 [shape = 's32[1]{0}', space=sflag, size = 0x4, scoped, tag = 'scoped memory for base_lstm_encoder_forward.2']
    %13 = vsyncpa [#allocation11], 0
    %14 = vsyncpa [#allocation13], 0
    loop: start=0, step=1, limit=4
    $region2: #{base_lstm_encoder_forward.2} parent=1 // loop_pre_header
      _
    $region3: #{base_lstm_encoder_forward.2} parent=1 // loop_header
      %s16 = sphi 0, %s20
      %p17 = scmp.ge.s32.totalorder %s16, 4
      %s26 = sphi 0, %s28
      %s29 = sphi 0, %s26
      %s30 = sphi 0, %s29
      %s46 = sphi 0, %s30
      %s54 = sphi 0, %s56
      %s57 = sphi 0, %s54
      %s58 = sphi 0, %s57
      %s74 = sphi 0, %s58
      %s78 = sphi 0, %s78
      %s80 = sphi 0, %s78
      %s81 = sphi 0, %s80
      %s95 = sphi 0, %s81
      %s99 = sphi 0, %s99
      %s101 = sphi 0, %s99
      %s102 = sphi 0, %s101
      %s116 = sphi 0, %s102
      %s122 = sphi 0, %s124
      %s125 = sphi 0, %s122
      %s126 = sphi 0, %s125
      %s142 = sphi 0, %s126
      %s150 = sphi 0, %s152
      %s153 = sphi 0, %s150
      %s154 = sphi 0, %s153
      %s170 = sphi 0, %s154
      %s174 = sphi 0, %s174
      %s176 = sphi 0, %s174
      %s177 = sphi 0, %s176
      %s191 = sphi 0, %s177
      %s195 = sphi 0, %s195
      %s197 = sphi 0, %s195
      %s198 = sphi 0, %s197
      %s212 = sphi 0, %s198
    $region4: #{base_lstm_encoder_forward.2} parent=1 // loop_header_branch
      %19 = sbr.rel (%p17) target = $region8
    $region5: #{base_lstm_encoder_forward.2} parent=1 // loop_body
      %s21 = ssub.s32 %s16, 1
      %s22 = ssub.s32 %s16, 2
      %s23 = sadd.s32 %s16, 1
      %s24 = ssub.s32 %s16, %s23
      %p25 = scmp.eq.s32.totalorder %s24, 0
      %s27 = sadd.s32 %s26, 1
      %s28 = scalar_select %p25, %s26, %s27
      %p31 = pneg %p25
      %p32 = scmp.eq.s32.totalorder %s16, 1
      %p33 = por %p31, %p32
      %p34 = scmp.ne.s32.totalorder %s26, %s29
      %p35 = scmp.eq.s32.totalorder %s16, 0
      %p36 = por %p34, %p35
      %p37 = scmp.ne.s32.totalorder %s26, %s29
      %p38 = scmp.eq.s32.totalorder %s21, 1
      %p39 = por %p37, %p38
      %p40 = scmp.ne.s32.totalorder %s29, %s30
      %p41 = scmp.eq.s32.totalorder %s21, 0
      %p42 = por %p40, %p41
      %p43 = scmp.ne.s32.totalorder %s29, %s30
      %p44 = scmp.eq.s32.totalorder %s22, 1
      %p45 = por %p43, %p44
      %p47 = scmp.ne.s32.totalorder %s30, %s46
      %p48 = scmp.eq.s32.totalorder %s22, 0
      %p49 = por %p47, %p48
      %s50 = ssub.s32 1, %s16
      %s51 = ssub.s32 1, %s23
      %s52 = ssub.s32 %s50, %s51
      %p53 = scmp.eq.s32.totalorder %s52, 0
      %s55 = sadd.s32 %s54, 1
      %s56 = scalar_select %p53, %s54, %s55
      %p59 = pneg %p53
      %p60 = scmp.eq.s32.totalorder %s16, 1
      %p61 = por %p59, %p60
      %p62 = scmp.ne.s32.totalorder %s54, %s57
      %p63 = scmp.eq.s32.totalorder %s16, 0
      %p64 = por %p62, %p63
      %p65 = scmp.ne.s32.totalorder %s54, %s57
      %p66 = scmp.eq.s32.totalorder %s21, 1
      %p67 = por %p65, %p66
      %p68 = scmp.ne.s32.totalorder %s57, %s58
      %p69 = scmp.eq.s32.totalorder %s21, 0
      %p70 = por %p68, %p69
      %p71 = scmp.ne.s32.totalorder %s57, %s58
      %p72 = scmp.eq.s32.totalorder %s22, 1
      %p73 = por %p71, %p72
      %p75 = scmp.ne.s32.totalorder %s58, %s74
      %p76 = scmp.eq.s32.totalorder %s22, 0
      %p77 = por %p75, %p76
      %s79 = sadd.s32 %s78, 1
      %p82 = scmp.eq.s32.totalorder %s16, 1
      %p83 = scmp.ne.s32.totalorder %s78, %s80
      %p84 = scmp.eq.s32.totalorder %s16, 0
      %p85 = por %p83, %p84
      %p86 = scmp.ne.s32.totalorder %s78, %s80
      %p87 = scmp.eq.s32.totalorder %s21, 1
      %p88 = por %p86, %p87
      %p89 = scmp.ne.s32.totalorder %s80, %s81
      %p90 = scmp.eq.s32.totalorder %s21, 0
      %p91 = por %p89, %p90
      %p92 = scmp.ne.s32.totalorder %s80, %s81
      %p93 = scmp.eq.s32.totalorder %s22, 1
      %p94 = por %p92, %p93
      %p96 = scmp.ne.s32.totalorder %s81, %s95
      %p97 = scmp.eq.s32.totalorder %s22, 0
      %p98 = por %p96, %p97
      %s100 = sadd.s32 %s99, 1
      %p103 = scmp.eq.s32.totalorder %s16, 1
      %p104 = scmp.ne.s32.totalorder %s99, %s101
      %p105 = scmp.eq.s32.totalorder %s16, 0
      %p106 = por %p104, %p105
      %p107 = scmp.ne.s32.totalorder %s99, %s101
      %p108 = scmp.eq.s32.totalorder %s21, 1
      %p109 = por %p107, %p108
      %p110 = scmp.ne.s32.totalorder %s101, %s102
      %p111 = scmp.eq.s32.totalorder %s21, 0
      %p112 = por %p110, %p111
      %p113 = scmp.ne.s32.totalorder %s101, %s102
      %p114 = scmp.eq.s32.totalorder %s22, 1
      %p115 = por %p113, %p114
      %p117 = scmp.ne.s32.totalorder %s102, %s116
      %p118 = scmp.eq.s32.totalorder %s22, 0
      %p119 = por %p117, %p118
      %s120 = ssub.s32 %s16, %s23
      %p121 = scmp.eq.s32.totalorder %s120, 0
      %s123 = sadd.s32 %s122, 1
      %s124 = scalar_select %p121, %s122, %s123
      %p127 = pneg %p121
      %p128 = scmp.eq.s32.totalorder %s16, 1
      %p129 = por %p127, %p128
      %p130 = scmp.ne.s32.totalorder %s122, %s125
      %p131 = scmp.eq.s32.totalorder %s16, 0
      %p132 = por %p130, %p131
      %p133 = scmp.ne.s32.totalorder %s122, %s125
      %p134 = scmp.eq.s32.totalorder %s21, 1
      %p135 = por %p133, %p134
      %p136 = scmp.ne.s32.totalorder %s125, %s126
      %p137 = scmp.eq.s32.totalorder %s21, 0
      %p138 = por %p136, %p137
      %p139 = scmp.ne.s32.totalorder %s125, %s126
      %p140 = scmp.eq.s32.totalorder %s22, 1
      %p141 = por %p139, %p140
      %p143 = scmp.ne.s32.totalorder %s126, %s142
      %p144 = scmp.eq.s32.totalorder %s22, 0
      %p145 = por %p143, %p144
      %s146 = ssub.s32 1, %s16
      %s147 = ssub.s32 1, %s23
      %s148 = ssub.s32 %s146, %s147
      %p149 = scmp.eq.s32.totalorder %s148, 0
      %s151 = sadd.s32 %s150, 1
      %s152 = scalar_select %p149, %s150, %s151
      %p155 = pneg %p149
      %p156 = scmp.eq.s32.totalorder %s16, 1
      %p157 = por %p155, %p156
      %p158 = scmp.ne.s32.totalorder %s150, %s153
      %p159 = scmp.eq.s32.totalorder %s16, 0
      %p160 = por %p158, %p159
      %p161 = scmp.ne.s32.totalorder %s150, %s153
      %p162 = scmp.eq.s32.totalorder %s21, 1
      %p163 = por %p161, %p162
      %p164 = scmp.ne.s32.totalorder %s153, %s154
      %p165 = scmp.eq.s32.totalorder %s21, 0
      %p166 = por %p164, %p165
      %p167 = scmp.ne.s32.totalorder %s153, %s154
      %p168 = scmp.eq.s32.totalorder %s22, 1
      %p169 = por %p167, %p168
      %p171 = scmp.ne.s32.totalorder %s154, %s170
      %p172 = scmp.eq.s32.totalorder %s22, 0
      %p173 = por %p171, %p172
      %s175 = sadd.s32 %s174, 1
      %p178 = scmp.eq.s32.totalorder %s16, 1
      %p179 = scmp.ne.s32.totalorder %s174, %s176
      %p180 = scmp.eq.s32.totalorder %s16, 0
      %p181 = por %p179, %p180
      %p182 = scmp.ne.s32.totalorder %s174, %s176
      %p183 = scmp.eq.s32.totalorder %s21, 1
      %p184 = por %p182, %p183
      %p185 = scmp.ne.s32.totalorder %s176, %s177
      %p186 = scmp.eq.s32.totalorder %s21, 0
      %p187 = por %p185, %p186
      %p188 = scmp.ne.s32.totalorder %s176, %s177
      %p189 = scmp.eq.s32.totalorder %s22, 1
      %p190 = por %p188, %p189
      %p192 = scmp.ne.s32.totalorder %s177, %s191
      %p193 = scmp.eq.s32.totalorder %s22, 0
      %p194 = por %p192, %p193
      %s196 = sadd.s32 %s195, 1
      %p199 = scmp.eq.s32.totalorder %s16, 1
      %p200 = scmp.ne.s32.totalorder %s195, %s197
      %p201 = scmp.eq.s32.totalorder %s16, 0
      %p202 = por %p200, %p201
      %p203 = scmp.ne.s32.totalorder %s195, %s197
      %p204 = scmp.eq.s32.totalorder %s21, 1
      %p205 = por %p203, %p204
      %p206 = scmp.ne.s32.totalorder %s197, %s198
      %p207 = scmp.eq.s32.totalorder %s21, 0
      %p208 = por %p206, %p207
      %p209 = scmp.ne.s32.totalorder %s197, %s198
      %p210 = scmp.eq.s32.totalorder %s22, 1
      %p211 = por %p209, %p210
      %p213 = scmp.ne.s32.totalorder %s198, %s212
      %p214 = scmp.eq.s32.totalorder %s22, 0
      %p215 = por %p213, %p214
      %p216 = scmp.le.s32.totalorder 1, %s16
      %p217 = scmp.lt.s32.totalorder %s16, 3
      %p218 = pnand %p216, %p217
      %p219 = pneg %p218
      // Predicated region
      $region9: #{base_lstm_encoder_forward.2} parent=5 // pred_check
        _
      $region10: #{base_lstm_encoder_forward.2} parent=5 // pred_check_branch
        %221 = sbr.rel (%p218) target = $region12
      $region11: #{base_lstm_encoder_forward.2} parent=5 // pred_region
        %s222 = ssub.s32 %s16, 1
        // Predicated region
        $region13: #{base_lstm_encoder_forward.2} parent=11 // pred_check
          %p223 = pneg %p91
        $region14: #{base_lstm_encoder_forward.2} parent=11 // pred_check_branch
          %225 = sbr.rel (%p223) target = $region16
        $region15: #{base_lstm_encoder_forward.2} parent=11 // pred_region
          _
        $region16: #{base_lstm_encoder_forward.2} parent=11 // pred_fallthru
          _
        // Predicated region
        $region17: #{base_lstm_encoder_forward.2} parent=11 // pred_check
          %p226 = pneg %p112
        $region18: #{base_lstm_encoder_forward.2} parent=11 // pred_check_branch
          %228 = sbr.rel (%p226) target = $region20
        $region19: #{base_lstm_encoder_forward.2} parent=11 // pred_region
          _
        $region20: #{base_lstm_encoder_forward.2} parent=11 // pred_fallthru
          _
      $region12: #{base_lstm_encoder_forward.2} parent=5 // pred_fallthru
        _
      %p229 = scmp.lt.s32.totalorder %s16, 2
      // Predicated region
      $region21: #{base_lstm_encoder_forward.2} parent=5 // pred_check
        %p230 = pneg %p229
      $region22: #{base_lstm_encoder_forward.2} parent=5 // pred_check_branch
        %232 = sbr.rel (%p230) target = $region24
      $region23: #{base_lstm_encoder_forward.2} parent=5 // pred_region
        // Predicated region
        $region25: #{base_lstm_encoder_forward.2} parent=23 // pred_check
          %p233 = pneg %p36
        $region26: #{base_lstm_encoder_forward.2} parent=23 // pred_check_branch
          %235 = sbr.rel (%p233) target = $region28
        $region27: #{base_lstm_encoder_forward.2} parent=23 // pred_region
          %s236 = sand.u32 %s26, 1
          %s237 = sand.u32 %s26, 1
          %s238 = smul.addr %s237, 16
          %s239 = scalar_lea.vmem [#allocation6], %s238
          %s240 = smul.addr %s16, 8
          %s241 = scalar_lea.vmem %s0, %s240
          // Predicated region
          $region29: #{base_lstm_encoder_forward.2} parent=27 // pred_check
            _
          $region30: #{base_lstm_encoder_forward.2} parent=27 // pred_check_branch
            %243 = sbr.rel (0) target = $region32
          $region31: #{base_lstm_encoder_forward.2} parent=27 // pred_region
            // Predicated region
            $region33: #{base_lstm_encoder_forward.2} parent=31 // pred_check
              _
            $region34: #{base_lstm_encoder_forward.2} parent=31 // pred_check_branch
              %245 = sbr.rel (0) target = $region36
            $region35: #{base_lstm_encoder_forward.2} parent=31 // pred_region
              // Predicated region
              $region48: #{base_lstm_encoder_forward.2} parent=35 // pred_check
                _
              $region49: #{base_lstm_encoder_forward.2} parent=35 // pred_check_branch
                %262 = sbr.rel (0) target = $region51
              $region50: #{base_lstm_encoder_forward.2} parent=35 // pred_region
                loop: start=0, step=1, limit=1
                $region52: #{base_lstm_encoder_forward.2} parent=50 // loop_pre_header
                  _
                $region53: #{base_lstm_encoder_forward.2} parent=50 // loop_header
                  %s264 = sphi 0, %s268
                  %p265 = scmp.ge.s32.totalorder %s264, 1
                  %s269 = sphi %s241, %s241
                  %s270 = sphi %s239, %s239
                $region54: #{base_lstm_encoder_forward.2} parent=50 // loop_header_branch
                  %267 = sbr.rel (%p265) target = $region58
                $region55: #{base_lstm_encoder_forward.2} parent=50 // loop_body
                  %v271 = vld [vmem:[%s269] sm:$0xff]
                  %272 = vst [vmem:[%s270] sm:$0xff] %v271
                  %v273 = vld [vmem:[%s269 + $0x10] sm:$0xff]
                  %274 = vst [vmem:[%s270 + $0x8] sm:$0xff] %v273
                $region56: #{base_lstm_encoder_forward.2} parent=50 // loop_footer
                  %s268 = sadd.s32 1, %s264
                $region57: #{base_lstm_encoder_forward.2} parent=50 // loop_footer_branch
                  %263 = sbr.rel target = $region53
                $region58: #{base_lstm_encoder_forward.2} parent=50 // loop_exit
                  _
              $region51: #{base_lstm_encoder_forward.2} parent=35 // pred_fallthru
                _
              // Predicated region
              $region59: #{base_lstm_encoder_forward.2} parent=35 // pred_check
                _
              $region60: #{base_lstm_encoder_forward.2} parent=35 // pred_check_branch
                %276 = sbr.rel target = $region62
              $region61: #{base_lstm_encoder_forward.2} parent=35 // pred_region
                _
              $region62: #{base_lstm_encoder_forward.2} parent=35 // pred_fallthru
                _
            $region36: #{base_lstm_encoder_forward.2} parent=31 // pred_fallthru
              _
            // Predicated region
            $region37: #{base_lstm_encoder_forward.2} parent=31 // pred_check
              _
            $region38: #{base_lstm_encoder_forward.2} parent=31 // pred_check_branch
              %247 = sbr.rel target = $region40
            $region39: #{base_lstm_encoder_forward.2} parent=31 // pred_region
              loop: start=0, step=1, limit=1
              $region41: #{base_lstm_encoder_forward.2} parent=39 // loop_pre_header
                _
              $region42: #{base_lstm_encoder_forward.2} parent=39 // loop_header
                %s250 = sphi 0, %s254
                %p251 = scmp.ge.s32.totalorder %s250, 1
                %s255 = sphi %s241, %s241
                %s256 = sphi %s239, %s239
              $region43: #{base_lstm_encoder_forward.2} parent=39 // loop_header_branch
                %253 = sbr.rel (%p251) target = $region47
              $region44: #{base_lstm_encoder_forward.2} parent=39 // loop_body
                %v257 = vld [vmem:[%s255] sm:$0xff]
                %258 = vst [vmem:[%s256] sm:$0xff] %v257
                %v259 = vld [vmem:[%s255 + $0x10] sm:$0xff]
                %260 = vst [vmem:[%s256 + $0x8] sm:$0xff] %v259
              $region45: #{base_lstm_encoder_forward.2} parent=39 // loop_footer
                %s254 = sadd.s32 1, %s250
              $region46: #{base_lstm_encoder_forward.2} parent=39 // loop_footer_branch
                %249 = sbr.rel target = $region42
              $region47: #{base_lstm_encoder_forward.2} parent=39 // loop_exit
                _
            $region40: #{base_lstm_encoder_forward.2} parent=31 // pred_fallthru
              _
          $region32: #{base_lstm_encoder_forward.2} parent=27 // pred_fallthru
            _
          %277 = vnop
        $region28: #{base_lstm_encoder_forward.2} parent=23 // pred_fallthru
          _
        // Predicated region
        $region63: #{base_lstm_encoder_forward.2} parent=23 // pred_check
          %p278 = pneg %p64
        $region64: #{base_lstm_encoder_forward.2} parent=23 // pred_check_branch
          %280 = sbr.rel (%p278) target = $region66
        $region65: #{base_lstm_encoder_forward.2} parent=23 // pred_region
          %s281 = sand.u32 %s54, 1
          %s282 = sand.u32 %s54, 1
          %s283 = smul.addr %s282, 16
          %s284 = scalar_lea.vmem [#allocation7], %s283
          %s285 = ssub.s32 1, %s16
          %s286 = smul.addr %s285, 8
          %s287 = scalar_lea.vmem %s1, %s286
          // Predicated region
          $region67: #{base_lstm_encoder_forward.2} parent=65 // pred_check
            _
          $region68: #{base_lstm_encoder_forward.2} parent=65 // pred_check_branch
            %289 = sbr.rel (0) target = $region70
          $region69: #{base_lstm_encoder_forward.2} parent=65 // pred_region
            // Predicated region
            $region71: #{base_lstm_encoder_forward.2} parent=69 // pred_check
              _
            $region72: #{base_lstm_encoder_forward.2} parent=69 // pred_check_branch
              %291 = sbr.rel (0) target = $region74
            $region73: #{base_lstm_encoder_forward.2} parent=69 // pred_region
              // Predicated region
              $region86: #{base_lstm_encoder_forward.2} parent=73 // pred_check
                _
              $region87: #{base_lstm_encoder_forward.2} parent=73 // pred_check_branch
                %308 = sbr.rel (0) target = $region89
              $region88: #{base_lstm_encoder_forward.2} parent=73 // pred_region
                loop: start=0, step=1, limit=1
                $region90: #{base_lstm_encoder_forward.2} parent=88 // loop_pre_header
                  _
                $region91: #{base_lstm_encoder_forward.2} parent=88 // loop_header
                  %s310 = sphi 0, %s314
                  %p311 = scmp.ge.s32.totalorder %s310, 1
                  %s315 = sphi %s287, %s287
                  %s316 = sphi %s284, %s284
                $region92: #{base_lstm_encoder_forward.2} parent=88 // loop_header_branch
                  %313 = sbr.rel (%p311) target = $region96
                $region93: #{base_lstm_encoder_forward.2} parent=88 // loop_body
                  %v317 = vld [vmem:[%s315] sm:$0xff]
                  %318 = vst [vmem:[%s316] sm:$0xff] %v317
                  %v319 = vld [vmem:[%s315 + $0x10] sm:$0xff]
                  %320 = vst [vmem:[%s316 + $0x8] sm:$0xff] %v319
                $region94: #{base_lstm_encoder_forward.2} parent=88 // loop_footer
                  %s314 = sadd.s32 1, %s310
                $region95: #{base_lstm_encoder_forward.2} parent=88 // loop_footer_branch
                  %309 = sbr.rel target = $region91
                $region96: #{base_lstm_encoder_forward.2} parent=88 // loop_exit
                  _
              $region89: #{base_lstm_encoder_forward.2} parent=73 // pred_fallthru
                _
              // Predicated region
              $region97: #{base_lstm_encoder_forward.2} parent=73 // pred_check
                _
              $region98: #{base_lstm_encoder_forward.2} parent=73 // pred_check_branch
                %322 = sbr.rel target = $region100
              $region99: #{base_lstm_encoder_forward.2} parent=73 // pred_region
                _
              $region100: #{base_lstm_encoder_forward.2} parent=73 // pred_fallthru
                _
            $region74: #{base_lstm_encoder_forward.2} parent=69 // pred_fallthru
              _
            // Predicated region
            $region75: #{base_lstm_encoder_forward.2} parent=69 // pred_check
              _
            $region76: #{base_lstm_encoder_forward.2} parent=69 // pred_check_branch
              %293 = sbr.rel target = $region78
            $region77: #{base_lstm_encoder_forward.2} parent=69 // pred_region
              loop: start=0, step=1, limit=1
              $region79: #{base_lstm_encoder_forward.2} parent=77 // loop_pre_header
                _
              $region80: #{base_lstm_encoder_forward.2} parent=77 // loop_header
                %s296 = sphi 0, %s300
                %p297 = scmp.ge.s32.totalorder %s296, 1
                %s301 = sphi %s287, %s287
                %s302 = sphi %s284, %s284
              $region81: #{base_lstm_encoder_forward.2} parent=77 // loop_header_branch
                %299 = sbr.rel (%p297) target = $region85
              $region82: #{base_lstm_encoder_forward.2} parent=77 // loop_body
                %v303 = vld [vmem:[%s301] sm:$0xff]
                %304 = vst [vmem:[%s302] sm:$0xff] %v303
                %v305 = vld [vmem:[%s301 + $0x10] sm:$0xff]
                %306 = vst [vmem:[%s302 + $0x8] sm:$0xff] %v305
              $region83: #{base_lstm_encoder_forward.2} parent=77 // loop_footer
                %s300 = sadd.s32 1, %s296
              $region84: #{base_lstm_encoder_forward.2} parent=77 // loop_footer_branch
                %295 = sbr.rel target = $region80
              $region85: #{base_lstm_encoder_forward.2} parent=77 // loop_exit
                _
            $region78: #{base_lstm_encoder_forward.2} parent=69 // pred_fallthru
              _
          $region70: #{base_lstm_encoder_forward.2} parent=65 // pred_fallthru
            _
          %323 = vnop
        $region66: #{base_lstm_encoder_forward.2} parent=23 // pred_fallthru
          _
      $region24: #{base_lstm_encoder_forward.2} parent=5 // pred_fallthru
        _
      %p324 = scmp.le.s32.totalorder 1, %s16
      %p325 = scmp.lt.s32.totalorder %s16, 3
      %p326 = pnand %p324, %p325
      %p327 = pneg %p326
      // Predicated region
      $region101: #{base_lstm_encoder_forward.2} parent=5 // pred_check
        _
      $region102: #{base_lstm_encoder_forward.2} parent=5 // pred_check_branch
        %329 = sbr.rel (%p326) target = $region104
      $region103: #{base_lstm_encoder_forward.2} parent=5 // pred_region
        %s330 = ssub.s32 %s16, 1
        %s331 = sand.u32 %s29, 1
        %s332 = sand.u32 %s29, 1
        %s333 = smul.addr %s332, 16
        %s334 = scalar_lea.vmem [#allocation6], %s333
        // Predicated region
        $region105: #{base_lstm_encoder_forward.2} parent=103 // pred_check
          %p335 = pneg %p42
        $region106: #{base_lstm_encoder_forward.2} parent=103 // pred_check_branch
          %337 = sbr.rel (%p335) target = $region108
        $region107: #{base_lstm_encoder_forward.2} parent=103 // pred_region
          _
        $region108: #{base_lstm_encoder_forward.2} parent=103 // pred_fallthru
          _
        %s338 = sand.u32 %s57, 1
        %s339 = sand.u32 %s57, 1
        %s340 = smul.addr %s339, 16
        %s341 = scalar_lea.vmem [#allocation7], %s340
        // Predicated region
        $region109: #{base_lstm_encoder_forward.2} parent=103 // pred_check
          %p342 = pneg %p70
        $region110: #{base_lstm_encoder_forward.2} parent=103 // pred_check_branch
          %344 = sbr.rel (%p342) target = $region112
        $region111: #{base_lstm_encoder_forward.2} parent=103 // pred_region
          _
        $region112: #{base_lstm_encoder_forward.2} parent=103 // pred_fallthru
          _
        %s345 = sand.u32 %s29, 1
        %s346 = sand.u32 %s29, 1
        %s347 = smul.addr %s346, 16
        %s348 = scalar_lea.vmem [#allocation6], %s347
        %p349 = pneg %p42
        %p350 = pneg %p39
        %s351 = sand.u32 %s57, 1
        %s352 = sand.u32 %s57, 1
        %s353 = smul.addr %s352, 16
        %s354 = scalar_lea.vmem [#allocation7], %s353
        %p355 = pneg %p70
        %p356 = pneg %p67
        %p357 = pneg %p91
        %p358 = pneg %p88
        %p359 = pneg %p112
        %p360 = pneg %p109
        %p361 = pneg %p138
        %p362 = pneg %p135
        %s363 = sand.u32 %s125, 1
        %s364 = sand.u32 %s125, 1
        %s365 = smul.addr %s364, 16
        %s366 = scalar_lea.vmem [#allocation8], %s365
        %p367 = pneg %p166
        %p368 = pneg %p163
        %s369 = sand.u32 %s153, 1
        %s370 = sand.u32 %s153, 1
        %s371 = smul.addr %s370, 16
        %s372 = scalar_lea.vmem [#allocation9], %s371
        %p373 = pneg %p187
        %p374 = pneg %p184
        %p375 = pneg %p208
        %p376 = pneg %p205
        %s377 = ssub.s32 1, %s21
        %s378 = ssub.s32 1, %s21
        %p380 = scmp.eq.s32.totalorder %s21, 0
        // Predicated region
        $region113: #{base_lstm_encoder_forward.2} parent=103 // pred_check
          %p381 = pneg %p380
        $region114: #{base_lstm_encoder_forward.2} parent=103 // pred_check_branch
          %383 = sbr.rel (%p381) target = $region116
        $region115: #{base_lstm_encoder_forward.2} parent=103 // pred_region
          %vm384 = vcmask 123904
          %385 = vst.msk [vmem:[#allocation2] sm:$0x3] %vm384, 0.0
          %386 = vst.msk [vmem:[#allocation3] sm:$0x3] %vm384, 0.0
          %387 = vst.msk [vmem:[#allocation4] sm:$0x3] %vm384, 0.0
          %388 = vst.msk [vmem:[#allocation5] sm:$0x3] %vm384, 0.0
          %389 = vst.msk [vmem:[#allocation10] sm:$0x3] %vm384, -inf
          %390 = vst.msk [vmem:[#allocation12] sm:$0x3] %vm384, -inf
        $region116: #{base_lstm_encoder_forward.2} parent=103 // pred_fallthru
          _
        %v391 = vld [vmem:[%s2] sm:$0xf]
        %v392 = vld [vmem:[%s2 + $0x4] sm:$0xf]
        %v393 = vld [vmem:[%s3] sm:$0xf]
        %v394 = vld [vmem:[%s3 + $0x4] sm:$0xf]
        %v395 = vld [vmem:[%s334] sm:$0x1]
        %v396 = vld [vmem:[%s334 + $0x8] sm:$0x1]
        %v397 = vld [vmem:[#allocation2] sm:$0x3]
        %v398 = vld [vmem:[#allocation3] sm:$0x3]
        %v399 = vpack.c.bf16 %v397, %v397
        %v402 = vunpack.c.l.b16 %v391
        %v403 = vunpack.c.l.b16 %v392
        %v404 = vpack.c.b16 %v403, %v402
        %v408 = vrot.slane %v396, 7
        %vm409 = vcmask 1041409
        %v410 = vsel %vm409, %v408, %v395
        %vm412 = vcmask 130048
        %v414 = vsel %vm412, %v399, 0
        %416 = vmatprep.subr.bf16.mxu0 0
        %417 = vmatpush1.bf16.msra.mxu0 %v404
        %418 = vmatprep.subr.bf16.mxu0 0
        %419 = vmatpush1.bf16.msra.mxu0 0
        %420 = vmatprep.subr.bf16.mxu0 0
        %421 = vmatpush1.bf16.msra.mxu0 0
        %422 = vmatprep.subr.bf16.mxu0 0
        %423 = vmatpush1.bf16.msra.mxu0 0
        %424 = vmatprep.subr.bf16.mxu0 0
        %425 = vmatpush1.bf16.msra.mxu0 0
        %426 = vmatprep.subr.bf16.mxu0 0
        %427 = vmatpush1.bf16.msra.mxu0 0
        %428 = vmatprep.subr.bf16.mxu0 0
        %429 = vmatpush1.bf16.msra.mxu0 0
        %430 = vmatprep.subr.bf16.mxu0 0
        %431 = vmatpush1.bf16.msra.mxu0 0
        %432 = vmatprep.subr.bf16.mxu0 0
        %433 = vmatpush1.bf16.msra.mxu0 0
        %434 = vmatprep.subr.bf16.mxu0 0
        %435 = vmatpush1.bf16.msra.mxu0 0
        %436 = vmatprep.subr.bf16.mxu0 0
        %437 = vmatpush1.bf16.msra.mxu0 0
        %438 = vmatprep.subr.bf16.mxu0 0
        %439 = vmatpush1.bf16.msra.mxu0 0
        %440 = vmatprep.subr.bf16.mxu0 0
        %441 = vmatpush1.bf16.msra.mxu0 0
        %442 = vmatprep.subr.bf16.mxu0 0
        %443 = vmatpush1.bf16.msra.mxu0 0
        %444 = vmatprep.subr.bf16.mxu0 0
        %445 = vmatpush1.bf16.msra.mxu0 0
        %446 = vmatprep.subr.bf16.mxu0 0
        %447 = vmatpush1.bf16.msra.mxu0 0
        %448 = vmatprep.mubr.bf16.mxu0 0
        %449 = vmatmul.mubr.bf16.gmra.mrb[0].mxu0 %v414
        %v450 = vpop.f32.mrb[0].mxu0
        %v451 = vadd.f32 %v410, %v450
        %v452 = vpop.f32.mrb[0].mxu0
        %v453 = vpop.f32.mrb[0].mxu0
        %v454 = vpop.f32.mrb[0].mxu0
        %455 = vdwg.mxu0
        %v456 = vxor.u32 %v451, 2147483648
        %v457 = vmul.f32 %v456, 1.442695
        %v458 = vpow.pop %v457
        %v459 = vadd.f32 %v458, 1.0
        %v460 = vrcp.pop %v459
        %v461 = vmul.f32 1.0, %v460
        %v462 = vtanh.pop %v451
        %464 = vrot.lane.b32.xlu0 %v398, 16
        %v465 = vpop.permute.xlu0 %464
        %v467 = vmul.f32 %v461, %v465
        %469 = vrot.lane.b32.xlu0 %v462, 96
        %v470 = vpop.permute.xlu0 %469
        %v472 = vmul.f32 %v461, %v470
        %474 = vrot.lane.b32.xlu0 %v472, 16
        %v475 = vpop.permute.xlu0 %474
        %v477 = vadd.f32 %v467, %v475
        %v478 = vtanh.pop %v477
        %480 = vrot.lane.b32.xlu0 %v478, 32
        %v481 = vpop.permute.xlu0 %480
        %v483 = vmul.f32 %v461, %v481
        %485 = vrot.lane.b32.xlu0 %v483, 80
        %v486 = vpop.permute.xlu0 %485
        %vm488 = vcmask 123904
        %489 = vst.msk [vmem:[#allocation2] sm:$0x3] %vm488, %v486
        %491 = vrot.lane.b32.xlu0 %v477, 112
        %v492 = vpop.permute.xlu0 %491
        %494 = vst.msk [vmem:[#allocation3] sm:$0x3] %vm488, %v492
        %v496 = vunpack.c.l.s4 1966171168
        %v497 = vunpack.c.0.s8 %v496
        %v498 = vlaneseq
        %v499 = vshrl.u32 %v498, 7
        %v500 = vsub.s32 %v497, %v499
        %v501 = vrot.slane %v483, %v500
        %v502 = vcombine.high %v501, %v501
        %v504 = vunpack.c.l.s4 1966171168
        %v505 = vunpack.c.0.s8 %v504
        %v506 = vlaneseq
        %v507 = vshrl.u32 %v506, 7
        %v508 = vsub.s32 %v505, %v507
        %v509 = vrot.slane %v501, %v508
        %v511 = vunpack.c.l.s4 1966171168
        %v512 = vunpack.c.0.s8 %v511
        %v513 = vlaneseq
        %v514 = vshrl.u32 %v513, 7
        %v515 = vsub.s32 %v512, %v514
        %v516 = vrot.slane %v502, %v515
        %v517 = vlaneseq
        %v518 = vshrl.u32 %v517, 7
        %v519 = vsub.s32 0, %v518
        %v520 = vrot.slane %v509, %v519
        %v521 = vlaneseq
        %v522 = vshrl.u32 %v521, 7
        %v523 = vsub.s32 0, %v522
        %v524 = vrot.slane %v516, %v523
        %525 = vrot.lane.b32.xlu0 %v520, 80
        %v526 = vpop.permute.xlu0 %525
        %527 = vrot.lane.b32.xlu0 %v524, 80
        %v528 = vpop.permute.xlu0 %527
        %vm531 = vcmask 122880
        %532 = vst.msk [vmem:[%s366] sm:$0x1] %vm531, %v526
        %533 = vst.msk [vmem:[%s366 + $0x8] sm:$0x1] %vm531, %v528
        %v534 = vld [vmem:[%s341 + $0x7] sm:$0x1]
        %v535 = vld [vmem:[%s341 + $0xf] sm:$0x1]
        %v536 = vld [vmem:[#allocation4] sm:$0x3]
        %v537 = vld [vmem:[#allocation5] sm:$0x3]
        %v538 = vpack.c.bf16 %v536, %v536
        %v541 = vunpack.c.l.b16 %v393
        %v542 = vunpack.c.l.b16 %v394
        %v543 = vpack.c.b16 %v542, %v541
        %v547 = vrot.slane %v535, 7
        %v548 = vsel %vm409, %v547, %v534
        %v551 = vsel %vm412, %v538, 0
        %553 = vmatprep.subr.bf16.mxu0 0
        %554 = vmatpush1.bf16.msra.mxu0 %v543
        %555 = vmatprep.subr.bf16.mxu0 0
        %556 = vmatpush1.bf16.msra.mxu0 0
        %557 = vmatprep.subr.bf16.mxu0 0
        %558 = vmatpush1.bf16.msra.mxu0 0
        %559 = vmatprep.subr.bf16.mxu0 0
        %560 = vmatpush1.bf16.msra.mxu0 0
        %561 = vmatprep.subr.bf16.mxu0 0
        %562 = vmatpush1.bf16.msra.mxu0 0
        %563 = vmatprep.subr.bf16.mxu0 0
        %564 = vmatpush1.bf16.msra.mxu0 0
        %565 = vmatprep.subr.bf16.mxu0 0
        %566 = vmatpush1.bf16.msra.mxu0 0
        %567 = vmatprep.subr.bf16.mxu0 0
        %568 = vmatpush1.bf16.msra.mxu0 0
        %569 = vmatprep.subr.bf16.mxu0 0
        %570 = vmatpush1.bf16.msra.mxu0 0
        %571 = vmatprep.subr.bf16.mxu0 0
        %572 = vmatpush1.bf16.msra.mxu0 0
        %573 = vmatprep.subr.bf16.mxu0 0
        %574 = vmatpush1.bf16.msra.mxu0 0
        %575 = vmatprep.subr.bf16.mxu0 0
        %576 = vmatpush1.bf16.msra.mxu0 0
        %577 = vmatprep.subr.bf16.mxu0 0
        %578 = vmatpush1.bf16.msra.mxu0 0
        %579 = vmatprep.subr.bf16.mxu0 0
        %580 = vmatpush1.bf16.msra.mxu0 0
        %581 = vmatprep.subr.bf16.mxu0 0
        %582 = vmatpush1.bf16.msra.mxu0 0
        %583 = vmatprep.subr.bf16.mxu0 0
        %584 = vmatpush1.bf16.msra.mxu0 0
        %585 = vmatprep.mubr.bf16.mxu0 0
        %586 = vmatmul.mubr.bf16.gmra.mrb[0].mxu0 %v551
        %v587 = vpop.f32.mrb[0].mxu0
        %v588 = vadd.f32 %v548, %v587
        %v589 = vpop.f32.mrb[0].mxu0
        %v590 = vpop.f32.mrb[0].mxu0
        %v591 = vpop.f32.mrb[0].mxu0
        %592 = vdwg.mxu0
        %v593 = vxor.u32 %v588, 2147483648
        %v594 = vmul.f32 %v593, 1.442695
        %v595 = vpow.pop %v594
        %v596 = vadd.f32 %v595, 1.0
        %v597 = vrcp.pop %v596
        %v598 = vmul.f32 1.0, %v597
        %v599 = vtanh.pop %v588
        %601 = vrot.lane.b32.xlu0 %v537, 16
        %v602 = vpop.permute.xlu0 %601
        %v604 = vmul.f32 %v598, %v602
        %606 = vrot.lane.b32.xlu0 %v599, 96
        %v607 = vpop.permute.xlu0 %606
        %v609 = vmul.f32 %v598, %v607
        %611 = vrot.lane.b32.xlu0 %v609, 16
        %v612 = vpop.permute.xlu0 %611
        %v614 = vadd.f32 %v604, %v612
        %v615 = vtanh.pop %v614
        %617 = vrot.lane.b32.xlu0 %v615, 32
        %v618 = vpop.permute.xlu0 %617
        %v620 = vmul.f32 %v598, %v618
        %622 = vrot.lane.b32.xlu0 %v620, 80
        %v623 = vpop.permute.xlu0 %622
        %625 = vst.msk [vmem:[#allocation4] sm:$0x3] %vm488, %v623
        %627 = vrot.lane.b32.xlu0 %v614, 112
        %v628 = vpop.permute.xlu0 %627
        %630 = vst.msk [vmem:[#allocation5] sm:$0x3] %vm488, %v628
        %v632 = vunpack.c.l.s4 1966171168
        %v633 = vunpack.c.0.s8 %v632
        %v634 = vlaneseq
        %v635 = vshrl.u32 %v634, 7
        %v636 = vsub.s32 %v633, %v635
        %v637 = vrot.slane %v620, %v636
        %v638 = vcombine.high %v637, %v637
        %v640 = vunpack.c.l.s4 1966171168
        %v641 = vunpack.c.0.s8 %v640
        %v642 = vlaneseq
        %v643 = vshrl.u32 %v642, 7
        %v644 = vsub.s32 %v641, %v643
        %v645 = vrot.slane %v637, %v644
        %v647 = vunpack.c.l.s4 1966171168
        %v648 = vunpack.c.0.s8 %v647
        %v649 = vlaneseq
        %v650 = vshrl.u32 %v649, 7
        %v651 = vsub.s32 %v648, %v650
        %v652 = vrot.slane %v638, %v651
        %v653 = vlaneseq
        %v654 = vshrl.u32 %v653, 7
        %v655 = vsub.s32 0, %v654
        %v656 = vrot.slane %v645, %v655
        %v657 = vlaneseq
        %v658 = vshrl.u32 %v657, 7
        %v659 = vsub.s32 0, %v658
        %v660 = vrot.slane %v652, %v659
        %661 = vrot.lane.b32.xlu0 %v656, 80
        %v662 = vpop.permute.xlu0 %661
        %663 = vrot.lane.b32.xlu0 %v660, 80
        %v664 = vpop.permute.xlu0 %663
        %667 = vst.msk [vmem:[%s372 + $0x7] sm:$0x1] %vm531, %v662
        %668 = vst.msk [vmem:[%s372 + $0xf] sm:$0x1] %vm531, %v664
        %v669 = vld [vmem:[#allocation10] sm:$0x3]
        %v670 = vmax.f32 %v669, %v486
        %671 = vst.msk [vmem:[#allocation10] sm:$0x3] %vm488, %v670
        %v672 = vld [vmem:[#allocation12] sm:$0x3]
        %v673 = vmax.f32 %v672, %v623
        %674 = vst.msk [vmem:[#allocation12] sm:$0x3] %vm488, %v673
        %v675 = vld [vmem:[%s334 + $0x1] sm:$0x1]
        %v676 = vld [vmem:[%s334 + $0x9] sm:$0x1]
        %v677 = vld [vmem:[#allocation2] sm:$0x3]
        %v678 = vld [vmem:[#allocation3] sm:$0x3]
        %v679 = vpack.c.bf16 %v677, %v677
        %v682 = vrot.slane %v676, 7
        %v683 = vsel %vm409, %v682, %v675
        %v686 = vsel %vm412, %v679, 0
        %688 = vmatprep.subr.bf16.mxu0 0
        %689 = vmatpush1.bf16.msra.mxu0 %v404
        %690 = vmatprep.subr.bf16.mxu0 0
        %691 = vmatpush1.bf16.msra.mxu0 0
        %692 = vmatprep.subr.bf16.mxu0 0
        %693 = vmatpush1.bf16.msra.mxu0 0
        %694 = vmatprep.subr.bf16.mxu0 0
        %695 = vmatpush1.bf16.msra.mxu0 0
        %696 = vmatprep.subr.bf16.mxu0 0
        %697 = vmatpush1.bf16.msra.mxu0 0
        %698 = vmatprep.subr.bf16.mxu0 0
        %699 = vmatpush1.bf16.msra.mxu0 0
        %700 = vmatprep.subr.bf16.mxu0 0
        %701 = vmatpush1.bf16.msra.mxu0 0
        %702 = vmatprep.subr.bf16.mxu0 0
        %703 = vmatpush1.bf16.msra.mxu0 0
        %704 = vmatprep.subr.bf16.mxu0 0
        %705 = vmatpush1.bf16.msra.mxu0 0
        %706 = vmatprep.subr.bf16.mxu0 0
        %707 = vmatpush1.bf16.msra.mxu0 0
        %708 = vmatprep.subr.bf16.mxu0 0
        %709 = vmatpush1.bf16.msra.mxu0 0
        %710 = vmatprep.subr.bf16.mxu0 0
        %711 = vmatpush1.bf16.msra.mxu0 0
        %712 = vmatprep.subr.bf16.mxu0 0
        %713 = vmatpush1.bf16.msra.mxu0 0
        %714 = vmatprep.subr.bf16.mxu0 0
        %715 = vmatpush1.bf16.msra.mxu0 0
        %716 = vmatprep.subr.bf16.mxu0 0
        %717 = vmatpush1.bf16.msra.mxu0 0
        %718 = vmatprep.subr.bf16.mxu0 0
        %719 = vmatpush1.bf16.msra.mxu0 0
        %720 = vmatprep.mubr.bf16.mxu0 0
        %721 = vmatmul.mubr.bf16.gmra.mrb[0].mxu0 %v686
        %v722 = vpop.f32.mrb[0].mxu0
        %v723 = vadd.f32 %v683, %v722
        %v724 = vpop.f32.mrb[0].mxu0
        %v725 = vpop.f32.mrb[0].mxu0
        %v726 = vpop.f32.mrb[0].mxu0
        %727 = vdwg.mxu0
        %v728 = vxor.u32 %v723, 2147483648
        %v729 = vmul.f32 %v728, 1.442695
        %v730 = vpow.pop %v729
        %v731 = vadd.f32 %v730, 1.0
        %v732 = vrcp.pop %v731
        %v733 = vmul.f32 1.0, %v732
        %v734 = vtanh.pop %v723
        %736 = vrot.lane.b32.xlu0 %v678, 16
        %v737 = vpop.permute.xlu0 %736
        %v739 = vmul.f32 %v733, %v737
        %741 = vrot.lane.b32.xlu0 %v734, 96
        %v742 = vpop.permute.xlu0 %741
        %v744 = vmul.f32 %v733, %v742
        %746 = vrot.lane.b32.xlu0 %v744, 16
        %v747 = vpop.permute.xlu0 %746
        %v749 = vadd.f32 %v739, %v747
        %v750 = vtanh.pop %v749
        %752 = vrot.lane.b32.xlu0 %v750, 32
        %v753 = vpop.permute.xlu0 %752
        %v755 = vmul.f32 %v733, %v753
        %757 = vrot.lane.b32.xlu0 %v755, 80
        %v758 = vpop.permute.xlu0 %757
        %760 = vst.msk [vmem:[#allocation2] sm:$0x3] %vm488, %v758
        %762 = vrot.lane.b32.xlu0 %v749, 112
        %v763 = vpop.permute.xlu0 %762
        %765 = vst.msk [vmem:[#allocation3] sm:$0x3] %vm488, %v763
        %v767 = vunpack.c.l.s4 1966171168
        %v768 = vunpack.c.0.s8 %v767
        %v769 = vlaneseq
        %v770 = vshrl.u32 %v769, 7
        %v771 = vsub.s32 %v768, %v770
        %v772 = vrot.slane %v755, %v771
        %v773 = vcombine.high %v772, %v772
        %v775 = vunpack.c.l.s4 1966171168
        %v776 = vunpack.c.0.s8 %v775
        %v777 = vlaneseq
        %v778 = vshrl.u32 %v777, 7
        %v779 = vsub.s32 %v776, %v778
        %v780 = vrot.slane %v772, %v779
        %v782 = vunpack.c.l.s4 1966171168
        %v783 = vunpack.c.0.s8 %v782
        %v784 = vlaneseq
        %v785 = vshrl.u32 %v784, 7
        %v786 = vsub.s32 %v783, %v785
        %v787 = vrot.slane %v773, %v786
        %v788 = vlaneseq
        %v789 = vshrl.u32 %v788, 7
        %v790 = vsub.s32 0, %v789
        %v791 = vrot.slane %v780, %v790
        %v792 = vlaneseq
        %v793 = vshrl.u32 %v792, 7
        %v794 = vsub.s32 0, %v793
        %v795 = vrot.slane %v787, %v794
        %796 = vrot.lane.b32.xlu0 %v791, 80
        %v797 = vpop.permute.xlu0 %796
        %798 = vrot.lane.b32.xlu0 %v795, 80
        %v799 = vpop.permute.xlu0 %798
        %802 = vst.msk [vmem:[%s366 + $0x1] sm:$0x1] %vm531, %v797
        %803 = vst.msk [vmem:[%s366 + $0x9] sm:$0x1] %vm531, %v799
        %v804 = vld [vmem:[%s341 + $0x6] sm:$0x1]
        %v805 = vld [vmem:[%s341 + $0xe] sm:$0x1]
        %v806 = vld [vmem:[#allocation4] sm:$0x3]
        %v807 = vld [vmem:[#allocation5] sm:$0x3]
        %v808 = vpack.c.bf16 %v806, %v806
        %v811 = vrot.slane %v805, 7
        %v812 = vsel %vm409, %v811, %v804
        %v815 = vsel %vm412, %v808, 0
        %817 = vmatprep.subr.bf16.mxu0 0
        %818 = vmatpush1.bf16.msra.mxu0 %v543
        %819 = vmatprep.subr.bf16.mxu0 0
        %820 = vmatpush1.bf16.msra.mxu0 0
        %821 = vmatprep.subr.bf16.mxu0 0
        %822 = vmatpush1.bf16.msra.mxu0 0
        %823 = vmatprep.subr.bf16.mxu0 0
        %824 = vmatpush1.bf16.msra.mxu0 0
        %825 = vmatprep.subr.bf16.mxu0 0
        %826 = vmatpush1.bf16.msra.mxu0 0
        %827 = vmatprep.subr.bf16.mxu0 0
        %828 = vmatpush1.bf16.msra.mxu0 0
        %829 = vmatprep.subr.bf16.mxu0 0
        %830 = vmatpush1.bf16.msra.mxu0 0
        %831 = vmatprep.subr.bf16.mxu0 0
        %832 = vmatpush1.bf16.msra.mxu0 0
        %833 = vmatprep.subr.bf16.mxu0 0
        %834 = vmatpush1.bf16.msra.mxu0 0
        %835 = vmatprep.subr.bf16.mxu0 0
        %836 = vmatpush1.bf16.msra.mxu0 0
        %837 = vmatprep.subr.bf16.mxu0 0
        %838 = vmatpush1.bf16.msra.mxu0 0
        %839 = vmatprep.subr.bf16.mxu0 0
        %840 = vmatpush1.bf16.msra.mxu0 0
        %841 = vmatprep.subr.bf16.mxu0 0
        %842 = vmatpush1.bf16.msra.mxu0 0
        %843 = vmatprep.subr.bf16.mxu0 0
        %844 = vmatpush1.bf16.msra.mxu0 0
        %845 = vmatprep.subr.bf16.mxu0 0
        %846 = vmatpush1.bf16.msra.mxu0 0
        %847 = vmatprep.subr.bf16.mxu0 0
        %848 = vmatpush1.bf16.msra.mxu0 0
        %849 = vmatprep.mubr.bf16.mxu0 0
        %850 = vmatmul.mubr.bf16.gmra.mrb[0].mxu0 %v815
        %v851 = vpop.f32.mrb[0].mxu0
        %v852 = vadd.f32 %v812, %v851
        %v853 = vpop.f32.mrb[0].mxu0
        %v854 = vpop.f32.mrb[0].mxu0
        %v855 = vpop.f32.mrb[0].mxu0
        %856 = vdwg.mxu0
        %v857 = vxor.u32 %v852, 2147483648
        %v858 = vmul.f32 %v857, 1.442695
        %v859 = vpow.pop %v858
        %v860 = vadd.f32 %v859, 1.0
        %v861 = vrcp.pop %v860
        %v862 = vmul.f32 1.0, %v861
        %v863 = vtanh.pop %v852
        %865 = vrot.lane.b32.xlu0 %v807, 16
        %v866 = vpop.permute.xlu0 %865
        %v868 = vmul.f32 %v862, %v866
        %870 = vrot.lane.b32.xlu0 %v863, 96
        %v871 = vpop.permute.xlu0 %870
        %v873 = vmul.f32 %v862, %v871
        %875 = vrot.lane.b32.xlu0 %v873, 16
        %v876 = vpop.permute.xlu0 %875
        %v878 = vadd.f32 %v868, %v876
        %v879 = vtanh.pop %v878
        %881 = vrot.lane.b32.xlu0 %v879, 32
        %v882 = vpop.permute.xlu0 %881
        %v884 = vmul.f32 %v862, %v882
        %886 = vrot.lane.b32.xlu0 %v884, 80
        %v887 = vpop.permute.xlu0 %886
        %889 = vst.msk [vmem:[#allocation4] sm:$0x3] %vm488, %v887
        %891 = vrot.lane.b32.xlu0 %v878, 112
        %v892 = vpop.permute.xlu0 %891
        %894 = vst.msk [vmem:[#allocation5] sm:$0x3] %vm488, %v892
        %v896 = vunpack.c.l.s4 1966171168
        %v897 = vunpack.c.0.s8 %v896
        %v898 = vlaneseq
        %v899 = vshrl.u32 %v898, 7
        %v900 = vsub.s32 %v897, %v899
        %v901 = vrot.slane %v884, %v900
        %v902 = vcombine.high %v901, %v901
        %v904 = vunpack.c.l.s4 1966171168
        %v905 = vunpack.c.0.s8 %v904
        %v906 = vlaneseq
        %v907 = vshrl.u32 %v906, 7
        %v908 = vsub.s32 %v905, %v907
        %v909 = vrot.slane %v901, %v908
        %v911 = vunpack.c.l.s4 1966171168
        %v912 = vunpack.c.0.s8 %v911
        %v913 = vlaneseq
        %v914 = vshrl.u32 %v913, 7
        %v915 = vsub.s32 %v912, %v914
        %v916 = vrot.slane %v902, %v915
        %v917 = vlaneseq
        %v918 = vshrl.u32 %v917, 7
        %v919 = vsub.s32 0, %v918
        %v920 = vrot.slane %v909, %v919
        %v921 = vlaneseq
        %v922 = vshrl.u32 %v921, 7
        %v923 = vsub.s32 0, %v922
        %v924 = vrot.slane %v916, %v923
        %925 = vrot.lane.b32.xlu0 %v920, 80
        %v926 = vpop.permute.xlu0 %925
        %927 = vrot.lane.b32.xlu0 %v924, 80
        %v928 = vpop.permute.xlu0 %927
        %931 = vst.msk [vmem:[%s372 + $0x6] sm:$0x1] %vm531, %v926
        %932 = vst.msk [vmem:[%s372 + $0xe] sm:$0x1] %vm531, %v928
        %v933 = vld [vmem:[#allocation10] sm:$0x3]
        %v934 = vmax.f32 %v933, %v758
        %935 = vst.msk [vmem:[#allocation10] sm:$0x3] %vm488, %v934
        %v936 = vld [vmem:[#allocation12] sm:$0x3]
        %v937 = vmax.f32 %v936, %v887
        %938 = vst.msk [vmem:[#allocation12] sm:$0x3] %vm488, %v937
        %v939 = vld [vmem:[%s334 + $0x2] sm:$0x1]
        %v940 = vld [vmem:[%s334 + $0xa] sm:$0x1]
        %v941 = vld [vmem:[#allocation2] sm:$0x3]
        %v942 = vld [vmem:[#allocation3] sm:$0x3]
        %v943 = vpack.c.bf16 %v941, %v941
        %v946 = vrot.slane %v940, 7
        %v947 = vsel %vm409, %v946, %v939
        %v950 = vsel %vm412, %v943, 0
        %952 = vmatprep.subr.bf16.mxu0 0
        %953 = vmatpush1.bf16.msra.mxu0 %v404
        %954 = vmatprep.subr.bf16.mxu0 0
        %955 = vmatpush1.bf16.msra.mxu0 0
        %956 = vmatprep.subr.bf16.mxu0 0
        %957 = vmatpush1.bf16.msra.mxu0 0
        %958 = vmatprep.subr.bf16.mxu0 0
        %959 = vmatpush1.bf16.msra.mxu0 0
        %960 = vmatprep.subr.bf16.mxu0 0
        %961 = vmatpush1.bf16.msra.mxu0 0
        %962 = vmatprep.subr.bf16.mxu0 0
        %963 = vmatpush1.bf16.msra.mxu0 0
        %964 = vmatprep.subr.bf16.mxu0 0
        %965 = vmatpush1.bf16.msra.mxu0 0
        %966 = vmatprep.subr.bf16.mxu0 0
        %967 = vmatpush1.bf16.msra.mxu0 0
        %968 = vmatprep.subr.bf16.mxu0 0
        %969 = vmatpush1.bf16.msra.mxu0 0
        %970 = vmatprep.subr.bf16.mxu0 0
        %971 = vmatpush1.bf16.msra.mxu0 0
        %972 = vmatprep.subr.bf16.mxu0 0
        %973 = vmatpush1.bf16.msra.mxu0 0
        %974 = vmatprep.subr.bf16.mxu0 0
        %975 = vmatpush1.bf16.msra.mxu0 0
        %976 = vmatprep.subr.bf16.mxu0 0
        %977 = vmatpush1.bf16.msra.mxu0 0
        %978 = vmatprep.subr.bf16.mxu0 0
        %979 = vmatpush1.bf16.msra.mxu0 0
        %980 = vmatprep.subr.bf16.mxu0 0
        %981 = vmatpush1.bf16.msra.mxu0 0
        %982 = vmatprep.subr.bf16.mxu0 0
        %983 = vmatpush1.bf16.msra.mxu0 0
        %984 = vmatprep.mubr.bf16.mxu0 0
        %985 = vmatmul.mubr.bf16.gmra.mrb[0].mxu0 %v950
        %v986 = vpop.f32.mrb[0].mxu0
        %v987 = vadd.f32 %v947, %v986
        %v988 = vpop.f32.mrb[0].mxu0
        %v989 = vpop.f32.mrb[0].mxu0
        %v990 = vpop.f32.mrb[0].mxu0
        %991 = vdwg.mxu0
        %v992 = vxor.u32 %v987, 2147483648
        %v993 = vmul.f32 %v992, 1.442695
        %v994 = vpow.pop %v993
        %v995 = vadd.f32 %v994, 1.0
        %v996 = vrcp.pop %v995
        %v997 = vmul.f32 1.0, %v996
        %v998 = vtanh.pop %v987
        %1000 = vrot.lane.b32.xlu0 %v942, 16
        %v1001 = vpop.permute.xlu0 %1000
        %v1003 = vmul.f32 %v997, %v1001
        %1005 = vrot.lane.b32.xlu0 %v998, 96
        %v1006 = vpop.permute.xlu0 %1005
        %v1008 = vmul.f32 %v997, %v1006
        %1010 = vrot.lane.b32.xlu0 %v1008, 16
        %v1011 = vpop.permute.xlu0 %1010
        %v1013 = vadd.f32 %v1003, %v1011
        %v1014 = vtanh.pop %v1013
        %1016 = vrot.lane.b32.xlu0 %v1014, 32
        %v1017 = vpop.permute.xlu0 %1016
        %v1019 = vmul.f32 %v997, %v1017
        %1021 = vrot.lane.b32.xlu0 %v1019, 80
        %v1022 = vpop.permute.xlu0 %1021
        %1024 = vst.msk [vmem:[#allocation2] sm:$0x3] %vm488, %v1022
        %1026 = vrot.lane.b32.xlu0 %v1013, 112
        %v1027 = vpop.permute.xlu0 %1026
        %1029 = vst.msk [vmem:[#allocation3] sm:$0x3] %vm488, %v1027
        %v1031 = vunpack.c.l.s4 1966171168
        %v1032 = vunpack.c.0.s8 %v1031
        %v1033 = vlaneseq
        %v1034 = vshrl.u32 %v1033, 7
        %v1035 = vsub.s32 %v1032, %v1034
        %v1036 = vrot.slane %v1019, %v1035
        %v1037 = vcombine.high %v1036, %v1036
        %v1039 = vunpack.c.l.s4 1966171168
        %v1040 = vunpack.c.0.s8 %v1039
        %v1041 = vlaneseq
        %v1042 = vshrl.u32 %v1041, 7
        %v1043 = vsub.s32 %v1040, %v1042
        %v1044 = vrot.slane %v1036, %v1043
        %v1046 = vunpack.c.l.s4 1966171168
        %v1047 = vunpack.c.0.s8 %v1046
        %v1048 = vlaneseq
        %v1049 = vshrl.u32 %v1048, 7
        %v1050 = vsub.s32 %v1047, %v1049
        %v1051 = vrot.slane %v1037, %v1050
        %v1052 = vlaneseq
        %v1053 = vshrl.u32 %v1052, 7
        %v1054 = vsub.s32 0, %v1053
        %v1055 = vrot.slane %v1044, %v1054
        %v1056 = vlaneseq
        %v1057 = vshrl.u32 %v1056, 7
        %v1058 = vsub.s32 0, %v1057
        %v1059 = vrot.slane %v1051, %v1058
        %1060 = vrot.lane.b32.xlu0 %v1055, 80
        %v1061 = vpop.permute.xlu0 %1060
        %1062 = vrot.lane.b32.xlu0 %v1059, 80
        %v1063 = vpop.permute.xlu0 %1062
        %1066 = vst.msk [vmem:[%s366 + $0x2] sm:$0x1] %vm531, %v1061
        %1067 = vst.msk [vmem:[%s366 + $0xa] sm:$0x1] %vm531, %v1063
        %v1068 = vld [vmem:[%s341 + $0x5] sm:$0x1]
        %v1069 = vld [vmem:[%s341 + $0xd] sm:$0x1]
        %v1070 = vld [vmem:[#allocation4] sm:$0x3]
        %v1071 = vld [vmem:[#allocation5] sm:$0x3]
        %v1072 = vpack.c.bf16 %v1070, %v1070
        %v1075 = vrot.slane %v1069, 7
        %v1076 = vsel %vm409, %v1075, %v1068
        %v1079 = vsel %vm412, %v1072, 0
        %1081 = vmatprep.subr.bf16.mxu0 0
        %1082 = vmatpush1.bf16.msra.mxu0 %v543
        %1083 = vmatprep.subr.bf16.mxu0 0
        %1084 = vmatpush1.bf16.msra.mxu0 0
        %1085 = vmatprep.subr.bf16.mxu0 0
        %1086 = vmatpush1.bf16.msra.mxu0 0
        %1087 = vmatprep.subr.bf16.mxu0 0
        %1088 = vmatpush1.bf16.msra.mxu0 0
        %1089 = vmatprep.subr.bf16.mxu0 0
        %1090 = vmatpush1.bf16.msra.mxu0 0
        %1091 = vmatprep.subr.bf16.mxu0 0
        %1092 = vmatpush1.bf16.msra.mxu0 0
        %1093 = vmatprep.subr.bf16.mxu0 0
        %1094 = vmatpush1.bf16.msra.mxu0 0
        %1095 = vmatprep.subr.bf16.mxu0 0
        %1096 = vmatpush1.bf16.msra.mxu0 0
        %1097 = vmatprep.subr.bf16.mxu0 0
        %1098 = vmatpush1.bf16.msra.mxu0 0
        %1099 = vmatprep.subr.bf16.mxu0 0
        %1100 = vmatpush1.bf16.msra.mxu0 0
        %1101 = vmatprep.subr.bf16.mxu0 0
        %1102 = vmatpush1.bf16.msra.mxu0 0
        %1103 = vmatprep.subr.bf16.mxu0 0
        %1104 = vmatpush1.bf16.msra.mxu0 0
        %1105 = vmatprep.subr.bf16.mxu0 0
        %1106 = vmatpush1.bf16.msra.mxu0 0
        %1107 = vmatprep.subr.bf16.mxu0 0
        %1108 = vmatpush1.bf16.msra.mxu0 0
        %1109 = vmatprep.subr.bf16.mxu0 0
        %1110 = vmatpush1.bf16.msra.mxu0 0
        %1111 = vmatprep.subr.bf16.mxu0 0
        %1112 = vmatpush1.bf16.msra.mxu0 0
        %1113 = vmatprep.mubr.bf16.mxu0 0
        %1114 = vmatmul.mubr.bf16.gmra.mrb[0].mxu0 %v1079
        %v1115 = vpop.f32.mrb[0].mxu0
        %v1116 = vadd.f32 %v1076, %v1115
        %v1117 = vpop.f32.mrb[0].mxu0
        %v1118 = vpop.f32.mrb[0].mxu0
        %v1119 = vpop.f32.mrb[0].mxu0
        %1120 = vdwg.mxu0
        %v1121 = vxor.u32 %v1116, 2147483648
        %v1122 = vmul.f32 %v1121, 1.442695
        %v1123 = vpow.pop %v1122
        %v1124 = vadd.f32 %v1123, 1.0
        %v1125 = vrcp.pop %v1124
        %v1126 = vmul.f32 1.0, %v1125
        %v1127 = vtanh.pop %v1116
        %1129 = vrot.lane.b32.xlu0 %v1071, 16
        %v1130 = vpop.permute.xlu0 %1129
        %v1132 = vmul.f32 %v1126, %v1130
        %1134 = vrot.lane.b32.xlu0 %v1127, 96
        %v1135 = vpop.permute.xlu0 %1134
        %v1137 = vmul.f32 %v1126, %v1135
        %1139 = vrot.lane.b32.xlu0 %v1137, 16
        %v1140 = vpop.permute.xlu0 %1139
        %v1142 = vadd.f32 %v1132, %v1140
        %v1143 = vtanh.pop %v1142
        %1145 = vrot.lane.b32.xlu0 %v1143, 32
        %v1146 = vpop.permute.xlu0 %1145
        %v1148 = vmul.f32 %v1126, %v1146
        %1150 = vrot.lane.b32.xlu0 %v1148, 80
        %v1151 = vpop.permute.xlu0 %1150
        %1153 = vst.msk [vmem:[#allocation4] sm:$0x3] %vm488, %v1151
        %1155 = vrot.lane.b32.xlu0 %v1142, 112
        %v1156 = vpop.permute.xlu0 %1155
        %1158 = vst.msk [vmem:[#allocation5] sm:$0x3] %vm488, %v1156
        %v1160 = vunpack.c.l.s4 1966171168
        %v1161 = vunpack.c.0.s8 %v1160
        %v1162 = vlaneseq
        %v1163 = vshrl.u32 %v1162, 7
        %v1164 = vsub.s32 %v1161, %v1163
        %v1165 = vrot.slane %v1148, %v1164
        %v1166 = vcombine.high %v1165, %v1165
        %v1168 = vunpack.c.l.s4 1966171168
        %v1169 = vunpack.c.0.s8 %v1168
        %v1170 = vlaneseq
        %v1171 = vshrl.u32 %v1170, 7
        %v1172 = vsub.s32 %v1169, %v1171
        %v1173 = vrot.slane %v1165, %v1172
        %v1175 = vunpack.c.l.s4 1966171168
        %v1176 = vunpack.c.0.s8 %v1175
        %v1177 = vlaneseq
        %v1178 = vshrl.u32 %v1177, 7
        %v1179 = vsub.s32 %v1176, %v1178
        %v1180 = vrot.slane %v1166, %v1179
        %v1181 = vlaneseq
        %v1182 = vshrl.u32 %v1181, 7
        %v1183 = vsub.s32 0, %v1182
        %v1184 = vrot.slane %v1173, %v1183
        %v1185 = vlaneseq
        %v1186 = vshrl.u32 %v1185, 7
        %v1187 = vsub.s32 0, %v1186
        %v1188 = vrot.slane %v1180, %v1187
        %1189 = vrot.lane.b32.xlu0 %v1184, 80
        %v1190 = vpop.permute.xlu0 %1189
        %1191 = vrot.lane.b32.xlu0 %v1188, 80
        %v1192 = vpop.permute.xlu0 %1191
        %1195 = vst.msk [vmem:[%s372 + $0x5] sm:$0x1] %vm531, %v1190
        %1196 = vst.msk [vmem:[%s372 + $0xd] sm:$0x1] %vm531, %v1192
        %v1197 = vld [vmem:[#allocation10] sm:$0x3]
        %v1198 = vmax.f32 %v1197, %v1022
        %1199 = vst.msk [vmem:[#allocation10] sm:$0x3] %vm488, %v1198
        %v1200 = vld [vmem:[#allocation12] sm:$0x3]
        %v1201 = vmax.f32 %v1200, %v1151
        %1202 = vst.msk [vmem:[#allocation12] sm:$0x3] %vm488, %v1201
        %v1203 = vld [vmem:[%s334 + $0x3] sm:$0x1]
        %v1204 = vld [vmem:[%s334 + $0xb] sm:$0x1]
        %v1205 = vld [vmem:[#allocation2] sm:$0x3]
        %v1206 = vld [vmem:[#allocation3] sm:$0x3]
        %v1207 = vpack.c.bf16 %v1205, %v1205
        %v1210 = vrot.slane %v1204, 7
        %v1211 = vsel %vm409, %v1210, %v1203
        %v1214 = vsel %vm412, %v1207, 0
        %1216 = vmatprep.subr.bf16.mxu0 0
        %1217 = vmatpush1.bf16.msra.mxu0 %v404
        %1218 = vmatprep.subr.bf16.mxu0 0
        %1219 = vmatpush1.bf16.msra.mxu0 0
        %1220 = vmatprep.subr.bf16.mxu0 0
        %1221 = vmatpush1.bf16.msra.mxu0 0
        %1222 = vmatprep.subr.bf16.mxu0 0
        %1223 = vmatpush1.bf16.msra.mxu0 0
        %1224 = vmatprep.subr.bf16.mxu0 0
        %1225 = vmatpush1.bf16.msra.mxu0 0
        %1226 = vmatprep.subr.bf16.mxu0 0
        %1227 = vmatpush1.bf16.msra.mxu0 0
        %1228 = vmatprep.subr.bf16.mxu0 0
        %1229 = vmatpush1.bf16.msra.mxu0 0
        %1230 = vmatprep.subr.bf16.mxu0 0
        %1231 = vmatpush1.bf16.msra.mxu0 0
        %1232 = vmatprep.subr.bf16.mxu0 0
        %1233 = vmatpush1.bf16.msra.mxu0 0
        %1234 = vmatprep.subr.bf16.mxu0 0
        %1235 = vmatpush1.bf16.msra.mxu0 0
        %1236 = vmatprep.subr.bf16.mxu0 0
        %1237 = vmatpush1.bf16.msra.mxu0 0
        %1238 = vmatprep.subr.bf16.mxu0 0
        %1239 = vmatpush1.bf16.msra.mxu0 0
        %1240 = vmatprep.subr.bf16.mxu0 0
        %1241 = vmatpush1.bf16.msra.mxu0 0
        %1242 = vmatprep.subr.bf16.mxu0 0
        %1243 = vmatpush1.bf16.msra.mxu0 0
        %1244 = vmatprep.subr.bf16.mxu0 0
        %1245 = vmatpush1.bf16.msra.mxu0 0
        %1246 = vmatprep.subr.bf16.mxu0 0
        %1247 = vmatpush1.bf16.msra.mxu0 0
        %1248 = vmatprep.mubr.bf16.mxu0 0
        %1249 = vmatmul.mubr.bf16.gmra.mrb[0].mxu0 %v1214
        %v1250 = vpop.f32.mrb[0].mxu0
        %v1251 = vadd.f32 %v1211, %v1250
        %v1252 = vpop.f32.mrb[0].mxu0
        %v1253 = vpop.f32.mrb[0].mxu0
        %v1254 = vpop.f32.mrb[0].mxu0
        %1255 = vdwg.mxu0
        %v1256 = vxor.u32 %v1251, 2147483648
        %v1257 = vmul.f32 %v1256, 1.442695
        %v1258 = vpow.pop %v1257
        %v1259 = vadd.f32 %v1258, 1.0
        %v1260 = vrcp.pop %v1259
        %v1261 = vmul.f32 1.0, %v1260
        %v1262 = vtanh.pop %v1251
        %1264 = vrot.lane.b32.xlu0 %v1206, 16
        %v1265 = vpop.permute.xlu0 %1264
        %v1267 = vmul.f32 %v1261, %v1265
        %1269 = vrot.lane.b32.xlu0 %v1262, 96
        %v1270 = vpop.permute.xlu0 %1269
        %v1272 = vmul.f32 %v1261, %v1270
        %1274 = vrot.lane.b32.xlu0 %v1272, 16
        %v1275 = vpop.permute.xlu0 %1274
        %v1277 = vadd.f32 %v1267, %v1275
        %v1278 = vtanh.pop %v1277
        %1280 = vrot.lane.b32.xlu0 %v1278, 32
        %v1281 = vpop.permute.xlu0 %1280
        %v1283 = vmul.f32 %v1261, %v1281
        %1285 = vrot.lane.b32.xlu0 %v1283, 80
        %v1286 = vpop.permute.xlu0 %1285
        %1288 = vst.msk [vmem:[#allocation2] sm:$0x3] %vm488, %v1286
        %1290 = vrot.lane.b32.xlu0 %v1277, 112
        %v1291 = vpop.permute.xlu0 %1290
        %1293 = vst.msk [vmem:[#allocation3] sm:$0x3] %vm488, %v1291
        %v1295 = vunpack.c.l.s4 1966171168
        %v1296 = vunpack.c.0.s8 %v1295
        %v1297 = vlaneseq
        %v1298 = vshrl.u32 %v1297, 7
        %v1299 = vsub.s32 %v1296, %v1298
        %v1300 = vrot.slane %v1283, %v1299
        %v1301 = vcombine.high %v1300, %v1300
        %v1303 = vunpack.c.l.s4 1966171168
        %v1304 = vunpack.c.0.s8 %v1303
        %v1305 = vlaneseq
        %v1306 = vshrl.u32 %v1305, 7
        %v1307 = vsub.s32 %v1304, %v1306
        %v1308 = vrot.slane %v1300, %v1307
        %v1310 = vunpack.c.l.s4 1966171168
        %v1311 = vunpack.c.0.s8 %v1310
        %v1312 = vlaneseq
        %v1313 = vshrl.u32 %v1312, 7
        %v1314 = vsub.s32 %v1311, %v1313
        %v1315 = vrot.slane %v1301, %v1314
        %v1316 = vlaneseq
        %v1317 = vshrl.u32 %v1316, 7
        %v1318 = vsub.s32 0, %v1317
        %v1319 = vrot.slane %v1308, %v1318
        %v1320 = vlaneseq
        %v1321 = vshrl.u32 %v1320, 7
        %v1322 = vsub.s32 0, %v1321
        %v1323 = vrot.slane %v1315, %v1322
        %1324 = vrot.lane.b32.xlu0 %v1319, 80
        %v1325 = vpop.permute.xlu0 %1324
        %1326 = vrot.lane.b32.xlu0 %v1323, 80
        %v1327 = vpop.permute.xlu0 %1326
        %1330 = vst.msk [vmem:[%s366 + $0x3] sm:$0x1] %vm531, %v1325
        %1331 = vst.msk [vmem:[%s366 + $0xb] sm:$0x1] %vm531, %v1327
        %v1332 = vld [vmem:[%s341 + $0x4] sm:$0x1]
        %v1333 = vld [vmem:[%s341 + $0xc] sm:$0x1]
        %v1334 = vld [vmem:[#allocation4] sm:$0x3]
        %v1335 = vld [vmem:[#allocation5] sm:$0x3]
        %v1336 = vpack.c.bf16 %v1334, %v1334
        %v1339 = vrot.slane %v1333, 7
        %v1340 = vsel %vm409, %v1339, %v1332
        %v1343 = vsel %vm412, %v1336, 0
        %1345 = vmatprep.subr.bf16.mxu0 0
        %1346 = vmatpush1.bf16.msra.mxu0 %v543
        %1347 = vmatprep.subr.bf16.mxu0 0
        %1348 = vmatpush1.bf16.msra.mxu0 0
        %1349 = vmatprep.subr.bf16.mxu0 0
        %1350 = vmatpush1.bf16.msra.mxu0 0
        %1351 = vmatprep.subr.bf16.mxu0 0
        %1352 = vmatpush1.bf16.msra.mxu0 0
        %1353 = vmatprep.subr.bf16.mxu0 0
        %1354 = vmatpush1.bf16.msra.mxu0 0
        %1355 = vmatprep.subr.bf16.mxu0 0
        %1356 = vmatpush1.bf16.msra.mxu0 0
        %1357 = vmatprep.subr.bf16.mxu0 0
        %1358 = vmatpush1.bf16.msra.mxu0 0
        %1359 = vmatprep.subr.bf16.mxu0 0
        %1360 = vmatpush1.bf16.msra.mxu0 0
        %1361 = vmatprep.subr.bf16.mxu0 0
        %1362 = vmatpush1.bf16.msra.mxu0 0
        %1363 = vmatprep.subr.bf16.mxu0 0
        %1364 = vmatpush1.bf16.msra.mxu0 0
        %1365 = vmatprep.subr.bf16.mxu0 0
        %1366 = vmatpush1.bf16.msra.mxu0 0
        %1367 = vmatprep.subr.bf16.mxu0 0
        %1368 = vmatpush1.bf16.msra.mxu0 0
        %1369 = vmatprep.subr.bf16.mxu0 0
        %1370 = vmatpush1.bf16.msra.mxu0 0
        %1371 = vmatprep.subr.bf16.mxu0 0
        %1372 = vmatpush1.bf16.msra.mxu0 0
        %1373 = vmatprep.subr.bf16.mxu0 0
        %1374 = vmatpush1.bf16.msra.mxu0 0
        %1375 = vmatprep.subr.bf16.mxu0 0
        %1376 = vmatpush1.bf16.msra.mxu0 0
        %1377 = vmatprep.mubr.bf16.mxu0 0
        %1378 = vmatmul.mubr.bf16.gmra.mrb[0].mxu0 %v1343
        %v1379 = vpop.f32.mrb[0].mxu0
        %v1380 = vadd.f32 %v1340, %v1379
        %v1381 = vpop.f32.mrb[0].mxu0
        %v1382 = vpop.f32.mrb[0].mxu0
        %v1383 = vpop.f32.mrb[0].mxu0
        %1384 = vdwg.mxu0
        %v1385 = vxor.u32 %v1380, 2147483648
        %v1386 = vmul.f32 %v1385, 1.442695
        %v1387 = vpow.pop %v1386
        %v1388 = vadd.f32 %v1387, 1.0
        %v1389 = vrcp.pop %v1388
        %v1390 = vmul.f32 1.0, %v1389
        %v1391 = vtanh.pop %v1380
        %1393 = vrot.lane.b32.xlu0 %v1335, 16
        %v1394 = vpop.permute.xlu0 %1393
        %v1396 = vmul.f32 %v1390, %v1394
        %1398 = vrot.lane.b32.xlu0 %v1391, 96
        %v1399 = vpop.permute.xlu0 %1398
        %v1401 = vmul.f32 %v1390, %v1399
        %1403 = vrot.lane.b32.xlu0 %v1401, 16
        %v1404 = vpop.permute.xlu0 %1403
        %v1406 = vadd.f32 %v1396, %v1404
        %v1407 = vtanh.pop %v1406
        %1409 = vrot.lane.b32.xlu0 %v1407, 32
        %v1410 = vpop.permute.xlu0 %1409
        %v1412 = vmul.f32 %v1390, %v1410
        %1414 = vrot.lane.b32.xlu0 %v1412, 80
        %v1415 = vpop.permute.xlu0 %1414
        %1417 = vst.msk [vmem:[#allocation4] sm:$0x3] %vm488, %v1415
        %1419 = vrot.lane.b32.xlu0 %v1406, 112
        %v1420 = vpop.permute.xlu0 %1419
        %1422 = vst.msk [vmem:[#allocation5] sm:$0x3] %vm488, %v1420
        %v1424 = vunpack.c.l.s4 1966171168
        %v1425 = vunpack.c.0.s8 %v1424
        %v1426 = vlaneseq
        %v1427 = vshrl.u32 %v1426, 7
        %v1428 = vsub.s32 %v1425, %v1427
        %v1429 = vrot.slane %v1412, %v1428
        %v1430 = vcombine.high %v1429, %v1429
        %v1432 = vunpack.c.l.s4 1966171168
        %v1433 = vunpack.c.0.s8 %v1432
        %v1434 = vlaneseq
        %v1435 = vshrl.u32 %v1434, 7
        %v1436 = vsub.s32 %v1433, %v1435
        %v1437 = vrot.slane %v1429, %v1436
        %v1439 = vunpack.c.l.s4 1966171168
        %v1440 = vunpack.c.0.s8 %v1439
        %v1441 = vlaneseq
        %v1442 = vshrl.u32 %v1441, 7
        %v1443 = vsub.s32 %v1440, %v1442
        %v1444 = vrot.slane %v1430, %v1443
        %v1445 = vlaneseq
        %v1446 = vshrl.u32 %v1445, 7
        %v1447 = vsub.s32 0, %v1446
        %v1448 = vrot.slane %v1437, %v1447
        %v1449 = vlaneseq
        %v1450 = vshrl.u32 %v1449, 7
        %v1451 = vsub.s32 0, %v1450
        %v1452 = vrot.slane %v1444, %v1451
        %1453 = vrot.lane.b32.xlu0 %v1448, 80
        %v1454 = vpop.permute.xlu0 %1453
        %1455 = vrot.lane.b32.xlu0 %v1452, 80
        %v1456 = vpop.permute.xlu0 %1455
        %1459 = vst.msk [vmem:[%s372 + $0x4] sm:$0x1] %vm531, %v1454
        %1460 = vst.msk [vmem:[%s372 + $0xc] sm:$0x1] %vm531, %v1456
        %v1461 = vld [vmem:[#allocation10] sm:$0x3]
        %v1462 = vmax.f32 %v1461, %v1286
        %1463 = vst.msk [vmem:[#allocation10] sm:$0x3] %vm488, %v1462
        %v1464 = vld [vmem:[#allocation12] sm:$0x3]
        %v1465 = vmax.f32 %v1464, %v1415
        %1466 = vst.msk [vmem:[#allocation12] sm:$0x3] %vm488, %v1465
        %v1467 = vld [vmem:[%s334 + $0x4] sm:$0x1]
        %v1468 = vld [vmem:[%s334 + $0xc] sm:$0x1]
        %v1469 = vld [vmem:[#allocation2] sm:$0x3]
        %v1470 = vld [vmem:[#allocation3] sm:$0x3]
        %v1471 = vpack.c.bf16 %v1469, %v1469
        %v1474 = vrot.slane %v1468, 7
        %v1475 = vsel %vm409, %v1474, %v1467
        %v1478 = vsel %vm412, %v1471, 0
        %1480 = vmatprep.subr.bf16.mxu0 0
        %1481 = vmatpush1.bf16.msra.mxu0 %v404
        %1482 = vmatprep.subr.bf16.mxu0 0
        %1483 = vmatpush1.bf16.msra.mxu0 0
        %1484 = vmatprep.subr.bf16.mxu0 0
        %1485 = vmatpush1.bf16.msra.mxu0 0
        %1486 = vmatprep.subr.bf16.mxu0 0
        %1487 = vmatpush1.bf16.msra.mxu0 0
        %1488 = vmatprep.subr.bf16.mxu0 0
        %1489 = vmatpush1.bf16.msra.mxu0 0
        %1490 = vmatprep.subr.bf16.mxu0 0
        %1491 = vmatpush1.bf16.msra.mxu0 0
        %1492 = vmatprep.subr.bf16.mxu0 0
        %1493 = vmatpush1.bf16.msra.mxu0 0
        %1494 = vmatprep.subr.bf16.mxu0 0
        %1495 = vmatpush1.bf16.msra.mxu0 0
        %1496 = vmatprep.subr.bf16.mxu0 0
        %1497 = vmatpush1.bf16.msra.mxu0 0
        %1498 = vmatprep.subr.bf16.mxu0 0
        %1499 = vmatpush1.bf16.msra.mxu0 0
        %1500 = vmatprep.subr.bf16.mxu0 0
        %1501 = vmatpush1.bf16.msra.mxu0 0
        %1502 = vmatprep.subr.bf16.mxu0 0
        %1503 = vmatpush1.bf16.msra.mxu0 0
        %1504 = vmatprep.subr.bf16.mxu0 0
        %1505 = vmatpush1.bf16.msra.mxu0 0
        %1506 = vmatprep.subr.bf16.mxu0 0
        %1507 = vmatpush1.bf16.msra.mxu0 0
        %1508 = vmatprep.subr.bf16.mxu0 0
        %1509 = vmatpush1.bf16.msra.mxu0 0
        %1510 = vmatprep.subr.bf16.mxu0 0
        %1511 = vmatpush1.bf16.msra.mxu0 0
        %1512 = vmatprep.mubr.bf16.mxu0 0
        %1513 = vmatmul.mubr.bf16.gmra.mrb[0].mxu0 %v1478
        %v1514 = vpop.f32.mrb[0].mxu0
        %v1515 = vadd.f32 %v1475, %v1514
        %v1516 = vpop.f32.mrb[0].mxu0
        %v1517 = vpop.f32.mrb[0].mxu0
        %v1518 = vpop.f32.mrb[0].mxu0
        %1519 = vdwg.mxu0
        %v1520 = vxor.u32 %v1515, 2147483648
        %v1521 = vmul.f32 %v1520, 1.442695
        %v1522 = vpow.pop %v1521
        %v1523 = vadd.f32 %v1522, 1.0
        %v1524 = vrcp.pop %v1523
        %v1525 = vmul.f32 1.0, %v1524
        %v1526 = vtanh.pop %v1515
        %1528 = vrot.lane.b32.xlu0 %v1470, 16
        %v1529 = vpop.permute.xlu0 %1528
        %v1531 = vmul.f32 %v1525, %v1529
        %1533 = vrot.lane.b32.xlu0 %v1526, 96
        %v1534 = vpop.permute.xlu0 %1533
        %v1536 = vmul.f32 %v1525, %v1534
        %1538 = vrot.lane.b32.xlu0 %v1536, 16
        %v1539 = vpop.permute.xlu0 %1538
        %v1541 = vadd.f32 %v1531, %v1539
        %v1542 = vtanh.pop %v1541
        %1544 = vrot.lane.b32.xlu0 %v1542, 32
        %v1545 = vpop.permute.xlu0 %1544
        %v1547 = vmul.f32 %v1525, %v1545
        %1549 = vrot.lane.b32.xlu0 %v1547, 80
        %v1550 = vpop.permute.xlu0 %1549
        %1552 = vst.msk [vmem:[#allocation2] sm:$0x3] %vm488, %v1550
        %1554 = vrot.lane.b32.xlu0 %v1541, 112
        %v1555 = vpop.permute.xlu0 %1554
        %1557 = vst.msk [vmem:[#allocation3] sm:$0x3] %vm488, %v1555
        %v1559 = vunpack.c.l.s4 1966171168
        %v1560 = vunpack.c.0.s8 %v1559
        %v1561 = vlaneseq
        %v1562 = vshrl.u32 %v1561, 7
        %v1563 = vsub.s32 %v1560, %v1562
        %v1564 = vrot.slane %v1547, %v1563
        %v1565 = vcombine.high %v1564, %v1564
        %v1567 = vunpack.c.l.s4 1966171168
        %v1568 = vunpack.c.0.s8 %v1567
        %v1569 = vlaneseq
        %v1570 = vshrl.u32 %v1569, 7
        %v1571 = vsub.s32 %v1568, %v1570
        %v1572 = vrot.slane %v1564, %v1571
        %v1574 = vunpack.c.l.s4 1966171168
        %v1575 = vunpack.c.0.s8 %v1574
        %v1576 = vlaneseq
        %v1577 = vshrl.u32 %v1576, 7
        %v1578 = vsub.s32 %v1575, %v1577
        %v1579 = vrot.slane %v1565, %v1578
        %v1580 = vlaneseq
        %v1581 = vshrl.u32 %v1580, 7
        %v1582 = vsub.s32 0, %v1581
        %v1583 = vrot.slane %v1572, %v1582
        %v1584 = vlaneseq
        %v1585 = vshrl.u32 %v1584, 7
        %v1586 = vsub.s32 0, %v1585
        %v1587 = vrot.slane %v1579, %v1586
        %1588 = vrot.lane.b32.xlu0 %v1583, 80
        %v1589 = vpop.permute.xlu0 %1588
        %1590 = vrot.lane.b32.xlu0 %v1587, 80
        %v1591 = vpop.permute.xlu0 %1590
        %1594 = vst.msk [vmem:[%s366 + $0x4] sm:$0x1] %vm531, %v1589
        %1595 = vst.msk [vmem:[%s366 + $0xc] sm:$0x1] %vm531, %v1591
        %v1596 = vld [vmem:[%s341 + $0x3] sm:$0x1]
        %v1597 = vld [vmem:[%s341 + $0xb] sm:$0x1]
        %v1598 = vld [vmem:[#allocation4] sm:$0x3]
        %v1599 = vld [vmem:[#allocation5] sm:$0x3]
        %v1600 = vpack.c.bf16 %v1598, %v1598
        %v1603 = vrot.slane %v1597, 7
        %v1604 = vsel %vm409, %v1603, %v1596
        %v1607 = vsel %vm412, %v1600, 0
        %1609 = vmatprep.subr.bf16.mxu0 0
        %1610 = vmatpush1.bf16.msra.mxu0 %v543
        %1611 = vmatprep.subr.bf16.mxu0 0
        %1612 = vmatpush1.bf16.msra.mxu0 0
        %1613 = vmatprep.subr.bf16.mxu0 0
        %1614 = vmatpush1.bf16.msra.mxu0 0
        %1615 = vmatprep.subr.bf16.mxu0 0
        %1616 = vmatpush1.bf16.msra.mxu0 0
        %1617 = vmatprep.subr.bf16.mxu0 0
        %1618 = vmatpush1.bf16.msra.mxu0 0
        %1619 = vmatprep.subr.bf16.mxu0 0
        %1620 = vmatpush1.bf16.msra.mxu0 0
        %1621 = vmatprep.subr.bf16.mxu0 0
        %1622 = vmatpush1.bf16.msra.mxu0 0
        %1623 = vmatprep.subr.bf16.mxu0 0
        %1624 = vmatpush1.bf16.msra.mxu0 0
        %1625 = vmatprep.subr.bf16.mxu0 0
        %1626 = vmatpush1.bf16.msra.mxu0 0
        %1627 = vmatprep.subr.bf16.mxu0 0
        %1628 = vmatpush1.bf16.msra.mxu0 0
        %1629 = vmatprep.subr.bf16.mxu0 0
        %1630 = vmatpush1.bf16.msra.mxu0 0
        %1631 = vmatprep.subr.bf16.mxu0 0
        %1632 = vmatpush1.bf16.msra.mxu0 0
        %1633 = vmatprep.subr.bf16.mxu0 0
        %1634 = vmatpush1.bf16.msra.mxu0 0
        %1635 = vmatprep.subr.bf16.mxu0 0
        %1636 = vmatpush1.bf16.msra.mxu0 0
        %1637 = vmatprep.subr.bf16.mxu0 0
        %1638 = vmatpush1.bf16.msra.mxu0 0
        %1639 = vmatprep.subr.bf16.mxu0 0
        %1640 = vmatpush1.bf16.msra.mxu0 0
        %1641 = vmatprep.mubr.bf16.mxu0 0
        %1642 = vmatmul.mubr.bf16.gmra.mrb[0].mxu0 %v1607
        %v1643 = vpop.f32.mrb[0].mxu0
        %v1644 = vadd.f32 %v1604, %v1643
        %v1645 = vpop.f32.mrb[0].mxu0
        %v1646 = vpop.f32.mrb[0].mxu0
        %v1647 = vpop.f32.mrb[0].mxu0
        %1648 = vdwg.mxu0
        %v1649 = vxor.u32 %v1644, 2147483648
        %v1650 = vmul.f32 %v1649, 1.442695
        %v1651 = vpow.pop %v1650
        %v1652 = vadd.f32 %v1651, 1.0
        %v1653 = vrcp.pop %v1652
        %v1654 = vmul.f32 1.0, %v1653
        %v1655 = vtanh.pop %v1644
        %1657 = vrot.lane.b32.xlu0 %v1599, 16
        %v1658 = vpop.permute.xlu0 %1657
        %v1660 = vmul.f32 %v1654, %v1658
        %1662 = vrot.lane.b32.xlu0 %v1655, 96
        %v1663 = vpop.permute.xlu0 %1662
        %v1665 = vmul.f32 %v1654, %v1663
        %1667 = vrot.lane.b32.xlu0 %v1665, 16
        %v1668 = vpop.permute.xlu0 %1667
        %v1670 = vadd.f32 %v1660, %v1668
        %v1671 = vtanh.pop %v1670
        %1673 = vrot.lane.b32.xlu0 %v1671, 32
        %v1674 = vpop.permute.xlu0 %1673
        %v1676 = vmul.f32 %v1654, %v1674
        %1678 = vrot.lane.b32.xlu0 %v1676, 80
        %v1679 = vpop.permute.xlu0 %1678
        %1681 = vst.msk [vmem:[#allocation4] sm:$0x3] %vm488, %v1679
        %1683 = vrot.lane.b32.xlu0 %v1670, 112
        %v1684 = vpop.permute.xlu0 %1683
        %1686 = vst.msk [vmem:[#allocation5] sm:$0x3] %vm488, %v1684
        %v1688 = vunpack.c.l.s4 1966171168
        %v1689 = vunpack.c.0.s8 %v1688
        %v1690 = vlaneseq
        %v1691 = vshrl.u32 %v1690, 7
        %v1692 = vsub.s32 %v1689, %v1691
        %v1693 = vrot.slane %v1676, %v1692
        %v1694 = vcombine.high %v1693, %v1693
        %v1696 = vunpack.c.l.s4 1966171168
        %v1697 = vunpack.c.0.s8 %v1696
        %v1698 = vlaneseq
        %v1699 = vshrl.u32 %v1698, 7
        %v1700 = vsub.s32 %v1697, %v1699
        %v1701 = vrot.slane %v1693, %v1700
        %v1703 = vunpack.c.l.s4 1966171168
        %v1704 = vunpack.c.0.s8 %v1703
        %v1705 = vlaneseq
        %v1706 = vshrl.u32 %v1705, 7
        %v1707 = vsub.s32 %v1704, %v1706
        %v1708 = vrot.slane %v1694, %v1707
        %v1709 = vlaneseq
        %v1710 = vshrl.u32 %v1709, 7
        %v1711 = vsub.s32 0, %v1710
        %v1712 = vrot.slane %v1701, %v1711
        %v1713 = vlaneseq
        %v1714 = vshrl.u32 %v1713, 7
        %v1715 = vsub.s32 0, %v1714
        %v1716 = vrot.slane %v1708, %v1715
        %1717 = vrot.lane.b32.xlu0 %v1712, 80
        %v1718 = vpop.permute.xlu0 %1717
        %1719 = vrot.lane.b32.xlu0 %v1716, 80
        %v1720 = vpop.permute.xlu0 %1719
        %1723 = vst.msk [vmem:[%s372 + $0x3] sm:$0x1] %vm531, %v1718
        %1724 = vst.msk [vmem:[%s372 + $0xb] sm:$0x1] %vm531, %v1720
        %v1725 = vld [vmem:[#allocation10] sm:$0x3]
        %v1726 = vmax.f32 %v1725, %v1550
        %1727 = vst.msk [vmem:[#allocation10] sm:$0x3] %vm488, %v1726
        %v1728 = vld [vmem:[#allocation12] sm:$0x3]
        %v1729 = vmax.f32 %v1728, %v1679
        %1730 = vst.msk [vmem:[#allocation12] sm:$0x3] %vm488, %v1729
        %v1731 = vld [vmem:[%s334 + $0x5] sm:$0x1]
        %v1732 = vld [vmem:[%s334 + $0xd] sm:$0x1]
        %v1733 = vld [vmem:[#allocation2] sm:$0x3]
        %v1734 = vld [vmem:[#allocation3] sm:$0x3]
        %v1735 = vpack.c.bf16 %v1733, %v1733
        %v1738 = vrot.slane %v1732, 7
        %v1739 = vsel %vm409, %v1738, %v1731
        %v1742 = vsel %vm412, %v1735, 0
        %1744 = vmatprep.subr.bf16.mxu0 0
        %1745 = vmatpush1.bf16.msra.mxu0 %v404
        %1746 = vmatprep.subr.bf16.mxu0 0
        %1747 = vmatpush1.bf16.msra.mxu0 0
        %1748 = vmatprep.subr.bf16.mxu0 0
        %1749 = vmatpush1.bf16.msra.mxu0 0
        %1750 = vmatprep.subr.bf16.mxu0 0
        %1751 = vmatpush1.bf16.msra.mxu0 0
        %1752 = vmatprep.subr.bf16.mxu0 0
        %1753 = vmatpush1.bf16.msra.mxu0 0
        %1754 = vmatprep.subr.bf16.mxu0 0
        %1755 = vmatpush1.bf16.msra.mxu0 0
        %1756 = vmatprep.subr.bf16.mxu0 0
        %1757 = vmatpush1.bf16.msra.mxu0 0
        %1758 = vmatprep.subr.bf16.mxu0 0
        %1759 = vmatpush1.bf16.msra.mxu0 0
        %1760 = vmatprep.subr.bf16.mxu0 0
        %1761 = vmatpush1.bf16.msra.mxu0 0
        %1762 = vmatprep.subr.bf16.mxu0 0
        %1763 = vmatpush1.bf16.msra.mxu0 0
        %1764 = vmatprep.subr.bf16.mxu0 0
        %1765 = vmatpush1.bf16.msra.mxu0 0
        %1766 = vmatprep.subr.bf16.mxu0 0
        %1767 = vmatpush1.bf16.msra.mxu0 0
        %1768 = vmatprep.subr.bf16.mxu0 0
        %1769 = vmatpush1.bf16.msra.mxu0 0
        %1770 = vmatprep.subr.bf16.mxu0 0
        %1771 = vmatpush1.bf16.msra.mxu0 0
        %1772 = vmatprep.subr.bf16.mxu0 0
        %1773 = vmatpush1.bf16.msra.mxu0 0
        %1774 = vmatprep.subr.bf16.mxu0 0
        %1775 = vmatpush1.bf16.msra.mxu0 0
        %1776 = vmatprep.mubr.bf16.mxu0 0
        %1777 = vmatmul.mubr.bf16.gmra.mrb[0].mxu0 %v1742
        %v1778 = vpop.f32.mrb[0].mxu0
        %v1779 = vadd.f32 %v1739, %v1778
        %v1780 = vpop.f32.mrb[0].mxu0
        %v1781 = vpop.f32.mrb[0].mxu0
        %v1782 = vpop.f32.mrb[0].mxu0
        %1783 = vdwg.mxu0
        %v1784 = vxor.u32 %v1779, 2147483648
        %v1785 = vmul.f32 %v1784, 1.442695
        %v1786 = vpow.pop %v1785
        %v1787 = vadd.f32 %v1786, 1.0
        %v1788 = vrcp.pop %v1787
        %v1789 = vmul.f32 1.0, %v1788
        %v1790 = vtanh.pop %v1779
        %1792 = vrot.lane.b32.xlu0 %v1734, 16
        %v1793 = vpop.permute.xlu0 %1792
        %v1795 = vmul.f32 %v1789, %v1793
        %1797 = vrot.lane.b32.xlu0 %v1790, 96
        %v1798 = vpop.permute.xlu0 %1797
        %v1800 = vmul.f32 %v1789, %v1798
        %1802 = vrot.lane.b32.xlu0 %v1800, 16
        %v1803 = vpop.permute.xlu0 %1802
        %v1805 = vadd.f32 %v1795, %v1803
        %v1806 = vtanh.pop %v1805
        %1808 = vrot.lane.b32.xlu0 %v1806, 32
        %v1809 = vpop.permute.xlu0 %1808
        %v1811 = vmul.f32 %v1789, %v1809
        %1813 = vrot.lane.b32.xlu0 %v1811, 80
        %v1814 = vpop.permute.xlu0 %1813
        %1816 = vst.msk [vmem:[#allocation2] sm:$0x3] %vm488, %v1814
        %1818 = vrot.lane.b32.xlu0 %v1805, 112
        %v1819 = vpop.permute.xlu0 %1818
        %1821 = vst.msk [vmem:[#allocation3] sm:$0x3] %vm488, %v1819
        %v1823 = vunpack.c.l.s4 1966171168
        %v1824 = vunpack.c.0.s8 %v1823
        %v1825 = vlaneseq
        %v1826 = vshrl.u32 %v1825, 7
        %v1827 = vsub.s32 %v1824, %v1826
        %v1828 = vrot.slane %v1811, %v1827
        %v1829 = vcombine.high %v1828, %v1828
        %v1831 = vunpack.c.l.s4 1966171168
        %v1832 = vunpack.c.0.s8 %v1831
        %v1833 = vlaneseq
        %v1834 = vshrl.u32 %v1833, 7
        %v1835 = vsub.s32 %v1832, %v1834
        %v1836 = vrot.slane %v1828, %v1835
        %v1838 = vunpack.c.l.s4 1966171168
        %v1839 = vunpack.c.0.s8 %v1838
        %v1840 = vlaneseq
        %v1841 = vshrl.u32 %v1840, 7
        %v1842 = vsub.s32 %v1839, %v1841
        %v1843 = vrot.slane %v1829, %v1842
        %v1844 = vlaneseq
        %v1845 = vshrl.u32 %v1844, 7
        %v1846 = vsub.s32 0, %v1845
        %v1847 = vrot.slane %v1836, %v1846
        %v1848 = vlaneseq
        %v1849 = vshrl.u32 %v1848, 7
        %v1850 = vsub.s32 0, %v1849
        %v1851 = vrot.slane %v1843, %v1850
        %1852 = vrot.lane.b32.xlu0 %v1847, 80
        %v1853 = vpop.permute.xlu0 %1852
        %1854 = vrot.lane.b32.xlu0 %v1851, 80
        %v1855 = vpop.permute.xlu0 %1854
        %1858 = vst.msk [vmem:[%s366 + $0x5] sm:$0x1] %vm531, %v1853
        %1859 = vst.msk [vmem:[%s366 + $0xd] sm:$0x1] %vm531, %v1855
        %v1860 = vld [vmem:[%s341 + $0x2] sm:$0x1]
        %v1861 = vld [vmem:[%s341 + $0xa] sm:$0x1]
        %v1862 = vld [vmem:[#allocation4] sm:$0x3]
        %v1863 = vld [vmem:[#allocation5] sm:$0x3]
        %v1864 = vpack.c.bf16 %v1862, %v1862
        %v1867 = vrot.slane %v1861, 7
        %v1868 = vsel %vm409, %v1867, %v1860
        %v1871 = vsel %vm412, %v1864, 0
        %1873 = vmatprep.subr.bf16.mxu0 0
        %1874 = vmatpush1.bf16.msra.mxu0 %v543
        %1875 = vmatprep.subr.bf16.mxu0 0
        %1876 = vmatpush1.bf16.msra.mxu0 0
        %1877 = vmatprep.subr.bf16.mxu0 0
        %1878 = vmatpush1.bf16.msra.mxu0 0
        %1879 = vmatprep.subr.bf16.mxu0 0
        %1880 = vmatpush1.bf16.msra.mxu0 0
        %1881 = vmatprep.subr.bf16.mxu0 0
        %1882 = vmatpush1.bf16.msra.mxu0 0
        %1883 = vmatprep.subr.bf16.mxu0 0
        %1884 = vmatpush1.bf16.msra.mxu0 0
        %1885 = vmatprep.subr.bf16.mxu0 0
        %1886 = vmatpush1.bf16.msra.mxu0 0
        %1887 = vmatprep.subr.bf16.mxu0 0
        %1888 = vmatpush1.bf16.msra.mxu0 0
        %1889 = vmatprep.subr.bf16.mxu0 0
        %1890 = vmatpush1.bf16.msra.mxu0 0
        %1891 = vmatprep.subr.bf16.mxu0 0
        %1892 = vmatpush1.bf16.msra.mxu0 0
        %1893 = vmatprep.subr.bf16.mxu0 0
        %1894 = vmatpush1.bf16.msra.mxu0 0
        %1895 = vmatprep.subr.bf16.mxu0 0
        %1896 = vmatpush1.bf16.msra.mxu0 0
        %1897 = vmatprep.subr.bf16.mxu0 0
        %1898 = vmatpush1.bf16.msra.mxu0 0
        %1899 = vmatprep.subr.bf16.mxu0 0
        %1900 = vmatpush1.bf16.msra.mxu0 0
        %1901 = vmatprep.subr.bf16.mxu0 0
        %1902 = vmatpush1.bf16.msra.mxu0 0
        %1903 = vmatprep.subr.bf16.mxu0 0
        %1904 = vmatpush1.bf16.msra.mxu0 0
        %1905 = vmatprep.mubr.bf16.mxu0 0
        %1906 = vmatmul.mubr.bf16.gmra.mrb[0].mxu0 %v1871
        %v1907 = vpop.f32.mrb[0].mxu0
        %v1908 = vadd.f32 %v1868, %v1907
        %v1909 = vpop.f32.mrb[0].mxu0
        %v1910 = vpop.f32.mrb[0].mxu0
        %v1911 = vpop.f32.mrb[0].mxu0
        %1912 = vdwg.mxu0
        %v1913 = vxor.u32 %v1908, 2147483648
        %v1914 = vmul.f32 %v1913, 1.442695
        %v1915 = vpow.pop %v1914
        %v1916 = vadd.f32 %v1915, 1.0
        %v1917 = vrcp.pop %v1916
        %v1918 = vmul.f32 1.0, %v1917
        %v1919 = vtanh.pop %v1908
        %1921 = vrot.lane.b32.xlu0 %v1863, 16
        %v1922 = vpop.permute.xlu0 %1921
        %v1924 = vmul.f32 %v1918, %v1922
        %1926 = vrot.lane.b32.xlu0 %v1919, 96
        %v1927 = vpop.permute.xlu0 %1926
        %v1929 = vmul.f32 %v1918, %v1927
        %1931 = vrot.lane.b32.xlu0 %v1929, 16
        %v1932 = vpop.permute.xlu0 %1931
        %v1934 = vadd.f32 %v1924, %v1932
        %v1935 = vtanh.pop %v1934
        %1937 = vrot.lane.b32.xlu0 %v1935, 32
        %v1938 = vpop.permute.xlu0 %1937
        %v1940 = vmul.f32 %v1918, %v1938
        %1942 = vrot.lane.b32.xlu0 %v1940, 80
        %v1943 = vpop.permute.xlu0 %1942
        %1945 = vst.msk [vmem:[#allocation4] sm:$0x3] %vm488, %v1943
        %1947 = vrot.lane.b32.xlu0 %v1934, 112
        %v1948 = vpop.permute.xlu0 %1947
        %1950 = vst.msk [vmem:[#allocation5] sm:$0x3] %vm488, %v1948
        %v1952 = vunpack.c.l.s4 1966171168
        %v1953 = vunpack.c.0.s8 %v1952
        %v1954 = vlaneseq
        %v1955 = vshrl.u32 %v1954, 7
        %v1956 = vsub.s32 %v1953, %v1955
        %v1957 = vrot.slane %v1940, %v1956
        %v1958 = vcombine.high %v1957, %v1957
        %v1960 = vunpack.c.l.s4 1966171168
        %v1961 = vunpack.c.0.s8 %v1960
        %v1962 = vlaneseq
        %v1963 = vshrl.u32 %v1962, 7
        %v1964 = vsub.s32 %v1961, %v1963
        %v1965 = vrot.slane %v1957, %v1964
        %v1967 = vunpack.c.l.s4 1966171168
        %v1968 = vunpack.c.0.s8 %v1967
        %v1969 = vlaneseq
        %v1970 = vshrl.u32 %v1969, 7
        %v1971 = vsub.s32 %v1968, %v1970
        %v1972 = vrot.slane %v1958, %v1971
        %v1973 = vlaneseq
        %v1974 = vshrl.u32 %v1973, 7
        %v1975 = vsub.s32 0, %v1974
        %v1976 = vrot.slane %v1965, %v1975
        %v1977 = vlaneseq
        %v1978 = vshrl.u32 %v1977, 7
        %v1979 = vsub.s32 0, %v1978
        %v1980 = vrot.slane %v1972, %v1979
        %1981 = vrot.lane.b32.xlu0 %v1976, 80
        %v1982 = vpop.permute.xlu0 %1981
        %1983 = vrot.lane.b32.xlu0 %v1980, 80
        %v1984 = vpop.permute.xlu0 %1983
        %1987 = vst.msk [vmem:[%s372 + $0x2] sm:$0x1] %vm531, %v1982
        %1988 = vst.msk [vmem:[%s372 + $0xa] sm:$0x1] %vm531, %v1984
        %v1989 = vld [vmem:[#allocation10] sm:$0x3]
        %v1990 = vmax.f32 %v1989, %v1814
        %1991 = vst.msk [vmem:[#allocation10] sm:$0x3] %vm488, %v1990
        %v1992 = vld [vmem:[#allocation12] sm:$0x3]
        %v1993 = vmax.f32 %v1992, %v1943
        %1994 = vst.msk [vmem:[#allocation12] sm:$0x3] %vm488, %v1993
        %v1995 = vld [vmem:[%s334 + $0x6] sm:$0x1]
        %v1996 = vld [vmem:[%s334 + $0xe] sm:$0x1]
        %v1997 = vld [vmem:[#allocation2] sm:$0x3]
        %v1998 = vld [vmem:[#allocation3] sm:$0x3]
        %v1999 = vpack.c.bf16 %v1997, %v1997
        %v2002 = vrot.slane %v1996, 7
        %v2003 = vsel %vm409, %v2002, %v1995
        %v2006 = vsel %vm412, %v1999, 0
        %2008 = vmatprep.subr.bf16.mxu0 0
        %2009 = vmatpush1.bf16.msra.mxu0 %v404
        %2010 = vmatprep.subr.bf16.mxu0 0
        %2011 = vmatpush1.bf16.msra.mxu0 0
        %2012 = vmatprep.subr.bf16.mxu0 0
        %2013 = vmatpush1.bf16.msra.mxu0 0
        %2014 = vmatprep.subr.bf16.mxu0 0
        %2015 = vmatpush1.bf16.msra.mxu0 0
        %2016 = vmatprep.subr.bf16.mxu0 0
        %2017 = vmatpush1.bf16.msra.mxu0 0
        %2018 = vmatprep.subr.bf16.mxu0 0
        %2019 = vmatpush1.bf16.msra.mxu0 0
        %2020 = vmatprep.subr.bf16.mxu0 0
        %2021 = vmatpush1.bf16.msra.mxu0 0
        %2022 = vmatprep.subr.bf16.mxu0 0
        %2023 = vmatpush1.bf16.msra.mxu0 0
        %2024 = vmatprep.subr.bf16.mxu0 0
        %2025 = vmatpush1.bf16.msra.mxu0 0
        %2026 = vmatprep.subr.bf16.mxu0 0
        %2027 = vmatpush1.bf16.msra.mxu0 0
        %2028 = vmatprep.subr.bf16.mxu0 0
        %2029 = vmatpush1.bf16.msra.mxu0 0
        %2030 = vmatprep.subr.bf16.mxu0 0
        %2031 = vmatpush1.bf16.msra.mxu0 0
        %2032 = vmatprep.subr.bf16.mxu0 0
        %2033 = vmatpush1.bf16.msra.mxu0 0
        %2034 = vmatprep.subr.bf16.mxu0 0
        %2035 = vmatpush1.bf16.msra.mxu0 0
        %2036 = vmatprep.subr.bf16.mxu0 0
        %2037 = vmatpush1.bf16.msra.mxu0 0
        %2038 = vmatprep.subr.bf16.mxu0 0
        %2039 = vmatpush1.bf16.msra.mxu0 0
        %2040 = vmatprep.mubr.bf16.mxu0 0
        %2041 = vmatmul.mubr.bf16.gmra.mrb[0].mxu0 %v2006
        %v2042 = vpop.f32.mrb[0].mxu0
        %v2043 = vadd.f32 %v2003, %v2042
        %v2044 = vpop.f32.mrb[0].mxu0
        %v2045 = vpop.f32.mrb[0].mxu0
        %v2046 = vpop.f32.mrb[0].mxu0
        %2047 = vdwg.mxu0
        %v2048 = vxor.u32 %v2043, 2147483648
        %v2049 = vmul.f32 %v2048, 1.442695
        %v2050 = vpow.pop %v2049
        %v2051 = vadd.f32 %v2050, 1.0
        %v2052 = vrcp.pop %v2051
        %v2053 = vmul.f32 1.0, %v2052
        %v2054 = vtanh.pop %v2043
        %2056 = vrot.lane.b32.xlu0 %v1998, 16
        %v2057 = vpop.permute.xlu0 %2056
        %v2059 = vmul.f32 %v2053, %v2057
        %2061 = vrot.lane.b32.xlu0 %v2054, 96
        %v2062 = vpop.permute.xlu0 %2061
        %v2064 = vmul.f32 %v2053, %v2062
        %2066 = vrot.lane.b32.xlu0 %v2064, 16
        %v2067 = vpop.permute.xlu0 %2066
        %v2069 = vadd.f32 %v2059, %v2067
        %v2070 = vtanh.pop %v2069
        %2072 = vrot.lane.b32.xlu0 %v2070, 32
        %v2073 = vpop.permute.xlu0 %2072
        %v2075 = vmul.f32 %v2053, %v2073
        %2077 = vrot.lane.b32.xlu0 %v2075, 80
        %v2078 = vpop.permute.xlu0 %2077
        %2080 = vst.msk [vmem:[#allocation2] sm:$0x3] %vm488, %v2078
        %2082 = vrot.lane.b32.xlu0 %v2069, 112
        %v2083 = vpop.permute.xlu0 %2082
        %2085 = vst.msk [vmem:[#allocation3] sm:$0x3] %vm488, %v2083
        %v2087 = vunpack.c.l.s4 1966171168
        %v2088 = vunpack.c.0.s8 %v2087
        %v2089 = vlaneseq
        %v2090 = vshrl.u32 %v2089, 7
        %v2091 = vsub.s32 %v2088, %v2090
        %v2092 = vrot.slane %v2075, %v2091
        %v2093 = vcombine.high %v2092, %v2092
        %v2095 = vunpack.c.l.s4 1966171168
        %v2096 = vunpack.c.0.s8 %v2095
        %v2097 = vlaneseq
        %v2098 = vshrl.u32 %v2097, 7
        %v2099 = vsub.s32 %v2096, %v2098
        %v2100 = vrot.slane %v2092, %v2099
        %v2102 = vunpack.c.l.s4 1966171168
        %v2103 = vunpack.c.0.s8 %v2102
        %v2104 = vlaneseq
        %v2105 = vshrl.u32 %v2104, 7
        %v2106 = vsub.s32 %v2103, %v2105
        %v2107 = vrot.slane %v2093, %v2106
        %v2108 = vlaneseq
        %v2109 = vshrl.u32 %v2108, 7
        %v2110 = vsub.s32 0, %v2109
        %v2111 = vrot.slane %v2100, %v2110
        %v2112 = vlaneseq
        %v2113 = vshrl.u32 %v2112, 7
        %v2114 = vsub.s32 0, %v2113
        %v2115 = vrot.slane %v2107, %v2114
        %2116 = vrot.lane.b32.xlu0 %v2111, 80
        %v2117 = vpop.permute.xlu0 %2116
        %2118 = vrot.lane.b32.xlu0 %v2115, 80
        %v2119 = vpop.permute.xlu0 %2118
        %2122 = vst.msk [vmem:[%s366 + $0x6] sm:$0x1] %vm531, %v2117
        %2123 = vst.msk [vmem:[%s366 + $0xe] sm:$0x1] %vm531, %v2119
        %v2124 = vld [vmem:[%s341 + $0x1] sm:$0x1]
        %v2125 = vld [vmem:[%s341 + $0x9] sm:$0x1]
        %v2126 = vld [vmem:[#allocation4] sm:$0x3]
        %v2127 = vld [vmem:[#allocation5] sm:$0x3]
        %v2128 = vpack.c.bf16 %v2126, %v2126
        %v2131 = vrot.slane %v2125, 7
        %v2132 = vsel %vm409, %v2131, %v2124
        %v2135 = vsel %vm412, %v2128, 0
        %2137 = vmatprep.subr.bf16.mxu0 0
        %2138 = vmatpush1.bf16.msra.mxu0 %v543
        %2139 = vmatprep.subr.bf16.mxu0 0
        %2140 = vmatpush1.bf16.msra.mxu0 0
        %2141 = vmatprep.subr.bf16.mxu0 0
        %2142 = vmatpush1.bf16.msra.mxu0 0
        %2143 = vmatprep.subr.bf16.mxu0 0
        %2144 = vmatpush1.bf16.msra.mxu0 0
        %2145 = vmatprep.subr.bf16.mxu0 0
        %2146 = vmatpush1.bf16.msra.mxu0 0
        %2147 = vmatprep.subr.bf16.mxu0 0
        %2148 = vmatpush1.bf16.msra.mxu0 0
        %2149 = vmatprep.subr.bf16.mxu0 0
        %2150 = vmatpush1.bf16.msra.mxu0 0
        %2151 = vmatprep.subr.bf16.mxu0 0
        %2152 = vmatpush1.bf16.msra.mxu0 0
        %2153 = vmatprep.subr.bf16.mxu0 0
        %2154 = vmatpush1.bf16.msra.mxu0 0
        %2155 = vmatprep.subr.bf16.mxu0 0
        %2156 = vmatpush1.bf16.msra.mxu0 0
        %2157 = vmatprep.subr.bf16.mxu0 0
        %2158 = vmatpush1.bf16.msra.mxu0 0
        %2159 = vmatprep.subr.bf16.mxu0 0
        %2160 = vmatpush1.bf16.msra.mxu0 0
        %2161 = vmatprep.subr.bf16.mxu0 0
        %2162 = vmatpush1.bf16.msra.mxu0 0
        %2163 = vmatprep.subr.bf16.mxu0 0
        %2164 = vmatpush1.bf16.msra.mxu0 0
        %2165 = vmatprep.subr.bf16.mxu0 0
        %2166 = vmatpush1.bf16.msra.mxu0 0
        %2167 = vmatprep.subr.bf16.mxu0 0
        %2168 = vmatpush1.bf16.msra.mxu0 0
        %2169 = vmatprep.mubr.bf16.mxu0 0
        %2170 = vmatmul.mubr.bf16.gmra.mrb[0].mxu0 %v2135
        %v2171 = vpop.f32.mrb[0].mxu0
        %v2172 = vadd.f32 %v2132, %v2171
        %v2173 = vpop.f32.mrb[0].mxu0
        %v2174 = vpop.f32.mrb[0].mxu0
        %v2175 = vpop.f32.mrb[0].mxu0
        %2176 = vdwg.mxu0
        %v2177 = vxor.u32 %v2172, 2147483648
        %v2178 = vmul.f32 %v2177, 1.442695
        %v2179 = vpow.pop %v2178
        %v2180 = vadd.f32 %v2179, 1.0
        %v2181 = vrcp.pop %v2180
        %v2182 = vmul.f32 1.0, %v2181
        %v2183 = vtanh.pop %v2172
        %2185 = vrot.lane.b32.xlu0 %v2127, 16
        %v2186 = vpop.permute.xlu0 %2185
        %v2188 = vmul.f32 %v2182, %v2186
        %2190 = vrot.lane.b32.xlu0 %v2183, 96
        %v2191 = vpop.permute.xlu0 %2190
        %v2193 = vmul.f32 %v2182, %v2191
        %2195 = vrot.lane.b32.xlu0 %v2193, 16
        %v2196 = vpop.permute.xlu0 %2195
        %v2198 = vadd.f32 %v2188, %v2196
        %v2199 = vtanh.pop %v2198
        %2201 = vrot.lane.b32.xlu0 %v2199, 32
        %v2202 = vpop.permute.xlu0 %2201
        %v2204 = vmul.f32 %v2182, %v2202
        %2206 = vrot.lane.b32.xlu0 %v2204, 80
        %v2207 = vpop.permute.xlu0 %2206
        %2209 = vst.msk [vmem:[#allocation4] sm:$0x3] %vm488, %v2207
        %2211 = vrot.lane.b32.xlu0 %v2198, 112
        %v2212 = vpop.permute.xlu0 %2211
        %2214 = vst.msk [vmem:[#allocation5] sm:$0x3] %vm488, %v2212
        %v2216 = vunpack.c.l.s4 1966171168
        %v2217 = vunpack.c.0.s8 %v2216
        %v2218 = vlaneseq
        %v2219 = vshrl.u32 %v2218, 7
        %v2220 = vsub.s32 %v2217, %v2219
        %v2221 = vrot.slane %v2204, %v2220
        %v2222 = vcombine.high %v2221, %v2221
        %v2224 = vunpack.c.l.s4 1966171168
        %v2225 = vunpack.c.0.s8 %v2224
        %v2226 = vlaneseq
        %v2227 = vshrl.u32 %v2226, 7
        %v2228 = vsub.s32 %v2225, %v2227
        %v2229 = vrot.slane %v2221, %v2228
        %v2231 = vunpack.c.l.s4 1966171168
        %v2232 = vunpack.c.0.s8 %v2231
        %v2233 = vlaneseq
        %v2234 = vshrl.u32 %v2233, 7
        %v2235 = vsub.s32 %v2232, %v2234
        %v2236 = vrot.slane %v2222, %v2235
        %v2237 = vlaneseq
        %v2238 = vshrl.u32 %v2237, 7
        %v2239 = vsub.s32 0, %v2238
        %v2240 = vrot.slane %v2229, %v2239
        %v2241 = vlaneseq
        %v2242 = vshrl.u32 %v2241, 7
        %v2243 = vsub.s32 0, %v2242
        %v2244 = vrot.slane %v2236, %v2243
        %2245 = vrot.lane.b32.xlu0 %v2240, 80
        %v2246 = vpop.permute.xlu0 %2245
        %2247 = vrot.lane.b32.xlu0 %v2244, 80
        %v2248 = vpop.permute.xlu0 %2247
        %2251 = vst.msk [vmem:[%s372 + $0x1] sm:$0x1] %vm531, %v2246
        %2252 = vst.msk [vmem:[%s372 + $0x9] sm:$0x1] %vm531, %v2248
        %v2253 = vld [vmem:[#allocation10] sm:$0x3]
        %v2254 = vmax.f32 %v2253, %v2078
        %2255 = vst.msk [vmem:[#allocation10] sm:$0x3] %vm488, %v2254
        %v2256 = vld [vmem:[#allocation12] sm:$0x3]
        %v2257 = vmax.f32 %v2256, %v2207
        %2258 = vst.msk [vmem:[#allocation12] sm:$0x3] %vm488, %v2257
        %v2259 = vld [vmem:[%s334 + $0x7] sm:$0x1]
        %v2260 = vld [vmem:[%s334 + $0xf] sm:$0x1]
        %v2261 = vld [vmem:[#allocation2] sm:$0x3]
        %v2262 = vld [vmem:[#allocation3] sm:$0x3]
        %v2263 = vpack.c.bf16 %v2261, %v2261
        %v2266 = vrot.slane %v2260, 7
        %v2267 = vsel %vm409, %v2266, %v2259
        %v2270 = vsel %vm412, %v2263, 0
        %2272 = vmatprep.subr.bf16.mxu0 0
        %2273 = vmatpush1.bf16.msra.mxu0 %v404
        %2274 = vmatprep.subr.bf16.mxu0 0
        %2275 = vmatpush1.bf16.msra.mxu0 0
        %2276 = vmatprep.subr.bf16.mxu0 0
        %2277 = vmatpush1.bf16.msra.mxu0 0
        %2278 = vmatprep.subr.bf16.mxu0 0
        %2279 = vmatpush1.bf16.msra.mxu0 0
        %2280 = vmatprep.subr.bf16.mxu0 0
        %2281 = vmatpush1.bf16.msra.mxu0 0
        %2282 = vmatprep.subr.bf16.mxu0 0
        %2283 = vmatpush1.bf16.msra.mxu0 0
        %2284 = vmatprep.subr.bf16.mxu0 0
        %2285 = vmatpush1.bf16.msra.mxu0 0
        %2286 = vmatprep.subr.bf16.mxu0 0
        %2287 = vmatpush1.bf16.msra.mxu0 0
        %2288 = vmatprep.subr.bf16.mxu0 0
        %2289 = vmatpush1.bf16.msra.mxu0 0
        %2290 = vmatprep.subr.bf16.mxu0 0
        %2291 = vmatpush1.bf16.msra.mxu0 0
        %2292 = vmatprep.subr.bf16.mxu0 0
        %2293 = vmatpush1.bf16.msra.mxu0 0
        %2294 = vmatprep.subr.bf16.mxu0 0
        %2295 = vmatpush1.bf16.msra.mxu0 0
        %2296 = vmatprep.subr.bf16.mxu0 0
        %2297 = vmatpush1.bf16.msra.mxu0 0
        %2298 = vmatprep.subr.bf16.mxu0 0
        %2299 = vmatpush1.bf16.msra.mxu0 0
        %2300 = vmatprep.subr.bf16.mxu0 0
        %2301 = vmatpush1.bf16.msra.mxu0 0
        %2302 = vmatprep.subr.bf16.mxu0 0
        %2303 = vmatpush1.bf16.msra.mxu0 0
        %2304 = vmatprep.mubr.bf16.mxu0 0
        %2305 = vmatmul.mubr.bf16.gmra.mrb[0].mxu0 %v2270
        %v2306 = vpop.f32.mrb[0].mxu0
        %v2307 = vadd.f32 %v2267, %v2306
        %v2308 = vpop.f32.mrb[0].mxu0
        %v2309 = vpop.f32.mrb[0].mxu0
        %v2310 = vpop.f32.mrb[0].mxu0
        %2311 = vdwg.mxu0
        %v2312 = vxor.u32 %v2307, 2147483648
        %v2313 = vmul.f32 %v2312, 1.442695
        %v2314 = vpow.pop %v2313
        %v2315 = vadd.f32 %v2314, 1.0
        %v2316 = vrcp.pop %v2315
        %v2317 = vmul.f32 1.0, %v2316
        %v2318 = vtanh.pop %v2307
        %2320 = vrot.lane.b32.xlu0 %v2262, 16
        %v2321 = vpop.permute.xlu0 %2320
        %v2323 = vmul.f32 %v2317, %v2321
        %2325 = vrot.lane.b32.xlu0 %v2318, 96
        %v2326 = vpop.permute.xlu0 %2325
        %v2328 = vmul.f32 %v2317, %v2326
        %2330 = vrot.lane.b32.xlu0 %v2328, 16
        %v2331 = vpop.permute.xlu0 %2330
        %v2333 = vadd.f32 %v2323, %v2331
        %v2334 = vtanh.pop %v2333
        %2336 = vrot.lane.b32.xlu0 %v2334, 32
        %v2337 = vpop.permute.xlu0 %2336
        %v2339 = vmul.f32 %v2317, %v2337
        %2341 = vrot.lane.b32.xlu0 %v2339, 80
        %v2342 = vpop.permute.xlu0 %2341
        %2344 = vst.msk [vmem:[#allocation2] sm:$0x3] %vm488, %v2342
        %2346 = vrot.lane.b32.xlu0 %v2333, 112
        %v2347 = vpop.permute.xlu0 %2346
        %2349 = vst.msk [vmem:[#allocation3] sm:$0x3] %vm488, %v2347
        %v2351 = vunpack.c.l.s4 1966171168
        %v2352 = vunpack.c.0.s8 %v2351
        %v2353 = vlaneseq
        %v2354 = vshrl.u32 %v2353, 7
        %v2355 = vsub.s32 %v2352, %v2354
        %v2356 = vrot.slane %v2339, %v2355
        %v2357 = vcombine.high %v2356, %v2356
        %v2359 = vunpack.c.l.s4 1966171168
        %v2360 = vunpack.c.0.s8 %v2359
        %v2361 = vlaneseq
        %v2362 = vshrl.u32 %v2361, 7
        %v2363 = vsub.s32 %v2360, %v2362
        %v2364 = vrot.slane %v2356, %v2363
        %v2366 = vunpack.c.l.s4 1966171168
        %v2367 = vunpack.c.0.s8 %v2366
        %v2368 = vlaneseq
        %v2369 = vshrl.u32 %v2368, 7
        %v2370 = vsub.s32 %v2367, %v2369
        %v2371 = vrot.slane %v2357, %v2370
        %v2372 = vlaneseq
        %v2373 = vshrl.u32 %v2372, 7
        %v2374 = vsub.s32 0, %v2373
        %v2375 = vrot.slane %v2364, %v2374
        %v2376 = vlaneseq
        %v2377 = vshrl.u32 %v2376, 7
        %v2378 = vsub.s32 0, %v2377
        %v2379 = vrot.slane %v2371, %v2378
        %2380 = vrot.lane.b32.xlu0 %v2375, 80
        %v2381 = vpop.permute.xlu0 %2380
        %2382 = vrot.lane.b32.xlu0 %v2379, 80
        %v2383 = vpop.permute.xlu0 %2382
        %2386 = vst.msk [vmem:[%s366 + $0x7] sm:$0x1] %vm531, %v2381
        %2387 = vst.msk [vmem:[%s366 + $0xf] sm:$0x1] %vm531, %v2383
        %v2388 = vld [vmem:[%s341] sm:$0x1]
        %v2389 = vld [vmem:[%s341 + $0x8] sm:$0x1]
        %v2390 = vld [vmem:[#allocation4] sm:$0x3]
        %v2391 = vld [vmem:[#allocation5] sm:$0x3]
        %v2392 = vpack.c.bf16 %v2390, %v2390
        %v2395 = vrot.slane %v2389, 7
        %v2396 = vsel %vm409, %v2395, %v2388
        %v2399 = vsel %vm412, %v2392, 0
        %2401 = vmatprep.subr.bf16.mxu0 0
        %2402 = vmatpush1.bf16.msra.mxu0 %v543
        %2403 = vmatprep.subr.bf16.mxu0 0
        %2404 = vmatpush1.bf16.msra.mxu0 0
        %2405 = vmatprep.subr.bf16.mxu0 0
        %2406 = vmatpush1.bf16.msra.mxu0 0
        %2407 = vmatprep.subr.bf16.mxu0 0
        %2408 = vmatpush1.bf16.msra.mxu0 0
        %2409 = vmatprep.subr.bf16.mxu0 0
        %2410 = vmatpush1.bf16.msra.mxu0 0
        %2411 = vmatprep.subr.bf16.mxu0 0
        %2412 = vmatpush1.bf16.msra.mxu0 0
        %2413 = vmatprep.subr.bf16.mxu0 0
        %2414 = vmatpush1.bf16.msra.mxu0 0
        %2415 = vmatprep.subr.bf16.mxu0 0
        %2416 = vmatpush1.bf16.msra.mxu0 0
        %2417 = vmatprep.subr.bf16.mxu0 0
        %2418 = vmatpush1.bf16.msra.mxu0 0
        %2419 = vmatprep.subr.bf16.mxu0 0
        %2420 = vmatpush1.bf16.msra.mxu0 0
        %2421 = vmatprep.subr.bf16.mxu0 0
        %2422 = vmatpush1.bf16.msra.mxu0 0
        %2423 = vmatprep.subr.bf16.mxu0 0
        %2424 = vmatpush1.bf16.msra.mxu0 0
        %2425 = vmatprep.subr.bf16.mxu0 0
        %2426 = vmatpush1.bf16.msra.mxu0 0
        %2427 = vmatprep.subr.bf16.mxu0 0
        %2428 = vmatpush1.bf16.msra.mxu0 0
        %2429 = vmatprep.subr.bf16.mxu0 0
        %2430 = vmatpush1.bf16.msra.mxu0 0
        %2431 = vmatprep.subr.bf16.mxu0 0
        %2432 = vmatpush1.bf16.msra.mxu0 0
        %2433 = vmatprep.mubr.bf16.mxu0 0
        %2434 = vmatmul.mubr.bf16.gmra.mrb[0].mxu0 %v2399
        %v2435 = vpop.f32.mrb[0].mxu0
        %v2436 = vadd.f32 %v2396, %v2435
        %v2437 = vpop.f32.mrb[0].mxu0
        %v2438 = vpop.f32.mrb[0].mxu0
        %v2439 = vpop.f32.mrb[0].mxu0
        %2440 = vdwg.mxu0
        %v2441 = vxor.u32 %v2436, 2147483648
        %v2442 = vmul.f32 %v2441, 1.442695
        %v2443 = vpow.pop %v2442
        %v2444 = vadd.f32 %v2443, 1.0
        %v2445 = vrcp.pop %v2444
        %v2446 = vmul.f32 1.0, %v2445
        %v2447 = vtanh.pop %v2436
        %2449 = vrot.lane.b32.xlu0 %v2391, 16
        %v2450 = vpop.permute.xlu0 %2449
        %v2452 = vmul.f32 %v2446, %v2450
        %2454 = vrot.lane.b32.xlu0 %v2447, 96
        %v2455 = vpop.permute.xlu0 %2454
        %v2457 = vmul.f32 %v2446, %v2455
        %2459 = vrot.lane.b32.xlu0 %v2457, 16
        %v2460 = vpop.permute.xlu0 %2459
        %v2462 = vadd.f32 %v2452, %v2460
        %v2463 = vtanh.pop %v2462
        %2465 = vrot.lane.b32.xlu0 %v2463, 32
        %v2466 = vpop.permute.xlu0 %2465
        %v2468 = vmul.f32 %v2446, %v2466
        %2470 = vrot.lane.b32.xlu0 %v2468, 80
        %v2471 = vpop.permute.xlu0 %2470
        %2473 = vst.msk [vmem:[#allocation4] sm:$0x3] %vm488, %v2471
        %2475 = vrot.lane.b32.xlu0 %v2462, 112
        %v2476 = vpop.permute.xlu0 %2475
        %2478 = vst.msk [vmem:[#allocation5] sm:$0x3] %vm488, %v2476
        %v2480 = vunpack.c.l.s4 1966171168
        %v2481 = vunpack.c.0.s8 %v2480
        %v2482 = vlaneseq
        %v2483 = vshrl.u32 %v2482, 7
        %v2484 = vsub.s32 %v2481, %v2483
        %v2485 = vrot.slane %v2468, %v2484
        %v2486 = vcombine.high %v2485, %v2485
        %v2488 = vunpack.c.l.s4 1966171168
        %v2489 = vunpack.c.0.s8 %v2488
        %v2490 = vlaneseq
        %v2491 = vshrl.u32 %v2490, 7
        %v2492 = vsub.s32 %v2489, %v2491
        %v2493 = vrot.slane %v2485, %v2492
        %v2495 = vunpack.c.l.s4 1966171168
        %v2496 = vunpack.c.0.s8 %v2495
        %v2497 = vlaneseq
        %v2498 = vshrl.u32 %v2497, 7
        %v2499 = vsub.s32 %v2496, %v2498
        %v2500 = vrot.slane %v2486, %v2499
        %v2501 = vlaneseq
        %v2502 = vshrl.u32 %v2501, 7
        %v2503 = vsub.s32 0, %v2502
        %v2504 = vrot.slane %v2493, %v2503
        %v2505 = vlaneseq
        %v2506 = vshrl.u32 %v2505, 7
        %v2507 = vsub.s32 0, %v2506
        %v2508 = vrot.slane %v2500, %v2507
        %2509 = vrot.lane.b32.xlu0 %v2504, 80
        %v2510 = vpop.permute.xlu0 %2509
        %2511 = vrot.lane.b32.xlu0 %v2508, 80
        %v2512 = vpop.permute.xlu0 %2511
        %2515 = vst.msk [vmem:[%s372] sm:$0x1] %vm531, %v2510
        %2516 = vst.msk [vmem:[%s372 + $0x8] sm:$0x1] %vm531, %v2512
        %v2517 = vld [vmem:[#allocation10] sm:$0x3]
        %v2518 = vmax.f32 %v2517, %v2342
        %2519 = vst.msk [vmem:[#allocation10] sm:$0x3] %vm488, %v2518
        %v2520 = vld [vmem:[#allocation12] sm:$0x3]
        %v2521 = vmax.f32 %v2520, %v2471
        %2522 = vst.msk [vmem:[#allocation12] sm:$0x3] %vm488, %v2521
        %s2523 = sand.u32 %s125, 1
        %s2524 = sand.u32 %s125, 1
        %s2525 = smul.addr %s2524, 16
        %s2526 = scalar_lea.vmem [#allocation8], %s2525
        %s2527 = sand.u32 %s153, 1
        %s2528 = sand.u32 %s153, 1
        %s2529 = smul.addr %s2528, 16
        %s2530 = scalar_lea.vmem [#allocation9], %s2529
        // Predicated region
        $region117: #{base_lstm_encoder_forward.2} parent=103 // pred_check
          %p2531 = pneg %p135
        $region118: #{base_lstm_encoder_forward.2} parent=103 // pred_check_branch
          %2533 = sbr.rel (%p2531) target = $region120
        $region119: #{base_lstm_encoder_forward.2} parent=103 // pred_region
          %s2534 = smul.addr %s21, 8
          %s2535 = scalar_lea.vmem %s4, %s2534
          // Predicated region
          $region121: #{base_lstm_encoder_forward.2} parent=119 // pred_check
            _
          $region122: #{base_lstm_encoder_forward.2} parent=119 // pred_check_branch
            %2537 = sbr.rel (0) target = $region124
          $region123: #{base_lstm_encoder_forward.2} parent=119 // pred_region
            // Predicated region
            $region125: #{base_lstm_encoder_forward.2} parent=123 // pred_check
              _
            $region126: #{base_lstm_encoder_forward.2} parent=123 // pred_check_branch
              %2539 = sbr.rel (0) target = $region128
            $region127: #{base_lstm_encoder_forward.2} parent=123 // pred_region
              // Predicated region
              $region140: #{base_lstm_encoder_forward.2} parent=127 // pred_check
                _
              $region141: #{base_lstm_encoder_forward.2} parent=127 // pred_check_branch
                %2556 = sbr.rel (0) target = $region143
              $region142: #{base_lstm_encoder_forward.2} parent=127 // pred_region
                loop: start=0, step=1, limit=1
                $region144: #{base_lstm_encoder_forward.2} parent=142 // loop_pre_header
                  _
                $region145: #{base_lstm_encoder_forward.2} parent=142 // loop_header
                  %s2558 = sphi 0, %s2562
                  %p2559 = scmp.ge.s32.totalorder %s2558, 1
                  %s2563 = sphi %s2526, %s2526
                  %s2564 = sphi %s2535, %s2535
                $region146: #{base_lstm_encoder_forward.2} parent=142 // loop_header_branch
                  %2561 = sbr.rel (%p2559) target = $region150
                $region147: #{base_lstm_encoder_forward.2} parent=142 // loop_body
                  %v2565 = vld [vmem:[%s2563] sm:$0xff]
                  %2566 = vst [vmem:[%s2564] sm:$0xff] %v2565
                  %v2567 = vld [vmem:[%s2563 + $0x8] sm:$0xff]
                  %2568 = vst [vmem:[%s2564 + $0x10] sm:$0xff] %v2567
                $region148: #{base_lstm_encoder_forward.2} parent=142 // loop_footer
                  %s2562 = sadd.s32 1, %s2558
                $region149: #{base_lstm_encoder_forward.2} parent=142 // loop_footer_branch
                  %2557 = sbr.rel target = $region145
                $region150: #{base_lstm_encoder_forward.2} parent=142 // loop_exit
                  _
              $region143: #{base_lstm_encoder_forward.2} parent=127 // pred_fallthru
                _
              // Predicated region
              $region151: #{base_lstm_encoder_forward.2} parent=127 // pred_check
                _
              $region152: #{base_lstm_encoder_forward.2} parent=127 // pred_check_branch
                %2570 = sbr.rel target = $region154
              $region153: #{base_lstm_encoder_forward.2} parent=127 // pred_region
                _
              $region154: #{base_lstm_encoder_forward.2} parent=127 // pred_fallthru
                _
            $region128: #{base_lstm_encoder_forward.2} parent=123 // pred_fallthru
              _
            // Predicated region
            $region129: #{base_lstm_encoder_forward.2} parent=123 // pred_check
              _
            $region130: #{base_lstm_encoder_forward.2} parent=123 // pred_check_branch
              %2541 = sbr.rel target = $region132
            $region131: #{base_lstm_encoder_forward.2} parent=123 // pred_region
              loop: start=0, step=1, limit=1
              $region133: #{base_lstm_encoder_forward.2} parent=131 // loop_pre_header
                _
              $region134: #{base_lstm_encoder_forward.2} parent=131 // loop_header
                %s2544 = sphi 0, %s2548
                %p2545 = scmp.ge.s32.totalorder %s2544, 1
                %s2549 = sphi %s2526, %s2526
                %s2550 = sphi %s2535, %s2535
              $region135: #{base_lstm_encoder_forward.2} parent=131 // loop_header_branch
                %2547 = sbr.rel (%p2545) target = $region139
              $region136: #{base_lstm_encoder_forward.2} parent=131 // loop_body
                %v2551 = vld [vmem:[%s2549] sm:$0xff]
                %2552 = vst [vmem:[%s2550] sm:$0xff] %v2551
                %v2553 = vld [vmem:[%s2549 + $0x8] sm:$0xff]
                %2554 = vst [vmem:[%s2550 + $0x10] sm:$0xff] %v2553
              $region137: #{base_lstm_encoder_forward.2} parent=131 // loop_footer
                %s2548 = sadd.s32 1, %s2544
              $region138: #{base_lstm_encoder_forward.2} parent=131 // loop_footer_branch
                %2543 = sbr.rel target = $region134
              $region139: #{base_lstm_encoder_forward.2} parent=131 // loop_exit
                _
            $region132: #{base_lstm_encoder_forward.2} parent=123 // pred_fallthru
              _
          $region124: #{base_lstm_encoder_forward.2} parent=119 // pred_fallthru
            _
          %2571 = vnop
        $region120: #{base_lstm_encoder_forward.2} parent=103 // pred_fallthru
          _
        // Predicated region
        $region155: #{base_lstm_encoder_forward.2} parent=103 // pred_check
          %p2572 = pneg %p163
        $region156: #{base_lstm_encoder_forward.2} parent=103 // pred_check_branch
          %2574 = sbr.rel (%p2572) target = $region158
        $region157: #{base_lstm_encoder_forward.2} parent=103 // pred_region
          %s2575 = ssub.s32 1, %s21
          %s2576 = smul.addr %s2575, 8
          %s2577 = scalar_lea.vmem %s5, %s2576
          // Predicated region
          $region159: #{base_lstm_encoder_forward.2} parent=157 // pred_check
            _
          $region160: #{base_lstm_encoder_forward.2} parent=157 // pred_check_branch
            %2579 = sbr.rel (0) target = $region162
          $region161: #{base_lstm_encoder_forward.2} parent=157 // pred_region
            // Predicated region
            $region163: #{base_lstm_encoder_forward.2} parent=161 // pred_check
              _
            $region164: #{base_lstm_encoder_forward.2} parent=161 // pred_check_branch
              %2581 = sbr.rel (0) target = $region166
            $region165: #{base_lstm_encoder_forward.2} parent=161 // pred_region
              // Predicated region
              $region178: #{base_lstm_encoder_forward.2} parent=165 // pred_check
                _
              $region179: #{base_lstm_encoder_forward.2} parent=165 // pred_check_branch
                %2598 = sbr.rel (0) target = $region181
              $region180: #{base_lstm_encoder_forward.2} parent=165 // pred_region
                loop: start=0, step=1, limit=1
                $region182: #{base_lstm_encoder_forward.2} parent=180 // loop_pre_header
                  _
                $region183: #{base_lstm_encoder_forward.2} parent=180 // loop_header
                  %s2600 = sphi 0, %s2604
                  %p2601 = scmp.ge.s32.totalorder %s2600, 1
                  %s2605 = sphi %s2530, %s2530
                  %s2606 = sphi %s2577, %s2577
                $region184: #{base_lstm_encoder_forward.2} parent=180 // loop_header_branch
                  %2603 = sbr.rel (%p2601) target = $region188
                $region185: #{base_lstm_encoder_forward.2} parent=180 // loop_body
                  %v2607 = vld [vmem:[%s2605] sm:$0xff]
                  %2608 = vst [vmem:[%s2606] sm:$0xff] %v2607
                  %v2609 = vld [vmem:[%s2605 + $0x8] sm:$0xff]
                  %2610 = vst [vmem:[%s2606 + $0x10] sm:$0xff] %v2609
                $region186: #{base_lstm_encoder_forward.2} parent=180 // loop_footer
                  %s2604 = sadd.s32 1, %s2600
                $region187: #{base_lstm_encoder_forward.2} parent=180 // loop_footer_branch
                  %2599 = sbr.rel target = $region183
                $region188: #{base_lstm_encoder_forward.2} parent=180 // loop_exit
                  _
              $region181: #{base_lstm_encoder_forward.2} parent=165 // pred_fallthru
                _
              // Predicated region
              $region189: #{base_lstm_encoder_forward.2} parent=165 // pred_check
                _
              $region190: #{base_lstm_encoder_forward.2} parent=165 // pred_check_branch
                %2612 = sbr.rel target = $region192
              $region191: #{base_lstm_encoder_forward.2} parent=165 // pred_region
                _
              $region192: #{base_lstm_encoder_forward.2} parent=165 // pred_fallthru
                _
            $region166: #{base_lstm_encoder_forward.2} parent=161 // pred_fallthru
              _
            // Predicated region
            $region167: #{base_lstm_encoder_forward.2} parent=161 // pred_check
              _
            $region168: #{base_lstm_encoder_forward.2} parent=161 // pred_check_branch
              %2583 = sbr.rel target = $region170
            $region169: #{base_lstm_encoder_forward.2} parent=161 // pred_region
              loop: start=0, step=1, limit=1
              $region171: #{base_lstm_encoder_forward.2} parent=169 // loop_pre_header
                _
              $region172: #{base_lstm_encoder_forward.2} parent=169 // loop_header
                %s2586 = sphi 0, %s2590
                %p2587 = scmp.ge.s32.totalorder %s2586, 1
                %s2591 = sphi %s2530, %s2530
                %s2592 = sphi %s2577, %s2577
              $region173: #{base_lstm_encoder_forward.2} parent=169 // loop_header_branch
                %2589 = sbr.rel (%p2587) target = $region177
              $region174: #{base_lstm_encoder_forward.2} parent=169 // loop_body
                %v2593 = vld [vmem:[%s2591] sm:$0xff]
                %2594 = vst [vmem:[%s2592] sm:$0xff] %v2593
                %v2595 = vld [vmem:[%s2591 + $0x8] sm:$0xff]
                %2596 = vst [vmem:[%s2592 + $0x10] sm:$0xff] %v2595
              $region175: #{base_lstm_encoder_forward.2} parent=169 // loop_footer
                %s2590 = sadd.s32 1, %s2586
              $region176: #{base_lstm_encoder_forward.2} parent=169 // loop_footer_branch
                %2585 = sbr.rel target = $region172
              $region177: #{base_lstm_encoder_forward.2} parent=169 // loop_exit
                _
            $region170: #{base_lstm_encoder_forward.2} parent=161 // pred_fallthru
              _
          $region162: #{base_lstm_encoder_forward.2} parent=157 // pred_fallthru
            _
          %2613 = vnop
        $region158: #{base_lstm_encoder_forward.2} parent=103 // pred_fallthru
          _
        // Predicated region
        $region193: #{base_lstm_encoder_forward.2} parent=103 // pred_check
          %p2614 = pneg %p184
        $region194: #{base_lstm_encoder_forward.2} parent=103 // pred_check_branch
          %2616 = sbr.rel (%p2614) target = $region196
        $region195: #{base_lstm_encoder_forward.2} parent=103 // pred_region
          %s2618 = ssub.s32 32, 32
          %2619 = vsyncadd [#allocation11], %s2618
          %s2621 = sshll.u32 [#allocation10], 4
          %s2622 = int_to_ptr.vmem [resolvable:$true] %s2621
          %2624 = dma.vmem_to_hbm [thread:$0]  %s2622, 32, %s6, [#allocation11]
        $region196: #{base_lstm_encoder_forward.2} parent=103 // pred_fallthru
          _
        // Predicated region
        $region197: #{base_lstm_encoder_forward.2} parent=103 // pred_check
          %p2625 = pneg %p205
        $region198: #{base_lstm_encoder_forward.2} parent=103 // pred_check_branch
          %2627 = sbr.rel (%p2625) target = $region200
        $region199: #{base_lstm_encoder_forward.2} parent=103 // pred_region
          %s2629 = ssub.s32 32, 32
          %2630 = vsyncadd [#allocation13], %s2629
          %s2632 = sshll.u32 [#allocation12], 4
          %s2633 = int_to_ptr.vmem [resolvable:$true] %s2632
          %2635 = dma.vmem_to_hbm [thread:$0]  %s2633, 32, %s7, [#allocation13]
        $region200: #{base_lstm_encoder_forward.2} parent=103 // pred_fallthru
          _
        // Predicated region
        $region201: #{base_lstm_encoder_forward.2} parent=103 // pred_check
          %p2636 = pneg %p184
        $region202: #{base_lstm_encoder_forward.2} parent=103 // pred_check_branch
          %2638 = sbr.rel (%p2636) target = $region204
        $region203: #{base_lstm_encoder_forward.2} parent=103 // pred_region
          %2639 = dma.done [#allocation11], 32
        $region204: #{base_lstm_encoder_forward.2} parent=103 // pred_fallthru
          _
        // Predicated region
        $region205: #{base_lstm_encoder_forward.2} parent=103 // pred_check
          %p2640 = pneg %p205
        $region206: #{base_lstm_encoder_forward.2} parent=103 // pred_check_branch
          %2642 = sbr.rel (%p2640) target = $region208
        $region207: #{base_lstm_encoder_forward.2} parent=103 // pred_region
          %2643 = dma.done [#allocation13], 32
        $region208: #{base_lstm_encoder_forward.2} parent=103 // pred_fallthru
          _
      $region104: #{base_lstm_encoder_forward.2} parent=5 // pred_fallthru
        _
      %p2644 = scmp.le.s32.totalorder 2, %s16
      // Predicated region
      $region209: #{base_lstm_encoder_forward.2} parent=5 // pred_check
        %p2645 = pneg %p2644
      $region210: #{base_lstm_encoder_forward.2} parent=5 // pred_check_branch
        %2647 = sbr.rel (%p2645) target = $region212
      $region211: #{base_lstm_encoder_forward.2} parent=5 // pred_region
        %s2648 = ssub.s32 %s16, 2
        // Predicated region
        $region213: #{base_lstm_encoder_forward.2} parent=211 // pred_check
          %p2649 = pneg %p141
        $region214: #{base_lstm_encoder_forward.2} parent=211 // pred_check_branch
          %2651 = sbr.rel (%p2649) target = $region216
        $region215: #{base_lstm_encoder_forward.2} parent=211 // pred_region
          %s2652 = sand.u32 %s126, 1
          %s2653 = sand.u32 %s126, 1
          %s2654 = smul.addr %s2653, 16
          %s2655 = scalar_lea.vmem [#allocation8], %s2654
        $region216: #{base_lstm_encoder_forward.2} parent=211 // pred_fallthru
          _
        // Predicated region
        $region217: #{base_lstm_encoder_forward.2} parent=211 // pred_check
          %p2656 = pneg %p169
        $region218: #{base_lstm_encoder_forward.2} parent=211 // pred_check_branch
          %2658 = sbr.rel (%p2656) target = $region220
        $region219: #{base_lstm_encoder_forward.2} parent=211 // pred_region
          %s2659 = sand.u32 %s154, 1
          %s2660 = sand.u32 %s154, 1
          %s2661 = smul.addr %s2660, 16
          %s2662 = scalar_lea.vmem [#allocation9], %s2661
        $region220: #{base_lstm_encoder_forward.2} parent=211 // pred_fallthru
          _
      $region212: #{base_lstm_encoder_forward.2} parent=5 // pred_fallthru
        _
    $region6: #{base_lstm_encoder_forward.2} parent=1 // loop_footer
      %s20 = sadd.s32 1, %s16
    $region7: #{base_lstm_encoder_forward.2} parent=1 // loop_footer_branch
      %15 = sbr.rel target = $region3
    $region8: #{base_lstm_encoder_forward.2} parent=1 // loop_exit
      _
    %2663 = vsyncpa [#allocation11], 1
    %s2664 = scalar_lea.sflag [#allocation11], 1
    %2665 = vsyncpa %s2664, 1
    %2666 = vsyncpa [#allocation13], 1

// kernel: base_lstm_encoder_forward.3
$region0: #{base_lstm_encoder_forward.3}
  #allocation0 [shape = 'u32[]', space=smem, size = 0x4, offset = 0x4, fixed_abs, tag = 'smem constant byte address 0x4 - core index']
  #allocation1 [shape = 'u32[144,128]{1,0:T(1,128)}', space=vmem, size = 0x12000, scoped, tag = 'internal scratch']
  #allocation2 [shape = 'f32[2,16]{1,0:T(2,128)}', space=vmem, size = 0x400, scoped, tag = 'scratch operand']
  #allocation3 [shape = 'f32[2,16]{1,0:T(2,128)}', space=vmem, size = 0x400, scoped, tag = 'scratch operand']
  #allocation4 [shape = 'f32[2,16]{1,0:T(2,128)}', space=vmem, size = 0x400, scoped, tag = 'scratch operand']
  #allocation5 [shape = 'f32[2,16]{1,0:T(2,128)}', space=vmem, size = 0x400, scoped, tag = 'scratch operand']
  %s0 = inlined_call_operand.vmem [shape: f32[2,16,64], index: 0, kind: input, shape index: {}]
  %s1 = inlined_call_operand.vmem [shape: f32[2,16,64], index: 1, kind: input, shape index: {}]
  %s2 = inlined_call_operand.vmem [shape: bf16[16,64], index: 2, kind: input, shape index: {}]
  %s3 = inlined_call_operand.vmem [shape: bf16[16,64], index: 3, kind: input, shape index: {}]
  %s4 = inlined_call_operand.vmem [shape: f32[2,16,16], index: 4, kind: output, shape index: {0}]
  %s5 = inlined_call_operand.vmem [shape: f32[2,16,16], index: 5, kind: output, shape index: {1}]
  %s6 = inlined_call_operand.vmem [shape: f32[2,16], index: 6, kind: output, shape index: {2}]
  %s7 = inlined_call_operand.vmem [shape: f32[2,16], index: 7, kind: output, shape index: {3}]
  %8 = xla_tuple %s4, %s5, %s6, %s7
  %s9 = sld [smem:[#allocation0]]
  $region221: #{base_lstm_encoder_forward.3} parent=0
    _
  %s11 = ssub.s32 1, %s9
  %s12 = scalar_select 0, %s11, %s9
  $region1: #{base_lstm_encoder_forward.3} parent=0
    #allocation6 [shape = 'u8[16384]{0}', space=vmem, size = 0x4000, scoped, tag = 'input window, operand 0']
    #allocation7 [shape = 'u8[16384]{0}', space=vmem, size = 0x4000, scoped, tag = 'input window, operand 1']
    #allocation8 [shape = 'u8[16384]{0}', space=vmem, size = 0x4000, scoped, tag = 'output window, operand 0']
    #allocation9 [shape = 'u8[16384]{0}', space=vmem, size = 0x4000, scoped, tag = 'output window, operand 1']
    loop: start=0, step=1, limit=4
    $region2: #{base_lstm_encoder_forward.3} parent=1 // loop_pre_header
      _
    $region3: #{base_lstm_encoder_forward.3} parent=1 // loop_header
      %s14 = sphi 0, %s18
      %p15 = scmp.ge.s32.totalorder %s14, 4
      %s24 = sphi 0, %s26
      %s27 = sphi 0, %s24
      %s28 = sphi 0, %s27
      %s44 = sphi 0, %s28
      %s52 = sphi 0, %s54
      %s55 = sphi 0, %s52
      %s56 = sphi 0, %s55
      %s72 = sphi 0, %s56
      %s76 = sphi 0, %s76
      %s78 = sphi 0, %s76
      %s79 = sphi 0, %s78
      %s93 = sphi 0, %s79
      %s97 = sphi 0, %s97
      %s99 = sphi 0, %s97
      %s100 = sphi 0, %s99
      %s114 = sphi 0, %s100
      %s120 = sphi 0, %s122
      %s123 = sphi 0, %s120
      %s124 = sphi 0, %s123
      %s140 = sphi 0, %s124
      %s148 = sphi 0, %s150
      %s151 = sphi 0, %s148
      %s152 = sphi 0, %s151
      %s168 = sphi 0, %s152
      %s172 = sphi 0, %s172
      %s174 = sphi 0, %s172
      %s175 = sphi 0, %s174
      %s189 = sphi 0, %s175
      %s193 = sphi 0, %s193
      %s195 = sphi 0, %s193
      %s196 = sphi 0, %s195
      %s210 = sphi 0, %s196
    $region4: #{base_lstm_encoder_forward.3} parent=1 // loop_header_branch
      %17 = sbr.rel (%p15) target = $region8
    $region5: #{base_lstm_encoder_forward.3} parent=1 // loop_body
      %s19 = ssub.s32 %s14, 1
      %s20 = ssub.s32 %s14, 2
      %s21 = sadd.s32 %s14, 1
      %s22 = ssub.s32 %s14, %s21
      %p23 = scmp.eq.s32.totalorder %s22, 0
      %s25 = sadd.s32 %s24, 1
      %s26 = scalar_select %p23, %s24, %s25
      %p29 = pneg %p23
      %p30 = scmp.eq.s32.totalorder %s14, 1
      %p31 = por %p29, %p30
      %p32 = scmp.ne.s32.totalorder %s24, %s27
      %p33 = scmp.eq.s32.totalorder %s14, 0
      %p34 = por %p32, %p33
      %p35 = scmp.ne.s32.totalorder %s24, %s27
      %p36 = scmp.eq.s32.totalorder %s19, 1
      %p37 = por %p35, %p36
      %p38 = scmp.ne.s32.totalorder %s27, %s28
      %p39 = scmp.eq.s32.totalorder %s19, 0
      %p40 = por %p38, %p39
      %p41 = scmp.ne.s32.totalorder %s27, %s28
      %p42 = scmp.eq.s32.totalorder %s20, 1
      %p43 = por %p41, %p42
      %p45 = scmp.ne.s32.totalorder %s28, %s44
      %p46 = scmp.eq.s32.totalorder %s20, 0
      %p47 = por %p45, %p46
      %s48 = ssub.s32 1, %s14
      %s49 = ssub.s32 1, %s21
      %s50 = ssub.s32 %s48, %s49
      %p51 = scmp.eq.s32.totalorder %s50, 0
      %s53 = sadd.s32 %s52, 1
      %s54 = scalar_select %p51, %s52, %s53
      %p57 = pneg %p51
      %p58 = scmp.eq.s32.totalorder %s14, 1
      %p59 = por %p57, %p58
      %p60 = scmp.ne.s32.totalorder %s52, %s55
      %p61 = scmp.eq.s32.totalorder %s14, 0
      %p62 = por %p60, %p61
      %p63 = scmp.ne.s32.totalorder %s52, %s55
      %p64 = scmp.eq.s32.totalorder %s19, 1
      %p65 = por %p63, %p64
      %p66 = scmp.ne.s32.totalorder %s55, %s56
      %p67 = scmp.eq.s32.totalorder %s19, 0
      %p68 = por %p66, %p67
      %p69 = scmp.ne.s32.totalorder %s55, %s56
      %p70 = scmp.eq.s32.totalorder %s20, 1
      %p71 = por %p69, %p70
      %p73 = scmp.ne.s32.totalorder %s56, %s72
      %p74 = scmp.eq.s32.totalorder %s20, 0
      %p75 = por %p73, %p74
      %s77 = sadd.s32 %s76, 1
      %p80 = scmp.eq.s32.totalorder %s14, 1
      %p81 = scmp.ne.s32.totalorder %s76, %s78
      %p82 = scmp.eq.s32.totalorder %s14, 0
      %p83 = por %p81, %p82
      %p84 = scmp.ne.s32.totalorder %s76, %s78
      %p85 = scmp.eq.s32.totalorder %s19, 1
      %p86 = por %p84, %p85
      %p87 = scmp.ne.s32.totalorder %s78, %s79
      %p88 = scmp.eq.s32.totalorder %s19, 0
      %p89 = por %p87, %p88
      %p90 = scmp.ne.s32.totalorder %s78, %s79
      %p91 = scmp.eq.s32.totalorder %s20, 1
      %p92 = por %p90, %p91
      %p94 = scmp.ne.s32.totalorder %s79, %s93
      %p95 = scmp.eq.s32.totalorder %s20, 0
      %p96 = por %p94, %p95
      %s98 = sadd.s32 %s97, 1
      %p101 = scmp.eq.s32.totalorder %s14, 1
      %p102 = scmp.ne.s32.totalorder %s97, %s99
      %p103 = scmp.eq.s32.totalorder %s14, 0
      %p104 = por %p102, %p103
      %p105 = scmp.ne.s32.totalorder %s97, %s99
      %p106 = scmp.eq.s32.totalorder %s19, 1
      %p107 = por %p105, %p106
      %p108 = scmp.ne.s32.totalorder %s99, %s100
      %p109 = scmp.eq.s32.totalorder %s19, 0
      %p110 = por %p108, %p109
      %p111 = scmp.ne.s32.totalorder %s99, %s100
      %p112 = scmp.eq.s32.totalorder %s20, 1
      %p113 = por %p111, %p112
      %p115 = scmp.ne.s32.totalorder %s100, %s114
      %p116 = scmp.eq.s32.totalorder %s20, 0
      %p117 = por %p115, %p116
      %s118 = ssub.s32 %s14, %s21
      %p119 = scmp.eq.s32.totalorder %s118, 0
      %s121 = sadd.s32 %s120, 1
      %s122 = scalar_select %p119, %s120, %s121
      %p125 = pneg %p119
      %p126 = scmp.eq.s32.totalorder %s14, 1
      %p127 = por %p125, %p126
      %p128 = scmp.ne.s32.totalorder %s120, %s123
      %p129 = scmp.eq.s32.totalorder %s14, 0
      %p130 = por %p128, %p129
      %p131 = scmp.ne.s32.totalorder %s120, %s123
      %p132 = scmp.eq.s32.totalorder %s19, 1
      %p133 = por %p131, %p132
      %p134 = scmp.ne.s32.totalorder %s123, %s124
      %p135 = scmp.eq.s32.totalorder %s19, 0
      %p136 = por %p134, %p135
      %p137 = scmp.ne.s32.totalorder %s123, %s124
      %p138 = scmp.eq.s32.totalorder %s20, 1
      %p139 = por %p137, %p138
      %p141 = scmp.ne.s32.totalorder %s124, %s140
      %p142 = scmp.eq.s32.totalorder %s20, 0
      %p143 = por %p141, %p142
      %s144 = ssub.s32 1, %s14
      %s145 = ssub.s32 1, %s21
      %s146 = ssub.s32 %s144, %s145
      %p147 = scmp.eq.s32.totalorder %s146, 0
      %s149 = sadd.s32 %s148, 1
      %s150 = scalar_select %p147, %s148, %s149
      %p153 = pneg %p147
      %p154 = scmp.eq.s32.totalorder %s14, 1
      %p155 = por %p153, %p154
      %p156 = scmp.ne.s32.totalorder %s148, %s151
      %p157 = scmp.eq.s32.totalorder %s14, 0
      %p158 = por %p156, %p157
      %p159 = scmp.ne.s32.totalorder %s148, %s151
      %p160 = scmp.eq.s32.totalorder %s19, 1
      %p161 = por %p159, %p160
      %p162 = scmp.ne.s32.totalorder %s151, %s152
      %p163 = scmp.eq.s32.totalorder %s19, 0
      %p164 = por %p162, %p163
      %p165 = scmp.ne.s32.totalorder %s151, %s152
      %p166 = scmp.eq.s32.totalorder %s20, 1
      %p167 = por %p165, %p166
      %p169 = scmp.ne.s32.totalorder %s152, %s168
      %p170 = scmp.eq.s32.totalorder %s20, 0
      %p171 = por %p169, %p170
      %s173 = sadd.s32 %s172, 1
      %p176 = scmp.eq.s32.totalorder %s14, 1
      %p177 = scmp.ne.s32.totalorder %s172, %s174
      %p178 = scmp.eq.s32.totalorder %s14, 0
      %p179 = por %p177, %p178
      %p180 = scmp.ne.s32.totalorder %s172, %s174
      %p181 = scmp.eq.s32.totalorder %s19, 1
      %p182 = por %p180, %p181
      %p183 = scmp.ne.s32.totalorder %s174, %s175
      %p184 = scmp.eq.s32.totalorder %s19, 0
      %p185 = por %p183, %p184
      %p186 = scmp.ne.s32.totalorder %s174, %s175
      %p187 = scmp.eq.s32.totalorder %s20, 1
      %p188 = por %p186, %p187
      %p190 = scmp.ne.s32.totalorder %s175, %s189
      %p191 = scmp.eq.s32.totalorder %s20, 0
      %p192 = por %p190, %p191
      %s194 = sadd.s32 %s193, 1
      %p197 = scmp.eq.s32.totalorder %s14, 1
      %p198 = scmp.ne.s32.totalorder %s193, %s195
      %p199 = scmp.eq.s32.totalorder %s14, 0
      %p200 = por %p198, %p199
      %p201 = scmp.ne.s32.totalorder %s193, %s195
      %p202 = scmp.eq.s32.totalorder %s19, 1
      %p203 = por %p201, %p202
      %p204 = scmp.ne.s32.totalorder %s195, %s196
      %p205 = scmp.eq.s32.totalorder %s19, 0
      %p206 = por %p204, %p205
      %p207 = scmp.ne.s32.totalorder %s195, %s196
      %p208 = scmp.eq.s32.totalorder %s20, 1
      %p209 = por %p207, %p208
      %p211 = scmp.ne.s32.totalorder %s196, %s210
      %p212 = scmp.eq.s32.totalorder %s20, 0
      %p213 = por %p211, %p212
      %p214 = scmp.le.s32.totalorder 1, %s14
      %p215 = scmp.lt.s32.totalorder %s14, 3
      %p216 = pnand %p214, %p215
      %p217 = pneg %p216
      // Predicated region
      $region9: #{base_lstm_encoder_forward.3} parent=5 // pred_check
        _
      $region10: #{base_lstm_encoder_forward.3} parent=5 // pred_check_branch
        %219 = sbr.rel (%p216) target = $region12
      $region11: #{base_lstm_encoder_forward.3} parent=5 // pred_region
        %s220 = ssub.s32 %s14, 1
        // Predicated region
        $region13: #{base_lstm_encoder_forward.3} parent=11 // pred_check
          %p221 = pneg %p89
        $region14: #{base_lstm_encoder_forward.3} parent=11 // pred_check_branch
          %223 = sbr.rel (%p221) target = $region16
        $region15: #{base_lstm_encoder_forward.3} parent=11 // pred_region
          _
        $region16: #{base_lstm_encoder_forward.3} parent=11 // pred_fallthru
          _
        // Predicated region
        $region17: #{base_lstm_encoder_forward.3} parent=11 // pred_check
          %p224 = pneg %p110
        $region18: #{base_lstm_encoder_forward.3} parent=11 // pred_check_branch
          %226 = sbr.rel (%p224) target = $region20
        $region19: #{base_lstm_encoder_forward.3} parent=11 // pred_region
          _
        $region20: #{base_lstm_encoder_forward.3} parent=11 // pred_fallthru
          _
      $region12: #{base_lstm_encoder_forward.3} parent=5 // pred_fallthru
        _
      %p227 = scmp.lt.s32.totalorder %s14, 2
      // Predicated region
      $region21: #{base_lstm_encoder_forward.3} parent=5 // pred_check
        %p228 = pneg %p227
      $region22: #{base_lstm_encoder_forward.3} parent=5 // pred_check_branch
        %230 = sbr.rel (%p228) target = $region24
      $region23: #{base_lstm_encoder_forward.3} parent=5 // pred_region
        // Predicated region
        $region25: #{base_lstm_encoder_forward.3} parent=23 // pred_check
          %p231 = pneg %p34
        $region26: #{base_lstm_encoder_forward.3} parent=23 // pred_check_branch
          %233 = sbr.rel (%p231) target = $region28
        $region27: #{base_lstm_encoder_forward.3} parent=23 // pred_region
          %s234 = sand.u32 %s24, 1
          %s235 = sand.u32 %s24, 1
          %s236 = smul.addr %s235, 16
          %s237 = scalar_lea.vmem [#allocation6], %s236
          %s238 = smul.addr %s14, 8
          %s239 = scalar_lea.vmem %s0, %s238
          // Predicated region
          $region29: #{base_lstm_encoder_forward.3} parent=27 // pred_check
            _
          $region30: #{base_lstm_encoder_forward.3} parent=27 // pred_check_branch
            %241 = sbr.rel (0) target = $region32
          $region31: #{base_lstm_encoder_forward.3} parent=27 // pred_region
            // Predicated region
            $region33: #{base_lstm_encoder_forward.3} parent=31 // pred_check
              _
            $region34: #{base_lstm_encoder_forward.3} parent=31 // pred_check_branch
              %243 = sbr.rel (0) target = $region36
            $region35: #{base_lstm_encoder_forward.3} parent=31 // pred_region
              // Predicated region
              $region48: #{base_lstm_encoder_forward.3} parent=35 // pred_check
                _
              $region49: #{base_lstm_encoder_forward.3} parent=35 // pred_check_branch
                %260 = sbr.rel (0) target = $region51
              $region50: #{base_lstm_encoder_forward.3} parent=35 // pred_region
                loop: start=0, step=1, limit=1
                $region52: #{base_lstm_encoder_forward.3} parent=50 // loop_pre_header
                  _
                $region53: #{base_lstm_encoder_forward.3} parent=50 // loop_header
                  %s262 = sphi 0, %s266
                  %p263 = scmp.ge.s32.totalorder %s262, 1
                  %s267 = sphi %s239, %s239
                  %s268 = sphi %s237, %s237
                $region54: #{base_lstm_encoder_forward.3} parent=50 // loop_header_branch
                  %265 = sbr.rel (%p263) target = $region58
                $region55: #{base_lstm_encoder_forward.3} parent=50 // loop_body
                  %v269 = vld [vmem:[%s267] sm:$0xff]
                  %270 = vst [vmem:[%s268] sm:$0xff] %v269
                  %v271 = vld [vmem:[%s267 + $0x10] sm:$0xff]
                  %272 = vst [vmem:[%s268 + $0x8] sm:$0xff] %v271
                $region56: #{base_lstm_encoder_forward.3} parent=50 // loop_footer
                  %s266 = sadd.s32 1, %s262
                $region57: #{base_lstm_encoder_forward.3} parent=50 // loop_footer_branch
                  %261 = sbr.rel target = $region53
                $region58: #{base_lstm_encoder_forward.3} parent=50 // loop_exit
                  _
              $region51: #{base_lstm_encoder_forward.3} parent=35 // pred_fallthru
                _
              // Predicated region
              $region59: #{base_lstm_encoder_forward.3} parent=35 // pred_check
                _
              $region60: #{base_lstm_encoder_forward.3} parent=35 // pred_check_branch
                %274 = sbr.rel target = $region62
              $region61: #{base_lstm_encoder_forward.3} parent=35 // pred_region
                _
              $region62: #{base_lstm_encoder_forward.3} parent=35 // pred_fallthru
                _
            $region36: #{base_lstm_encoder_forward.3} parent=31 // pred_fallthru
              _
            // Predicated region
            $region37: #{base_lstm_encoder_forward.3} parent=31 // pred_check
              _
            $region38: #{base_lstm_encoder_forward.3} parent=31 // pred_check_branch
              %245 = sbr.rel target = $region40
            $region39: #{base_lstm_encoder_forward.3} parent=31 // pred_region
              loop: start=0, step=1, limit=1
              $region41: #{base_lstm_encoder_forward.3} parent=39 // loop_pre_header
                _
              $region42: #{base_lstm_encoder_forward.3} parent=39 // loop_header
                %s248 = sphi 0, %s252
                %p249 = scmp.ge.s32.totalorder %s248, 1
                %s253 = sphi %s239, %s239
                %s254 = sphi %s237, %s237
              $region43: #{base_lstm_encoder_forward.3} parent=39 // loop_header_branch
                %251 = sbr.rel (%p249) target = $region47
              $region44: #{base_lstm_encoder_forward.3} parent=39 // loop_body
                %v255 = vld [vmem:[%s253] sm:$0xff]
                %256 = vst [vmem:[%s254] sm:$0xff] %v255
                %v257 = vld [vmem:[%s253 + $0x10] sm:$0xff]
                %258 = vst [vmem:[%s254 + $0x8] sm:$0xff] %v257
              $region45: #{base_lstm_encoder_forward.3} parent=39 // loop_footer
                %s252 = sadd.s32 1, %s248
              $region46: #{base_lstm_encoder_forward.3} parent=39 // loop_footer_branch
                %247 = sbr.rel target = $region42
              $region47: #{base_lstm_encoder_forward.3} parent=39 // loop_exit
                _
            $region40: #{base_lstm_encoder_forward.3} parent=31 // pred_fallthru
              _
          $region32: #{base_lstm_encoder_forward.3} parent=27 // pred_fallthru
            _
          %275 = vnop
        $region28: #{base_lstm_encoder_forward.3} parent=23 // pred_fallthru
          _
        // Predicated region
        $region63: #{base_lstm_encoder_forward.3} parent=23 // pred_check
          %p276 = pneg %p62
        $region64: #{base_lstm_encoder_forward.3} parent=23 // pred_check_branch
          %278 = sbr.rel (%p276) target = $region66
        $region65: #{base_lstm_encoder_forward.3} parent=23 // pred_region
          %s279 = sand.u32 %s52, 1
          %s280 = sand.u32 %s52, 1
          %s281 = smul.addr %s280, 16
          %s282 = scalar_lea.vmem [#allocation7], %s281
          %s283 = ssub.s32 1, %s14
          %s284 = smul.addr %s283, 8
          %s285 = scalar_lea.vmem %s1, %s284
          // Predicated region
          $region67: #{base_lstm_encoder_forward.3} parent=65 // pred_check
            _
          $region68: #{base_lstm_encoder_forward.3} parent=65 // pred_check_branch
            %287 = sbr.rel (0) target = $region70
          $region69: #{base_lstm_encoder_forward.3} parent=65 // pred_region
            // Predicated region
            $region71: #{base_lstm_encoder_forward.3} parent=69 // pred_check
              _
            $region72: #{base_lstm_encoder_forward.3} parent=69 // pred_check_branch
              %289 = sbr.rel (0) target = $region74
            $region73: #{base_lstm_encoder_forward.3} parent=69 // pred_region
              // Predicated region
              $region86: #{base_lstm_encoder_forward.3} parent=73 // pred_check
                _
              $region87: #{base_lstm_encoder_forward.3} parent=73 // pred_check_branch
                %306 = sbr.rel (0) target = $region89
              $region88: #{base_lstm_encoder_forward.3} parent=73 // pred_region
                loop: start=0, step=1, limit=1
                $region90: #{base_lstm_encoder_forward.3} parent=88 // loop_pre_header
                  _
                $region91: #{base_lstm_encoder_forward.3} parent=88 // loop_header
                  %s308 = sphi 0, %s312
                  %p309 = scmp.ge.s32.totalorder %s308, 1
                  %s313 = sphi %s285, %s285
                  %s314 = sphi %s282, %s282
                $region92: #{base_lstm_encoder_forward.3} parent=88 // loop_header_branch
                  %311 = sbr.rel (%p309) target = $region96
                $region93: #{base_lstm_encoder_forward.3} parent=88 // loop_body
                  %v315 = vld [vmem:[%s313] sm:$0xff]
                  %316 = vst [vmem:[%s314] sm:$0xff] %v315
                  %v317 = vld [vmem:[%s313 + $0x10] sm:$0xff]
                  %318 = vst [vmem:[%s314 + $0x8] sm:$0xff] %v317
                $region94: #{base_lstm_encoder_forward.3} parent=88 // loop_footer
                  %s312 = sadd.s32 1, %s308
                $region95: #{base_lstm_encoder_forward.3} parent=88 // loop_footer_branch
                  %307 = sbr.rel target = $region91
                $region96: #{base_lstm_encoder_forward.3} parent=88 // loop_exit
                  _
              $region89: #{base_lstm_encoder_forward.3} parent=73 // pred_fallthru
                _
              // Predicated region
              $region97: #{base_lstm_encoder_forward.3} parent=73 // pred_check
                _
              $region98: #{base_lstm_encoder_forward.3} parent=73 // pred_check_branch
                %320 = sbr.rel target = $region100
              $region99: #{base_lstm_encoder_forward.3} parent=73 // pred_region
                _
              $region100: #{base_lstm_encoder_forward.3} parent=73 // pred_fallthru
                _
            $region74: #{base_lstm_encoder_forward.3} parent=69 // pred_fallthru
              _
            // Predicated region
            $region75: #{base_lstm_encoder_forward.3} parent=69 // pred_check
              _
            $region76: #{base_lstm_encoder_forward.3} parent=69 // pred_check_branch
              %291 = sbr.rel target = $region78
            $region77: #{base_lstm_encoder_forward.3} parent=69 // pred_region
              loop: start=0, step=1, limit=1
              $region79: #{base_lstm_encoder_forward.3} parent=77 // loop_pre_header
                _
              $region80: #{base_lstm_encoder_forward.3} parent=77 // loop_header
                %s294 = sphi 0, %s298
                %p295 = scmp.ge.s32.totalorder %s294, 1
                %s299 = sphi %s285, %s285
                %s300 = sphi %s282, %s282
              $region81: #{base_lstm_encoder_forward.3} parent=77 // loop_header_branch
                %297 = sbr.rel (%p295) target = $region85
              $region82: #{base_lstm_encoder_forward.3} parent=77 // loop_body
                %v301 = vld [vmem:[%s299] sm:$0xff]
                %302 = vst [vmem:[%s300] sm:$0xff] %v301
                %v303 = vld [vmem:[%s299 + $0x10] sm:$0xff]
                %304 = vst [vmem:[%s300 + $0x8] sm:$0xff] %v303
              $region83: #{base_lstm_encoder_forward.3} parent=77 // loop_footer
                %s298 = sadd.s32 1, %s294
              $region84: #{base_lstm_encoder_forward.3} parent=77 // loop_footer_branch
                %293 = sbr.rel target = $region80
              $region85: #{base_lstm_encoder_forward.3} parent=77 // loop_exit
                _
            $region78: #{base_lstm_encoder_forward.3} parent=69 // pred_fallthru
              _
          $region70: #{base_lstm_encoder_forward.3} parent=65 // pred_fallthru
            _
          %321 = vnop
        $region66: #{base_lstm_encoder_forward.3} parent=23 // pred_fallthru
          _
      $region24: #{base_lstm_encoder_forward.3} parent=5 // pred_fallthru
        _
      %p322 = scmp.le.s32.totalorder 1, %s14
      %p323 = scmp.lt.s32.totalorder %s14, 3
      %p324 = pnand %p322, %p323
      %p325 = pneg %p324
      // Predicated region
      $region101: #{base_lstm_encoder_forward.3} parent=5 // pred_check
        _
      $region102: #{base_lstm_encoder_forward.3} parent=5 // pred_check_branch
        %327 = sbr.rel (%p324) target = $region104
      $region103: #{base_lstm_encoder_forward.3} parent=5 // pred_region
        %s328 = ssub.s32 %s14, 1
        %s329 = sand.u32 %s27, 1
        %s330 = sand.u32 %s27, 1
        %s331 = smul.addr %s330, 16
        %s332 = scalar_lea.vmem [#allocation6], %s331
        // Predicated region
        $region105: #{base_lstm_encoder_forward.3} parent=103 // pred_check
          %p333 = pneg %p40
        $region106: #{base_lstm_encoder_forward.3} parent=103 // pred_check_branch
          %335 = sbr.rel (%p333) target = $region108
        $region107: #{base_lstm_encoder_forward.3} parent=103 // pred_region
          _
        $region108: #{base_lstm_encoder_forward.3} parent=103 // pred_fallthru
          _
        %s336 = sand.u32 %s55, 1
        %s337 = sand.u32 %s55, 1
        %s338 = smul.addr %s337, 16
        %s339 = scalar_lea.vmem [#allocation7], %s338
        // Predicated region
        $region109: #{base_lstm_encoder_forward.3} parent=103 // pred_check
          %p340 = pneg %p68
        $region110: #{base_lstm_encoder_forward.3} parent=103 // pred_check_branch
          %342 = sbr.rel (%p340) target = $region112
        $region111: #{base_lstm_encoder_forward.3} parent=103 // pred_region
          _
        $region112: #{base_lstm_encoder_forward.3} parent=103 // pred_fallthru
          _
        %s343 = sand.u32 %s27, 1
        %s344 = sand.u32 %s27, 1
        %s345 = smul.addr %s344, 16
        %s346 = scalar_lea.vmem [#allocation6], %s345
        %p347 = pneg %p40
        %p348 = pneg %p37
        %s349 = sand.u32 %s55, 1
        %s350 = sand.u32 %s55, 1
        %s351 = smul.addr %s350, 16
        %s352 = scalar_lea.vmem [#allocation7], %s351
        %p353 = pneg %p68
        %p354 = pneg %p65
        %p355 = pneg %p89
        %p356 = pneg %p86
        %p357 = pneg %p110
        %p358 = pneg %p107
        %p359 = pneg %p136
        %p360 = pneg %p133
        %s361 = sand.u32 %s123, 1
        %s362 = sand.u32 %s123, 1
        %s363 = smul.addr %s362, 16
        %s364 = scalar_lea.vmem [#allocation8], %s363
        %p365 = pneg %p164
        %p366 = pneg %p161
        %s367 = sand.u32 %s151, 1
        %s368 = sand.u32 %s151, 1
        %s369 = smul.addr %s368, 16
        %s370 = scalar_lea.vmem [#allocation9], %s369
        %p371 = pneg %p185
        %p372 = pneg %p182
        %p373 = pneg %p206
        %p374 = pneg %p203
        %s375 = ssub.s32 1, %s19
        %s376 = ssub.s32 1, %s19
        %p378 = scmp.eq.s32.totalorder %s19, 0
        // Predicated region
        $region113: #{base_lstm_encoder_forward.3} parent=103 // pred_check
          %p379 = pneg %p378
        $region114: #{base_lstm_encoder_forward.3} parent=103 // pred_check_branch
          %381 = sbr.rel (%p379) target = $region116
        $region115: #{base_lstm_encoder_forward.3} parent=103 // pred_region
          %vm382 = vcmask 123904
          %383 = vst.msk [vmem:[#allocation2] sm:$0x3] %vm382, 0.0
          %384 = vst.msk [vmem:[#allocation3] sm:$0x3] %vm382, 0.0
          %385 = vst.msk [vmem:[#allocation4] sm:$0x3] %vm382, 0.0
          %386 = vst.msk [vmem:[#allocation5] sm:$0x3] %vm382, 0.0
          %387 = vst.msk [vmem:[%s6] sm:$0x3] %vm382, -inf
          %388 = vst.msk [vmem:[%s7] sm:$0x3] %vm382, -inf
        $region116: #{base_lstm_encoder_forward.3} parent=103 // pred_fallthru
          _
        %v389 = vld [vmem:[%s2] sm:$0xf]
        %v390 = vld [vmem:[%s2 + $0x4] sm:$0xf]
        %v391 = vld [vmem:[%s3] sm:$0xf]
        %v392 = vld [vmem:[%s3 + $0x4] sm:$0xf]
        %v393 = vld [vmem:[%s332] sm:$0x1]
        %v394 = vld [vmem:[%s332 + $0x8] sm:$0x1]
        %v395 = vld [vmem:[#allocation2] sm:$0x3]
        %v396 = vld [vmem:[#allocation3] sm:$0x3]
        %v397 = vpack.c.bf16 %v395, %v395
        %v400 = vunpack.c.l.b16 %v389
        %v401 = vunpack.c.l.b16 %v390
        %v402 = vpack.c.b16 %v401, %v400
        %v406 = vrot.slane %v394, 7
        %vm407 = vcmask 1041409
        %v408 = vsel %vm407, %v406, %v393
        %vm410 = vcmask 130048
        %v412 = vsel %vm410, %v397, 0
        %414 = vmatprep.subr.bf16.mxu0 0
        %415 = vmatpush1.bf16.msra.mxu0 %v402
        %416 = vmatprep.subr.bf16.mxu0 0
        %417 = vmatpush1.bf16.msra.mxu0 0
        %418 = vmatprep.subr.bf16.mxu0 0
        %419 = vmatpush1.bf16.msra.mxu0 0
        %420 = vmatprep.subr.bf16.mxu0 0
        %421 = vmatpush1.bf16.msra.mxu0 0
        %422 = vmatprep.subr.bf16.mxu0 0
        %423 = vmatpush1.bf16.msra.mxu0 0
        %424 = vmatprep.subr.bf16.mxu0 0
        %425 = vmatpush1.bf16.msra.mxu0 0
        %426 = vmatprep.subr.bf16.mxu0 0
        %427 = vmatpush1.bf16.msra.mxu0 0
        %428 = vmatprep.subr.bf16.mxu0 0
        %429 = vmatpush1.bf16.msra.mxu0 0
        %430 = vmatprep.subr.bf16.mxu0 0
        %431 = vmatpush1.bf16.msra.mxu0 0
        %432 = vmatprep.subr.bf16.mxu0 0
        %433 = vmatpush1.bf16.msra.mxu0 0
        %434 = vmatprep.subr.bf16.mxu0 0
        %435 = vmatpush1.bf16.msra.mxu0 0
        %436 = vmatprep.subr.bf16.mxu0 0
        %437 = vmatpush1.bf16.msra.mxu0 0
        %438 = vmatprep.subr.bf16.mxu0 0
        %439 = vmatpush1.bf16.msra.mxu0 0
        %440 = vmatprep.subr.bf16.mxu0 0
        %441 = vmatpush1.bf16.msra.mxu0 0
        %442 = vmatprep.subr.bf16.mxu0 0
        %443 = vmatpush1.bf16.msra.mxu0 0
        %444 = vmatprep.subr.bf16.mxu0 0
        %445 = vmatpush1.bf16.msra.mxu0 0
        %446 = vmatprep.mubr.bf16.mxu0 0
        %447 = vmatmul.mubr.bf16.gmra.mrb[0].mxu0 %v412
        %v448 = vpop.f32.mrb[0].mxu0
        %v449 = vadd.f32 %v408, %v448
        %v450 = vpop.f32.mrb[0].mxu0
        %v451 = vpop.f32.mrb[0].mxu0
        %v452 = vpop.f32.mrb[0].mxu0
        %453 = vdwg.mxu0
        %v454 = vxor.u32 %v449, 2147483648
        %v455 = vmul.f32 %v454, 1.442695
        %v456 = vpow.pop %v455
        %v457 = vadd.f32 %v456, 1.0
        %v458 = vrcp.pop %v457
        %v459 = vmul.f32 1.0, %v458
        %v460 = vtanh.pop %v449
        %462 = vrot.lane.b32.xlu0 %v396, 16
        %v463 = vpop.permute.xlu0 %462
        %v465 = vmul.f32 %v459, %v463
        %467 = vrot.lane.b32.xlu0 %v460, 96
        %v468 = vpop.permute.xlu0 %467
        %v470 = vmul.f32 %v459, %v468
        %472 = vrot.lane.b32.xlu0 %v470, 16
        %v473 = vpop.permute.xlu0 %472
        %v475 = vadd.f32 %v465, %v473
        %v476 = vtanh.pop %v475
        %478 = vrot.lane.b32.xlu0 %v476, 32
        %v479 = vpop.permute.xlu0 %478
        %v481 = vmul.f32 %v459, %v479
        %483 = vrot.lane.b32.xlu0 %v481, 80
        %v484 = vpop.permute.xlu0 %483
        %vm486 = vcmask 123904
        %487 = vst.msk [vmem:[#allocation2] sm:$0x3] %vm486, %v484
        %489 = vrot.lane.b32.xlu0 %v475, 112
        %v490 = vpop.permute.xlu0 %489
        %492 = vst.msk [vmem:[#allocation3] sm:$0x3] %vm486, %v490
        %v494 = vunpack.c.l.s4 1966171168
        %v495 = vunpack.c.0.s8 %v494
        %v496 = vlaneseq
        %v497 = vshrl.u32 %v496, 7
        %v498 = vsub.s32 %v495, %v497
        %v499 = vrot.slane %v481, %v498
        %v500 = vcombine.high %v499, %v499
        %v502 = vunpack.c.l.s4 1966171168
        %v503 = vunpack.c.0.s8 %v502
        %v504 = vlaneseq
        %v505 = vshrl.u32 %v504, 7
        %v506 = vsub.s32 %v503, %v505
        %v507 = vrot.slane %v499, %v506
        %v509 = vunpack.c.l.s4 1966171168
        %v510 = vunpack.c.0.s8 %v509
        %v511 = vlaneseq
        %v512 = vshrl.u32 %v511, 7
        %v513 = vsub.s32 %v510, %v512
        %v514 = vrot.slane %v500, %v513
        %v515 = vlaneseq
        %v516 = vshrl.u32 %v515, 7
        %v517 = vsub.s32 0, %v516
        %v518 = vrot.slane %v507, %v517
        %v519 = vlaneseq
        %v520 = vshrl.u32 %v519, 7
        %v521 = vsub.s32 0, %v520
        %v522 = vrot.slane %v514, %v521
        %523 = vrot.lane.b32.xlu0 %v518, 80
        %v524 = vpop.permute.xlu0 %523
        %525 = vrot.lane.b32.xlu0 %v522, 80
        %v526 = vpop.permute.xlu0 %525
        %vm529 = vcmask 122880
        %530 = vst.msk [vmem:[%s364] sm:$0x1] %vm529, %v524
        %531 = vst.msk [vmem:[%s364 + $0x8] sm:$0x1] %vm529, %v526
        %v532 = vld [vmem:[%s339 + $0x7] sm:$0x1]
        %v533 = vld [vmem:[%s339 + $0xf] sm:$0x1]
        %v534 = vld [vmem:[#allocation4] sm:$0x3]
        %v535 = vld [vmem:[#allocation5] sm:$0x3]
        %v536 = vpack.c.bf16 %v534, %v534
        %v539 = vunpack.c.l.b16 %v391
        %v540 = vunpack.c.l.b16 %v392
        %v541 = vpack.c.b16 %v540, %v539
        %v545 = vrot.slane %v533, 7
        %v546 = vsel %vm407, %v545, %v532
        %v549 = vsel %vm410, %v536, 0
        %551 = vmatprep.subr.bf16.mxu0 0
        %552 = vmatpush1.bf16.msra.mxu0 %v541
        %553 = vmatprep.subr.bf16.mxu0 0
        %554 = vmatpush1.bf16.msra.mxu0 0
        %555 = vmatprep.subr.bf16.mxu0 0
        %556 = vmatpush1.bf16.msra.mxu0 0
        %557 = vmatprep.subr.bf16.mxu0 0
        %558 = vmatpush1.bf16.msra.mxu0 0
        %559 = vmatprep.subr.bf16.mxu0 0
        %560 = vmatpush1.bf16.msra.mxu0 0
        %561 = vmatprep.subr.bf16.mxu0 0
        %562 = vmatpush1.bf16.msra.mxu0 0
        %563 = vmatprep.subr.bf16.mxu0 0
        %564 = vmatpush1.bf16.msra.mxu0 0
        %565 = vmatprep.subr.bf16.mxu0 0
        %566 = vmatpush1.bf16.msra.mxu0 0
        %567 = vmatprep.subr.bf16.mxu0 0
        %568 = vmatpush1.bf16.msra.mxu0 0
        %569 = vmatprep.subr.bf16.mxu0 0
        %570 = vmatpush1.bf16.msra.mxu0 0
        %571 = vmatprep.subr.bf16.mxu0 0
        %572 = vmatpush1.bf16.msra.mxu0 0
        %573 = vmatprep.subr.bf16.mxu0 0
        %574 = vmatpush1.bf16.msra.mxu0 0
        %575 = vmatprep.subr.bf16.mxu0 0
        %576 = vmatpush1.bf16.msra.mxu0 0
        %577 = vmatprep.subr.bf16.mxu0 0
        %578 = vmatpush1.bf16.msra.mxu0 0
        %579 = vmatprep.subr.bf16.mxu0 0
        %580 = vmatpush1.bf16.msra.mxu0 0
        %581 = vmatprep.subr.bf16.mxu0 0
        %582 = vmatpush1.bf16.msra.mxu0 0
        %583 = vmatprep.mubr.bf16.mxu0 0
        %584 = vmatmul.mubr.bf16.gmra.mrb[0].mxu0 %v549
        %v585 = vpop.f32.mrb[0].mxu0
        %v586 = vadd.f32 %v546, %v585
        %v587 = vpop.f32.mrb[0].mxu0
        %v588 = vpop.f32.mrb[0].mxu0
        %v589 = vpop.f32.mrb[0].mxu0
        %590 = vdwg.mxu0
        %v591 = vxor.u32 %v586, 2147483648
        %v592 = vmul.f32 %v591, 1.442695
        %v593 = vpow.pop %v592
        %v594 = vadd.f32 %v593, 1.0
        %v595 = vrcp.pop %v594
        %v596 = vmul.f32 1.0, %v595
        %v597 = vtanh.pop %v586
        %599 = vrot.lane.b32.xlu0 %v535, 16
        %v600 = vpop.permute.xlu0 %599
        %v602 = vmul.f32 %v596, %v600
        %604 = vrot.lane.b32.xlu0 %v597, 96
        %v605 = vpop.permute.xlu0 %604
        %v607 = vmul.f32 %v596, %v605
        %609 = vrot.lane.b32.xlu0 %v607, 16
        %v610 = vpop.permute.xlu0 %609
        %v612 = vadd.f32 %v602, %v610
        %v613 = vtanh.pop %v612
        %615 = vrot.lane.b32.xlu0 %v613, 32
        %v616 = vpop.permute.xlu0 %615
        %v618 = vmul.f32 %v596, %v616
        %620 = vrot.lane.b32.xlu0 %v618, 80
        %v621 = vpop.permute.xlu0 %620
        %623 = vst.msk [vmem:[#allocation4] sm:$0x3] %vm486, %v621
        %625 = vrot.lane.b32.xlu0 %v612, 112
        %v626 = vpop.permute.xlu0 %625
        %628 = vst.msk [vmem:[#allocation5] sm:$0x3] %vm486, %v626
        %v630 = vunpack.c.l.s4 1966171168
        %v631 = vunpack.c.0.s8 %v630
        %v632 = vlaneseq
        %v633 = vshrl.u32 %v632, 7
        %v634 = vsub.s32 %v631, %v633
        %v635 = vrot.slane %v618, %v634
        %v636 = vcombine.high %v635, %v635
        %v638 = vunpack.c.l.s4 1966171168
        %v639 = vunpack.c.0.s8 %v638
        %v640 = vlaneseq
        %v641 = vshrl.u32 %v640, 7
        %v642 = vsub.s32 %v639, %v641
        %v643 = vrot.slane %v635, %v642
        %v645 = vunpack.c.l.s4 1966171168
        %v646 = vunpack.c.0.s8 %v645
        %v647 = vlaneseq
        %v648 = vshrl.u32 %v647, 7
        %v649 = vsub.s32 %v646, %v648
        %v650 = vrot.slane %v636, %v649
        %v651 = vlaneseq
        %v652 = vshrl.u32 %v651, 7
        %v653 = vsub.s32 0, %v652
        %v654 = vrot.slane %v643, %v653
        %v655 = vlaneseq
        %v656 = vshrl.u32 %v655, 7
        %v657 = vsub.s32 0, %v656
        %v658 = vrot.slane %v650, %v657
        %659 = vrot.lane.b32.xlu0 %v654, 80
        %v660 = vpop.permute.xlu0 %659
        %661 = vrot.lane.b32.xlu0 %v658, 80
        %v662 = vpop.permute.xlu0 %661
        %665 = vst.msk [vmem:[%s370 + $0x7] sm:$0x1] %vm529, %v660
        %666 = vst.msk [vmem:[%s370 + $0xf] sm:$0x1] %vm529, %v662
        %v667 = vld [vmem:[%s6] sm:$0x3]
        %v668 = vmax.f32 %v667, %v484
        %669 = vst.msk [vmem:[%s6] sm:$0x3] %vm486, %v668
        %v670 = vld [vmem:[%s7] sm:$0x3]
        %v671 = vmax.f32 %v670, %v621
        %672 = vst.msk [vmem:[%s7] sm:$0x3] %vm486, %v671
        %v673 = vld [vmem:[%s332 + $0x1] sm:$0x1]
        %v674 = vld [vmem:[%s332 + $0x9] sm:$0x1]
        %v675 = vld [vmem:[#allocation2] sm:$0x3]
        %v676 = vld [vmem:[#allocation3] sm:$0x3]
        %v677 = vpack.c.bf16 %v675, %v675
        %v680 = vrot.slane %v674, 7
        %v681 = vsel %vm407, %v680, %v673
        %v684 = vsel %vm410, %v677, 0
        %686 = vmatprep.subr.bf16.mxu0 0
        %687 = vmatpush1.bf16.msra.mxu0 %v402
        %688 = vmatprep.subr.bf16.mxu0 0
        %689 = vmatpush1.bf16.msra.mxu0 0
        %690 = vmatprep.subr.bf16.mxu0 0
        %691 = vmatpush1.bf16.msra.mxu0 0
        %692 = vmatprep.subr.bf16.mxu0 0
        %693 = vmatpush1.bf16.msra.mxu0 0
        %694 = vmatprep.subr.bf16.mxu0 0
        %695 = vmatpush1.bf16.msra.mxu0 0
        %696 = vmatprep.subr.bf16.mxu0 0
        %697 = vmatpush1.bf16.msra.mxu0 0
        %698 = vmatprep.subr.bf16.mxu0 0
        %699 = vmatpush1.bf16.msra.mxu0 0
        %700 = vmatprep.subr.bf16.mxu0 0
        %701 = vmatpush1.bf16.msra.mxu0 0
        %702 = vmatprep.subr.bf16.mxu0 0
        %703 = vmatpush1.bf16.msra.mxu0 0
        %704 = vmatprep.subr.bf16.mxu0 0
        %705 = vmatpush1.bf16.msra.mxu0 0
        %706 = vmatprep.subr.bf16.mxu0 0
        %707 = vmatpush1.bf16.msra.mxu0 0
        %708 = vmatprep.subr.bf16.mxu0 0
        %709 = vmatpush1.bf16.msra.mxu0 0
        %710 = vmatprep.subr.bf16.mxu0 0
        %711 = vmatpush1.bf16.msra.mxu0 0
        %712 = vmatprep.subr.bf16.mxu0 0
        %713 = vmatpush1.bf16.msra.mxu0 0
        %714 = vmatprep.subr.bf16.mxu0 0
        %715 = vmatpush1.bf16.msra.mxu0 0
        %716 = vmatprep.subr.bf16.mxu0 0
        %717 = vmatpush1.bf16.msra.mxu0 0
        %718 = vmatprep.mubr.bf16.mxu0 0
        %719 = vmatmul.mubr.bf16.gmra.mrb[0].mxu0 %v684
        %v720 = vpop.f32.mrb[0].mxu0
        %v721 = vadd.f32 %v681, %v720
        %v722 = vpop.f32.mrb[0].mxu0
        %v723 = vpop.f32.mrb[0].mxu0
        %v724 = vpop.f32.mrb[0].mxu0
        %725 = vdwg.mxu0
        %v726 = vxor.u32 %v721, 2147483648
        %v727 = vmul.f32 %v726, 1.442695
        %v728 = vpow.pop %v727
        %v729 = vadd.f32 %v728, 1.0
        %v730 = vrcp.pop %v729
        %v731 = vmul.f32 1.0, %v730
        %v732 = vtanh.pop %v721
        %734 = vrot.lane.b32.xlu0 %v676, 16
        %v735 = vpop.permute.xlu0 %734
        %v737 = vmul.f32 %v731, %v735
        %739 = vrot.lane.b32.xlu0 %v732, 96
        %v740 = vpop.permute.xlu0 %739
        %v742 = vmul.f32 %v731, %v740
        %744 = vrot.lane.b32.xlu0 %v742, 16
        %v745 = vpop.permute.xlu0 %744
        %v747 = vadd.f32 %v737, %v745
        %v748 = vtanh.pop %v747
        %750 = vrot.lane.b32.xlu0 %v748, 32
        %v751 = vpop.permute.xlu0 %750
        %v753 = vmul.f32 %v731, %v751
        %755 = vrot.lane.b32.xlu0 %v753, 80
        %v756 = vpop.permute.xlu0 %755
        %758 = vst.msk [vmem:[#allocation2] sm:$0x3] %vm486, %v756
        %760 = vrot.lane.b32.xlu0 %v747, 112
        %v761 = vpop.permute.xlu0 %760
        %763 = vst.msk [vmem:[#allocation3] sm:$0x3] %vm486, %v761
        %v765 = vunpack.c.l.s4 1966171168
        %v766 = vunpack.c.0.s8 %v765
        %v767 = vlaneseq
        %v768 = vshrl.u32 %v767, 7
        %v769 = vsub.s32 %v766, %v768
        %v770 = vrot.slane %v753, %v769
        %v771 = vcombine.high %v770, %v770
        %v773 = vunpack.c.l.s4 1966171168
        %v774 = vunpack.c.0.s8 %v773
        %v775 = vlaneseq
        %v776 = vshrl.u32 %v775, 7
        %v777 = vsub.s32 %v774, %v776
        %v778 = vrot.slane %v770, %v777
        %v780 = vunpack.c.l.s4 1966171168
        %v781 = vunpack.c.0.s8 %v780
        %v782 = vlaneseq
        %v783 = vshrl.u32 %v782, 7
        %v784 = vsub.s32 %v781, %v783
        %v785 = vrot.slane %v771, %v784
        %v786 = vlaneseq
        %v787 = vshrl.u32 %v786, 7
        %v788 = vsub.s32 0, %v787
        %v789 = vrot.slane %v778, %v788
        %v790 = vlaneseq
        %v791 = vshrl.u32 %v790, 7
        %v792 = vsub.s32 0, %v791
        %v793 = vrot.slane %v785, %v792
        %794 = vrot.lane.b32.xlu0 %v789, 80
        %v795 = vpop.permute.xlu0 %794
        %796 = vrot.lane.b32.xlu0 %v793, 80
        %v797 = vpop.permute.xlu0 %796
        %800 = vst.msk [vmem:[%s364 + $0x1] sm:$0x1] %vm529, %v795
        %801 = vst.msk [vmem:[%s364 + $0x9] sm:$0x1] %vm529, %v797
        %v802 = vld [vmem:[%s339 + $0x6] sm:$0x1]
        %v803 = vld [vmem:[%s339 + $0xe] sm:$0x1]
        %v804 = vld [vmem:[#allocation4] sm:$0x3]
        %v805 = vld [vmem:[#allocation5] sm:$0x3]
        %v806 = vpack.c.bf16 %v804, %v804
        %v809 = vrot.slane %v803, 7
        %v810 = vsel %vm407, %v809, %v802
        %v813 = vsel %vm410, %v806, 0
        %815 = vmatprep.subr.bf16.mxu0 0
        %816 = vmatpush1.bf16.msra.mxu0 %v541
        %817 = vmatprep.subr.bf16.mxu0 0
        %818 = vmatpush1.bf16.msra.mxu0 0
        %819 = vmatprep.subr.bf16.mxu0 0
        %820 = vmatpush1.bf16.msra.mxu0 0
        %821 = vmatprep.subr.bf16.mxu0 0
        %822 = vmatpush1.bf16.msra.mxu0 0
        %823 = vmatprep.subr.bf16.mxu0 0
        %824 = vmatpush1.bf16.msra.mxu0 0
        %825 = vmatprep.subr.bf16.mxu0 0
        %826 = vmatpush1.bf16.msra.mxu0 0
        %827 = vmatprep.subr.bf16.mxu0 0
        %828 = vmatpush1.bf16.msra.mxu0 0
        %829 = vmatprep.subr.bf16.mxu0 0
        %830 = vmatpush1.bf16.msra.mxu0 0
        %831 = vmatprep.subr.bf16.mxu0 0
        %832 = vmatpush1.bf16.msra.mxu0 0
        %833 = vmatprep.subr.bf16.mxu0 0
        %834 = vmatpush1.bf16.msra.mxu0 0
        %835 = vmatprep.subr.bf16.mxu0 0
        %836 = vmatpush1.bf16.msra.mxu0 0
        %837 = vmatprep.subr.bf16.mxu0 0
        %838 = vmatpush1.bf16.msra.mxu0 0
        %839 = vmatprep.subr.bf16.mxu0 0
        %840 = vmatpush1.bf16.msra.mxu0 0
        %841 = vmatprep.subr.bf16.mxu0 0
        %842 = vmatpush1.bf16.msra.mxu0 0
        %843 = vmatprep.subr.bf16.mxu0 0
        %844 = vmatpush1.bf16.msra.mxu0 0
        %845 = vmatprep.subr.bf16.mxu0 0
        %846 = vmatpush1.bf16.msra.mxu0 0
        %847 = vmatprep.mubr.bf16.mxu0 0
        %848 = vmatmul.mubr.bf16.gmra.mrb[0].mxu0 %v813
        %v849 = vpop.f32.mrb[0].mxu0
        %v850 = vadd.f32 %v810, %v849
        %v851 = vpop.f32.mrb[0].mxu0
        %v852 = vpop.f32.mrb[0].mxu0
        %v853 = vpop.f32.mrb[0].mxu0
        %854 = vdwg.mxu0
        %v855 = vxor.u32 %v850, 2147483648
        %v856 = vmul.f32 %v855, 1.442695
        %v857 = vpow.pop %v856
        %v858 = vadd.f32 %v857, 1.0
        %v859 = vrcp.pop %v858
        %v860 = vmul.f32 1.0, %v859
        %v861 = vtanh.pop %v850
        %863 = vrot.lane.b32.xlu0 %v805, 16
        %v864 = vpop.permute.xlu0 %863
        %v866 = vmul.f32 %v860, %v864
        %868 = vrot.lane.b32.xlu0 %v861, 96
        %v869 = vpop.permute.xlu0 %868
        %v871 = vmul.f32 %v860, %v869
        %873 = vrot.lane.b32.xlu0 %v871, 16
        %v874 = vpop.permute.xlu0 %873
        %v876 = vadd.f32 %v866, %v874
        %v877 = vtanh.pop %v876
        %879 = vrot.lane.b32.xlu0 %v877, 32
        %v880 = vpop.permute.xlu0 %879
        %v882 = vmul.f32 %v860, %v880
        %884 = vrot.lane.b32.xlu0 %v882, 80
        %v885 = vpop.permute.xlu0 %884
        %887 = vst.msk [vmem:[#allocation4] sm:$0x3] %vm486, %v885
        %889 = vrot.lane.b32.xlu0 %v876, 112
        %v890 = vpop.permute.xlu0 %889
        %892 = vst.msk [vmem:[#allocation5] sm:$0x3] %vm486, %v890
        %v894 = vunpack.c.l.s4 1966171168
        %v895 = vunpack.c.0.s8 %v894
        %v896 = vlaneseq
        %v897 = vshrl.u32 %v896, 7
        %v898 = vsub.s32 %v895, %v897
        %v899 = vrot.slane %v882, %v898
        %v900 = vcombine.high %v899, %v899
        %v902 = vunpack.c.l.s4 1966171168
        %v903 = vunpack.c.0.s8 %v902
        %v904 = vlaneseq
        %v905 = vshrl.u32 %v904, 7
        %v906 = vsub.s32 %v903, %v905
        %v907 = vrot.slane %v899, %v906
        %v909 = vunpack.c.l.s4 1966171168
        %v910 = vunpack.c.0.s8 %v909
        %v911 = vlaneseq
        %v912 = vshrl.u32 %v911, 7
        %v913 = vsub.s32 %v910, %v912
        %v914 = vrot.slane %v900, %v913
        %v915 = vlaneseq
        %v916 = vshrl.u32 %v915, 7
        %v917 = vsub.s32 0, %v916
        %v918 = vrot.slane %v907, %v917
        %v919 = vlaneseq
        %v920 = vshrl.u32 %v919, 7
        %v921 = vsub.s32 0, %v920
        %v922 = vrot.slane %v914, %v921
        %923 = vrot.lane.b32.xlu0 %v918, 80
        %v924 = vpop.permute.xlu0 %923
        %925 = vrot.lane.b32.xlu0 %v922, 80
        %v926 = vpop.permute.xlu0 %925
        %929 = vst.msk [vmem:[%s370 + $0x6] sm:$0x1] %vm529, %v924
        %930 = vst.msk [vmem:[%s370 + $0xe] sm:$0x1] %vm529, %v926
        %v931 = vld [vmem:[%s6] sm:$0x3]
        %v932 = vmax.f32 %v931, %v756
        %933 = vst.msk [vmem:[%s6] sm:$0x3] %vm486, %v932
        %v934 = vld [vmem:[%s7] sm:$0x3]
        %v935 = vmax.f32 %v934, %v885
        %936 = vst.msk [vmem:[%s7] sm:$0x3] %vm486, %v935
        %v937 = vld [vmem:[%s332 + $0x2] sm:$0x1]
        %v938 = vld [vmem:[%s332 + $0xa] sm:$0x1]
        %v939 = vld [vmem:[#allocation2] sm:$0x3]
        %v940 = vld [vmem:[#allocation3] sm:$0x3]
        %v941 = vpack.c.bf16 %v939, %v939
        %v944 = vrot.slane %v938, 7
        %v945 = vsel %vm407, %v944, %v937
        %v948 = vsel %vm410, %v941, 0
        %950 = vmatprep.subr.bf16.mxu0 0
        %951 = vmatpush1.bf16.msra.mxu0 %v402
        %952 = vmatprep.subr.bf16.mxu0 0
        %953 = vmatpush1.bf16.msra.mxu0 0
        %954 = vmatprep.subr.bf16.mxu0 0
        %955 = vmatpush1.bf16.msra.mxu0 0
        %956 = vmatprep.subr.bf16.mxu0 0
        %957 = vmatpush1.bf16.msra.mxu0 0
        %958 = vmatprep.subr.bf16.mxu0 0
        %959 = vmatpush1.bf16.msra.mxu0 0
        %960 = vmatprep.subr.bf16.mxu0 0
        %961 = vmatpush1.bf16.msra.mxu0 0
        %962 = vmatprep.subr.bf16.mxu0 0
        %963 = vmatpush1.bf16.msra.mxu0 0
        %964 = vmatprep.subr.bf16.mxu0 0
        %965 = vmatpush1.bf16.msra.mxu0 0
        %966 = vmatprep.subr.bf16.mxu0 0
        %967 = vmatpush1.bf16.msra.mxu0 0
        %968 = vmatprep.subr.bf16.mxu0 0
        %969 = vmatpush1.bf16.msra.mxu0 0
        %970 = vmatprep.subr.bf16.mxu0 0
        %971 = vmatpush1.bf16.msra.mxu0 0
        %972 = vmatprep.subr.bf16.mxu0 0
        %973 = vmatpush1.bf16.msra.mxu0 0
        %974 = vmatprep.subr.bf16.mxu0 0
        %975 = vmatpush1.bf16.msra.mxu0 0
        %976 = vmatprep.subr.bf16.mxu0 0
        %977 = vmatpush1.bf16.msra.mxu0 0
        %978 = vmatprep.subr.bf16.mxu0 0
        %979 = vmatpush1.bf16.msra.mxu0 0
        %980 = vmatprep.subr.bf16.mxu0 0
        %981 = vmatpush1.bf16.msra.mxu0 0
        %982 = vmatprep.mubr.bf16.mxu0 0
        %983 = vmatmul.mubr.bf16.gmra.mrb[0].mxu0 %v948
        %v984 = vpop.f32.mrb[0].mxu0
        %v985 = vadd.f32 %v945, %v984
        %v986 = vpop.f32.mrb[0].mxu0
        %v987 = vpop.f32.mrb[0].mxu0
        %v988 = vpop.f32.mrb[0].mxu0
        %989 = vdwg.mxu0
        %v990 = vxor.u32 %v985, 2147483648
        %v991 = vmul.f32 %v990, 1.442695
        %v992 = vpow.pop %v991
        %v993 = vadd.f32 %v992, 1.0
        %v994 = vrcp.pop %v993
        %v995 = vmul.f32 1.0, %v994
        %v996 = vtanh.pop %v985
        %998 = vrot.lane.b32.xlu0 %v940, 16
        %v999 = vpop.permute.xlu0 %998
        %v1001 = vmul.f32 %v995, %v999
        %1003 = vrot.lane.b32.xlu0 %v996, 96
        %v1004 = vpop.permute.xlu0 %1003
        %v1006 = vmul.f32 %v995, %v1004
        %1008 = vrot.lane.b32.xlu0 %v1006, 16
        %v1009 = vpop.permute.xlu0 %1008
        %v1011 = vadd.f32 %v1001, %v1009
        %v1012 = vtanh.pop %v1011
        %1014 = vrot.lane.b32.xlu0 %v1012, 32
        %v1015 = vpop.permute.xlu0 %1014
        %v1017 = vmul.f32 %v995, %v1015
        %1019 = vrot.lane.b32.xlu0 %v1017, 80
        %v1020 = vpop.permute.xlu0 %1019
        %1022 = vst.msk [vmem:[#allocation2] sm:$0x3] %vm486, %v1020
        %1024 = vrot.lane.b32.xlu0 %v1011, 112
        %v1025 = vpop.permute.xlu0 %1024
        %1027 = vst.msk [vmem:[#allocation3] sm:$0x3] %vm486, %v1025
        %v1029 = vunpack.c.l.s4 1966171168
        %v1030 = vunpack.c.0.s8 %v1029
        %v1031 = vlaneseq
        %v1032 = vshrl.u32 %v1031, 7
        %v1033 = vsub.s32 %v1030, %v1032
        %v1034 = vrot.slane %v1017, %v1033
        %v1035 = vcombine.high %v1034, %v1034
        %v1037 = vunpack.c.l.s4 1966171168
        %v1038 = vunpack.c.0.s8 %v1037
        %v1039 = vlaneseq
        %v1040 = vshrl.u32 %v1039, 7
        %v1041 = vsub.s32 %v1038, %v1040
        %v1042 = vrot.slane %v1034, %v1041
        %v1044 = vunpack.c.l.s4 1966171168
        %v1045 = vunpack.c.0.s8 %v1044
        %v1046 = vlaneseq
        %v1047 = vshrl.u32 %v1046, 7
        %v1048 = vsub.s32 %v1045, %v1047
        %v1049 = vrot.slane %v1035, %v1048
        %v1050 = vlaneseq
        %v1051 = vshrl.u32 %v1050, 7
        %v1052 = vsub.s32 0, %v1051
        %v1053 = vrot.slane %v1042, %v1052
        %v1054 = vlaneseq
        %v1055 = vshrl.u32 %v1054, 7
        %v1056 = vsub.s32 0, %v1055
        %v1057 = vrot.slane %v1049, %v1056
        %1058 = vrot.lane.b32.xlu0 %v1053, 80
        %v1059 = vpop.permute.xlu0 %1058
        %1060 = vrot.lane.b32.xlu0 %v1057, 80
        %v1061 = vpop.permute.xlu0 %1060
        %1064 = vst.msk [vmem:[%s364 + $0x2] sm:$0x1] %vm529, %v1059
        %1065 = vst.msk [vmem:[%s364 + $0xa] sm:$0x1] %vm529, %v1061
        %v1066 = vld [vmem:[%s339 + $0x5] sm:$0x1]
        %v1067 = vld [vmem:[%s339 + $0xd] sm:$0x1]
        %v1068 = vld [vmem:[#allocation4] sm:$0x3]
        %v1069 = vld [vmem:[#allocation5] sm:$0x3]
        %v1070 = vpack.c.bf16 %v1068, %v1068
        %v1073 = vrot.slane %v1067, 7
        %v1074 = vsel %vm407, %v1073, %v1066
        %v1077 = vsel %vm410, %v1070, 0
        %1079 = vmatprep.subr.bf16.mxu0 0
        %1080 = vmatpush1.bf16.msra.mxu0 %v541
        %1081 = vmatprep.subr.bf16.mxu0 0
        %1082 = vmatpush1.bf16.msra.mxu0 0
        %1083 = vmatprep.subr.bf16.mxu0 0
        %1084 = vmatpush1.bf16.msra.mxu0 0
        %1085 = vmatprep.subr.bf16.mxu0 0
        %1086 = vmatpush1.bf16.msra.mxu0 0
        %1087 = vmatprep.subr.bf16.mxu0 0
        %1088 = vmatpush1.bf16.msra.mxu0 0
        %1089 = vmatprep.subr.bf16.mxu0 0
        %1090 = vmatpush1.bf16.msra.mxu0 0
        %1091 = vmatprep.subr.bf16.mxu0 0
        %1092 = vmatpush1.bf16.msra.mxu0 0
        %1093 = vmatprep.subr.bf16.mxu0 0
        %1094 = vmatpush1.bf16.msra.mxu0 0
        %1095 = vmatprep.subr.bf16.mxu0 0
        %1096 = vmatpush1.bf16.msra.mxu0 0
        %1097 = vmatprep.subr.bf16.mxu0 0
        %1098 = vmatpush1.bf16.msra.mxu0 0
        %1099 = vmatprep.subr.bf16.mxu0 0
        %1100 = vmatpush1.bf16.msra.mxu0 0
        %1101 = vmatprep.subr.bf16.mxu0 0
        %1102 = vmatpush1.bf16.msra.mxu0 0
        %1103 = vmatprep.subr.bf16.mxu0 0
        %1104 = vmatpush1.bf16.msra.mxu0 0
        %1105 = vmatprep.subr.bf16.mxu0 0
        %1106 = vmatpush1.bf16.msra.mxu0 0
        %1107 = vmatprep.subr.bf16.mxu0 0
        %1108 = vmatpush1.bf16.msra.mxu0 0
        %1109 = vmatprep.subr.bf16.mxu0 0
        %1110 = vmatpush1.bf16.msra.mxu0 0
        %1111 = vmatprep.mubr.bf16.mxu0 0
        %1112 = vmatmul.mubr.bf16.gmra.mrb[0].mxu0 %v1077
        %v1113 = vpop.f32.mrb[0].mxu0
        %v1114 = vadd.f32 %v1074, %v1113
        %v1115 = vpop.f32.mrb[0].mxu0
        %v1116 = vpop.f32.mrb[0].mxu0
        %v1117 = vpop.f32.mrb[0].mxu0
        %1118 = vdwg.mxu0
        %v1119 = vxor.u32 %v1114, 2147483648
        %v1120 = vmul.f32 %v1119, 1.442695
        %v1121 = vpow.pop %v1120
        %v1122 = vadd.f32 %v1121, 1.0
        %v1123 = vrcp.pop %v1122
        %v1124 = vmul.f32 1.0, %v1123
        %v1125 = vtanh.pop %v1114
        %1127 = vrot.lane.b32.xlu0 %v1069, 16
        %v1128 = vpop.permute.xlu0 %1127
        %v1130 = vmul.f32 %v1124, %v1128
        %1132 = vrot.lane.b32.xlu0 %v1125, 96
        %v1133 = vpop.permute.xlu0 %1132
        %v1135 = vmul.f32 %v1124, %v1133
        %1137 = vrot.lane.b32.xlu0 %v1135, 16
        %v1138 = vpop.permute.xlu0 %1137
        %v1140 = vadd.f32 %v1130, %v1138
        %v1141 = vtanh.pop %v1140
        %1143 = vrot.lane.b32.xlu0 %v1141, 32
        %v1144 = vpop.permute.xlu0 %1143
        %v1146 = vmul.f32 %v1124, %v1144
        %1148 = vrot.lane.b32.xlu0 %v1146, 80
        %v1149 = vpop.permute.xlu0 %1148
        %1151 = vst.msk [vmem:[#allocation4] sm:$0x3] %vm486, %v1149
        %1153 = vrot.lane.b32.xlu0 %v1140, 112
        %v1154 = vpop.permute.xlu0 %1153
        %1156 = vst.msk [vmem:[#allocation5] sm:$0x3] %vm486, %v1154
        %v1158 = vunpack.c.l.s4 1966171168
        %v1159 = vunpack.c.0.s8 %v1158
        %v1160 = vlaneseq
        %v1161 = vshrl.u32 %v1160, 7
        %v1162 = vsub.s32 %v1159, %v1161
        %v1163 = vrot.slane %v1146, %v1162
        %v1164 = vcombine.high %v1163, %v1163
        %v1166 = vunpack.c.l.s4 1966171168
        %v1167 = vunpack.c.0.s8 %v1166
        %v1168 = vlaneseq
        %v1169 = vshrl.u32 %v1168, 7
        %v1170 = vsub.s32 %v1167, %v1169
        %v1171 = vrot.slane %v1163, %v1170
        %v1173 = vunpack.c.l.s4 1966171168
        %v1174 = vunpack.c.0.s8 %v1173
        %v1175 = vlaneseq
        %v1176 = vshrl.u32 %v1175, 7
        %v1177 = vsub.s32 %v1174, %v1176
        %v1178 = vrot.slane %v1164, %v1177
        %v1179 = vlaneseq
        %v1180 = vshrl.u32 %v1179, 7
        %v1181 = vsub.s32 0, %v1180
        %v1182 = vrot.slane %v1171, %v1181
        %v1183 = vlaneseq
        %v1184 = vshrl.u32 %v1183, 7
        %v1185 = vsub.s32 0, %v1184
        %v1186 = vrot.slane %v1178, %v1185
        %1187 = vrot.lane.b32.xlu0 %v1182, 80
        %v1188 = vpop.permute.xlu0 %1187
        %1189 = vrot.lane.b32.xlu0 %v1186, 80
        %v1190 = vpop.permute.xlu0 %1189
        %1193 = vst.msk [vmem:[%s370 + $0x5] sm:$0x1] %vm529, %v1188
        %1194 = vst.msk [vmem:[%s370 + $0xd] sm:$0x1] %vm529, %v1190
        %v1195 = vld [vmem:[%s6] sm:$0x3]
        %v1196 = vmax.f32 %v1195, %v1020
        %1197 = vst.msk [vmem:[%s6] sm:$0x3] %vm486, %v1196
        %v1198 = vld [vmem:[%s7] sm:$0x3]
        %v1199 = vmax.f32 %v1198, %v1149
        %1200 = vst.msk [vmem:[%s7] sm:$0x3] %vm486, %v1199
        %v1201 = vld [vmem:[%s332 + $0x3] sm:$0x1]
        %v1202 = vld [vmem:[%s332 + $0xb] sm:$0x1]
        %v1203 = vld [vmem:[#allocation2] sm:$0x3]
        %v1204 = vld [vmem:[#allocation3] sm:$0x3]
        %v1205 = vpack.c.bf16 %v1203, %v1203
        %v1208 = vrot.slane %v1202, 7
        %v1209 = vsel %vm407, %v1208, %v1201
        %v1212 = vsel %vm410, %v1205, 0
        %1214 = vmatprep.subr.bf16.mxu0 0
        %1215 = vmatpush1.bf16.msra.mxu0 %v402
        %1216 = vmatprep.subr.bf16.mxu0 0
        %1217 = vmatpush1.bf16.msra.mxu0 0
        %1218 = vmatprep.subr.bf16.mxu0 0
        %1219 = vmatpush1.bf16.msra.mxu0 0
        %1220 = vmatprep.subr.bf16.mxu0 0
        %1221 = vmatpush1.bf16.msra.mxu0 0
        %1222 = vmatprep.subr.bf16.mxu0 0
        %1223 = vmatpush1.bf16.msra.mxu0 0
        %1224 = vmatprep.subr.bf16.mxu0 0
        %1225 = vmatpush1.bf16.msra.mxu0 0
        %1226 = vmatprep.subr.bf16.mxu0 0
        %1227 = vmatpush1.bf16.msra.mxu0 0
        %1228 = vmatprep.subr.bf16.mxu0 0
        %1229 = vmatpush1.bf16.msra.mxu0 0
        %1230 = vmatprep.subr.bf16.mxu0 0
        %1231 = vmatpush1.bf16.msra.mxu0 0
        %1232 = vmatprep.subr.bf16.mxu0 0
        %1233 = vmatpush1.bf16.msra.mxu0 0
        %1234 = vmatprep.subr.bf16.mxu0 0
        %1235 = vmatpush1.bf16.msra.mxu0 0
        %1236 = vmatprep.subr.bf16.mxu0 0
        %1237 = vmatpush1.bf16.msra.mxu0 0
        %1238 = vmatprep.subr.bf16.mxu0 0
        %1239 = vmatpush1.bf16.msra.mxu0 0
        %1240 = vmatprep.subr.bf16.mxu0 0
        %1241 = vmatpush1.bf16.msra.mxu0 0
        %1242 = vmatprep.subr.bf16.mxu0 0
        %1243 = vmatpush1.bf16.msra.mxu0 0
        %1244 = vmatprep.subr.bf16.mxu0 0
        %1245 = vmatpush1.bf16.msra.mxu0 0
        %1246 = vmatprep.mubr.bf16.mxu0 0
        %1247 = vmatmul.mubr.bf16.gmra.mrb[0].mxu0 %v1212
        %v1248 = vpop.f32.mrb[0].mxu0
        %v1249 = vadd.f32 %v1209, %v1248
        %v1250 = vpop.f32.mrb[0].mxu0
        %v1251 = vpop.f32.mrb[0].mxu0
        %v1252 = vpop.f32.mrb[0].mxu0
        %1253 = vdwg.mxu0
        %v1254 = vxor.u32 %v1249, 2147483648
        %v1255 = vmul.f32 %v1254, 1.442695
        %v1256 = vpow.pop %v1255
        %v1257 = vadd.f32 %v1256, 1.0
        %v1258 = vrcp.pop %v1257
        %v1259 = vmul.f32 1.0, %v1258
        %v1260 = vtanh.pop %v1249
        %1262 = vrot.lane.b32.xlu0 %v1204, 16
        %v1263 = vpop.permute.xlu0 %1262
        %v1265 = vmul.f32 %v1259, %v1263
        %1267 = vrot.lane.b32.xlu0 %v1260, 96
        %v1268 = vpop.permute.xlu0 %1267
        %v1270 = vmul.f32 %v1259, %v1268
        %1272 = vrot.lane.b32.xlu0 %v1270, 16
        %v1273 = vpop.permute.xlu0 %1272
        %v1275 = vadd.f32 %v1265, %v1273
        %v1276 = vtanh.pop %v1275
        %1278 = vrot.lane.b32.xlu0 %v1276, 32
        %v1279 = vpop.permute.xlu0 %1278
        %v1281 = vmul.f32 %v1259, %v1279
        %1283 = vrot.lane.b32.xlu0 %v1281, 80
        %v1284 = vpop.permute.xlu0 %1283
        %1286 = vst.msk [vmem:[#allocation2] sm:$0x3] %vm486, %v1284
        %1288 = vrot.lane.b32.xlu0 %v1275, 112
        %v1289 = vpop.permute.xlu0 %1288
        %1291 = vst.msk [vmem:[#allocation3] sm:$0x3] %vm486, %v1289
        %v1293 = vunpack.c.l.s4 1966171168
        %v1294 = vunpack.c.0.s8 %v1293
        %v1295 = vlaneseq
        %v1296 = vshrl.u32 %v1295, 7
        %v1297 = vsub.s32 %v1294, %v1296
        %v1298 = vrot.slane %v1281, %v1297
        %v1299 = vcombine.high %v1298, %v1298
        %v1301 = vunpack.c.l.s4 1966171168
        %v1302 = vunpack.c.0.s8 %v1301
        %v1303 = vlaneseq
        %v1304 = vshrl.u32 %v1303, 7
        %v1305 = vsub.s32 %v1302, %v1304
        %v1306 = vrot.slane %v1298, %v1305
        %v1308 = vunpack.c.l.s4 1966171168
        %v1309 = vunpack.c.0.s8 %v1308
        %v1310 = vlaneseq
        %v1311 = vshrl.u32 %v1310, 7
        %v1312 = vsub.s32 %v1309, %v1311
        %v1313 = vrot.slane %v1299, %v1312
        %v1314 = vlaneseq
        %v1315 = vshrl.u32 %v1314, 7
        %v1316 = vsub.s32 0, %v1315
        %v1317 = vrot.slane %v1306, %v1316
        %v1318 = vlaneseq
        %v1319 = vshrl.u32 %v1318, 7
        %v1320 = vsub.s32 0, %v1319
        %v1321 = vrot.slane %v1313, %v1320
        %1322 = vrot.lane.b32.xlu0 %v1317, 80
        %v1323 = vpop.permute.xlu0 %1322
        %1324 = vrot.lane.b32.xlu0 %v1321, 80
        %v1325 = vpop.permute.xlu0 %1324
        %1328 = vst.msk [vmem:[%s364 + $0x3] sm:$0x1] %vm529, %v1323
        %1329 = vst.msk [vmem:[%s364 + $0xb] sm:$0x1] %vm529, %v1325
        %v1330 = vld [vmem:[%s339 + $0x4] sm:$0x1]
        %v1331 = vld [vmem:[%s339 + $0xc] sm:$0x1]
        %v1332 = vld [vmem:[#allocation4] sm:$0x3]
        %v1333 = vld [vmem:[#allocation5] sm:$0x3]
        %v1334 = vpack.c.bf16 %v1332, %v1332
        %v1337 = vrot.slane %v1331, 7
        %v1338 = vsel %vm407, %v1337, %v1330
        %v1341 = vsel %vm410, %v1334, 0
        %1343 = vmatprep.subr.bf16.mxu0 0
        %1344 = vmatpush1.bf16.msra.mxu0 %v541
        %1345 = vmatprep.subr.bf16.mxu0 0
        %1346 = vmatpush1.bf16.msra.mxu0 0
        %1347 = vmatprep.subr.bf16.mxu0 0
        %1348 = vmatpush1.bf16.msra.mxu0 0
        %1349 = vmatprep.subr.bf16.mxu0 0
        %1350 = vmatpush1.bf16.msra.mxu0 0
        %1351 = vmatprep.subr.bf16.mxu0 0
        %1352 = vmatpush1.bf16.msra.mxu0 0
        %1353 = vmatprep.subr.bf16.mxu0 0
        %1354 = vmatpush1.bf16.msra.mxu0 0
        %1355 = vmatprep.subr.bf16.mxu0 0
        %1356 = vmatpush1.bf16.msra.mxu0 0
        %1357 = vmatprep.subr.bf16.mxu0 0
        %1358 = vmatpush1.bf16.msra.mxu0 0
        %1359 = vmatprep.subr.bf16.mxu0 0
        %1360 = vmatpush1.bf16.msra.mxu0 0
        %1361 = vmatprep.subr.bf16.mxu0 0
        %1362 = vmatpush1.bf16.msra.mxu0 0
        %1363 = vmatprep.subr.bf16.mxu0 0
        %1364 = vmatpush1.bf16.msra.mxu0 0
        %1365 = vmatprep.subr.bf16.mxu0 0
        %1366 = vmatpush1.bf16.msra.mxu0 0
        %1367 = vmatprep.subr.bf16.mxu0 0
        %1368 = vmatpush1.bf16.msra.mxu0 0
        %1369 = vmatprep.subr.bf16.mxu0 0
        %1370 = vmatpush1.bf16.msra.mxu0 0
        %1371 = vmatprep.subr.bf16.mxu0 0
        %1372 = vmatpush1.bf16.msra.mxu0 0
        %1373 = vmatprep.subr.bf16.mxu0 0
        %1374 = vmatpush1.bf16.msra.mxu0 0
        %1375 = vmatprep.mubr.bf16.mxu0 0
        %1376 = vmatmul.mubr.bf16.gmra.mrb[0].mxu0 %v1341
        %v1377 = vpop.f32.mrb[0].mxu0
        %v1378 = vadd.f32 %v1338, %v1377
        %v1379 = vpop.f32.mrb[0].mxu0
        %v1380 = vpop.f32.mrb[0].mxu0
        %v1381 = vpop.f32.mrb[0].mxu0
        %1382 = vdwg.mxu0
        %v1383 = vxor.u32 %v1378, 2147483648
        %v1384 = vmul.f32 %v1383, 1.442695
        %v1385 = vpow.pop %v1384
        %v1386 = vadd.f32 %v1385, 1.0
        %v1387 = vrcp.pop %v1386
        %v1388 = vmul.f32 1.0, %v1387
        %v1389 = vtanh.pop %v1378
        %1391 = vrot.lane.b32.xlu0 %v1333, 16
        %v1392 = vpop.permute.xlu0 %1391
        %v1394 = vmul.f32 %v1388, %v1392
        %1396 = vrot.lane.b32.xlu0 %v1389, 96
        %v1397 = vpop.permute.xlu0 %1396
        %v1399 = vmul.f32 %v1388, %v1397
        %1401 = vrot.lane.b32.xlu0 %v1399, 16
        %v1402 = vpop.permute.xlu0 %1401
        %v1404 = vadd.f32 %v1394, %v1402
        %v1405 = vtanh.pop %v1404
        %1407 = vrot.lane.b32.xlu0 %v1405, 32
        %v1408 = vpop.permute.xlu0 %1407
        %v1410 = vmul.f32 %v1388, %v1408
        %1412 = vrot.lane.b32.xlu0 %v1410, 80
        %v1413 = vpop.permute.xlu0 %1412
        %1415 = vst.msk [vmem:[#allocation4] sm:$0x3] %vm486, %v1413
        %1417 = vrot.lane.b32.xlu0 %v1404, 112
        %v1418 = vpop.permute.xlu0 %1417
        %1420 = vst.msk [vmem:[#allocation5] sm:$0x3] %vm486, %v1418
        %v1422 = vunpack.c.l.s4 1966171168
        %v1423 = vunpack.c.0.s8 %v1422
        %v1424 = vlaneseq
        %v1425 = vshrl.u32 %v1424, 7
        %v1426 = vsub.s32 %v1423, %v1425
        %v1427 = vrot.slane %v1410, %v1426
        %v1428 = vcombine.high %v1427, %v1427
        %v1430 = vunpack.c.l.s4 1966171168
        %v1431 = vunpack.c.0.s8 %v1430
        %v1432 = vlaneseq
        %v1433 = vshrl.u32 %v1432, 7
        %v1434 = vsub.s32 %v1431, %v1433
        %v1435 = vrot.slane %v1427, %v1434
        %v1437 = vunpack.c.l.s4 1966171168
        %v1438 = vunpack.c.0.s8 %v1437
        %v1439 = vlaneseq
        %v1440 = vshrl.u32 %v1439, 7
        %v1441 = vsub.s32 %v1438, %v1440
        %v1442 = vrot.slane %v1428, %v1441
        %v1443 = vlaneseq
        %v1444 = vshrl.u32 %v1443, 7
        %v1445 = vsub.s32 0, %v1444
        %v1446 = vrot.slane %v1435, %v1445
        %v1447 = vlaneseq
        %v1448 = vshrl.u32 %v1447, 7
        %v1449 = vsub.s32 0, %v1448
        %v1450 = vrot.slane %v1442, %v1449
        %1451 = vrot.lane.b32.xlu0 %v1446, 80
        %v1452 = vpop.permute.xlu0 %1451
        %1453 = vrot.lane.b32.xlu0 %v1450, 80
        %v1454 = vpop.permute.xlu0 %1453
        %1457 = vst.msk [vmem:[%s370 + $0x4] sm:$0x1] %vm529, %v1452
        %1458 = vst.msk [vmem:[%s370 + $0xc] sm:$0x1] %vm529, %v1454
        %v1459 = vld [vmem:[%s6] sm:$0x3]
        %v1460 = vmax.f32 %v1459, %v1284
        %1461 = vst.msk [vmem:[%s6] sm:$0x3] %vm486, %v1460
        %v1462 = vld [vmem:[%s7] sm:$0x3]
        %v1463 = vmax.f32 %v1462, %v1413
        %1464 = vst.msk [vmem:[%s7] sm:$0x3] %vm486, %v1463
        %v1465 = vld [vmem:[%s332 + $0x4] sm:$0x1]
        %v1466 = vld [vmem:[%s332 + $0xc] sm:$0x1]
        %v1467 = vld [vmem:[#allocation2] sm:$0x3]
        %v1468 = vld [vmem:[#allocation3] sm:$0x3]
        %v1469 = vpack.c.bf16 %v1467, %v1467
        %v1472 = vrot.slane %v1466, 7
        %v1473 = vsel %vm407, %v1472, %v1465
        %v1476 = vsel %vm410, %v1469, 0
        %1478 = vmatprep.subr.bf16.mxu0 0
        %1479 = vmatpush1.bf16.msra.mxu0 %v402
        %1480 = vmatprep.subr.bf16.mxu0 0
        %1481 = vmatpush1.bf16.msra.mxu0 0
        %1482 = vmatprep.subr.bf16.mxu0 0
        %1483 = vmatpush1.bf16.msra.mxu0 0
        %1484 = vmatprep.subr.bf16.mxu0 0
        %1485 = vmatpush1.bf16.msra.mxu0 0
        %1486 = vmatprep.subr.bf16.mxu0 0
        %1487 = vmatpush1.bf16.msra.mxu0 0
        %1488 = vmatprep.subr.bf16.mxu0 0
        %1489 = vmatpush1.bf16.msra.mxu0 0
        %1490 = vmatprep.subr.bf16.mxu0 0
        %1491 = vmatpush1.bf16.msra.mxu0 0
        %1492 = vmatprep.subr.bf16.mxu0 0
        %1493 = vmatpush1.bf16.msra.mxu0 0
        %1494 = vmatprep.subr.bf16.mxu0 0
        %1495 = vmatpush1.bf16.msra.mxu0 0
        %1496 = vmatprep.subr.bf16.mxu0 0
        %1497 = vmatpush1.bf16.msra.mxu0 0
        %1498 = vmatprep.subr.bf16.mxu0 0
        %1499 = vmatpush1.bf16.msra.mxu0 0
        %1500 = vmatprep.subr.bf16.mxu0 0
        %1501 = vmatpush1.bf16.msra.mxu0 0
        %1502 = vmatprep.subr.bf16.mxu0 0
        %1503 = vmatpush1.bf16.msra.mxu0 0
        %1504 = vmatprep.subr.bf16.mxu0 0
        %1505 = vmatpush1.bf16.msra.mxu0 0
        %1506 = vmatprep.subr.bf16.mxu0 0
        %1507 = vmatpush1.bf16.msra.mxu0 0
        %1508 = vmatprep.subr.bf16.mxu0 0
        %1509 = vmatpush1.bf16.msra.mxu0 0
        %1510 = vmatprep.mubr.bf16.mxu0 0
        %1511 = vmatmul.mubr.bf16.gmra.mrb[0].mxu0 %v1476
        %v1512 = vpop.f32.mrb[0].mxu0
        %v1513 = vadd.f32 %v1473, %v1512
        %v1514 = vpop.f32.mrb[0].mxu0
        %v1515 = vpop.f32.mrb[0].mxu0
        %v1516 = vpop.f32.mrb[0].mxu0
        %1517 = vdwg.mxu0
        %v1518 = vxor.u32 %v1513, 2147483648
        %v1519 = vmul.f32 %v1518, 1.442695
        %v1520 = vpow.pop %v1519
        %v1521 = vadd.f32 %v1520, 1.0
        %v1522 = vrcp.pop %v1521
        %v1523 = vmul.f32 1.0, %v1522
        %v1524 = vtanh.pop %v1513
        %1526 = vrot.lane.b32.xlu0 %v1468, 16
        %v1527 = vpop.permute.xlu0 %1526
        %v1529 = vmul.f32 %v1523, %v1527
        %1531 = vrot.lane.b32.xlu0 %v1524, 96
        %v1532 = vpop.permute.xlu0 %1531
        %v1534 = vmul.f32 %v1523, %v1532
        %1536 = vrot.lane.b32.xlu0 %v1534, 16
        %v1537 = vpop.permute.xlu0 %1536
        %v1539 = vadd.f32 %v1529, %v1537
        %v1540 = vtanh.pop %v1539
        %1542 = vrot.lane.b32.xlu0 %v1540, 32
        %v1543 = vpop.permute.xlu0 %1542
        %v1545 = vmul.f32 %v1523, %v1543
        %1547 = vrot.lane.b32.xlu0 %v1545, 80
        %v1548 = vpop.permute.xlu0 %1547
        %1550 = vst.msk [vmem:[#allocation2] sm:$0x3] %vm486, %v1548
        %1552 = vrot.lane.b32.xlu0 %v1539, 112
        %v1553 = vpop.permute.xlu0 %1552
        %1555 = vst.msk [vmem:[#allocation3] sm:$0x3] %vm486, %v1553
        %v1557 = vunpack.c.l.s4 1966171168
        %v1558 = vunpack.c.0.s8 %v1557
        %v1559 = vlaneseq
        %v1560 = vshrl.u32 %v1559, 7
        %v1561 = vsub.s32 %v1558, %v1560
        %v1562 = vrot.slane %v1545, %v1561
        %v1563 = vcombine.high %v1562, %v1562
        %v1565 = vunpack.c.l.s4 1966171168
        %v1566 = vunpack.c.0.s8 %v1565
        %v1567 = vlaneseq
        %v1568 = vshrl.u32 %v1567, 7
        %v1569 = vsub.s32 %v1566, %v1568
        %v1570 = vrot.slane %v1562, %v1569
        %v1572 = vunpack.c.l.s4 1966171168
        %v1573 = vunpack.c.0.s8 %v1572
        %v1574 = vlaneseq
        %v1575 = vshrl.u32 %v1574, 7
        %v1576 = vsub.s32 %v1573, %v1575
        %v1577 = vrot.slane %v1563, %v1576
        %v1578 = vlaneseq
        %v1579 = vshrl.u32 %v1578, 7
        %v1580 = vsub.s32 0, %v1579
        %v1581 = vrot.slane %v1570, %v1580
        %v1582 = vlaneseq
        %v1583 = vshrl.u32 %v1582, 7
        %v1584 = vsub.s32 0, %v1583
        %v1585 = vrot.slane %v1577, %v1584
        %1586 = vrot.lane.b32.xlu0 %v1581, 80
        %v1587 = vpop.permute.xlu0 %1586
        %1588 = vrot.lane.b32.xlu0 %v1585, 80
        %v1589 = vpop.permute.xlu0 %1588
        %1592 = vst.msk [vmem:[%s364 + $0x4] sm:$0x1] %vm529, %v1587
        %1593 = vst.msk [vmem:[%s364 + $0xc] sm:$0x1] %vm529, %v1589
        %v1594 = vld [vmem:[%s339 + $0x3] sm:$0x1]
        %v1595 = vld [vmem:[%s339 + $0xb] sm:$0x1]
        %v1596 = vld [vmem:[#allocation4] sm:$0x3]
        %v1597 = vld [vmem:[#allocation5] sm:$0x3]
        %v1598 = vpack.c.bf16 %v1596, %v1596
        %v1601 = vrot.slane %v1595, 7
        %v1602 = vsel %vm407, %v1601, %v1594
        %v1605 = vsel %vm410, %v1598, 0
        %1607 = vmatprep.subr.bf16.mxu0 0
        %1608 = vmatpush1.bf16.msra.mxu0 %v541
        %1609 = vmatprep.subr.bf16.mxu0 0
        %1610 = vmatpush1.bf16.msra.mxu0 0
        %1611 = vmatprep.subr.bf16.mxu0 0
        %1612 = vmatpush1.bf16.msra.mxu0 0
        %1613 = vmatprep.subr.bf16.mxu0 0
        %1614 = vmatpush1.bf16.msra.mxu0 0
        %1615 = vmatprep.subr.bf16.mxu0 0
        %1616 = vmatpush1.bf16.msra.mxu0 0
        %1617 = vmatprep.subr.bf16.mxu0 0
        %1618 = vmatpush1.bf16.msra.mxu0 0
        %1619 = vmatprep.subr.bf16.mxu0 0
        %1620 = vmatpush1.bf16.msra.mxu0 0
        %1621 = vmatprep.subr.bf16.mxu0 0
        %1622 = vmatpush1.bf16.msra.mxu0 0
        %1623 = vmatprep.subr.bf16.mxu0 0
        %1624 = vmatpush1.bf16.msra.mxu0 0
        %1625 = vmatprep.subr.bf16.mxu0 0
        %1626 = vmatpush1.bf16.msra.mxu0 0
        %1627 = vmatprep.subr.bf16.mxu0 0
        %1628 = vmatpush1.bf16.msra.mxu0 0
        %1629 = vmatprep.subr.bf16.mxu0 0
        %1630 = vmatpush1.bf16.msra.mxu0 0
        %1631 = vmatprep.subr.bf16.mxu0 0
        %1632 = vmatpush1.bf16.msra.mxu0 0
        %1633 = vmatprep.subr.bf16.mxu0 0
        %1634 = vmatpush1.bf16.msra.mxu0 0
        %1635 = vmatprep.subr.bf16.mxu0 0
        %1636 = vmatpush1.bf16.msra.mxu0 0
        %1637 = vmatprep.subr.bf16.mxu0 0
        %1638 = vmatpush1.bf16.msra.mxu0 0
        %1639 = vmatprep.mubr.bf16.mxu0 0
        %1640 = vmatmul.mubr.bf16.gmra.mrb[0].mxu0 %v1605
        %v1641 = vpop.f32.mrb[0].mxu0
        %v1642 = vadd.f32 %v1602, %v1641
        %v1643 = vpop.f32.mrb[0].mxu0
        %v1644 = vpop.f32.mrb[0].mxu0
        %v1645 = vpop.f32.mrb[0].mxu0
        %1646 = vdwg.mxu0
        %v1647 = vxor.u32 %v1642, 2147483648
        %v1648 = vmul.f32 %v1647, 1.442695
        %v1649 = vpow.pop %v1648
        %v1650 = vadd.f32 %v1649, 1.0
        %v1651 = vrcp.pop %v1650
        %v1652 = vmul.f32 1.0, %v1651
        %v1653 = vtanh.pop %v1642
        %1655 = vrot.lane.b32.xlu0 %v1597, 16
        %v1656 = vpop.permute.xlu0 %1655
        %v1658 = vmul.f32 %v1652, %v1656
        %1660 = vrot.lane.b32.xlu0 %v1653, 96
        %v1661 = vpop.permute.xlu0 %1660
        %v1663 = vmul.f32 %v1652, %v1661
        %1665 = vrot.lane.b32.xlu0 %v1663, 16
        %v1666 = vpop.permute.xlu0 %1665
        %v1668 = vadd.f32 %v1658, %v1666
        %v1669 = vtanh.pop %v1668
        %1671 = vrot.lane.b32.xlu0 %v1669, 32
        %v1672 = vpop.permute.xlu0 %1671
        %v1674 = vmul.f32 %v1652, %v1672
        %1676 = vrot.lane.b32.xlu0 %v1674, 80
        %v1677 = vpop.permute.xlu0 %1676
        %1679 = vst.msk [vmem:[#allocation4] sm:$0x3] %vm486, %v1677
        %1681 = vrot.lane.b32.xlu0 %v1668, 112
        %v1682 = vpop.permute.xlu0 %1681
        %1684 = vst.msk [vmem:[#allocation5] sm:$0x3] %vm486, %v1682
        %v1686 = vunpack.c.l.s4 1966171168
        %v1687 = vunpack.c.0.s8 %v1686
        %v1688 = vlaneseq
        %v1689 = vshrl.u32 %v1688, 7
        %v1690 = vsub.s32 %v1687, %v1689
        %v1691 = vrot.slane %v1674, %v1690
        %v1692 = vcombine.high %v1691, %v1691
        %v1694 = vunpack.c.l.s4 1966171168
        %v1695 = vunpack.c.0.s8 %v1694
        %v1696 = vlaneseq
        %v1697 = vshrl.u32 %v1696, 7
        %v1698 = vsub.s32 %v1695, %v1697
        %v1699 = vrot.slane %v1691, %v1698
        %v1701 = vunpack.c.l.s4 1966171168
        %v1702 = vunpack.c.0.s8 %v1701
        %v1703 = vlaneseq
        %v1704 = vshrl.u32 %v1703, 7
        %v1705 = vsub.s32 %v1702, %v1704
        %v1706 = vrot.slane %v1692, %v1705
        %v1707 = vlaneseq
        %v1708 = vshrl.u32 %v1707, 7
        %v1709 = vsub.s32 0, %v1708
        %v1710 = vrot.slane %v1699, %v1709
        %v1711 = vlaneseq
        %v1712 = vshrl.u32 %v1711, 7
        %v1713 = vsub.s32 0, %v1712
        %v1714 = vrot.slane %v1706, %v1713
        %1715 = vrot.lane.b32.xlu0 %v1710, 80
        %v1716 = vpop.permute.xlu0 %1715
        %1717 = vrot.lane.b32.xlu0 %v1714, 80
        %v1718 = vpop.permute.xlu0 %1717
        %1721 = vst.msk [vmem:[%s370 + $0x3] sm:$0x1] %vm529, %v1716
        %1722 = vst.msk [vmem:[%s370 + $0xb] sm:$0x1] %vm529, %v1718
        %v1723 = vld [vmem:[%s6] sm:$0x3]
        %v1724 = vmax.f32 %v1723, %v1548
        %1725 = vst.msk [vmem:[%s6] sm:$0x3] %vm486, %v1724
        %v1726 = vld [vmem:[%s7] sm:$0x3]
        %v1727 = vmax.f32 %v1726, %v1677
        %1728 = vst.msk [vmem:[%s7] sm:$0x3] %vm486, %v1727
        %v1729 = vld [vmem:[%s332 + $0x5] sm:$0x1]
        %v1730 = vld [vmem:[%s332 + $0xd] sm:$0x1]
        %v1731 = vld [vmem:[#allocation2] sm:$0x3]
        %v1732 = vld [vmem:[#allocation3] sm:$0x3]
        %v1733 = vpack.c.bf16 %v1731, %v1731
        %v1736 = vrot.slane %v1730, 7
        %v1737 = vsel %vm407, %v1736, %v1729
        %v1740 = vsel %vm410, %v1733, 0
        %1742 = vmatprep.subr.bf16.mxu0 0
        %1743 = vmatpush1.bf16.msra.mxu0 %v402
        %1744 = vmatprep.subr.bf16.mxu0 0
        %1745 = vmatpush1.bf16.msra.mxu0 0
        %1746 = vmatprep.subr.bf16.mxu0 0
        %1747 = vmatpush1.bf16.msra.mxu0 0
        %1748 = vmatprep.subr.bf16.mxu0 0
        %1749 = vmatpush1.bf16.msra.mxu0 0
        %1750 = vmatprep.subr.bf16.mxu0 0
        %1751 = vmatpush1.bf16.msra.mxu0 0
        %1752 = vmatprep.subr.bf16.mxu0 0
        %1753 = vmatpush1.bf16.msra.mxu0 0
        %1754 = vmatprep.subr.bf16.mxu0 0
        %1755 = vmatpush1.bf16.msra.mxu0 0
        %1756 = vmatprep.subr.bf16.mxu0 0
        %1757 = vmatpush1.bf16.msra.mxu0 0
        %1758 = vmatprep.subr.bf16.mxu0 0
        %1759 = vmatpush1.bf16.msra.mxu0 0
        %1760 = vmatprep.subr.bf16.mxu0 0
        %1761 = vmatpush1.bf16.msra.mxu0 0
        %1762 = vmatprep.subr.bf16.mxu0 0
        %1763 = vmatpush1.bf16.msra.mxu0 0
        %1764 = vmatprep.subr.bf16.mxu0 0
        %1765 = vmatpush1.bf16.msra.mxu0 0
        %1766 = vmatprep.subr.bf16.mxu0 0
        %1767 = vmatpush1.bf16.msra.mxu0 0
        %1768 = vmatprep.subr.bf16.mxu0 0
        %1769 = vmatpush1.bf16.msra.mxu0 0
        %1770 = vmatprep.subr.bf16.mxu0 0
        %1771 = vmatpush1.bf16.msra.mxu0 0
        %1772 = vmatprep.subr.bf16.mxu0 0
        %1773 = vmatpush1.bf16.msra.mxu0 0
        %1774 = vmatprep.mubr.bf16.mxu0 0
        %1775 = vmatmul.mubr.bf16.gmra.mrb[0].mxu0 %v1740
        %v1776 = vpop.f32.mrb[0].mxu0
        %v1777 = vadd.f32 %v1737, %v1776
        %v1778 = vpop.f32.mrb[0].mxu0
        %v1779 = vpop.f32.mrb[0].mxu0
        %v1780 = vpop.f32.mrb[0].mxu0
        %1781 = vdwg.mxu0
        %v1782 = vxor.u32 %v1777, 2147483648
        %v1783 = vmul.f32 %v1782, 1.442695
        %v1784 = vpow.pop %v1783
        %v1785 = vadd.f32 %v1784, 1.0
        %v1786 = vrcp.pop %v1785
        %v1787 = vmul.f32 1.0, %v1786
        %v1788 = vtanh.pop %v1777
        %1790 = vrot.lane.b32.xlu0 %v1732, 16
        %v1791 = vpop.permute.xlu0 %1790
        %v1793 = vmul.f32 %v1787, %v1791
        %1795 = vrot.lane.b32.xlu0 %v1788, 96
        %v1796 = vpop.permute.xlu0 %1795
        %v1798 = vmul.f32 %v1787, %v1796
        %1800 = vrot.lane.b32.xlu0 %v1798, 16
        %v1801 = vpop.permute.xlu0 %1800
        %v1803 = vadd.f32 %v1793, %v1801
        %v1804 = vtanh.pop %v1803
        %1806 = vrot.lane.b32.xlu0 %v1804, 32
        %v1807 = vpop.permute.xlu0 %1806
        %v1809 = vmul.f32 %v1787, %v1807
        %1811 = vrot.lane.b32.xlu0 %v1809, 80
        %v1812 = vpop.permute.xlu0 %1811
        %1814 = vst.msk [vmem:[#allocation2] sm:$0x3] %vm486, %v1812
        %1816 = vrot.lane.b32.xlu0 %v1803, 112
        %v1817 = vpop.permute.xlu0 %1816
        %1819 = vst.msk [vmem:[#allocation3] sm:$0x3] %vm486, %v1817
        %v1821 = vunpack.c.l.s4 1966171168
        %v1822 = vunpack.c.0.s8 %v1821
        %v1823 = vlaneseq
        %v1824 = vshrl.u32 %v1823, 7
        %v1825 = vsub.s32 %v1822, %v1824
        %v1826 = vrot.slane %v1809, %v1825
        %v1827 = vcombine.high %v1826, %v1826
        %v1829 = vunpack.c.l.s4 1966171168
        %v1830 = vunpack.c.0.s8 %v1829
        %v1831 = vlaneseq
        %v1832 = vshrl.u32 %v1831, 7
        %v1833 = vsub.s32 %v1830, %v1832
        %v1834 = vrot.slane %v1826, %v1833
        %v1836 = vunpack.c.l.s4 1966171168
        %v1837 = vunpack.c.0.s8 %v1836
        %v1838 = vlaneseq
        %v1839 = vshrl.u32 %v1838, 7
        %v1840 = vsub.s32 %v1837, %v1839
        %v1841 = vrot.slane %v1827, %v1840
        %v1842 = vlaneseq
        %v1843 = vshrl.u32 %v1842, 7
        %v1844 = vsub.s32 0, %v1843
        %v1845 = vrot.slane %v1834, %v1844
        %v1846 = vlaneseq
        %v1847 = vshrl.u32 %v1846, 7
        %v1848 = vsub.s32 0, %v1847
        %v1849 = vrot.slane %v1841, %v1848
        %1850 = vrot.lane.b32.xlu0 %v1845, 80
        %v1851 = vpop.permute.xlu0 %1850
        %1852 = vrot.lane.b32.xlu0 %v1849, 80
        %v1853 = vpop.permute.xlu0 %1852
        %1856 = vst.msk [vmem:[%s364 + $0x5] sm:$0x1] %vm529, %v1851
        %1857 = vst.msk [vmem:[%s364 + $0xd] sm:$0x1] %vm529, %v1853
        %v1858 = vld [vmem:[%s339 + $0x2] sm:$0x1]
        %v1859 = vld [vmem:[%s339 + $0xa] sm:$0x1]
        %v1860 = vld [vmem:[#allocation4] sm:$0x3]
        %v1861 = vld [vmem:[#allocation5] sm:$0x3]
        %v1862 = vpack.c.bf16 %v1860, %v1860
        %v1865 = vrot.slane %v1859, 7
        %v1866 = vsel %vm407, %v1865, %v1858
        %v1869 = vsel %vm410, %v1862, 0
        %1871 = vmatprep.subr.bf16.mxu0 0
        %1872 = vmatpush1.bf16.msra.mxu0 %v541
        %1873 = vmatprep.subr.bf16.mxu0 0
        %1874 = vmatpush1.bf16.msra.mxu0 0
        %1875 = vmatprep.subr.bf16.mxu0 0
        %1876 = vmatpush1.bf16.msra.mxu0 0
        %1877 = vmatprep.subr.bf16.mxu0 0
        %1878 = vmatpush1.bf16.msra.mxu0 0
        %1879 = vmatprep.subr.bf16.mxu0 0
        %1880 = vmatpush1.bf16.msra.mxu0 0
        %1881 = vmatprep.subr.bf16.mxu0 0
        %1882 = vmatpush1.bf16.msra.mxu0 0
        %1883 = vmatprep.subr.bf16.mxu0 0
        %1884 = vmatpush1.bf16.msra.mxu0 0
        %1885 = vmatprep.subr.bf16.mxu0 0
        %1886 = vmatpush1.bf16.msra.mxu0 0
        %1887 = vmatprep.subr.bf16.mxu0 0
        %1888 = vmatpush1.bf16.msra.mxu0 0
        %1889 = vmatprep.subr.bf16.mxu0 0
        %1890 = vmatpush1.bf16.msra.mxu0 0
        %1891 = vmatprep.subr.bf16.mxu0 0
        %1892 = vmatpush1.bf16.msra.mxu0 0
        %1893 = vmatprep.subr.bf16.mxu0 0
        %1894 = vmatpush1.bf16.msra.mxu0 0
        %1895 = vmatprep.subr.bf16.mxu0 0
        %1896 = vmatpush1.bf16.msra.mxu0 0
        %1897 = vmatprep.subr.bf16.mxu0 0
        %1898 = vmatpush1.bf16.msra.mxu0 0
        %1899 = vmatprep.subr.bf16.mxu0 0
        %1900 = vmatpush1.bf16.msra.mxu0 0
        %1901 = vmatprep.subr.bf16.mxu0 0
        %1902 = vmatpush1.bf16.msra.mxu0 0
        %1903 = vmatprep.mubr.bf16.mxu0 0
        %1904 = vmatmul.mubr.bf16.gmra.mrb[0].mxu0 %v1869
        %v1905 = vpop.f32.mrb[0].mxu0
        %v1906 = vadd.f32 %v1866, %v1905
        %v1907 = vpop.f32.mrb[0].mxu0
        %v1908 = vpop.f32.mrb[0].mxu0
        %v1909 = vpop.f32.mrb[0].mxu0
        %1910 = vdwg.mxu0
        %v1911 = vxor.u32 %v1906, 2147483648
        %v1912 = vmul.f32 %v1911, 1.442695
        %v1913 = vpow.pop %v1912
        %v1914 = vadd.f32 %v1913, 1.0
        %v1915 = vrcp.pop %v1914
        %v1916 = vmul.f32 1.0, %v1915
        %v1917 = vtanh.pop %v1906
        %1919 = vrot.lane.b32.xlu0 %v1861, 16
        %v1920 = vpop.permute.xlu0 %1919
        %v1922 = vmul.f32 %v1916, %v1920
        %1924 = vrot.lane.b32.xlu0 %v1917, 96
        %v1925 = vpop.permute.xlu0 %1924
        %v1927 = vmul.f32 %v1916, %v1925
        %1929 = vrot.lane.b32.xlu0 %v1927, 16
        %v1930 = vpop.permute.xlu0 %1929
        %v1932 = vadd.f32 %v1922, %v1930
        %v1933 = vtanh.pop %v1932
        %1935 = vrot.lane.b32.xlu0 %v1933, 32
        %v1936 = vpop.permute.xlu0 %1935
        %v1938 = vmul.f32 %v1916, %v1936
        %1940 = vrot.lane.b32.xlu0 %v1938, 80
        %v1941 = vpop.permute.xlu0 %1940
        %1943 = vst.msk [vmem:[#allocation4] sm:$0x3] %vm486, %v1941
        %1945 = vrot.lane.b32.xlu0 %v1932, 112
        %v1946 = vpop.permute.xlu0 %1945
        %1948 = vst.msk [vmem:[#allocation5] sm:$0x3] %vm486, %v1946
        %v1950 = vunpack.c.l.s4 1966171168
        %v1951 = vunpack.c.0.s8 %v1950
        %v1952 = vlaneseq
        %v1953 = vshrl.u32 %v1952, 7
        %v1954 = vsub.s32 %v1951, %v1953
        %v1955 = vrot.slane %v1938, %v1954
        %v1956 = vcombine.high %v1955, %v1955
        %v1958 = vunpack.c.l.s4 1966171168
        %v1959 = vunpack.c.0.s8 %v1958
        %v1960 = vlaneseq
        %v1961 = vshrl.u32 %v1960, 7
        %v1962 = vsub.s32 %v1959, %v1961
        %v1963 = vrot.slane %v1955, %v1962
        %v1965 = vunpack.c.l.s4 1966171168
        %v1966 = vunpack.c.0.s8 %v1965
        %v1967 = vlaneseq
        %v1968 = vshrl.u32 %v1967, 7
        %v1969 = vsub.s32 %v1966, %v1968
        %v1970 = vrot.slane %v1956, %v1969
        %v1971 = vlaneseq
        %v1972 = vshrl.u32 %v1971, 7
        %v1973 = vsub.s32 0, %v1972
        %v1974 = vrot.slane %v1963, %v1973
        %v1975 = vlaneseq
        %v1976 = vshrl.u32 %v1975, 7
        %v1977 = vsub.s32 0, %v1976
        %v1978 = vrot.slane %v1970, %v1977
        %1979 = vrot.lane.b32.xlu0 %v1974, 80
        %v1980 = vpop.permute.xlu0 %1979
        %1981 = vrot.lane.b32.xlu0 %v1978, 80
        %v1982 = vpop.permute.xlu0 %1981
        %1985 = vst.msk [vmem:[%s370 + $0x2] sm:$0x1] %vm529, %v1980
        %1986 = vst.msk [vmem:[%s370 + $0xa] sm:$0x1] %vm529, %v1982
        %v1987 = vld [vmem:[%s6] sm:$0x3]
        %v1988 = vmax.f32 %v1987, %v1812
        %1989 = vst.msk [vmem:[%s6] sm:$0x3] %vm486, %v1988
        %v1990 = vld [vmem:[%s7] sm:$0x3]
        %v1991 = vmax.f32 %v1990, %v1941
        %1992 = vst.msk [vmem:[%s7] sm:$0x3] %vm486, %v1991
        %v1993 = vld [vmem:[%s332 + $0x6] sm:$0x1]
        %v1994 = vld [vmem:[%s332 + $0xe] sm:$0x1]
        %v1995 = vld [vmem:[#allocation2] sm:$0x3]
        %v1996 = vld [vmem:[#allocation3] sm:$0x3]
        %v1997 = vpack.c.bf16 %v1995, %v1995
        %v2000 = vrot.slane %v1994, 7
        %v2001 = vsel %vm407, %v2000, %v1993
        %v2004 = vsel %vm410, %v1997, 0
        %2006 = vmatprep.subr.bf16.mxu0 0
        %2007 = vmatpush1.bf16.msra.mxu0 %v402
        %2008 = vmatprep.subr.bf16.mxu0 0
        %2009 = vmatpush1.bf16.msra.mxu0 0
        %2010 = vmatprep.subr.bf16.mxu0 0
        %2011 = vmatpush1.bf16.msra.mxu0 0
        %2012 = vmatprep.subr.bf16.mxu0 0
        %2013 = vmatpush1.bf16.msra.mxu0 0
        %2014 = vmatprep.subr.bf16.mxu0 0
        %2015 = vmatpush1.bf16.msra.mxu0 0
        %2016 = vmatprep.subr.bf16.mxu0 0
        %2017 = vmatpush1.bf16.msra.mxu0 0
        %2018 = vmatprep.subr.bf16.mxu0 0
        %2019 = vmatpush1.bf16.msra.mxu0 0
        %2020 = vmatprep.subr.bf16.mxu0 0
        %2021 = vmatpush1.bf16.msra.mxu0 0
        %2022 = vmatprep.subr.bf16.mxu0 0
        %2023 = vmatpush1.bf16.msra.mxu0 0
        %2024 = vmatprep.subr.bf16.mxu0 0
        %2025 = vmatpush1.bf16.msra.mxu0 0
        %2026 = vmatprep.subr.bf16.mxu0 0
        %2027 = vmatpush1.bf16.msra.mxu0 0
        %2028 = vmatprep.subr.bf16.mxu0 0
        %2029 = vmatpush1.bf16.msra.mxu0 0
        %2030 = vmatprep.subr.bf16.mxu0 0
        %2031 = vmatpush1.bf16.msra.mxu0 0
        %2032 = vmatprep.subr.bf16.mxu0 0
        %2033 = vmatpush1.bf16.msra.mxu0 0
        %2034 = vmatprep.subr.bf16.mxu0 0
        %2035 = vmatpush1.bf16.msra.mxu0 0
        %2036 = vmatprep.subr.bf16.mxu0 0
        %2037 = vmatpush1.bf16.msra.mxu0 0
        %2038 = vmatprep.mubr.bf16.mxu0 0
        %2039 = vmatmul.mubr.bf16.gmra.mrb[0].mxu0 %v2004
        %v2040 = vpop.f32.mrb[0].mxu0
        %v2041 = vadd.f32 %v2001, %v2040
        %v2042 = vpop.f32.mrb[0].mxu0
        %v2043 = vpop.f32.mrb[0].mxu0
        %v2044 = vpop.f32.mrb[0].mxu0
        %2045 = vdwg.mxu0
        %v2046 = vxor.u32 %v2041, 2147483648
        %v2047 = vmul.f32 %v2046, 1.442695
        %v2048 = vpow.pop %v2047
        %v2049 = vadd.f32 %v2048, 1.0
        %v2050 = vrcp.pop %v2049
        %v2051 = vmul.f32 1.0, %v2050
        %v2052 = vtanh.pop %v2041
        %2054 = vrot.lane.b32.xlu0 %v1996, 16
        %v2055 = vpop.permute.xlu0 %2054
        %v2057 = vmul.f32 %v2051, %v2055
        %2059 = vrot.lane.b32.xlu0 %v2052, 96
        %v2060 = vpop.permute.xlu0 %2059
        %v2062 = vmul.f32 %v2051, %v2060
        %2064 = vrot.lane.b32.xlu0 %v2062, 16
        %v2065 = vpop.permute.xlu0 %2064
        %v2067 = vadd.f32 %v2057, %v2065
        %v2068 = vtanh.pop %v2067
        %2070 = vrot.lane.b32.xlu0 %v2068, 32
        %v2071 = vpop.permute.xlu0 %2070
        %v2073 = vmul.f32 %v2051, %v2071
        %2075 = vrot.lane.b32.xlu0 %v2073, 80
        %v2076 = vpop.permute.xlu0 %2075
        %2078 = vst.msk [vmem:[#allocation2] sm:$0x3] %vm486, %v2076
        %2080 = vrot.lane.b32.xlu0 %v2067, 112
        %v2081 = vpop.permute.xlu0 %2080
        %2083 = vst.msk [vmem:[#allocation3] sm:$0x3] %vm486, %v2081
        %v2085 = vunpack.c.l.s4 1966171168
        %v2086 = vunpack.c.0.s8 %v2085
        %v2087 = vlaneseq
        %v2088 = vshrl.u32 %v2087, 7
        %v2089 = vsub.s32 %v2086, %v2088
        %v2090 = vrot.slane %v2073, %v2089
        %v2091 = vcombine.high %v2090, %v2090
        %v2093 = vunpack.c.l.s4 1966171168
        %v2094 = vunpack.c.0.s8 %v2093
        %v2095 = vlaneseq
        %v2096 = vshrl.u32 %v2095, 7
        %v2097 = vsub.s32 %v2094, %v2096
        %v2098 = vrot.slane %v2090, %v2097
        %v2100 = vunpack.c.l.s4 1966171168
        %v2101 = vunpack.c.0.s8 %v2100
        %v2102 = vlaneseq
        %v2103 = vshrl.u32 %v2102, 7
        %v2104 = vsub.s32 %v2101, %v2103
        %v2105 = vrot.slane %v2091, %v2104
        %v2106 = vlaneseq
        %v2107 = vshrl.u32 %v2106, 7
        %v2108 = vsub.s32 0, %v2107
        %v2109 = vrot.slane %v2098, %v2108
        %v2110 = vlaneseq
        %v2111 = vshrl.u32 %v2110, 7
        %v2112 = vsub.s32 0, %v2111
        %v2113 = vrot.slane %v2105, %v2112
        %2114 = vrot.lane.b32.xlu0 %v2109, 80
        %v2115 = vpop.permute.xlu0 %2114
        %2116 = vrot.lane.b32.xlu0 %v2113, 80
        %v2117 = vpop.permute.xlu0 %2116
        %2120 = vst.msk [vmem:[%s364 + $0x6] sm:$0x1] %vm529, %v2115
        %2121 = vst.msk [vmem:[%s364 + $0xe] sm:$0x1] %vm529, %v2117
        %v2122 = vld [vmem:[%s339 + $0x1] sm:$0x1]
        %v2123 = vld [vmem:[%s339 + $0x9] sm:$0x1]
        %v2124 = vld [vmem:[#allocation4] sm:$0x3]
        %v2125 = vld [vmem:[#allocation5] sm:$0x3]
        %v2126 = vpack.c.bf16 %v2124, %v2124
        %v2129 = vrot.slane %v2123, 7
        %v2130 = vsel %vm407, %v2129, %v2122
        %v2133 = vsel %vm410, %v2126, 0
        %2135 = vmatprep.subr.bf16.mxu0 0
        %2136 = vmatpush1.bf16.msra.mxu0 %v541
        %2137 = vmatprep.subr.bf16.mxu0 0
        %2138 = vmatpush1.bf16.msra.mxu0 0
        %2139 = vmatprep.subr.bf16.mxu0 0
        %2140 = vmatpush1.bf16.msra.mxu0 0
        %2141 = vmatprep.subr.bf16.mxu0 0
        %2142 = vmatpush1.bf16.msra.mxu0 0
        %2143 = vmatprep.subr.bf16.mxu0 0
        %2144 = vmatpush1.bf16.msra.mxu0 0
        %2145 = vmatprep.subr.bf16.mxu0 0
        %2146 = vmatpush1.bf16.msra.mxu0 0
        %2147 = vmatprep.subr.bf16.mxu0 0
        %2148 = vmatpush1.bf16.msra.mxu0 0
        %2149 = vmatprep.subr.bf16.mxu0 0
        %2150 = vmatpush1.bf16.msra.mxu0 0
        %2151 = vmatprep.subr.bf16.mxu0 0
        %2152 = vmatpush1.bf16.msra.mxu0 0
        %2153 = vmatprep.subr.bf16.mxu0 0
        %2154 = vmatpush1.bf16.msra.mxu0 0
        %2155 = vmatprep.subr.bf16.mxu0 0
        %2156 = vmatpush1.bf16.msra.mxu0 0
        %2157 = vmatprep.subr.bf16.mxu0 0
        %2158 = vmatpush1.bf16.msra.mxu0 0
        %2159 = vmatprep.subr.bf16.mxu0 0
        %2160 = vmatpush1.bf16.msra.mxu0 0
        %2161 = vmatprep.subr.bf16.mxu0 0
        %2162 = vmatpush1.bf16.msra.mxu0 0
        %2163 = vmatprep.subr.bf16.mxu0 0
        %2164 = vmatpush1.bf16.msra.mxu0 0
        %2165 = vmatprep.subr.bf16.mxu0 0
        %2166 = vmatpush1.bf16.msra.mxu0 0
        %2167 = vmatprep.mubr.bf16.mxu0 0
        %2168 = vmatmul.mubr.bf16.gmra.mrb[0].mxu0 %v2133
        %v2169 = vpop.f32.mrb[0].mxu0
        %v2170 = vadd.f32 %v2130, %v2169
        %v2171 = vpop.f32.mrb[0].mxu0
        %v2172 = vpop.f32.mrb[0].mxu0
        %v2173 = vpop.f32.mrb[0].mxu0
        %2174 = vdwg.mxu0
        %v2175 = vxor.u32 %v2170, 2147483648
        %v2176 = vmul.f32 %v2175, 1.442695
        %v2177 = vpow.pop %v2176
        %v2178 = vadd.f32 %v2177, 1.0
        %v2179 = vrcp.pop %v2178
        %v2180 = vmul.f32 1.0, %v2179
        %v2181 = vtanh.pop %v2170
        %2183 = vrot.lane.b32.xlu0 %v2125, 16
        %v2184 = vpop.permute.xlu0 %2183
        %v2186 = vmul.f32 %v2180, %v2184
        %2188 = vrot.lane.b32.xlu0 %v2181, 96
        %v2189 = vpop.permute.xlu0 %2188
        %v2191 = vmul.f32 %v2180, %v2189
        %2193 = vrot.lane.b32.xlu0 %v2191, 16
        %v2194 = vpop.permute.xlu0 %2193
        %v2196 = vadd.f32 %v2186, %v2194
        %v2197 = vtanh.pop %v2196
        %2199 = vrot.lane.b32.xlu0 %v2197, 32
        %v2200 = vpop.permute.xlu0 %2199
        %v2202 = vmul.f32 %v2180, %v2200
        %2204 = vrot.lane.b32.xlu0 %v2202, 80
        %v2205 = vpop.permute.xlu0 %2204
        %2207 = vst.msk [vmem:[#allocation4] sm:$0x3] %vm486, %v2205
        %2209 = vrot.lane.b32.xlu0 %v2196, 112
        %v2210 = vpop.permute.xlu0 %2209
        %2212 = vst.msk [vmem:[#allocation5] sm:$0x3] %vm486, %v2210
        %v2214 = vunpack.c.l.s4 1966171168
        %v2215 = vunpack.c.0.s8 %v2214
        %v2216 = vlaneseq
        %v2217 = vshrl.u32 %v2216, 7
        %v2218 = vsub.s32 %v2215, %v2217
        %v2219 = vrot.slane %v2202, %v2218
        %v2220 = vcombine.high %v2219, %v2219
        %v2222 = vunpack.c.l.s4 1966171168
        %v2223 = vunpack.c.0.s8 %v2222
        %v2224 = vlaneseq
        %v2225 = vshrl.u32 %v2224, 7
        %v2226 = vsub.s32 %v2223, %v2225
        %v2227 = vrot.slane %v2219, %v2226
        %v2229 = vunpack.c.l.s4 1966171168
        %v2230 = vunpack.c.0.s8 %v2229
        %v2231 = vlaneseq
        %v2232 = vshrl.u32 %v2231, 7
        %v2233 = vsub.s32 %v2230, %v2232
        %v2234 = vrot.slane %v2220, %v2233
        %v2235 = vlaneseq
        %v2236 = vshrl.u32 %v2235, 7
        %v2237 = vsub.s32 0, %v2236
        %v2238 = vrot.slane %v2227, %v2237
        %v2239 = vlaneseq
        %v2240 = vshrl.u32 %v2239, 7
        %v2241 = vsub.s32 0, %v2240
        %v2242 = vrot.slane %v2234, %v2241
        %2243 = vrot.lane.b32.xlu0 %v2238, 80
        %v2244 = vpop.permute.xlu0 %2243
        %2245 = vrot.lane.b32.xlu0 %v2242, 80
        %v2246 = vpop.permute.xlu0 %2245
        %2249 = vst.msk [vmem:[%s370 + $0x1] sm:$0x1] %vm529, %v2244
        %2250 = vst.msk [vmem:[%s370 + $0x9] sm:$0x1] %vm529, %v2246
        %v2251 = vld [vmem:[%s6] sm:$0x3]
        %v2252 = vmax.f32 %v2251, %v2076
        %2253 = vst.msk [vmem:[%s6] sm:$0x3] %vm486, %v2252
        %v2254 = vld [vmem:[%s7] sm:$0x3]
        %v2255 = vmax.f32 %v2254, %v2205
        %2256 = vst.msk [vmem:[%s7] sm:$0x3] %vm486, %v2255
        %v2257 = vld [vmem:[%s332 + $0x7] sm:$0x1]
        %v2258 = vld [vmem:[%s332 + $0xf] sm:$0x1]
        %v2259 = vld [vmem:[#allocation2] sm:$0x3]
        %v2260 = vld [vmem:[#allocation3] sm:$0x3]
        %v2261 = vpack.c.bf16 %v2259, %v2259
        %v2264 = vrot.slane %v2258, 7
        %v2265 = vsel %vm407, %v2264, %v2257
        %v2268 = vsel %vm410, %v2261, 0
        %2270 = vmatprep.subr.bf16.mxu0 0
        %2271 = vmatpush1.bf16.msra.mxu0 %v402
        %2272 = vmatprep.subr.bf16.mxu0 0
        %2273 = vmatpush1.bf16.msra.mxu0 0
        %2274 = vmatprep.subr.bf16.mxu0 0
        %2275 = vmatpush1.bf16.msra.mxu0 0
        %2276 = vmatprep.subr.bf16.mxu0 0
        %2277 = vmatpush1.bf16.msra.mxu0 0
        %2278 = vmatprep.subr.bf16.mxu0 0
        %2279 = vmatpush1.bf16.msra.mxu0 0
        %2280 = vmatprep.subr.bf16.mxu0 0
        %2281 = vmatpush1.bf16.msra.mxu0 0
        %2282 = vmatprep.subr.bf16.mxu0 0
        %2283 = vmatpush1.bf16.msra.mxu0 0
        %2284 = vmatprep.subr.bf16.mxu0 0
        %2285 = vmatpush1.bf16.msra.mxu0 0
        %2286 = vmatprep.subr.bf16.mxu0 0
        %2287 = vmatpush1.bf16.msra.mxu0 0
        %2288 = vmatprep.subr.bf16.mxu0 0
        %2289 = vmatpush1.bf16.msra.mxu0 0
        %2290 = vmatprep.subr.bf16.mxu0 0
        %2291 = vmatpush1.bf16.msra.mxu0 0
        %2292 = vmatprep.subr.bf16.mxu0 0
        %2293 = vmatpush1.bf16.msra.mxu0 0
        %2294 = vmatprep.subr.bf16.mxu0 0
        %2295 = vmatpush1.bf16.msra.mxu0 0
        %2296 = vmatprep.subr.bf16.mxu0 0
        %2297 = vmatpush1.bf16.msra.mxu0 0
        %2298 = vmatprep.subr.bf16.mxu0 0
        %2299 = vmatpush1.bf16.msra.mxu0 0
        %2300 = vmatprep.subr.bf16.mxu0 0
        %2301 = vmatpush1.bf16.msra.mxu0 0
        %2302 = vmatprep.mubr.bf16.mxu0 0
        %2303 = vmatmul.mubr.bf16.gmra.mrb[0].mxu0 %v2268
        %v2304 = vpop.f32.mrb[0].mxu0
        %v2305 = vadd.f32 %v2265, %v2304
        %v2306 = vpop.f32.mrb[0].mxu0
        %v2307 = vpop.f32.mrb[0].mxu0
        %v2308 = vpop.f32.mrb[0].mxu0
        %2309 = vdwg.mxu0
        %v2310 = vxor.u32 %v2305, 2147483648
        %v2311 = vmul.f32 %v2310, 1.442695
        %v2312 = vpow.pop %v2311
        %v2313 = vadd.f32 %v2312, 1.0
        %v2314 = vrcp.pop %v2313
        %v2315 = vmul.f32 1.0, %v2314
        %v2316 = vtanh.pop %v2305
        %2318 = vrot.lane.b32.xlu0 %v2260, 16
        %v2319 = vpop.permute.xlu0 %2318
        %v2321 = vmul.f32 %v2315, %v2319
        %2323 = vrot.lane.b32.xlu0 %v2316, 96
        %v2324 = vpop.permute.xlu0 %2323
        %v2326 = vmul.f32 %v2315, %v2324
        %2328 = vrot.lane.b32.xlu0 %v2326, 16
        %v2329 = vpop.permute.xlu0 %2328
        %v2331 = vadd.f32 %v2321, %v2329
        %v2332 = vtanh.pop %v2331
        %2334 = vrot.lane.b32.xlu0 %v2332, 32
        %v2335 = vpop.permute.xlu0 %2334
        %v2337 = vmul.f32 %v2315, %v2335
        %2339 = vrot.lane.b32.xlu0 %v2337, 80
        %v2340 = vpop.permute.xlu0 %2339
        %2342 = vst.msk [vmem:[#allocation2] sm:$0x3] %vm486, %v2340
        %2344 = vrot.lane.b32.xlu0 %v2331, 112
        %v2345 = vpop.permute.xlu0 %2344
        %2347 = vst.msk [vmem:[#allocation3] sm:$0x3] %vm486, %v2345
        %v2349 = vunpack.c.l.s4 1966171168
        %v2350 = vunpack.c.0.s8 %v2349
        %v2351 = vlaneseq
        %v2352 = vshrl.u32 %v2351, 7
        %v2353 = vsub.s32 %v2350, %v2352
        %v2354 = vrot.slane %v2337, %v2353
        %v2355 = vcombine.high %v2354, %v2354
        %v2357 = vunpack.c.l.s4 1966171168
        %v2358 = vunpack.c.0.s8 %v2357
        %v2359 = vlaneseq
        %v2360 = vshrl.u32 %v2359, 7
        %v2361 = vsub.s32 %v2358, %v2360
        %v2362 = vrot.slane %v2354, %v2361
        %v2364 = vunpack.c.l.s4 1966171168
        %v2365 = vunpack.c.0.s8 %v2364
        %v2366 = vlaneseq
        %v2367 = vshrl.u32 %v2366, 7
        %v2368 = vsub.s32 %v2365, %v2367
        %v2369 = vrot.slane %v2355, %v2368
        %v2370 = vlaneseq
        %v2371 = vshrl.u32 %v2370, 7
        %v2372 = vsub.s32 0, %v2371
        %v2373 = vrot.slane %v2362, %v2372
        %v2374 = vlaneseq
        %v2375 = vshrl.u32 %v2374, 7
        %v2376 = vsub.s32 0, %v2375
        %v2377 = vrot.slane %v2369, %v2376
        %2378 = vrot.lane.b32.xlu0 %v2373, 80
        %v2379 = vpop.permute.xlu0 %2378
        %2380 = vrot.lane.b32.xlu0 %v2377, 80
        %v2381 = vpop.permute.xlu0 %2380
        %2384 = vst.msk [vmem:[%s364 + $0x7] sm:$0x1] %vm529, %v2379
        %2385 = vst.msk [vmem:[%s364 + $0xf] sm:$0x1] %vm529, %v2381
        %v2386 = vld [vmem:[%s339] sm:$0x1]
        %v2387 = vld [vmem:[%s339 + $0x8] sm:$0x1]
        %v2388 = vld [vmem:[#allocation4] sm:$0x3]
        %v2389 = vld [vmem:[#allocation5] sm:$0x3]
        %v2390 = vpack.c.bf16 %v2388, %v2388
        %v2393 = vrot.slane %v2387, 7
        %v2394 = vsel %vm407, %v2393, %v2386
        %v2397 = vsel %vm410, %v2390, 0
        %2399 = vmatprep.subr.bf16.mxu0 0
        %2400 = vmatpush1.bf16.msra.mxu0 %v541
        %2401 = vmatprep.subr.bf16.mxu0 0
        %2402 = vmatpush1.bf16.msra.mxu0 0
        %2403 = vmatprep.subr.bf16.mxu0 0
        %2404 = vmatpush1.bf16.msra.mxu0 0
        %2405 = vmatprep.subr.bf16.mxu0 0
        %2406 = vmatpush1.bf16.msra.mxu0 0
        %2407 = vmatprep.subr.bf16.mxu0 0
        %2408 = vmatpush1.bf16.msra.mxu0 0
        %2409 = vmatprep.subr.bf16.mxu0 0
        %2410 = vmatpush1.bf16.msra.mxu0 0
        %2411 = vmatprep.subr.bf16.mxu0 0
        %2412 = vmatpush1.bf16.msra.mxu0 0
        %2413 = vmatprep.subr.bf16.mxu0 0
        %2414 = vmatpush1.bf16.msra.mxu0 0
        %2415 = vmatprep.subr.bf16.mxu0 0
        %2416 = vmatpush1.bf16.msra.mxu0 0
        %2417 = vmatprep.subr.bf16.mxu0 0
        %2418 = vmatpush1.bf16.msra.mxu0 0
        %2419 = vmatprep.subr.bf16.mxu0 0
        %2420 = vmatpush1.bf16.msra.mxu0 0
        %2421 = vmatprep.subr.bf16.mxu0 0
        %2422 = vmatpush1.bf16.msra.mxu0 0
        %2423 = vmatprep.subr.bf16.mxu0 0
        %2424 = vmatpush1.bf16.msra.mxu0 0
        %2425 = vmatprep.subr.bf16.mxu0 0
        %2426 = vmatpush1.bf16.msra.mxu0 0
        %2427 = vmatprep.subr.bf16.mxu0 0
        %2428 = vmatpush1.bf16.msra.mxu0 0
        %2429 = vmatprep.subr.bf16.mxu0 0
        %2430 = vmatpush1.bf16.msra.mxu0 0
        %2431 = vmatprep.mubr.bf16.mxu0 0
        %2432 = vmatmul.mubr.bf16.gmra.mrb[0].mxu0 %v2397
        %v2433 = vpop.f32.mrb[0].mxu0
        %v2434 = vadd.f32 %v2394, %v2433
        %v2435 = vpop.f32.mrb[0].mxu0
        %v2436 = vpop.f32.mrb[0].mxu0
        %v2437 = vpop.f32.mrb[0].mxu0
        %2438 = vdwg.mxu0
        %v2439 = vxor.u32 %v2434, 2147483648
        %v2440 = vmul.f32 %v2439, 1.442695
        %v2441 = vpow.pop %v2440
        %v2442 = vadd.f32 %v2441, 1.0
        %v2443 = vrcp.pop %v2442
        %v2444 = vmul.f32 1.0, %v2443
        %v2445 = vtanh.pop %v2434
        %2447 = vrot.lane.b32.xlu0 %v2389, 16
        %v2448 = vpop.permute.xlu0 %2447
        %v2450 = vmul.f32 %v2444, %v2448
        %2452 = vrot.lane.b32.xlu0 %v2445, 96
        %v2453 = vpop.permute.xlu0 %2452
        %v2455 = vmul.f32 %v2444, %v2453
        %2457 = vrot.lane.b32.xlu0 %v2455, 16
        %v2458 = vpop.permute.xlu0 %2457
        %v2460 = vadd.f32 %v2450, %v2458
        %v2461 = vtanh.pop %v2460
        %2463 = vrot.lane.b32.xlu0 %v2461, 32
        %v2464 = vpop.permute.xlu0 %2463
        %v2466 = vmul.f32 %v2444, %v2464
        %2468 = vrot.lane.b32.xlu0 %v2466, 80
        %v2469 = vpop.permute.xlu0 %2468
        %2471 = vst.msk [vmem:[#allocation4] sm:$0x3] %vm486, %v2469
        %2473 = vrot.lane.b32.xlu0 %v2460, 112
        %v2474 = vpop.permute.xlu0 %2473
        %2476 = vst.msk [vmem:[#allocation5] sm:$0x3] %vm486, %v2474
        %v2478 = vunpack.c.l.s4 1966171168
        %v2479 = vunpack.c.0.s8 %v2478
        %v2480 = vlaneseq
        %v2481 = vshrl.u32 %v2480, 7
        %v2482 = vsub.s32 %v2479, %v2481
        %v2483 = vrot.slane %v2466, %v2482
        %v2484 = vcombine.high %v2483, %v2483
        %v2486 = vunpack.c.l.s4 1966171168
        %v2487 = vunpack.c.0.s8 %v2486
        %v2488 = vlaneseq
        %v2489 = vshrl.u32 %v2488, 7
        %v2490 = vsub.s32 %v2487, %v2489
        %v2491 = vrot.slane %v2483, %v2490
        %v2493 = vunpack.c.l.s4 1966171168
        %v2494 = vunpack.c.0.s8 %v2493
        %v2495 = vlaneseq
        %v2496 = vshrl.u32 %v2495, 7
        %v2497 = vsub.s32 %v2494, %v2496
        %v2498 = vrot.slane %v2484, %v2497
        %v2499 = vlaneseq
        %v2500 = vshrl.u32 %v2499, 7
        %v2501 = vsub.s32 0, %v2500
        %v2502 = vrot.slane %v2491, %v2501
        %v2503 = vlaneseq
        %v2504 = vshrl.u32 %v2503, 7
        %v2505 = vsub.s32 0, %v2504
        %v2506 = vrot.slane %v2498, %v2505
        %2507 = vrot.lane.b32.xlu0 %v2502, 80
        %v2508 = vpop.permute.xlu0 %2507
        %2509 = vrot.lane.b32.xlu0 %v2506, 80
        %v2510 = vpop.permute.xlu0 %2509
        %2513 = vst.msk [vmem:[%s370] sm:$0x1] %vm529, %v2508
        %2514 = vst.msk [vmem:[%s370 + $0x8] sm:$0x1] %vm529, %v2510
        %v2515 = vld [vmem:[%s6] sm:$0x3]
        %v2516 = vmax.f32 %v2515, %v2340
        %2517 = vst.msk [vmem:[%s6] sm:$0x3] %vm486, %v2516
        %v2518 = vld [vmem:[%s7] sm:$0x3]
        %v2519 = vmax.f32 %v2518, %v2469
        %2520 = vst.msk [vmem:[%s7] sm:$0x3] %vm486, %v2519
        %s2521 = sand.u32 %s123, 1
        %s2522 = sand.u32 %s123, 1
        %s2523 = smul.addr %s2522, 16
        %s2524 = scalar_lea.vmem [#allocation8], %s2523
        %s2525 = sand.u32 %s151, 1
        %s2526 = sand.u32 %s151, 1
        %s2527 = smul.addr %s2526, 16
        %s2528 = scalar_lea.vmem [#allocation9], %s2527
        // Predicated region
        $region117: #{base_lstm_encoder_forward.3} parent=103 // pred_check
          %p2529 = pneg %p133
        $region118: #{base_lstm_encoder_forward.3} parent=103 // pred_check_branch
          %2531 = sbr.rel (%p2529) target = $region120
        $region119: #{base_lstm_encoder_forward.3} parent=103 // pred_region
          %s2532 = smul.addr %s19, 8
          %s2533 = scalar_lea.vmem %s4, %s2532
          // Predicated region
          $region121: #{base_lstm_encoder_forward.3} parent=119 // pred_check
            _
          $region122: #{base_lstm_encoder_forward.3} parent=119 // pred_check_branch
            %2535 = sbr.rel (0) target = $region124
          $region123: #{base_lstm_encoder_forward.3} parent=119 // pred_region
            // Predicated region
            $region125: #{base_lstm_encoder_forward.3} parent=123 // pred_check
              _
            $region126: #{base_lstm_encoder_forward.3} parent=123 // pred_check_branch
              %2537 = sbr.rel (0) target = $region128
            $region127: #{base_lstm_encoder_forward.3} parent=123 // pred_region
              // Predicated region
              $region140: #{base_lstm_encoder_forward.3} parent=127 // pred_check
                _
              $region141: #{base_lstm_encoder_forward.3} parent=127 // pred_check_branch
                %2554 = sbr.rel (0) target = $region143
              $region142: #{base_lstm_encoder_forward.3} parent=127 // pred_region
                loop: start=0, step=1, limit=1
                $region144: #{base_lstm_encoder_forward.3} parent=142 // loop_pre_header
                  _
                $region145: #{base_lstm_encoder_forward.3} parent=142 // loop_header
                  %s2556 = sphi 0, %s2560
                  %p2557 = scmp.ge.s32.totalorder %s2556, 1
                  %s2561 = sphi %s2524, %s2524
                  %s2562 = sphi %s2533, %s2533
                $region146: #{base_lstm_encoder_forward.3} parent=142 // loop_header_branch
                  %2559 = sbr.rel (%p2557) target = $region150
                $region147: #{base_lstm_encoder_forward.3} parent=142 // loop_body
                  %v2563 = vld [vmem:[%s2561] sm:$0xff]
                  %2564 = vst [vmem:[%s2562] sm:$0xff] %v2563
                  %v2565 = vld [vmem:[%s2561 + $0x8] sm:$0xff]
                  %2566 = vst [vmem:[%s2562 + $0x10] sm:$0xff] %v2565
                $region148: #{base_lstm_encoder_forward.3} parent=142 // loop_footer
                  %s2560 = sadd.s32 1, %s2556
                $region149: #{base_lstm_encoder_forward.3} parent=142 // loop_footer_branch
                  %2555 = sbr.rel target = $region145
                $region150: #{base_lstm_encoder_forward.3} parent=142 // loop_exit
                  _
              $region143: #{base_lstm_encoder_forward.3} parent=127 // pred_fallthru
                _
              // Predicated region
              $region151: #{base_lstm_encoder_forward.3} parent=127 // pred_check
                _
              $region152: #{base_lstm_encoder_forward.3} parent=127 // pred_check_branch
                %2568 = sbr.rel target = $region154
              $region153: #{base_lstm_encoder_forward.3} parent=127 // pred_region
                _
              $region154: #{base_lstm_encoder_forward.3} parent=127 // pred_fallthru
                _
            $region128: #{base_lstm_encoder_forward.3} parent=123 // pred_fallthru
              _
            // Predicated region
            $region129: #{base_lstm_encoder_forward.3} parent=123 // pred_check
              _
            $region130: #{base_lstm_encoder_forward.3} parent=123 // pred_check_branch
              %2539 = sbr.rel target = $region132
            $region131: #{base_lstm_encoder_forward.3} parent=123 // pred_region
              loop: start=0, step=1, limit=1
              $region133: #{base_lstm_encoder_forward.3} parent=131 // loop_pre_header
                _
              $region134: #{base_lstm_encoder_forward.3} parent=131 // loop_header
                %s2542 = sphi 0, %s2546
                %p2543 = scmp.ge.s32.totalorder %s2542, 1
                %s2547 = sphi %s2524, %s2524
                %s2548 = sphi %s2533, %s2533
              $region135: #{base_lstm_encoder_forward.3} parent=131 // loop_header_branch
                %2545 = sbr.rel (%p2543) target = $region139
              $region136: #{base_lstm_encoder_forward.3} parent=131 // loop_body
                %v2549 = vld [vmem:[%s2547] sm:$0xff]
                %2550 = vst [vmem:[%s2548] sm:$0xff] %v2549
                %v2551 = vld [vmem:[%s2547 + $0x8] sm:$0xff]
                %2552 = vst [vmem:[%s2548 + $0x10] sm:$0xff] %v2551
              $region137: #{base_lstm_encoder_forward.3} parent=131 // loop_footer
                %s2546 = sadd.s32 1, %s2542
              $region138: #{base_lstm_encoder_forward.3} parent=131 // loop_footer_branch
                %2541 = sbr.rel target = $region134
              $region139: #{base_lstm_encoder_forward.3} parent=131 // loop_exit
                _
            $region132: #{base_lstm_encoder_forward.3} parent=123 // pred_fallthru
              _
          $region124: #{base_lstm_encoder_forward.3} parent=119 // pred_fallthru
            _
          %2569 = vnop
        $region120: #{base_lstm_encoder_forward.3} parent=103 // pred_fallthru
          _
        // Predicated region
        $region155: #{base_lstm_encoder_forward.3} parent=103 // pred_check
          %p2570 = pneg %p161
        $region156: #{base_lstm_encoder_forward.3} parent=103 // pred_check_branch
          %2572 = sbr.rel (%p2570) target = $region158
        $region157: #{base_lstm_encoder_forward.3} parent=103 // pred_region
          %s2573 = ssub.s32 1, %s19
          %s2574 = smul.addr %s2573, 8
          %s2575 = scalar_lea.vmem %s5, %s2574
          // Predicated region
          $region159: #{base_lstm_encoder_forward.3} parent=157 // pred_check
            _
          $region160: #{base_lstm_encoder_forward.3} parent=157 // pred_check_branch
            %2577 = sbr.rel (0) target = $region162
          $region161: #{base_lstm_encoder_forward.3} parent=157 // pred_region
            // Predicated region
            $region163: #{base_lstm_encoder_forward.3} parent=161 // pred_check
              _
            $region164: #{base_lstm_encoder_forward.3} parent=161 // pred_check_branch
              %2579 = sbr.rel (0) target = $region166
            $region165: #{base_lstm_encoder_forward.3} parent=161 // pred_region
              // Predicated region
              $region178: #{base_lstm_encoder_forward.3} parent=165 // pred_check
                _
              $region179: #{base_lstm_encoder_forward.3} parent=165 // pred_check_branch
                %2596 = sbr.rel (0) target = $region181
              $region180: #{base_lstm_encoder_forward.3} parent=165 // pred_region
                loop: start=0, step=1, limit=1
                $region182: #{base_lstm_encoder_forward.3} parent=180 // loop_pre_header
                  _
                $region183: #{base_lstm_encoder_forward.3} parent=180 // loop_header
                  %s2598 = sphi 0, %s2602
                  %p2599 = scmp.ge.s32.totalorder %s2598, 1
                  %s2603 = sphi %s2528, %s2528
                  %s2604 = sphi %s2575, %s2575
                $region184: #{base_lstm_encoder_forward.3} parent=180 // loop_header_branch
                  %2601 = sbr.rel (%p2599) target = $region188
                $region185: #{base_lstm_encoder_forward.3} parent=180 // loop_body
                  %v2605 = vld [vmem:[%s2603] sm:$0xff]
                  %2606 = vst [vmem:[%s2604] sm:$0xff] %v2605
                  %v2607 = vld [vmem:[%s2603 + $0x8] sm:$0xff]
                  %2608 = vst [vmem:[%s2604 + $0x10] sm:$0xff] %v2607
                $region186: #{base_lstm_encoder_forward.3} parent=180 // loop_footer
                  %s2602 = sadd.s32 1, %s2598
                $region187: #{base_lstm_encoder_forward.3} parent=180 // loop_footer_branch
                  %2597 = sbr.rel target = $region183
                $region188: #{base_lstm_encoder_forward.3} parent=180 // loop_exit
                  _
              $region181: #{base_lstm_encoder_forward.3} parent=165 // pred_fallthru
                _
              // Predicated region
              $region189: #{base_lstm_encoder_forward.3} parent=165 // pred_check
                _
              $region190: #{base_lstm_encoder_forward.3} parent=165 // pred_check_branch
                %2610 = sbr.rel target = $region192
              $region191: #{base_lstm_encoder_forward.3} parent=165 // pred_region
                _
              $region192: #{base_lstm_encoder_forward.3} parent=165 // pred_fallthru
                _
            $region166: #{base_lstm_encoder_forward.3} parent=161 // pred_fallthru
              _
            // Predicated region
            $region167: #{base_lstm_encoder_forward.3} parent=161 // pred_check
              _
            $region168: #{base_lstm_encoder_forward.3} parent=161 // pred_check_branch
              %2581 = sbr.rel target = $region170
            $region169: #{base_lstm_encoder_forward.3} parent=161 // pred_region
              loop: start=0, step=1, limit=1
              $region171: #{base_lstm_encoder_forward.3} parent=169 // loop_pre_header
                _
              $region172: #{base_lstm_encoder_forward.3} parent=169 // loop_header
                %s2584 = sphi 0, %s2588
                %p2585 = scmp.ge.s32.totalorder %s2584, 1
                %s2589 = sphi %s2528, %s2528
                %s2590 = sphi %s2575, %s2575
              $region173: #{base_lstm_encoder_forward.3} parent=169 // loop_header_branch
                %2587 = sbr.rel (%p2585) target = $region177
              $region174: #{base_lstm_encoder_forward.3} parent=169 // loop_body
                %v2591 = vld [vmem:[%s2589] sm:$0xff]
                %2592 = vst [vmem:[%s2590] sm:$0xff] %v2591
                %v2593 = vld [vmem:[%s2589 + $0x8] sm:$0xff]
                %2594 = vst [vmem:[%s2590 + $0x10] sm:$0xff] %v2593
              $region175: #{base_lstm_encoder_forward.3} parent=169 // loop_footer
                %s2588 = sadd.s32 1, %s2584
              $region176: #{base_lstm_encoder_forward.3} parent=169 // loop_footer_branch
                %2583 = sbr.rel target = $region172
              $region177: #{base_lstm_encoder_forward.3} parent=169 // loop_exit
                _
            $region170: #{base_lstm_encoder_forward.3} parent=161 // pred_fallthru
              _
          $region162: #{base_lstm_encoder_forward.3} parent=157 // pred_fallthru
            _
          %2611 = vnop
        $region158: #{base_lstm_encoder_forward.3} parent=103 // pred_fallthru
          _
        // Predicated region
        $region193: #{base_lstm_encoder_forward.3} parent=103 // pred_check
          %p2612 = pneg %p182
        $region194: #{base_lstm_encoder_forward.3} parent=103 // pred_check_branch
          %2614 = sbr.rel (%p2612) target = $region196
        $region195: #{base_lstm_encoder_forward.3} parent=103 // pred_region
          _
        $region196: #{base_lstm_encoder_forward.3} parent=103 // pred_fallthru
          _
        // Predicated region
        $region197: #{base_lstm_encoder_forward.3} parent=103 // pred_check
          %p2615 = pneg %p203
        $region198: #{base_lstm_encoder_forward.3} parent=103 // pred_check_branch
          %2617 = sbr.rel (%p2615) target = $region200
        $region199: #{base_lstm_encoder_forward.3} parent=103 // pred_region
          _
        $region200: #{base_lstm_encoder_forward.3} parent=103 // pred_fallthru
          _
        // Predicated region
        $region201: #{base_lstm_encoder_forward.3} parent=103 // pred_check
          %p2618 = pneg %p182
        $region202: #{base_lstm_encoder_forward.3} parent=103 // pred_check_branch
          %2620 = sbr.rel (%p2618) target = $region204
        $region203: #{base_lstm_encoder_forward.3} parent=103 // pred_region
          _
        $region204: #{base_lstm_encoder_forward.3} parent=103 // pred_fallthru
          _
        // Predicated region
        $region205: #{base_lstm_encoder_forward.3} parent=103 // pred_check
          %p2621 = pneg %p203
        $region206: #{base_lstm_encoder_forward.3} parent=103 // pred_check_branch
          %2623 = sbr.rel (%p2621) target = $region208
        $region207: #{base_lstm_encoder_forward.3} parent=103 // pred_region
          _
        $region208: #{base_lstm_encoder_forward.3} parent=103 // pred_fallthru
          _
      $region104: #{base_lstm_encoder_forward.3} parent=5 // pred_fallthru
        _
      %p2624 = scmp.le.s32.totalorder 2, %s14
      // Predicated region
      $region209: #{base_lstm_encoder_forward.3} parent=5 // pred_check
        %p2625 = pneg %p2624
      $region210: #{base_lstm_encoder_forward.3} parent=5 // pred_check_branch
        %2627 = sbr.rel (%p2625) target = $region212
      $region211: #{base_lstm_encoder_forward.3} parent=5 // pred_region
        %s2628 = ssub.s32 %s14, 2
        // Predicated region
        $region213: #{base_lstm_encoder_forward.3} parent=211 // pred_check
          %p2629 = pneg %p139
        $region214: #{base_lstm_encoder_forward.3} parent=211 // pred_check_branch
          %2631 = sbr.rel (%p2629) target = $region216
        $region215: #{base_lstm_encoder_forward.3} parent=211 // pred_region
          %s2632 = sand.u32 %s124, 1
          %s2633 = sand.u32 %s124, 1
          %s2634 = smul.addr %s2633, 16
          %s2635 = scalar_lea.vmem [#allocation8], %s2634
        $region216: #{base_lstm_encoder_forward.3} parent=211 // pred_fallthru
          _
        // Predicated region
        $region217: #{base_lstm_encoder_forward.3} parent=211 // pred_check
          %p2636 = pneg %p167
        $region218: #{base_lstm_encoder_forward.3} parent=211 // pred_check_branch
          %2638 = sbr.rel (%p2636) target = $region220
        $region219: #{base_lstm_encoder_forward.3} parent=211 // pred_region
          %s2639 = sand.u32 %s152, 1
          %s2640 = sand.u32 %s152, 1
          %s2641 = smul.addr %s2640, 16
          %s2642 = scalar_lea.vmem [#allocation9], %s2641
        $region220: #{base_lstm_encoder_forward.3} parent=211 // pred_fallthru
          _
      $region212: #{base_lstm_encoder_forward.3} parent=5 // pred_fallthru
        _
    $region6: #{base_lstm_encoder_forward.3} parent=1 // loop_footer
      %s18 = sadd.s32 1, %s14
    $region7: #{base_lstm_encoder_forward.3} parent=1 // loop_footer_branch
      %13 = sbr.rel target = $region3
    $region8: #{base_lstm_encoder_forward.3} parent=1 // loop_exit
      _

</llo_original>
